<compile_context>
chip_gen: v7x
topology: tpu7x:2x2x1
jax: 0.10.0
libtpu: 0.0.40
codegen_flags: <defaults>
</compile_context>

<pallas_src>
import functools

import jax
import jax.numpy as jnp
from jax.experimental import pallas as pl
from jax.experimental.pallas import tpu as pltpu

LANE = 128     # TPU lane width: keep channel (last) dims multiples of this
SUBLANE = 8


def _rup(x, m):
    return (x + m - 1) // m * m


def _device_kind():
    try:
        return jax.devices()[0].device_kind.lower()
    except Exception:
        return ""


_KIND = _device_kind()
_BIG_VMEM = ("v5" in _KIND) or ("v6" in _KIND)          # 128 MiB VMEM chips
_DEFAULT_TM_MAX = 1024 if _BIG_VMEM else 512            # conservative on v7x
_VMEM_CAP = (100 << 20) if _BIG_VMEM else (48 << 20)    # leave v7x headroom


def _choose_tm(m, tm_max):
    """Big row tiles (amortize ~0.35us/step) but >=2 blocks so both TCs work."""
    tm = min(tm_max, _rup(max(m // 2, SUBLANE), SUBLANE))
    return max(SUBLANE, tm)


def _compiler_params(est_bytes, semantics):
    limit = int(min(_VMEM_CAP, max(16 << 20, 4 * est_bytes)))
    return pltpu.CompilerParams(dimension_semantics=semantics,
                                vmem_limit_bytes=limit)


def _silu(y):
    # f32 SiLU.  (pl.reciprocal(..., approx=True) would move the divide to the
    # EUP on HW; kept as a plain divide for maximum lowering portability.)
    return y * (1.0 / (1.0 + jnp.exp(-y)))


# ----------------------- fused 1x1 conv (+chunk / +concat) -------------------

def _make_pointwise_kernel(n_in, n_out, cp_out):
    """out = silu( concat_lanes(x_0..x_{n_in-1}) @ W + b ), split into n_out."""

    def kernel(*refs):
        x_refs = refs[:n_in]
        w_ref = refs[n_in]            # (sum_j Kp_j, n_out*cp_out) bf16
        b_ref = refs[n_in + 1]        # (1, n_out*cp_out) f32
        o_refs = refs[n_in + 2:]
        xs = [x_refs[j][...] for j in range(n_in)]          # hoisted loads
        x_all = xs[0] if n_in == 1 else jnp.concatenate(xs, axis=-1)
        y = jnp.dot(x_all, w_ref[...],
                    preferred_element_type=jnp.float32) + b_ref[...]
        out = _silu(y)
        for k in range(n_out):        # static lane slices (multiples of 128)
            o_refs[k][...] = out[:, k * cp_out:(k + 1) * cp_out].astype(
                o_refs[k].dtype)

    return kernel


def fused_pointwise_conv(xs, w, b, *, n_out, cp_out, out_dtype=jnp.bfloat16,
                         tm_max=None):
    """Fused 1x1 conv + BN bias + SiLU.

    xs: list of (M, Kp_j) bf16 activations (lane-dense).  Multi-input == fused
    concat; multi-output == fused channel chunk.  w: (sum Kp_j, n_out*cp_out)
    bf16 with BN scale pre-folded.  b: (1, n_out*cp_out) f32.
    """
    n_in = len(xs)
    m = xs[0].shape[0]
    k_total = sum(int(x.shape[1]) for x in xs)
    assert w.shape == (k_total, n_out * cp_out), (w.shape, k_total)
    tm = _choose_tm(m, tm_max or _DEFAULT_TM_MAX)
    n_blk = pl.cdiv(m, tm)
    out_isz = jnp.dtype(out_dtype).itemsize
    ntot = n_out * cp_out

    in_specs = ([pl.BlockSpec((tm, int(x.shape[1])), lambda i: (i, 0))
                 for x in xs]
                + [pl.BlockSpec(w.shape, lambda i: (0, 0)),
                   pl.BlockSpec(b.shape, lambda i: (0, 0))])
    out_specs = tuple(pl.BlockSpec((tm, cp_out), lambda i: (i, 0))
                      for _ in range(n_out))
    out_shape = tuple(jax.ShapeDtypeStruct((m, cp_out), out_dtype)
                      for _ in range(n_out))

    est = (2 * tm * k_total * 2 + w.size * 2 + b.size * 4
           + 2 * tm * ntot * out_isz + tm * ntot * 4)
    cost = pl.CostEstimate(
        flops=2 * m * k_total * ntot,
        transcendentals=m * ntot,
        bytes_accessed=(2 * m * k_total + w.size * 2 + b.size * 4
                        + m * ntot * out_isz))

    outs = pl.pallas_call(
        _make_pointwise_kernel(n_in, n_out, cp_out),
        out_shape=out_shape,
        grid=(n_blk,),
        in_specs=in_specs,
        out_specs=out_specs,
        compiler_params=_compiler_params(est, ("parallel",)),
        cost_estimate=cost,
    )(*xs, w, b)
    return list(outs)


# --------------- fused bottleneck: two 3x3 Conv+BN+SiLU in one kernel ---------

def _make_bottleneck_kernel(H, W, Cp, shortcut):
    HW = H * W

    def kernel(x_ref, w1_ref, b1_ref, w2_ref, b2_ref, o_ref, scr):
        # scr: (H+2, W, Cp) shared staging buffer with zero row-halo.  It holds
        # the conv1 input first, then is overwritten with the conv1 activation
        # so conv2 never round-trips through HBM.
        zrow = jnp.zeros((1, W, Cp), jnp.bfloat16)
        scr[0:1] = zrow
        scr[H + 1:H + 2] = zrow
        scr[1:H + 1] = x_ref[0]

        zcol = jnp.zeros((H, 1, Cp), jnp.bfloat16)

        def conv3x3(w_ref, b_ref):
            """3x3 'same' conv as 3 matmuls with K=3*Cp (taps packed on lanes)."""
            acc = jnp.zeros((HW, Cp), jnp.float32)
            for kh in range(3):
                rows = scr[kh:kh + H]                               # (H, W, Cp)
                left = jnp.concatenate([zcol, rows[:, :W - 1, :]], axis=1)
                right = jnp.concatenate([rows[:, 1:, :], zcol], axis=1)
                taps = jnp.concatenate([left, rows, right], axis=-1)  # (H,W,3Cp)
                acc = acc + jnp.dot(taps.reshape(HW, 3 * Cp), w_ref[kh],
                                    preferred_element_type=jnp.float32)
            return _silu(acc + b_ref[...])

        # ---- conv1 (3x3) + folded-BN bias + SiLU ----
        h = conv3x3(w1_ref, b1_ref)                                  # (HW, Cp)
        scr[1:H + 1] = h.reshape(H, W, Cp).astype(jnp.bfloat16)

        # ---- conv2 (3x3) + folded-BN bias + SiLU ----
        y2 = conv3x3(w2_ref, b2_ref)
        if shortcut:   # C2f_LMSA default is shortcut=False
            y2 = y2 + x_ref[0].reshape(HW, Cp).astype(jnp.float32)
        o_ref[0] = y2.reshape(H, W, Cp).astype(o_ref.dtype)

    return kernel


def fused_bottleneck3x3(x_pc, w1p, b1p, w2p, b2p, *, shortcut=False):
    """One Bottleneck_LMSA block, both 3x3 Conv+BN+SiLU fused into ONE kernel.

    x_pc: (N, H, W, Cp) bf16 channels-last, channel-padded to the lane width.
    w*p:  (3, 3*Cp, Cp) bf16 weights (kh, kw*Cp+cin, cout) with BN scale folded.
    b*p:  (1, Cp) f32 folded-BN bias.
    # TODO(synk): the LMSA module source is not provided; substituting the base
    # YOLO Bottleneck conv (3x3 Conv + BN + SiLU) for each LMSA layer.
    """
    N, H, W, Cp = x_pc.shape

    est = (2 * H * W * Cp * 2 * 2            # double-buffered input + output
           + 2 * 3 * 3 * Cp * Cp * 2         # both weight stacks
           + (H + 2) * W * Cp * 2            # staging scratch
           + 3 * H * W * Cp * 4)             # live f32 accumulators / taps
    cost = pl.CostEstimate(
        flops=2 * 2 * 9 * N * H * W * Cp * Cp,
        transcendentals=2 * N * H * W * Cp,
        bytes_accessed=(2 * N * H * W * Cp * 2 + 2 * 3 * 3 * Cp * Cp * 2))

    return pl.pallas_call(
        _make_bottleneck_kernel(H, W, Cp, shortcut),
        out_shape=jax.ShapeDtypeStruct((N, H, W, Cp), jnp.bfloat16),
        grid=(N,),
        in_specs=[
            pl.BlockSpec((1, H, W, Cp), lambda i: (i, 0, 0, 0)),
            pl.BlockSpec((3, 3 * Cp, Cp), lambda i: (0, 0, 0)),
            pl.BlockSpec((1, Cp), lambda i: (0, 0)),
            pl.BlockSpec((3, 3 * Cp, Cp), lambda i: (0, 0, 0)),
            pl.BlockSpec((1, Cp), lambda i: (0, 0)),
        ],
        out_specs=pl.BlockSpec((1, H, W, Cp), lambda i: (i, 0, 0, 0)),
        scratch_shapes=[pltpu.VMEM((H + 2, W, Cp), jnp.bfloat16)],
        compiler_params=_compiler_params(est, ("parallel",)),
        cost_estimate=cost,
    )(x_pc, w1p, b1p, w2p, b2p)


# ------------------------------ parameter init --------------------------------

def _make_bn(key, ch, eps=1e-5):
    """Deterministic BatchNorm params folded to (scale, bias) for inference."""
    k1, k2, k3, k4 = jax.random.split(key, 4)
    gamma = 1.0 + 0.1 * jax.random.normal(k1, (ch,), jnp.float32)
    beta = 0.1 * jax.random.normal(k2, (ch,), jnp.float32)
    mean = 0.1 * jax.random.normal(k3, (ch,), jnp.float32)
    var = jnp.abs(jax.random.normal(k4, (ch,), jnp.float32)) + 0.5
    scale = gamma / jnp.sqrt(var + eps)
    bias = beta - mean * scale
    return scale, bias


def init_c2f_lmsa_params(key, c1, c2, n=1, e=0.5):
    """Raw params.  1x1 weights are (cin, cout); 3x3 are (kh, kw, cin, cout).
    (PyTorch Conv2d stores (cout, cin, kh, kw); transpose when porting ckpts.)"""
    c = int(c2 * e)
    keys = jax.random.split(key, 4 + n)
    params = {}
    params["cv1_w"] = 0.1 * jax.random.normal(keys[0], (c1, 2 * c), jnp.float32)
    params["cv1_bn"] = _make_bn(keys[1], 2 * c)
    blocks = []
    for i in range(n):
        kk = jax.random.split(keys[2 + i], 4)
        w1 = 0.1 * jax.random.normal(kk[0], (3, 3, c, c), jnp.float32)
        bn1 = _make_bn(kk[1], c)
        w2 = 0.1 * jax.random.normal(kk[2], (3, 3, c, c), jnp.float32)
        bn2 = _make_bn(kk[3], c)
        blocks.append((w1, bn1, w2, bn2))
    params["m"] = blocks
    params["cv2_w"] = 0.1 * jax.random.normal(keys[2 + n], ((2 + n) * c, c2),
                                              jnp.float32)
    params["cv2_bn"] = _make_bn(keys[3 + n], c2)
    return params


def _prep_conv3x3(w, bn, c, cp):
    scale, bias = bn
    wf = w * scale[None, None, None, :]                       # fold BN scale
    wp = jnp.zeros((3, 3, cp, cp), jnp.float32).at[:, :, :c, :c].set(wf)
    wp = wp.reshape(3, 3 * cp, cp).astype(jnp.bfloat16)       # (kh, kw*Cp+cin, cout)
    bp = jnp.zeros((1, cp), jnp.float32).at[0, :c].set(bias)
    return wp, bp


def prepare_c2f_params(params, *, c1, c2, n, e=0.5):
    """Fold BN, pad channels to lane width, cast to bf16 — ONCE, outside jit."""
    c = int(c2 * e)
    cp = _rup(c, LANE)
    kp = _rup(c1, LANE)
    c2p = _rup(c2, LANE)

    # cv1: 1x1 conv c1 -> 2c, chunk(2) packed side by side on the N axis.
    s1, b1 = params["cv1_bn"]
    w1f = params["cv1_w"] * s1[None, :]
    cv1_w = jnp.zeros((kp, 2 * cp), jnp.float32)
    cv1_b = jnp.zeros((1, 2 * cp), jnp.float32)
    for j in range(2):
        cv1_w = cv1_w.at[:c1, j * cp:j * cp + c].set(w1f[:, j * c:(j + 1) * c])
        cv1_b = cv1_b.at[0, j * cp:j * cp + c].set(b1[j * c:(j + 1) * c])
    cv1_w = cv1_w.astype(jnp.bfloat16)

    blocks = [(_prep_conv3x3(w1, bn1, c, cp), _prep_conv3x3(w2, bn2, c, cp))
              for (w1, bn1, w2, bn2) in params["m"]]

    # cv2: 1x1 conv over the concat, inputs packed along the K axis.
    s_count = 2 + n
    s2, b2v = params["cv2_bn"]
    w2f = params["cv2_w"] * s2[None, :]
    cv2_w = jnp.zeros((s_count * cp, c2p), jnp.float32)
    for j in range(s_count):
        cv2_w = cv2_w.at[j * cp:j * cp + c, :c2].set(w2f[j * c:(j + 1) * c, :])
    cv2_w = cv2_w.astype(jnp.bfloat16)
    cv2_b = jnp.zeros((1, c2p), jnp.float32).at[0, :c2].set(b2v)

    return {"cv1_w": cv1_w, "cv1_b": cv1_b, "m": blocks,
            "cv2_w": cv2_w, "cv2_b": cv2_b}


# -------------------------------- forward pass --------------------------------

def c2f_lmsa_forward(prep, x_nchw, *, c, c2, shortcut=False):
    """C2f_LMSA.forward: cv1 -> chunk(2) -> n bottlenecks -> cat -> cv2."""
    x = jnp.transpose(x_nchw, (0, 2, 3, 1))            # NCHW -> NHWC
    N, H, W, Cin = x.shape
    M = N * H * W
    Cp = _rup(c, LANE)
    Kp = _rup(Cin, LANE)
    C2p = _rup(c2, LANE)

    # ---- cv1 (1x1 conv c1 -> 2c), chunk(2) fused into the kernel ----
    x2d = x.reshape(M, Cin)
    if Kp != Cin:
        x2d = jnp.pad(x2d, ((0, 0), (0, Kp - Cin)))
    x2d = x2d.astype(jnp.bfloat16)
    y0, y1 = fused_pointwise_conv([x2d], prep["cv1_w"], prep["cv1_b"],
                                  n_out=2, cp_out=Cp, out_dtype=jnp.bfloat16)

    ys = [y0, y1]                                       # (M, Cp) bf16, padded
    y_img = y1.reshape(N, H, W, Cp)
    for (w1p, b1p), (w2p, b2p) in prep["m"]:
        y_img = fused_bottleneck3x3(y_img, w1p, b1p, w2p, b2p,
                                    shortcut=shortcut)
        ys.append(y_img.reshape(M, Cp))

    # ---- cv2 (1x1 conv over the concat), concat fused into one K=S*Cp matmul ----
    (out2d,) = fused_pointwise_conv(ys, prep["cv2_w"], prep["cv2_b"],
                                    n_out=1, cp_out=C2p, out_dtype=jnp.float32)
    out = out2d[:, :c2].reshape(N, H, W, c2)
    return jnp.transpose(out, (0, 3, 1, 2)).astype(x_nchw.dtype)


# ------------------------------------ main -------------------------------------

if __name__ == "__main__":
    key = jax.random.PRNGKey(0)
    k_x, k_p = jax.random.split(key)

    # C2f_LMSA(c1=4, c2=8, n=1, shortcut=False, e=0.5) -> self.c = 4
    c1, c2, n, e = 4, 8, 1, 0.5
    c = int(c2 * e)
    x = jax.random.normal(k_x, (2, c1, 16, 16), jnp.float32)    # NCHW
    raw_params = init_c2f_lmsa_params(k_p, c1, c2, n=n, e=e)
    prep = prepare_c2f_params(raw_params, c1=c1, c2=c2, n=n, e=e)  # once, eager
    prep = jax.block_until_ready(prep)

    fwd = jax.jit(functools.partial(c2f_lmsa_forward, c=c, c2=c2,
                                    shortcut=False))
    out = fwd(prep, x)
    out = jax.block_until_ready(out)

    assert out.shape == (2, c2, 16, 16), out.shape
    assert bool(jnp.all(jnp.isfinite(out)))
    print("KERNEL_OK")
</pallas_src>

<mosaic_0001>
module attributes {stable_mosaic.version = 11 : i64} {
  func.func @kernel(%arg0: i32, %arg1: memref<256x128xbf16, #tpu.memory_space<vmem>>, %arg2: memref<128x256xbf16, #tpu.memory_space<vmem>>, %arg3: memref<1x256xf32, #tpu.memory_space<vmem>>, %arg4: memref<256x128xbf16, #tpu.memory_space<vmem>>, %arg5: memref<256x128xbf16, #tpu.memory_space<vmem>>) attributes {dimension_semantics = [#tpu.dimension_semantics<parallel>], iteration_bounds = array<i64: 2>, scalar_prefetch = 0 : i64, scratch_operands = 0 : i64, tpu.core_type = #tpu.core_type<tc>, window_params = [{transform_indices = @transform_0, window_bounds = array<i64: 256, 128>}, {pipeline_mode = #tpu.pipeline_mode<synchronous>, transform_indices = @transform_1, window_bounds = array<i64: 128, 256>}, {pipeline_mode = #tpu.pipeline_mode<synchronous>, transform_indices = @transform_2, window_bounds = array<i64: 1, 256>}, {transform_indices = @transform_3, window_bounds = array<i64: 256, 128>}, {transform_indices = @transform_4, window_bounds = array<i64: 256, 128>}]} {
    %c0 = arith.constant 0 : index
    %c0_0 = arith.constant 0 : index
    %0 = vector.load %arg1[%c0, %c0_0] : memref<256x128xbf16, #tpu.memory_space<vmem>>, vector<256x128xbf16>
    %c0_1 = arith.constant 0 : index
    %c0_2 = arith.constant 0 : index
    %1 = vector.load %arg2[%c0_1, %c0_2] : memref<128x256xbf16, #tpu.memory_space<vmem>>, vector<128x256xbf16>
    %cst = arith.constant dense<0.000000e+00> : vector<256x256xf32>
    %2 = tpu.matmul %0, %1, %cst {dimension_numbers = #tpu.dot_dimension_numbers<[1], [0], [0], [1], [0, 0, 1, 1], [], []>} : vector<256x128xbf16>, vector<128x256xbf16>, vector<256x256xf32> -> vector<256x256xf32>
    %c0_3 = arith.constant 0 : index
    %c0_4 = arith.constant 0 : index
    %3 = vector.load %arg3[%c0_3, %c0_4] : memref<1x256xf32, #tpu.memory_space<vmem>>, vector<1x256xf32>
    %4 = vector.broadcast %3 : vector<1x256xf32> to vector<256x256xf32>
    %5 = arith.addf %2, %4 : vector<256x256xf32>
    %cst_5 = arith.constant 0.000000e+00 : f32
    %6 = vector.broadcast %cst_5 : f32 to vector<256x256xf32>
    %7 = arith.subf %6, %5 : vector<256x256xf32>
    %8 = math.exp %7 : vector<256x256xf32>
    %cst_6 = arith.constant 1.000000e+00 : f32
    %9 = vector.broadcast %cst_6 : f32 to vector<256x256xf32>
    %10 = arith.addf %9, %8 : vector<256x256xf32>
    %cst_7 = arith.constant 1.000000e+00 : f32
    %11 = vector.broadcast %cst_7 : f32 to vector<256x256xf32>
    %12 = arith.divf %11, %10 : vector<256x256xf32>
    %13 = arith.mulf %5, %12 : vector<256x256xf32>
    %14 = vector.extract_strided_slice %13 {offsets = [0, 0], sizes = [256, 128], strides = [1, 1]} : vector<256x256xf32> to vector<256x128xf32>
    %15 = arith.truncf %14 : vector<256x128xf32> to vector<256x128xbf16>
    %c0_8 = arith.constant 0 : index
    %c0_9 = arith.constant 0 : index
    %16 = vector.load %arg4[%c0_8, %c0_9] : memref<256x128xbf16, #tpu.memory_space<vmem>>, vector<256x128xbf16>
    tpu.vector_store %arg4[%c0_8, %c0_9], %15 {strides = array<i32>} : memref<256x128xbf16, #tpu.memory_space<vmem>>, vector<256x128xbf16>,
    %17 = vector.extract_strided_slice %13 {offsets = [0, 128], sizes = [256, 128], strides = [1, 1]} : vector<256x256xf32> to vector<256x128xf32>
    %18 = arith.truncf %17 : vector<256x128xf32> to vector<256x128xbf16>
    %c0_10 = arith.constant 0 : index
    %c0_11 = arith.constant 0 : index
    %19 = vector.load %arg5[%c0_10, %c0_11] : memref<256x128xbf16, #tpu.memory_space<vmem>>, vector<256x128xbf16>
    tpu.vector_store %arg5[%c0_10, %c0_11], %18 {strides = array<i32>} : memref<256x128xbf16, #tpu.memory_space<vmem>>, vector<256x128xbf16>,
    return
  }
  func.func @transform_0(%arg0: i32) -> (i32, i32) {
    %c0_i32 = arith.constant 0 : i32
    %c0_i32_0 = arith.constant 0 : i32
    return %arg0, %c0_i32 : i32, i32
  }
  func.func @transform_1(%arg0: i32) -> (i32, i32) {
    %c0_i32 = arith.constant 0 : i32
    %c0_i32_0 = arith.constant 0 : i32
    %c0_i32_1 = arith.constant 0 : i32
    return %c0_i32, %c0_i32_0 : i32, i32
  }
  func.func @transform_2(%arg0: i32) -> (i32, i32) {
    %c0_i32 = arith.constant 0 : i32
    %c0_i32_0 = arith.constant 0 : i32
    %c0_i32_1 = arith.constant 0 : i32
    return %c0_i32, %c0_i32_0 : i32, i32
  }
  func.func @transform_3(%arg0: i32) -> (i32, i32) {
    %c0_i32 = arith.constant 0 : i32
    %c0_i32_0 = arith.constant 0 : i32
    return %arg0, %c0_i32 : i32, i32
  }
  func.func @transform_4(%arg0: i32) -> (i32, i32) {
    %c0_i32 = arith.constant 0 : i32
    %c0_i32_0 = arith.constant 0 : i32
    return %arg0, %c0_i32 : i32, i32
  }
}

module attributes {stable_mosaic.version = 11 : i64} {
  func.func @kernel(%arg0: i32, %arg1: memref<256x128xbf16, #tpu.memory_space<vmem>>, %arg2: memref<256x128xbf16, #tpu.memory_space<vmem>>, %arg3: memref<256x128xbf16, #tpu.memory_space<vmem>>, %arg4: memref<384x128xbf16, #tpu.memory_space<vmem>>, %arg5: memref<1x128xf32, #tpu.memory_space<vmem>>, %arg6: memref<256x128xf32, #tpu.memory_space<vmem>>) attributes {dimension_semantics = [#tpu.dimension_semantics<parallel>], iteration_bounds = array<i64: 2>, scalar_prefetch = 0 : i64, scratch_operands = 0 : i64, tpu.core_type = #tpu.core_type<tc>, window_params = [{transform_indices = @transform_0, window_bounds = array<i64: 256, 128>}, {transform_indices = @transform_1, window_bounds = array<i64: 256, 128>}, {transform_indices = @transform_2, window_bounds = array<i64: 256, 128>}, {pipeline_mode = #tpu.pipeline_mode<synchronous>, transform_indices = @transform_3, window_bounds = array<i64: 384, 128>}, {pipeline_mode = #tpu.pipeline_mode<synchronous>, transform_indices = @transform_4, window_bounds = array<i64: 1, 128>}, {transform_indices = @transform_5, window_bounds = array<i64: 256, 128>}]} {
    %c0 = arith.constant 0 : index
    %c0_0 = arith.constant 0 : index
    %0 = vector.load %arg1[%c0, %c0_0] : memref<256x128xbf16, #tpu.memory_space<vmem>>, vector<256x128xbf16>
    %c0_1 = arith.constant 0 : index
    %c0_2 = arith.constant 0 : index
    %1 = vector.load %arg2[%c0_1, %c0_2] : memref<256x128xbf16, #tpu.memory_space<vmem>>, vector<256x128xbf16>
    %c0_3 = arith.constant 0 : index
    %c0_4 = arith.constant 0 : index
    %2 = vector.load %arg3[%c0_3, %c0_4] : memref<256x128xbf16, #tpu.memory_space<vmem>>, vector<256x128xbf16>
    %3 = tpu.concatenate %0, %1, %2 in 1 : vector<256x128xbf16>, vector<256x128xbf16>, vector<256x128xbf16> -> vector<256x384xbf16>
    %c0_5 = arith.constant 0 : index
    %c0_6 = arith.constant 0 : index
    %4 = vector.load %arg4[%c0_5, %c0_6] : memref<384x128xbf16, #tpu.memory_space<vmem>>, vector<384x128xbf16>
    %cst = arith.constant dense<0.000000e+00> : vector<256x128xf32>
    %5 = tpu.matmul %3, %4, %cst {dimension_numbers = #tpu.dot_dimension_numbers<[1], [0], [0], [1], [0, 0, 1, 1], [], []>} : vector<256x384xbf16>, vector<384x128xbf16>, vector<256x128xf32> -> vector<256x128xf32>
    %c0_7 = arith.constant 0 : index
    %c0_8 = arith.constant 0 : index
    %6 = vector.load %arg5[%c0_7, %c0_8] : memref<1x128xf32, #tpu.memory_space<vmem>>, vector<1x128xf32>
    %7 = vector.broadcast %6 : vector<1x128xf32> to vector<256x128xf32>
    %8 = arith.addf %5, %7 : vector<256x128xf32>
    %cst_9 = arith.constant 0.000000e+00 : f32
    %9 = vector.broadcast %cst_9 : f32 to vector<256x128xf32>
    %10 = arith.subf %9, %8 : vector<256x128xf32>
    %11 = math.exp %10 : vector<256x128xf32>
    %cst_10 = arith.constant 1.000000e+00 : f32
    %12 = vector.broadcast %cst_10 : f32 to vector<256x128xf32>
    %13 = arith.addf %12, %11 : vector<256x128xf32>
    %cst_11 = arith.constant 1.000000e+00 : f32
    %14 = vector.broadcast %cst_11 : f32 to vector<256x128xf32>
    %15 = arith.divf %14, %13 : vector<256x128xf32>
    %16 = arith.mulf %8, %15 : vector<256x128xf32>
    %c0_12 = arith.constant 0 : index
    %c0_13 = arith.constant 0 : index
    %17 = vector.load %arg6[%c0_12, %c0_13] : memref<256x128xf32, #tpu.memory_space<vmem>>, vector<256x128xf32>
    tpu.vector_store %arg6[%c0_12, %c0_13], %16 {strides = array<i32>} : memref<256x128xf32, #tpu.memory_space<vmem>>, vector<256x128xf32>,
    return
  }
  func.func @transform_0(%arg0: i32) -> (i32, i32) {
    %c0_i32 = arith.constant 0 : i32
    %c0_i32_0 = arith.constant 0 : i32
    return %arg0, %c0_i32 : i32, i32
  }
  func.func @transform_1(%arg0: i32) -> (i32, i32) {
    %c0_i32 = arith.constant 0 : i32
    %c0_i32_0 = arith.constant 0 : i32
    return %arg0, %c0_i32 : i32, i32
  }
  func.func @transform_2(%arg0: i32) -> (i32, i32) {
    %c0_i32 = arith.constant 0 : i32
    %c0_i32_0 = arith.constant 0 : i32
    return %arg0, %c0_i32 : i32, i32
  }
  func.func @transform_3(%arg0: i32) -> (i32, i32) {
    %c0_i32 = arith.constant 0 : i32
    %c0_i32_0 = arith.constant 0 : i32
    %c0_i32_1 = arith.constant 0 : i32
    return %c0_i32, %c0_i32_0 : i32, i32
  }
  func.func @transform_4(%arg0: i32) -> (i32, i32) {
    %c0_i32 = arith.constant 0 : i32
    %c0_i32_0 = arith.constant 0 : i32
    %c0_i32_1 = arith.constant 0 : i32
    return %c0_i32, %c0_i32_0 : i32, i32
  }
  func.func @transform_5(%arg0: i32) -> (i32, i32) {
    %c0_i32 = arith.constant 0 : i32
    %c0_i32_0 = arith.constant 0 : i32
    return %arg0, %c0_i32 : i32, i32
  }
}

module attributes {stable_mosaic.version = 11 : i64} {
  func.func @kernel(%arg0: i32, %arg1: memref<1x16x16x128xbf16, #tpu.memory_space<vmem>>, %arg2: memref<3x384x128xbf16, #tpu.memory_space<vmem>>, %arg3: memref<1x128xf32, #tpu.memory_space<vmem>>, %arg4: memref<3x384x128xbf16, #tpu.memory_space<vmem>>, %arg5: memref<1x128xf32, #tpu.memory_space<vmem>>, %arg6: memref<1x16x16x128xbf16, #tpu.memory_space<vmem>>, %arg7: memref<18x16x128xbf16, #tpu.memory_space<vmem>>) attributes {dimension_semantics = [#tpu.dimension_semantics<parallel>], iteration_bounds = array<i64: 2>, scalar_prefetch = 0 : i64, scratch_operands = 1 : i64, tpu.core_type = #tpu.core_type<tc>, window_params = [{transform_indices = @transform_0, window_bounds = array<i64: 1, 16, 16, 128>}, {pipeline_mode = #tpu.pipeline_mode<synchronous>, transform_indices = @transform_1, window_bounds = array<i64: 3, 384, 128>}, {pipeline_mode = #tpu.pipeline_mode<synchronous>, transform_indices = @transform_2, window_bounds = array<i64: 1, 128>}, {pipeline_mode = #tpu.pipeline_mode<synchronous>, transform_indices = @transform_3, window_bounds = array<i64: 3, 384, 128>}, {pipeline_mode = #tpu.pipeline_mode<synchronous>, transform_indices = @transform_4, window_bounds = array<i64: 1, 128>}, {transform_indices = @transform_5, window_bounds = array<i64: 1, 16, 16, 128>}]} {
    %cst = arith.constant 0.000000e+00 : bf16
    %0 = vector.broadcast %cst : bf16 to vector<1x16x128xbf16>
    %c0 = arith.constant 0 : index
    %c0_0 = arith.constant 0 : index
    %c0_1 = arith.constant 0 : index
    %1 = vector.load %arg7[%c0, %c0_0, %c0_1] : memref<18x16x128xbf16, #tpu.memory_space<vmem>>, vector<1x16x128xbf16>
    tpu.vector_store %arg7[%c0, %c0_0, %c0_1], %0 {strides = array<i32>} : memref<18x16x128xbf16, #tpu.memory_space<vmem>>, vector<1x16x128xbf16>,
    %c17 = arith.constant 17 : index
    %c0_2 = arith.constant 0 : index
    %c0_3 = arith.constant 0 : index
    %2 = vector.load %arg7[%c17, %c0_2, %c0_3] : memref<18x16x128xbf16, #tpu.memory_space<vmem>>, vector<1x16x128xbf16>
    tpu.vector_store %arg7[%c17, %c0_2, %c0_3], %0 {strides = array<i32>} : memref<18x16x128xbf16, #tpu.memory_space<vmem>>, vector<1x16x128xbf16>,
    %c0_4 = arith.constant 0 : index
    %c0_5 = arith.constant 0 : index
    %c0_6 = arith.constant 0 : index
    %c0_7 = arith.constant 0 : index
    %3 = vector.load %arg1[%c0_4, %c0_5, %c0_6, %c0_7] : memref<1x16x16x128xbf16, #tpu.memory_space<vmem>>, vector<1x16x16x128xbf16>
    %4 = vector.shape_cast %3 : vector<1x16x16x128xbf16> to vector<16x16x128xbf16>
    %c1 = arith.constant 1 : index
    %c0_8 = arith.constant 0 : index
    %c0_9 = arith.constant 0 : index
    %5 = vector.load %arg7[%c1, %c0_8, %c0_9] : memref<18x16x128xbf16, #tpu.memory_space<vmem>>, vector<16x16x128xbf16>
    tpu.vector_store %arg7[%c1, %c0_8, %c0_9], %4 {strides = array<i32>} : memref<18x16x128xbf16, #tpu.memory_space<vmem>>, vector<16x16x128xbf16>,
    %cst_10 = arith.constant 0.000000e+00 : bf16
    %6 = vector.broadcast %cst_10 : bf16 to vector<16x1x128xbf16>
    %cst_11 = arith.constant 0.000000e+00 : f32
    %7 = vector.broadcast %cst_11 : f32 to vector<256x128xf32>
    %c0_12 = arith.constant 0 : index
    %c0_13 = arith.constant 0 : index
    %c0_14 = arith.constant 0 : index
    %8 = vector.load %arg7[%c0_12, %c0_13, %c0_14] : memref<18x16x128xbf16, #tpu.memory_space<vmem>>, vector<16x16x128xbf16>
    %9 = vector.extract_strided_slice %8 {offsets = [0, 0, 0], sizes = [16, 15, 128], strides = [1, 1, 1]} : vector<16x16x128xbf16> to vector<16x15x128xbf16>
    %10 = tpu.concatenate %6, %9 in 1 : vector<16x1x128xbf16>, vector<16x15x128xbf16> -> vector<16x16x128xbf16>
    %11 = vector.extract_strided_slice %8 {offsets = [0, 1, 0], sizes = [16, 15, 128], strides = [1, 1, 1]} : vector<16x16x128xbf16> to vector<16x15x128xbf16>
    %12 = tpu.concatenate %11, %6 in 1 : vector<16x15x128xbf16>, vector<16x1x128xbf16> -> vector<16x16x128xbf16>
    %13 = tpu.concatenate %10, %8, %12 in 2 : vector<16x16x128xbf16>, vector<16x16x128xbf16>, vector<16x16x128xbf16> -> vector<16x16x384xbf16>
    %14 = vector.shape_cast %13 : vector<16x16x384xbf16> to vector<256x384xbf16>
    %c0_15 = arith.constant 0 : index
    %c0_16 = arith.constant 0 : index
    %c0_17 = arith.constant 0 : index
    %15 = vector.load %arg2[%c0_15, %c0_16, %c0_17] : memref<3x384x128xbf16, #tpu.memory_space<vmem>>, vector<1x384x128xbf16>
    %16 = vector.shape_cast %15 : vector<1x384x128xbf16> to vector<384x128xbf16>
    %cst_18 = arith.constant dense<0.000000e+00> : vector<256x128xf32>
    %17 = tpu.matmul %14, %16, %cst_18 {dimension_numbers = #tpu.dot_dimension_numbers<[1], [0], [0], [1], [0, 0, 1, 1], [], []>} : vector<256x384xbf16>, vector<384x128xbf16>, vector<256x128xf32> -> vector<256x128xf32>
    %18 = arith.addf %7, %17 : vector<256x128xf32>
    %c1_19 = arith.constant 1 : index
    %c0_20 = arith.constant 0 : index
    %c0_21 = arith.constant 0 : index
    %19 = vector.load %arg7[%c1_19, %c0_20, %c0_21] : memref<18x16x128xbf16, #tpu.memory_space<vmem>>, vector<16x16x128xbf16>
    %20 = vector.extract_strided_slice %19 {offsets = [0, 0, 0], sizes = [16, 15, 128], strides = [1, 1, 1]} : vector<16x16x128xbf16> to vector<16x15x128xbf16>
    %21 = tpu.concatenate %6, %20 in 1 : vector<16x1x128xbf16>, vector<16x15x128xbf16> -> vector<16x16x128xbf16>
    %22 = vector.extract_strided_slice %19 {offsets = [0, 1, 0], sizes = [16, 15, 128], strides = [1, 1, 1]} : vector<16x16x128xbf16> to vector<16x15x128xbf16>
    %23 = tpu.concatenate %22, %6 in 1 : vector<16x15x128xbf16>, vector<16x1x128xbf16> -> vector<16x16x128xbf16>
    %24 = tpu.concatenate %21, %19, %23 in 2 : vector<16x16x128xbf16>, vector<16x16x128xbf16>, vector<16x16x128xbf16> -> vector<16x16x384xbf16>
    %25 = vector.shape_cast %24 : vector<16x16x384xbf16> to vector<256x384xbf16>
    %c1_22 = arith.constant 1 : index
    %c0_23 = arith.constant 0 : index
    %c0_24 = arith.constant 0 : index
    %26 = vector.load %arg2[%c1_22, %c0_23, %c0_24] : memref<3x384x128xbf16, #tpu.memory_space<vmem>>, vector<1x384x128xbf16>
    %27 = vector.shape_cast %26 : vector<1x384x128xbf16> to vector<384x128xbf16>
    %cst_25 = arith.constant dense<0.000000e+00> : vector<256x128xf32>
    %28 = tpu.matmul %25, %27, %cst_25 {dimension_numbers = #tpu.dot_dimension_numbers<[1], [0], [0], [1], [0, 0, 1, 1], [], []>} : vector<256x384xbf16>, vector<384x128xbf16>, vector<256x128xf32> -> vector<256x128xf32>
    %29 = arith.addf %18, %28 : vector<256x128xf32>
    %c2 = arith.constant 2 : index
    %c0_26 = arith.constant 0 : index
    %c0_27 = arith.constant 0 : index
    %30 = vector.load %arg7[%c2, %c0_26, %c0_27] : memref<18x16x128xbf16, #tpu.memory_space<vmem>>, vector<16x16x128xbf16>
    %31 = vector.extract_strided_slice %30 {offsets = [0, 0, 0], sizes = [16, 15, 128], strides = [1, 1, 1]} : vector<16x16x128xbf16> to vector<16x15x128xbf16>
    %32 = tpu.concatenate %6, %31 in 1 : vector<16x1x128xbf16>, vector<16x15x128xbf16> -> vector<16x16x128xbf16>
    %33 = vector.extract_strided_slice %30 {offsets = [0, 1, 0], sizes = [16, 15, 128], strides = [1, 1, 1]} : vector<16x16x128xbf16> to vector<16x15x128xbf16>
    %34 = tpu.concatenate %33, %6 in 1 : vector<16x15x128xbf16>, vector<16x1x128xbf16> -> vector<16x16x128xbf16>
    %35 = tpu.concatenate %32, %30, %34 in 2 : vector<16x16x128xbf16>, vector<16x16x128xbf16>, vector<16x16x128xbf16> -> vector<16x16x384xbf16>
    %36 = vector.shape_cast %35 : vector<16x16x384xbf16> to vector<256x384xbf16>
    %c2_28 = arith.constant 2 : index
    %c0_29 = arith.constant 0 : index
    %c0_30 = arith.constant 0 : index
    %37 = vector.load %arg2[%c2_28, %c0_29, %c0_30] : memref<3x384x128xbf16, #tpu.memory_space<vmem>>, vector<1x384x128xbf16>
    %38 = vector.shape_cast %37 : vector<1x384x128xbf16> to vector<384x128xbf16>
    %cst_31 = arith.constant dense<0.000000e+00> : vector<256x128xf32>
    %39 = tpu.matmul %36, %38, %cst_31 {dimension_numbers = #tpu.dot_dimension_numbers<[1], [0], [0], [1], [0, 0, 1, 1], [], []>} : vector<256x384xbf16>, vector<384x128xbf16>, vector<256x128xf32> -> vector<256x128xf32>
    %40 = arith.addf %29, %39 : vector<256x128xf32>
    %c0_32 = arith.constant 0 : index
    %c0_33 = arith.constant 0 : index
    %41 = vector.load %arg3[%c0_32, %c0_33] : memref<1x128xf32, #tpu.memory_space<vmem>>, vector<1x128xf32>
    %42 = vector.broadcast %41 : vector<1x128xf32> to vector<256x128xf32>
    %43 = arith.addf %40, %42 : vector<256x128xf32>
    %cst_34 = arith.constant 0.000000e+00 : f32
    %44 = vector.broadcast %cst_34 : f32 to vector<256x128xf32>
    %45 = arith.subf %44, %43 : vector<256x128xf32>
    %46 = math.exp %45 : vector<256x128xf32>
    %cst_35 = arith.constant 1.000000e+00 : f32
    %47 = vector.broadcast %cst_35 : f32 to vector<256x128xf32>
    %48 = arith.addf %47, %46 : vector<256x128xf32>
    %cst_36 = arith.constant 1.000000e+00 : f32
    %49 = vector.broadcast %cst_36 : f32 to vector<256x128xf32>
    %50 = arith.divf %49, %48 : vector<256x128xf32>
    %51 = arith.mulf %43, %50 : vector<256x128xf32>
    %52 = vector.shape_cast %51 : vector<256x128xf32> to vector<16x16x128xf32>
    %53 = arith.truncf %52 : vector<16x16x128xf32> to vector<16x16x128xbf16>
    %c1_37 = arith.constant 1 : index
    %c0_38 = arith.constant 0 : index
    %c0_39 = arith.constant 0 : index
    %54 = vector.load %arg7[%c1_37, %c0_38, %c0_39] : memref<18x16x128xbf16, #tpu.memory_space<vmem>>, vector<16x16x128xbf16>
    tpu.vector_store %arg7[%c1_37, %c0_38, %c0_39], %53 {strides = array<i32>} : memref<18x16x128xbf16, #tpu.memory_space<vmem>>, vector<16x16x128xbf16>,
    %cst_40 = arith.constant 0.000000e+00 : f32
    %55 = vector.broadcast %cst_40 : f32 to vector<256x128xf32>
    %c0_41 = arith.constant 0 : index
    %c0_42 = arith.constant 0 : index
    %c0_43 = arith.constant 0 : index
    %56 = vector.load %arg7[%c0_41, %c0_42, %c0_43] : memref<18x16x128xbf16, #tpu.memory_space<vmem>>, vector<16x16x128xbf16>
    %57 = vector.extract_strided_slice %56 {offsets = [0, 0, 0], sizes = [16, 15, 128], strides = [1, 1, 1]} : vector<16x16x128xbf16> to vector<16x15x128xbf16>
    %58 = tpu.concatenate %6, %57 in 1 : vector<16x1x128xbf16>, vector<16x15x128xbf16> -> vector<16x16x128xbf16>
    %59 = vector.extract_strided_slice %56 {offsets = [0, 1, 0], sizes = [16, 15, 128], strides = [1, 1, 1]} : vector<16x16x128xbf16> to vector<16x15x128xbf16>
    %60 = tpu.concatenate %59, %6 in 1 : vector<16x15x128xbf16>, vector<16x1x128xbf16> -> vector<16x16x128xbf16>
    %61 = tpu.concatenate %58, %56, %60 in 2 : vector<16x16x128xbf16>, vector<16x16x128xbf16>, vector<16x16x128xbf16> -> vector<16x16x384xbf16>
    %62 = vector.shape_cast %61 : vector<16x16x384xbf16> to vector<256x384xbf16>
    %c0_44 = arith.constant 0 : index
    %c0_45 = arith.constant 0 : index
    %c0_46 = arith.constant 0 : index
    %63 = vector.load %arg4[%c0_44, %c0_45, %c0_46] : memref<3x384x128xbf16, #tpu.memory_space<vmem>>, vector<1x384x128xbf16>
    %64 = vector.shape_cast %63 : vector<1x384x128xbf16> to vector<384x128xbf16>
    %cst_47 = arith.constant dense<0.000000e+00> : vector<256x128xf32>
    %65 = tpu.matmul %62, %64, %cst_47 {dimension_numbers = #tpu.dot_dimension_numbers<[1], [0], [0], [1], [0, 0, 1, 1], [], []>} : vector<256x384xbf16>, vector<384x128xbf16>, vector<256x128xf32> -> vector<256x128xf32>
    %66 = arith.addf %55, %65 : vector<256x128xf32>
    %c1_48 = arith.constant 1 : index
    %c0_49 = arith.constant 0 : index
    %c0_50 = arith.constant 0 : index
    %67 = vector.load %arg7[%c1_48, %c0_49, %c0_50] : memref<18x16x128xbf16, #tpu.memory_space<vmem>>, vector<16x16x128xbf16>
    %68 = vector.extract_strided_slice %67 {offsets = [0, 0, 0], sizes = [16, 15, 128], strides = [1, 1, 1]} : vector<16x16x128xbf16> to vector<16x15x128xbf16>
    %69 = tpu.concatenate %6, %68 in 1 : vector<16x1x128xbf16>, vector<16x15x128xbf16> -> vector<16x16x128xbf16>
    %70 = vector.extract_strided_slice %67 {offsets = [0, 1, 0], sizes = [16, 15, 128], strides = [1, 1, 1]} : vector<16x16x128xbf16> to vector<16x15x128xbf16>
    %71 = tpu.concatenate %70, %6 in 1 : vector<16x15x128xbf16>, vector<16x1x128xbf16> -> vector<16x16x128xbf16>
    %72 = tpu.concatenate %69, %67, %71 in 2 : vector<16x16x128xbf16>, vector<16x16x128xbf16>, vector<16x16x128xbf16> -> vector<16x16x384xbf16>
    %73 = vector.shape_cast %72 : vector<16x16x384xbf16> to vector<256x384xbf16>
    %c1_51 = arith.constant 1 : index
    %c0_52 = arith.constant 0 : index
    %c0_53 = arith.constant 0 : index
    %74 = vector.load %arg4[%c1_51, %c0_52, %c0_53] : memref<3x384x128xbf16, #tpu.memory_space<vmem>>, vector<1x384x128xbf16>
    %75 = vector.shape_cast %74 : vector<1x384x128xbf16> to vector<384x128xbf16>
    %cst_54 = arith.constant dense<0.000000e+00> : vector<256x128xf32>
    %76 = tpu.matmul %73, %75, %cst_54 {dimension_numbers = #tpu.dot_dimension_numbers<[1], [0], [0], [1], [0, 0, 1, 1], [], []>} : vector<256x384xbf16>, vector<384x128xbf16>, vector<256x128xf32> -> vector<256x128xf32>
    %77 = arith.addf %66, %76 : vector<256x128xf32>
    %c2_55 = arith.constant 2 : index
    %c0_56 = arith.constant 0 : index
    %c0_57 = arith.constant 0 : index
    %78 = vector.load %arg7[%c2_55, %c0_56, %c0_57] : memref<18x16x128xbf16, #tpu.memory_space<vmem>>, vector<16x16x128xbf16>
    %79 = vector.extract_strided_slice %78 {offsets = [0, 0, 0], sizes = [16, 15, 128], strides = [1, 1, 1]} : vector<16x16x128xbf16> to vector<16x15x128xbf16>
    %80 = tpu.concatenate %6, %79 in 1 : vector<16x1x128xbf16>, vector<16x15x128xbf16> -> vector<16x16x128xbf16>
    %81 = vector.extract_strided_slice %78 {offsets = [0, 1, 0], sizes = [16, 15, 128], strides = [1, 1, 1]} : vector<16x16x128xbf16> to vector<16x15x128xbf16>
    %82 = tpu.concatenate %81, %6 in 1 : vector<16x15x128xbf16>, vector<16x1x128xbf16> -> vector<16x16x128xbf16>
    %83 = tpu.concatenate %80, %78, %82 in 2 : vector<16x16x128xbf16>, vector<16x16x128xbf16>, vector<16x16x128xbf16> -> vector<16x16x384xbf16>
    %84 = vector.shape_cast %83 : vector<16x16x384xbf16> to vector<256x384xbf16>
    %c2_58 = arith.constant 2 : index
    %c0_59 = arith.constant 0 : index
    %c0_60 = arith.constant 0 : index
    %85 = vector.load %arg4[%c2_58, %c0_59, %c0_60] : memref<3x384x128xbf16, #tpu.memory_space<vmem>>, vector<1x384x128xbf16>
    %86 = vector.shape_cast %85 : vector<1x384x128xbf16> to vector<384x128xbf16>
    %cst_61 = arith.constant dense<0.000000e+00> : vector<256x128xf32>
    %87 = tpu.matmul %84, %86, %cst_61 {dimension_numbers = #tpu.dot_dimension_numbers<[1], [0], [0], [1], [0, 0, 1, 1], [], []>} : vector<256x384xbf16>, vector<384x128xbf16>, vector<256x128xf32> -> vector<256x128xf32>
    %88 = arith.addf %77, %87 : vector<256x128xf32>
    %c0_62 = arith.constant 0 : index
    %c0_63 = arith.constant 0 : index
    %89 = vector.load %arg5[%c0_62, %c0_63] : memref<1x128xf32, #tpu.memory_space<vmem>>, vector<1x128xf32>
    %90 = vector.broadcast %89 : vector<1x128xf32> to vector<256x128xf32>
    %91 = arith.addf %88, %90 : vector<256x128xf32>
    %cst_64 = arith.constant 0.000000e+00 : f32
    %92 = vector.broadcast %cst_64 : f32 to vector<256x128xf32>
    %93 = arith.subf %92, %91 : vector<256x128xf32>
    %94 = math.exp %93 : vector<256x128xf32>
    %cst_65 = arith.constant 1.000000e+00 : f32
    %95 = vector.broadcast %cst_65 : f32 to vector<256x128xf32>
    %96 = arith.addf %95, %94 : vector<256x128xf32>
    %cst_66 = arith.constant 1.000000e+00 : f32
    %97 = vector.broadcast %cst_66 : f32 to vector<256x128xf32>
    %98 = arith.divf %97, %96 : vector<256x128xf32>
    %99 = arith.mulf %91, %98 : vector<256x128xf32>
    %100 = vector.shape_cast %99 : vector<256x128xf32> to vector<16x16x128xf32>
    %101 = arith.truncf %100 : vector<16x16x128xf32> to vector<16x16x128xbf16>
    %c0_67 = arith.constant 0 : index
    %c0_68 = arith.constant 0 : index
    %c0_69 = arith.constant 0 : index
    %c0_70 = arith.constant 0 : index
    %102 = vector.load %arg6[%c0_67, %c0_68, %c0_69, %c0_70] : memref<1x16x16x128xbf16, #tpu.memory_space<vmem>>, vector<1x16x16x128xbf16>
    %103 = vector.shape_cast %102 : vector<1x16x16x128xbf16> to vector<16x16x128xbf16>
    %104 = vector.shape_cast %101 : vector<16x16x128xbf16> to vector<1x16x16x128xbf16>
    tpu.vector_store %arg6[%c0_67, %c0_68, %c0_69, %c0_70], %104 {strides = array<i32>} : memref<1x16x16x128xbf16, #tpu.memory_space<vmem>>, vector<1x16x16x128xbf16>,
    return
  }
  func.func @transform_0(%arg0: i32) -> (i32, i32, i32, i32) {
    %c0_i32 = arith.constant 0 : i32
    %c0_i32_0 = arith.constant 0 : i32
    %c0_i32_1 = arith.constant 0 : i32
    %c0_i32_2 = arith.constant 0 : i32
    return %arg0, %c0_i32, %c0_i32_0, %c0_i32_1 : i32, i32, i32, i32
  }
  func.func @transform_1(%arg0: i32) -> (i32, i32, i32) {
    %c0_i32 = arith.constant 0 : i32
    %c0_i32_0 = arith.constant 0 : i32
    %c0_i32_1 = arith.constant 0 : i32
    %c0_i32_2 = arith.constant 0 : i32
    return %c0_i32, %c0_i32_0, %c0_i32_1 : i32, i32, i32
  }
  func.func @transform_2(%arg0: i32) -> (i32, i32) {
    %c0_i32 = arith.constant 0 : i32
    %c0_i32_0 = arith.constant 0 : i32
    %c0_i32_1 = arith.constant 0 : i32
    return %c0_i32, %c0_i32_0 : i32, i32
  }
  func.func @transform_3(%arg0: i32) -> (i32, i32, i32) {
    %c0_i32 = arith.constant 0 : i32
    %c0_i32_0 = arith.constant 0 : i32
    %c0_i32_1 = arith.constant 0 : i32
    %c0_i32_2 = arith.constant 0 : i32
    return %c0_i32, %c0_i32_0, %c0_i32_1 : i32, i32, i32
  }
  func.func @transform_4(%arg0: i32) -> (i32, i32) {
    %c0_i32 = arith.constant 0 : i32
    %c0_i32_0 = arith.constant 0 : i32
    %c0_i32_1 = arith.constant 0 : i32
    return %c0_i32, %c0_i32_0 : i32, i32
  }
  func.func @transform_5(%arg0: i32) -> (i32, i32, i32, i32) {
    %c0_i32 = arith.constant 0 : i32
    %c0_i32_0 = arith.constant 0 : i32
    %c0_i32_1 = arith.constant 0 : i32
    %c0_i32_2 = arith.constant 0 : i32
    return %arg0, %c0_i32, %c0_i32_0, %c0_i32_1 : i32, i32, i32, i32
  }
}

</mosaic_0001>

<llo_original>
// kernel: c2f_lmsa_forward.3
$region0: #{c2f_lmsa_forward.3}
  #allocation0 [shape = 'u32[]', space=smem, size = 0x4, offset = 0x4, fixed_abs, tag = 'smem constant byte address 0x4 - core index']
  #allocation1 [shape = 'u32[144,128]{1,0:T(1,128)}', space=vmem, size = 0x12000, scoped, tag = 'internal scratch']
  %s0 = inlined_call_operand.vmem [shape: bf16[512,128], index: 0, kind: input, shape index: {}]
  %s1 = inlined_call_operand.vmem [shape: bf16[128,256], index: 1, kind: input, shape index: {}]
  %s2 = inlined_call_operand.vmem [shape: f32[1,256], index: 2, kind: input, shape index: {}]
  %s3 = inlined_call_operand.vmem [shape: bf16[512,128], index: 3, kind: output, shape index: {0}]
  %s4 = inlined_call_operand.vmem [shape: bf16[512,128], index: 4, kind: output, shape index: {1}]
  %5 = xla_tuple %s3, %s4
  %s6 = sld [smem:[#allocation0]]
  $region53: #{c2f_lmsa_forward.3} parent=0
    _
  %s8 = ssub.s32 1, %s6
  %s9 = scalar_select 0, %s8, %s6
  loop: start=0, step=1, limit=4
  $region2: #{c2f_lmsa_forward.3} parent=0 // loop_pre_header
    _
  $region3: #{c2f_lmsa_forward.3} parent=0 // loop_header
    %s11 = sphi 0, %s15
    %p12 = scmp.ge.s32.totalorder %s11, 4
    %s21 = sphi 0, %s23
    %s24 = sphi 0, %s21
    %s25 = sphi 0, %s24
    %s41 = sphi 0, %s25
    %s45 = sphi 0, %s45
    %s47 = sphi 0, %s45
    %s48 = sphi 0, %s47
    %s62 = sphi 0, %s48
    %s66 = sphi 0, %s66
    %s68 = sphi 0, %s66
    %s69 = sphi 0, %s68
    %s83 = sphi 0, %s69
    %s89 = sphi 0, %s91
    %s92 = sphi 0, %s89
    %s93 = sphi 0, %s92
    %s109 = sphi 0, %s93
    %s115 = sphi 0, %s117
    %s118 = sphi 0, %s115
    %s119 = sphi 0, %s118
    %s135 = sphi 0, %s119
  $region4: #{c2f_lmsa_forward.3} parent=0 // loop_header_branch
    %14 = sbr.rel (%p12) target = $region8
  $region5: #{c2f_lmsa_forward.3} parent=0 // loop_body
    %s16 = ssub.s32 %s11, 1
    %s17 = ssub.s32 %s11, 2
    %s18 = sadd.s32 %s11, 1
    %s19 = ssub.s32 %s11, %s18
    %p20 = scmp.eq.s32.totalorder %s19, 0
    %s22 = sadd.s32 %s21, 1
    %s23 = scalar_select %p20, %s21, %s22
    %p26 = pneg %p20
    %p27 = scmp.eq.s32.totalorder %s11, 1
    %p28 = por %p26, %p27
    %p29 = scmp.ne.s32.totalorder %s21, %s24
    %p30 = scmp.eq.s32.totalorder %s11, 0
    %p31 = por %p29, %p30
    %p32 = scmp.ne.s32.totalorder %s21, %s24
    %p33 = scmp.eq.s32.totalorder %s16, 1
    %p34 = por %p32, %p33
    %p35 = scmp.ne.s32.totalorder %s24, %s25
    %p36 = scmp.eq.s32.totalorder %s16, 0
    %p37 = por %p35, %p36
    %p38 = scmp.ne.s32.totalorder %s24, %s25
    %p39 = scmp.eq.s32.totalorder %s17, 1
    %p40 = por %p38, %p39
    %p42 = scmp.ne.s32.totalorder %s25, %s41
    %p43 = scmp.eq.s32.totalorder %s17, 0
    %p44 = por %p42, %p43
    %s46 = sadd.s32 %s45, 1
    %p49 = scmp.eq.s32.totalorder %s11, 1
    %p50 = scmp.ne.s32.totalorder %s45, %s47
    %p51 = scmp.eq.s32.totalorder %s11, 0
    %p52 = por %p50, %p51
    %p53 = scmp.ne.s32.totalorder %s45, %s47
    %p54 = scmp.eq.s32.totalorder %s16, 1
    %p55 = por %p53, %p54
    %p56 = scmp.ne.s32.totalorder %s47, %s48
    %p57 = scmp.eq.s32.totalorder %s16, 0
    %p58 = por %p56, %p57
    %p59 = scmp.ne.s32.totalorder %s47, %s48
    %p60 = scmp.eq.s32.totalorder %s17, 1
    %p61 = por %p59, %p60
    %p63 = scmp.ne.s32.totalorder %s48, %s62
    %p64 = scmp.eq.s32.totalorder %s17, 0
    %p65 = por %p63, %p64
    %s67 = sadd.s32 %s66, 1
    %p70 = scmp.eq.s32.totalorder %s11, 1
    %p71 = scmp.ne.s32.totalorder %s66, %s68
    %p72 = scmp.eq.s32.totalorder %s11, 0
    %p73 = por %p71, %p72
    %p74 = scmp.ne.s32.totalorder %s66, %s68
    %p75 = scmp.eq.s32.totalorder %s16, 1
    %p76 = por %p74, %p75
    %p77 = scmp.ne.s32.totalorder %s68, %s69
    %p78 = scmp.eq.s32.totalorder %s16, 0
    %p79 = por %p77, %p78
    %p80 = scmp.ne.s32.totalorder %s68, %s69
    %p81 = scmp.eq.s32.totalorder %s17, 1
    %p82 = por %p80, %p81
    %p84 = scmp.ne.s32.totalorder %s69, %s83
    %p85 = scmp.eq.s32.totalorder %s17, 0
    %p86 = por %p84, %p85
    %s87 = ssub.s32 %s11, %s18
    %p88 = scmp.eq.s32.totalorder %s87, 0
    %s90 = sadd.s32 %s89, 1
    %s91 = scalar_select %p88, %s89, %s90
    %p94 = pneg %p88
    %p95 = scmp.eq.s32.totalorder %s11, 1
    %p96 = por %p94, %p95
    %p97 = scmp.ne.s32.totalorder %s89, %s92
    %p98 = scmp.eq.s32.totalorder %s11, 0
    %p99 = por %p97, %p98
    %p100 = scmp.ne.s32.totalorder %s89, %s92
    %p101 = scmp.eq.s32.totalorder %s16, 1
    %p102 = por %p100, %p101
    %p103 = scmp.ne.s32.totalorder %s92, %s93
    %p104 = scmp.eq.s32.totalorder %s16, 0
    %p105 = por %p103, %p104
    %p106 = scmp.ne.s32.totalorder %s92, %s93
    %p107 = scmp.eq.s32.totalorder %s17, 1
    %p108 = por %p106, %p107
    %p110 = scmp.ne.s32.totalorder %s93, %s109
    %p111 = scmp.eq.s32.totalorder %s17, 0
    %p112 = por %p110, %p111
    %s113 = ssub.s32 %s11, %s18
    %p114 = scmp.eq.s32.totalorder %s113, 0
    %s116 = sadd.s32 %s115, 1
    %s117 = scalar_select %p114, %s115, %s116
    %p120 = pneg %p114
    %p121 = scmp.eq.s32.totalorder %s11, 1
    %p122 = por %p120, %p121
    %p123 = scmp.ne.s32.totalorder %s115, %s118
    %p124 = scmp.eq.s32.totalorder %s11, 0
    %p125 = por %p123, %p124
    %p126 = scmp.ne.s32.totalorder %s115, %s118
    %p127 = scmp.eq.s32.totalorder %s16, 1
    %p128 = por %p126, %p127
    %p129 = scmp.ne.s32.totalorder %s118, %s119
    %p130 = scmp.eq.s32.totalorder %s16, 0
    %p131 = por %p129, %p130
    %p132 = scmp.ne.s32.totalorder %s118, %s119
    %p133 = scmp.eq.s32.totalorder %s17, 1
    %p134 = por %p132, %p133
    %p136 = scmp.ne.s32.totalorder %s119, %s135
    %p137 = scmp.eq.s32.totalorder %s17, 0
    %p138 = por %p136, %p137
    %p139 = scmp.le.s32.totalorder 1, %s11
    %p140 = scmp.lt.s32.totalorder %s11, 3
    %p141 = pnand %p139, %p140
    %p142 = pneg %p141
    // Predicated region
    $region9: #{c2f_lmsa_forward.3} parent=5 // pred_check
      _
    $region10: #{c2f_lmsa_forward.3} parent=5 // pred_check_branch
      %144 = sbr.rel (%p141) target = $region12
    $region11: #{c2f_lmsa_forward.3} parent=5 // pred_region
      %s145 = ssub.s32 %s11, 1
      // Predicated region
      $region13: #{c2f_lmsa_forward.3} parent=11 // pred_check
        %p146 = pneg %p58
      $region14: #{c2f_lmsa_forward.3} parent=11 // pred_check_branch
        %148 = sbr.rel (%p146) target = $region16
      $region15: #{c2f_lmsa_forward.3} parent=11 // pred_region
        _
      $region16: #{c2f_lmsa_forward.3} parent=11 // pred_fallthru
        _
      // Predicated region
      $region17: #{c2f_lmsa_forward.3} parent=11 // pred_check
        %p149 = pneg %p79
      $region18: #{c2f_lmsa_forward.3} parent=11 // pred_check_branch
        %151 = sbr.rel (%p149) target = $region20
      $region19: #{c2f_lmsa_forward.3} parent=11 // pred_region
        _
      $region20: #{c2f_lmsa_forward.3} parent=11 // pred_fallthru
        _
    $region12: #{c2f_lmsa_forward.3} parent=5 // pred_fallthru
      _
    %p152 = scmp.lt.s32.totalorder %s11, 2
    // Predicated region
    $region21: #{c2f_lmsa_forward.3} parent=5 // pred_check
      %p153 = pneg %p152
    $region22: #{c2f_lmsa_forward.3} parent=5 // pred_check_branch
      %155 = sbr.rel (%p153) target = $region24
    $region23: #{c2f_lmsa_forward.3} parent=5 // pred_region
      // Predicated region
      $region25: #{c2f_lmsa_forward.3} parent=23 // pred_check
        %p156 = pneg %p31
      $region26: #{c2f_lmsa_forward.3} parent=23 // pred_check_branch
        %158 = sbr.rel (%p156) target = $region28
      $region27: #{c2f_lmsa_forward.3} parent=23 // pred_region
        %s159 = smul.u32 32, %s11
        %p160 = scmp.lt.s32.totalorder %s159, 63
        %s161 = scalar_select %p160, %s159, 63
        %s162 = smul.addr %s161, 4
        %s163 = scalar_lea.vmem %s0, %s162
        %s164 = smul.u32 32, %s11
      $region28: #{c2f_lmsa_forward.3} parent=23 // pred_fallthru
        _
    $region24: #{c2f_lmsa_forward.3} parent=5 // pred_fallthru
      _
    %p165 = scmp.le.s32.totalorder 1, %s11
    %p166 = scmp.lt.s32.totalorder %s11, 3
    %p167 = pnand %p165, %p166
    %p168 = pneg %p167
    // Predicated region
    $region29: #{c2f_lmsa_forward.3} parent=5 // pred_check
      _
    $region30: #{c2f_lmsa_forward.3} parent=5 // pred_check_branch
      %170 = sbr.rel (%p167) target = $region32
    $region31: #{c2f_lmsa_forward.3} parent=5 // pred_region
      %s171 = ssub.s32 %s11, 1
      %s172 = smul.u32 32, %s16
      %p173 = scmp.lt.s32.totalorder %s172, 63
      %s174 = scalar_select %p173, %s172, 63
      %s175 = smul.addr %s174, 4
      %s176 = scalar_lea.vmem %s0, %s175
      %p177 = pneg %p37
      %p178 = pneg %p34
      %p179 = pneg %p58
      %p180 = pneg %p55
      %p181 = pneg %p79
      %p182 = pneg %p76
      %p183 = pneg %p105
      %p184 = pneg %p102
      %s185 = smul.u32 32, %s16
      %p186 = scmp.lt.s32.totalorder %s185, 63
      %s187 = scalar_select %p186, %s185, 63
      %s188 = smul.addr %s187, 4
      %s189 = scalar_lea.vmem %s3, %s188
      %p190 = pneg %p131
      %p191 = pneg %p128
      %s192 = smul.u32 32, %s16
      %p193 = scmp.lt.s32.totalorder %s192, 63
      %s194 = scalar_select %p193, %s192, 63
      %s195 = smul.addr %s194, 4
      %s196 = scalar_lea.vmem %s4, %s195
      %s197 = smul.u32 32, %s16
      %p198 = scmp.lt.s32.totalorder %s197, 63
      %s199 = scalar_select %p198, %s197, 63
      %s200 = smul.addr %s199, 4
      %s201 = scalar_lea.vmem %s0, %s200
      %s202 = smul.u32 32, %s16
      %s203 = smul.u32 32, %s16
      %p204 = scmp.lt.s32.totalorder %s203, 63
      %s205 = scalar_select %p204, %s203, 63
      %s206 = smul.addr %s205, 4
      %s207 = scalar_lea.vmem %s3, %s206
      %s208 = smul.u32 32, %s16
      %s209 = smul.u32 32, %s16
      %p210 = scmp.lt.s32.totalorder %s209, 63
      %s211 = scalar_select %p210, %s209, 63
      %s212 = smul.addr %s211, 4
      %s213 = scalar_lea.vmem %s4, %s212
      %s214 = smul.u32 32, %s16
      %v216 = vld [vmem:[%s201] sm:$0xf]
      %v217 = vld [vmem:[%s201 + $0x4] sm:$0xf]
      %v218 = vld [vmem:[%s201 + $0x8] sm:$0xf]
      %v219 = vld [vmem:[%s201 + $0xc] sm:$0xf]
      %v220 = vld [vmem:[%s201 + $0x10] sm:$0xf]
      %v221 = vld [vmem:[%s201 + $0x14] sm:$0xf]
      %v222 = vld [vmem:[%s201 + $0x18] sm:$0xf]
      %v223 = vld [vmem:[%s201 + $0x1c] sm:$0xf]
      %v224 = vld [vmem:[%s201 + $0x20] sm:$0xf]
      %v225 = vld [vmem:[%s201 + $0x24] sm:$0xf]
      %v226 = vld [vmem:[%s201 + $0x28] sm:$0xf]
      %v227 = vld [vmem:[%s201 + $0x2c] sm:$0xf]
      %v228 = vld [vmem:[%s201 + $0x30] sm:$0xf]
      %v229 = vld [vmem:[%s201 + $0x34] sm:$0xf]
      %v230 = vld [vmem:[%s201 + $0x38] sm:$0xf]
      %v231 = vld [vmem:[%s201 + $0x3c] sm:$0xf]
      %v232 = vld [vmem:[%s201 + $0x40] sm:$0xf]
      %v233 = vld [vmem:[%s201 + $0x44] sm:$0xf]
      %v234 = vld [vmem:[%s201 + $0x48] sm:$0xf]
      %v235 = vld [vmem:[%s201 + $0x4c] sm:$0xf]
      %v236 = vld [vmem:[%s201 + $0x50] sm:$0xf]
      %v237 = vld [vmem:[%s201 + $0x54] sm:$0xf]
      %v238 = vld [vmem:[%s201 + $0x58] sm:$0xf]
      %v239 = vld [vmem:[%s201 + $0x5c] sm:$0xf]
      %v240 = vld [vmem:[%s201 + $0x60] sm:$0xf]
      %v241 = vld [vmem:[%s201 + $0x64] sm:$0xf]
      %v242 = vld [vmem:[%s201 + $0x68] sm:$0xf]
      %v243 = vld [vmem:[%s201 + $0x6c] sm:$0xf]
      %v244 = vld [vmem:[%s201 + $0x70] sm:$0xf]
      %v245 = vld [vmem:[%s201 + $0x74] sm:$0xf]
      %v246 = vld [vmem:[%s201 + $0x78] sm:$0xf]
      %v247 = vld [vmem:[%s201 + $0x7c] sm:$0xf]
      %v248 = vld [vmem:[%s1] sm:$0xff]
      %v249 = vld [vmem:[%s1 + $0x8] sm:$0xff]
      %v250 = vld [vmem:[%s1 + $0x10] sm:$0xff]
      %v251 = vld [vmem:[%s1 + $0x18] sm:$0xff]
      %v252 = vld [vmem:[%s1 + $0x20] sm:$0xff]
      %v253 = vld [vmem:[%s1 + $0x28] sm:$0xff]
      %v254 = vld [vmem:[%s1 + $0x30] sm:$0xff]
      %v255 = vld [vmem:[%s1 + $0x38] sm:$0xff]
      %v256 = vld [vmem:[%s1 + $0x40] sm:$0xff]
      %v257 = vld [vmem:[%s1 + $0x48] sm:$0xff]
      %v258 = vld [vmem:[%s1 + $0x50] sm:$0xff]
      %v259 = vld [vmem:[%s1 + $0x58] sm:$0xff]
      %v260 = vld [vmem:[%s1 + $0x60] sm:$0xff]
      %v261 = vld [vmem:[%s1 + $0x68] sm:$0xff]
      %v262 = vld [vmem:[%s1 + $0x70] sm:$0xff]
      %v263 = vld [vmem:[%s1 + $0x78] sm:$0xff]
      %v264 = vld [vmem:[%s2] sm:$0x3]
      %v266 = vlaneseq
      %v267 = vshrl.u32 %v266, 7
      %v268 = vsub.s32 0, %v267
      %v269 = vrot.slane %v264, %v268
      %v270 = vlaneseq
      %v271 = vshrl.u32 %v270, 7
      %v272 = vsub.s32 1, %v271
      %v273 = vrot.slane %v264, %v272
      %v308 = vunpack.c.l.b16 %v216
      %v309 = vunpack.c.l.b16 %v217
      %v310 = vunpack.c.l.b16 %v218
      %v311 = vunpack.c.l.b16 %v219
      %v312 = vunpack.c.l.b16 %v220
      %v313 = vunpack.c.l.b16 %v221
      %v314 = vunpack.c.l.b16 %v222
      %v315 = vunpack.c.l.b16 %v223
      %v316 = vunpack.c.l.b16 %v224
      %v317 = vunpack.c.l.b16 %v225
      %v318 = vunpack.c.l.b16 %v226
      %v319 = vunpack.c.l.b16 %v227
      %v320 = vunpack.c.l.b16 %v228
      %v321 = vunpack.c.l.b16 %v229
      %v322 = vunpack.c.l.b16 %v230
      %v323 = vunpack.c.l.b16 %v231
      %v324 = vunpack.c.l.b16 %v232
      %v325 = vunpack.c.l.b16 %v233
      %v326 = vunpack.c.l.b16 %v234
      %v327 = vunpack.c.l.b16 %v235
      %v328 = vunpack.c.l.b16 %v236
      %v329 = vunpack.c.l.b16 %v237
      %v330 = vunpack.c.l.b16 %v238
      %v331 = vunpack.c.l.b16 %v239
      %v332 = vunpack.c.l.b16 %v240
      %v333 = vunpack.c.l.b16 %v241
      %v334 = vunpack.c.l.b16 %v242
      %v335 = vunpack.c.l.b16 %v243
      %v336 = vunpack.c.l.b16 %v244
      %v337 = vunpack.c.l.b16 %v245
      %v338 = vunpack.c.l.b16 %v246
      %v339 = vunpack.c.l.b16 %v247
      %v340 = vpack.c.b16 %v309, %v308
      %v341 = vpack.c.b16 %v311, %v310
      %v342 = vpack.c.b16 %v313, %v312
      %v343 = vpack.c.b16 %v315, %v314
      %v344 = vpack.c.b16 %v317, %v316
      %v345 = vpack.c.b16 %v319, %v318
      %v346 = vpack.c.b16 %v321, %v320
      %v347 = vpack.c.b16 %v323, %v322
      %v348 = vpack.c.b16 %v325, %v324
      %v349 = vpack.c.b16 %v327, %v326
      %v350 = vpack.c.b16 %v329, %v328
      %v351 = vpack.c.b16 %v331, %v330
      %v352 = vpack.c.b16 %v333, %v332
      %v353 = vpack.c.b16 %v335, %v334
      %v354 = vpack.c.b16 %v337, %v336
      %v355 = vpack.c.b16 %v339, %v338
      %v388 = vunpack.c.l.b16 %v248
      %v389 = vunpack.c.h.b16 %v248
      %v390 = vunpack.c.l.b16 %v249
      %v391 = vunpack.c.h.b16 %v249
      %v392 = vunpack.c.l.b16 %v250
      %v393 = vunpack.c.h.b16 %v250
      %v394 = vunpack.c.l.b16 %v251
      %v395 = vunpack.c.h.b16 %v251
      %v396 = vunpack.c.l.b16 %v252
      %v397 = vunpack.c.h.b16 %v252
      %v398 = vunpack.c.l.b16 %v253
      %v399 = vunpack.c.h.b16 %v253
      %v400 = vunpack.c.l.b16 %v254
      %v401 = vunpack.c.h.b16 %v254
      %v402 = vunpack.c.l.b16 %v255
      %v403 = vunpack.c.h.b16 %v255
      %v404 = vunpack.c.l.b16 %v256
      %v405 = vunpack.c.h.b16 %v256
      %v406 = vunpack.c.l.b16 %v257
      %v407 = vunpack.c.h.b16 %v257
      %v408 = vunpack.c.l.b16 %v258
      %v409 = vunpack.c.h.b16 %v258
      %v410 = vunpack.c.l.b16 %v259
      %v411 = vunpack.c.h.b16 %v259
      %v412 = vunpack.c.l.b16 %v260
      %v413 = vunpack.c.h.b16 %v260
      %v414 = vunpack.c.l.b16 %v261
      %v415 = vunpack.c.h.b16 %v261
      %v416 = vunpack.c.l.b16 %v262
      %v417 = vunpack.c.h.b16 %v262
      %v418 = vunpack.c.l.b16 %v263
      %v419 = vunpack.c.h.b16 %v263
      %v420 = vpack.c.b16 %v390, %v388
      %v421 = vpack.c.b16 %v391, %v389
      %v422 = vpack.c.b16 %v394, %v392
      %v423 = vpack.c.b16 %v395, %v393
      %v424 = vpack.c.b16 %v398, %v396
      %v425 = vpack.c.b16 %v399, %v397
      %v426 = vpack.c.b16 %v402, %v400
      %v427 = vpack.c.b16 %v403, %v401
      %v428 = vpack.c.b16 %v406, %v404
      %v429 = vpack.c.b16 %v407, %v405
      %v430 = vpack.c.b16 %v410, %v408
      %v431 = vpack.c.b16 %v411, %v409
      %v432 = vpack.c.b16 %v414, %v412
      %v433 = vpack.c.b16 %v415, %v413
      %v434 = vpack.c.b16 %v418, %v416
      %v435 = vpack.c.b16 %v419, %v417
      %452 = vmatprep.subr.bf16.mxu0 %v421
      %453 = vmatpush1.bf16.msra.mxu0 %v420
      %454 = vmatprep.subr.bf16.mxu0 %v423
      %455 = vmatpush1.bf16.msra.mxu0 %v422
      %456 = vmatprep.subr.bf16.mxu0 %v425
      %457 = vmatpush1.bf16.msra.mxu0 %v424
      %458 = vmatprep.subr.bf16.mxu0 %v427
      %459 = vmatpush1.bf16.msra.mxu0 %v426
      %460 = vmatprep.subr.bf16.mxu0 %v429
      %461 = vmatpush1.bf16.msra.mxu0 %v428
      %462 = vmatprep.subr.bf16.mxu0 %v431
      %463 = vmatpush1.bf16.msra.mxu0 %v430
      %464 = vmatprep.subr.bf16.mxu0 %v433
      %465 = vmatpush1.bf16.msra.mxu0 %v432
      %466 = vmatprep.subr.bf16.mxu0 %v435
      %467 = vmatpush1.bf16.msra.mxu0 %v434
      %468 = vmatprep.subr.bf16.mxu0 0
      %469 = vmatpush1.bf16.msra.mxu0 0
      %470 = vmatprep.subr.bf16.mxu0 0
      %471 = vmatpush1.bf16.msra.mxu0 0
      %472 = vmatprep.subr.bf16.mxu0 0
      %473 = vmatpush1.bf16.msra.mxu0 0
      %474 = vmatprep.subr.bf16.mxu0 0
      %475 = vmatpush1.bf16.msra.mxu0 0
      %476 = vmatprep.subr.bf16.mxu0 0
      %477 = vmatpush1.bf16.msra.mxu0 0
      %478 = vmatprep.subr.bf16.mxu0 0
      %479 = vmatpush1.bf16.msra.mxu0 0
      %480 = vmatprep.subr.bf16.mxu0 0
      %481 = vmatpush1.bf16.msra.mxu0 0
      %482 = vmatprep.subr.bf16.mxu0 0
      %483 = vmatpush1.bf16.msra.mxu0 0
      %484 = vmatprep.mubr.bf16.mxu0 0
      %485 = vmatmul.mubr.bf16.gmra.mrb[0].mxu0 %v340
      %v486 = vpop.f32.mrb[0].mxu0
      %v487 = vadd.f32 %v269, %v486
      %v488 = vpop.f32.mrb[0].mxu0
      %v489 = vadd.f32 %v273, %v488
      %v490 = vpop.f32.mrb[0].mxu0
      %v491 = vadd.f32 %v269, %v490
      %v492 = vpop.f32.mrb[0].mxu0
      %v493 = vadd.f32 %v273, %v492
      %494 = vmatprep.mubr.bf16.mxu0 0
      %495 = vmatmul.mubr.bf16.gmra.mrb[0].mxu0 %v341
      %v496 = vpop.f32.mrb[0].mxu0
      %v497 = vadd.f32 %v269, %v496
      %v498 = vpop.f32.mrb[0].mxu0
      %v499 = vadd.f32 %v273, %v498
      %v500 = vpop.f32.mrb[0].mxu0
      %v501 = vadd.f32 %v269, %v500
      %v502 = vpop.f32.mrb[0].mxu0
      %v503 = vadd.f32 %v273, %v502
      %504 = vmatprep.mubr.bf16.mxu0 0
      %505 = vmatmul.mubr.bf16.gmra.mrb[0].mxu0 %v342
      %v506 = vpop.f32.mrb[0].mxu0
      %v507 = vadd.f32 %v269, %v506
      %v508 = vpop.f32.mrb[0].mxu0
      %v509 = vadd.f32 %v273, %v508
      %v510 = vpop.f32.mrb[0].mxu0
      %v511 = vadd.f32 %v269, %v510
      %v512 = vpop.f32.mrb[0].mxu0
      %v513 = vadd.f32 %v273, %v512
      %514 = vmatprep.mubr.bf16.mxu0 0
      %515 = vmatmul.mubr.bf16.gmra.mrb[0].mxu0 %v343
      %v516 = vpop.f32.mrb[0].mxu0
      %v517 = vadd.f32 %v269, %v516
      %v518 = vpop.f32.mrb[0].mxu0
      %v519 = vadd.f32 %v273, %v518
      %v520 = vpop.f32.mrb[0].mxu0
      %v521 = vadd.f32 %v269, %v520
      %v522 = vpop.f32.mrb[0].mxu0
      %v523 = vadd.f32 %v273, %v522
      %524 = vmatprep.mubr.bf16.mxu0 0
      %525 = vmatmul.mubr.bf16.gmra.mrb[0].mxu0 %v344
      %v526 = vpop.f32.mrb[0].mxu0
      %v527 = vadd.f32 %v269, %v526
      %v528 = vpop.f32.mrb[0].mxu0
      %v529 = vadd.f32 %v273, %v528
      %v530 = vpop.f32.mrb[0].mxu0
      %v531 = vadd.f32 %v269, %v530
      %v532 = vpop.f32.mrb[0].mxu0
      %v533 = vadd.f32 %v273, %v532
      %534 = vmatprep.mubr.bf16.mxu0 0
      %535 = vmatmul.mubr.bf16.gmra.mrb[0].mxu0 %v345
      %v536 = vpop.f32.mrb[0].mxu0
      %v537 = vadd.f32 %v269, %v536
      %v538 = vpop.f32.mrb[0].mxu0
      %v539 = vadd.f32 %v273, %v538
      %v540 = vpop.f32.mrb[0].mxu0
      %v541 = vadd.f32 %v269, %v540
      %v542 = vpop.f32.mrb[0].mxu0
      %v543 = vadd.f32 %v273, %v542
      %544 = vmatprep.mubr.bf16.mxu0 0
      %545 = vmatmul.mubr.bf16.gmra.mrb[0].mxu0 %v346
      %v546 = vpop.f32.mrb[0].mxu0
      %v547 = vadd.f32 %v269, %v546
      %v548 = vpop.f32.mrb[0].mxu0
      %v549 = vadd.f32 %v273, %v548
      %v550 = vpop.f32.mrb[0].mxu0
      %v551 = vadd.f32 %v269, %v550
      %v552 = vpop.f32.mrb[0].mxu0
      %v553 = vadd.f32 %v273, %v552
      %554 = vmatprep.mubr.bf16.mxu0 0
      %555 = vmatmul.mubr.bf16.gmra.mrb[0].mxu0 %v347
      %v556 = vpop.f32.mrb[0].mxu0
      %v557 = vadd.f32 %v269, %v556
      %v558 = vpop.f32.mrb[0].mxu0
      %v559 = vadd.f32 %v273, %v558
      %v560 = vpop.f32.mrb[0].mxu0
      %v561 = vadd.f32 %v269, %v560
      %v562 = vpop.f32.mrb[0].mxu0
      %v563 = vadd.f32 %v273, %v562
      %564 = vmatprep.mubr.bf16.mxu0 0
      %565 = vmatmul.mubr.bf16.gmra.mrb[0].mxu0 %v348
      %v566 = vpop.f32.mrb[0].mxu0
      %v567 = vadd.f32 %v269, %v566
      %v568 = vpop.f32.mrb[0].mxu0
      %v569 = vadd.f32 %v273, %v568
      %v570 = vpop.f32.mrb[0].mxu0
      %v571 = vadd.f32 %v269, %v570
      %v572 = vpop.f32.mrb[0].mxu0
      %v573 = vadd.f32 %v273, %v572
      %574 = vmatprep.mubr.bf16.mxu0 0
      %575 = vmatmul.mubr.bf16.gmra.mrb[0].mxu0 %v349
      %v576 = vpop.f32.mrb[0].mxu0
      %v577 = vadd.f32 %v269, %v576
      %v578 = vpop.f32.mrb[0].mxu0
      %v579 = vadd.f32 %v273, %v578
      %v580 = vpop.f32.mrb[0].mxu0
      %v581 = vadd.f32 %v269, %v580
      %v582 = vpop.f32.mrb[0].mxu0
      %v583 = vadd.f32 %v273, %v582
      %584 = vmatprep.mubr.bf16.mxu0 0
      %585 = vmatmul.mubr.bf16.gmra.mrb[0].mxu0 %v350
      %v586 = vpop.f32.mrb[0].mxu0
      %v587 = vadd.f32 %v269, %v586
      %v588 = vpop.f32.mrb[0].mxu0
      %v589 = vadd.f32 %v273, %v588
      %v590 = vpop.f32.mrb[0].mxu0
      %v591 = vadd.f32 %v269, %v590
      %v592 = vpop.f32.mrb[0].mxu0
      %v593 = vadd.f32 %v273, %v592
      %594 = vmatprep.mubr.bf16.mxu0 0
      %595 = vmatmul.mubr.bf16.gmra.mrb[0].mxu0 %v351
      %v596 = vpop.f32.mrb[0].mxu0
      %v597 = vadd.f32 %v269, %v596
      %v598 = vpop.f32.mrb[0].mxu0
      %v599 = vadd.f32 %v273, %v598
      %v600 = vpop.f32.mrb[0].mxu0
      %v601 = vadd.f32 %v269, %v600
      %v602 = vpop.f32.mrb[0].mxu0
      %v603 = vadd.f32 %v273, %v602
      %604 = vmatprep.mubr.bf16.mxu0 0
      %605 = vmatmul.mubr.bf16.gmra.mrb[0].mxu0 %v352
      %v606 = vpop.f32.mrb[0].mxu0
      %v607 = vadd.f32 %v269, %v606
      %v608 = vpop.f32.mrb[0].mxu0
      %v609 = vadd.f32 %v273, %v608
      %v610 = vpop.f32.mrb[0].mxu0
      %v611 = vadd.f32 %v269, %v610
      %v612 = vpop.f32.mrb[0].mxu0
      %v613 = vadd.f32 %v273, %v612
      %614 = vmatprep.mubr.bf16.mxu0 0
      %615 = vmatmul.mubr.bf16.gmra.mrb[0].mxu0 %v353
      %v616 = vpop.f32.mrb[0].mxu0
      %v617 = vadd.f32 %v269, %v616
      %v618 = vpop.f32.mrb[0].mxu0
      %v619 = vadd.f32 %v273, %v618
      %v620 = vpop.f32.mrb[0].mxu0
      %v621 = vadd.f32 %v269, %v620
      %v622 = vpop.f32.mrb[0].mxu0
      %v623 = vadd.f32 %v273, %v622
      %624 = vmatprep.mubr.bf16.mxu0 0
      %625 = vmatmul.mubr.bf16.gmra.mrb[0].mxu0 %v354
      %v626 = vpop.f32.mrb[0].mxu0
      %v627 = vadd.f32 %v269, %v626
      %v628 = vpop.f32.mrb[0].mxu0
      %v629 = vadd.f32 %v273, %v628
      %v630 = vpop.f32.mrb[0].mxu0
      %v631 = vadd.f32 %v269, %v630
      %v632 = vpop.f32.mrb[0].mxu0
      %v633 = vadd.f32 %v273, %v632
      %634 = vmatprep.mubr.bf16.mxu0 0
      %635 = vmatmul.mubr.bf16.gmra.mrb[0].mxu0 %v355
      %v636 = vpop.f32.mrb[0].mxu0
      %v637 = vadd.f32 %v269, %v636
      %v638 = vpop.f32.mrb[0].mxu0
      %v639 = vadd.f32 %v273, %v638
      %v640 = vpop.f32.mrb[0].mxu0
      %v641 = vadd.f32 %v269, %v640
      %v642 = vpop.f32.mrb[0].mxu0
      %v643 = vadd.f32 %v273, %v642
      %644 = vdwg.mxu0
      %v645 = vsub.f32 0.0, %v487
      %v646 = vsub.f32 0.0, %v489
      %v647 = vsub.f32 0.0, %v491
      %v648 = vsub.f32 0.0, %v493
      %v649 = vsub.f32 0.0, %v497
      %v650 = vsub.f32 0.0, %v499
      %v651 = vsub.f32 0.0, %v501
      %v652 = vsub.f32 0.0, %v503
      %v653 = vsub.f32 0.0, %v507
      %v654 = vsub.f32 0.0, %v509
      %v655 = vsub.f32 0.0, %v511
      %v656 = vsub.f32 0.0, %v513
      %v657 = vsub.f32 0.0, %v517
      %v658 = vsub.f32 0.0, %v519
      %v659 = vsub.f32 0.0, %v521
      %v660 = vsub.f32 0.0, %v523
      %v661 = vsub.f32 0.0, %v527
      %v662 = vsub.f32 0.0, %v529
      %v663 = vsub.f32 0.0, %v531
      %v664 = vsub.f32 0.0, %v533
      %v665 = vsub.f32 0.0, %v537
      %v666 = vsub.f32 0.0, %v539
      %v667 = vsub.f32 0.0, %v541
      %v668 = vsub.f32 0.0, %v543
      %v669 = vsub.f32 0.0, %v547
      %v670 = vsub.f32 0.0, %v549
      %v671 = vsub.f32 0.0, %v551
      %v672 = vsub.f32 0.0, %v553
      %v673 = vsub.f32 0.0, %v557
      %v674 = vsub.f32 0.0, %v559
      %v675 = vsub.f32 0.0, %v561
      %v676 = vsub.f32 0.0, %v563
      %v677 = vsub.f32 0.0, %v567
      %v678 = vsub.f32 0.0, %v569
      %v679 = vsub.f32 0.0, %v571
      %v680 = vsub.f32 0.0, %v573
      %v681 = vsub.f32 0.0, %v577
      %v682 = vsub.f32 0.0, %v579
      %v683 = vsub.f32 0.0, %v581
      %v684 = vsub.f32 0.0, %v583
      %v685 = vsub.f32 0.0, %v587
      %v686 = vsub.f32 0.0, %v589
      %v687 = vsub.f32 0.0, %v591
      %v688 = vsub.f32 0.0, %v593
      %v689 = vsub.f32 0.0, %v597
      %v690 = vsub.f32 0.0, %v599
      %v691 = vsub.f32 0.0, %v601
      %v692 = vsub.f32 0.0, %v603
      %v693 = vsub.f32 0.0, %v607
      %v694 = vsub.f32 0.0, %v609
      %v695 = vsub.f32 0.0, %v611
      %v696 = vsub.f32 0.0, %v613
      %v697 = vsub.f32 0.0, %v617
      %v698 = vsub.f32 0.0, %v619
      %v699 = vsub.f32 0.0, %v621
      %v700 = vsub.f32 0.0, %v623
      %v701 = vsub.f32 0.0, %v627
      %v702 = vsub.f32 0.0, %v629
      %v703 = vsub.f32 0.0, %v631
      %v704 = vsub.f32 0.0, %v633
      %v705 = vsub.f32 0.0, %v637
      %v706 = vsub.f32 0.0, %v639
      %v707 = vsub.f32 0.0, %v641
      %v708 = vsub.f32 0.0, %v643
      %v709 = vmul.f32 %v645, 1.442695
      %v710 = vpow.pop %v709
      %v711 = vmul.f32 %v646, 1.442695
      %v712 = vpow.pop %v711
      %v713 = vmul.f32 %v647, 1.442695
      %v714 = vpow.pop %v713
      %v715 = vmul.f32 %v648, 1.442695
      %v716 = vpow.pop %v715
      %v717 = vmul.f32 %v649, 1.442695
      %v718 = vpow.pop %v717
      %v719 = vmul.f32 %v650, 1.442695
      %v720 = vpow.pop %v719
      %v721 = vmul.f32 %v651, 1.442695
      %v722 = vpow.pop %v721
      %v723 = vmul.f32 %v652, 1.442695
      %v724 = vpow.pop %v723
      %v725 = vmul.f32 %v653, 1.442695
      %v726 = vpow.pop %v725
      %v727 = vmul.f32 %v654, 1.442695
      %v728 = vpow.pop %v727
      %v729 = vmul.f32 %v655, 1.442695
      %v730 = vpow.pop %v729
      %v731 = vmul.f32 %v656, 1.442695
      %v732 = vpow.pop %v731
      %v733 = vmul.f32 %v657, 1.442695
      %v734 = vpow.pop %v733
      %v735 = vmul.f32 %v658, 1.442695
      %v736 = vpow.pop %v735
      %v737 = vmul.f32 %v659, 1.442695
      %v738 = vpow.pop %v737
      %v739 = vmul.f32 %v660, 1.442695
      %v740 = vpow.pop %v739
      %v741 = vmul.f32 %v661, 1.442695
      %v742 = vpow.pop %v741
      %v743 = vmul.f32 %v662, 1.442695
      %v744 = vpow.pop %v743
      %v745 = vmul.f32 %v663, 1.442695
      %v746 = vpow.pop %v745
      %v747 = vmul.f32 %v664, 1.442695
      %v748 = vpow.pop %v747
      %v749 = vmul.f32 %v665, 1.442695
      %v750 = vpow.pop %v749
      %v751 = vmul.f32 %v666, 1.442695
      %v752 = vpow.pop %v751
      %v753 = vmul.f32 %v667, 1.442695
      %v754 = vpow.pop %v753
      %v755 = vmul.f32 %v668, 1.442695
      %v756 = vpow.pop %v755
      %v757 = vmul.f32 %v669, 1.442695
      %v758 = vpow.pop %v757
      %v759 = vmul.f32 %v670, 1.442695
      %v760 = vpow.pop %v759
      %v761 = vmul.f32 %v671, 1.442695
      %v762 = vpow.pop %v761
      %v763 = vmul.f32 %v672, 1.442695
      %v764 = vpow.pop %v763
      %v765 = vmul.f32 %v673, 1.442695
      %v766 = vpow.pop %v765
      %v767 = vmul.f32 %v674, 1.442695
      %v768 = vpow.pop %v767
      %v769 = vmul.f32 %v675, 1.442695
      %v770 = vpow.pop %v769
      %v771 = vmul.f32 %v676, 1.442695
      %v772 = vpow.pop %v771
      %v773 = vmul.f32 %v677, 1.442695
      %v774 = vpow.pop %v773
      %v775 = vmul.f32 %v678, 1.442695
      %v776 = vpow.pop %v775
      %v777 = vmul.f32 %v679, 1.442695
      %v778 = vpow.pop %v777
      %v779 = vmul.f32 %v680, 1.442695
      %v780 = vpow.pop %v779
      %v781 = vmul.f32 %v681, 1.442695
      %v782 = vpow.pop %v781
      %v783 = vmul.f32 %v682, 1.442695
      %v784 = vpow.pop %v783
      %v785 = vmul.f32 %v683, 1.442695
      %v786 = vpow.pop %v785
      %v787 = vmul.f32 %v684, 1.442695
      %v788 = vpow.pop %v787
      %v789 = vmul.f32 %v685, 1.442695
      %v790 = vpow.pop %v789
      %v791 = vmul.f32 %v686, 1.442695
      %v792 = vpow.pop %v791
      %v793 = vmul.f32 %v687, 1.442695
      %v794 = vpow.pop %v793
      %v795 = vmul.f32 %v688, 1.442695
      %v796 = vpow.pop %v795
      %v797 = vmul.f32 %v689, 1.442695
      %v798 = vpow.pop %v797
      %v799 = vmul.f32 %v690, 1.442695
      %v800 = vpow.pop %v799
      %v801 = vmul.f32 %v691, 1.442695
      %v802 = vpow.pop %v801
      %v803 = vmul.f32 %v692, 1.442695
      %v804 = vpow.pop %v803
      %v805 = vmul.f32 %v693, 1.442695
      %v806 = vpow.pop %v805
      %v807 = vmul.f32 %v694, 1.442695
      %v808 = vpow.pop %v807
      %v809 = vmul.f32 %v695, 1.442695
      %v810 = vpow.pop %v809
      %v811 = vmul.f32 %v696, 1.442695
      %v812 = vpow.pop %v811
      %v813 = vmul.f32 %v697, 1.442695
      %v814 = vpow.pop %v813
      %v815 = vmul.f32 %v698, 1.442695
      %v816 = vpow.pop %v815
      %v817 = vmul.f32 %v699, 1.442695
      %v818 = vpow.pop %v817
      %v819 = vmul.f32 %v700, 1.442695
      %v820 = vpow.pop %v819
      %v821 = vmul.f32 %v701, 1.442695
      %v822 = vpow.pop %v821
      %v823 = vmul.f32 %v702, 1.442695
      %v824 = vpow.pop %v823
      %v825 = vmul.f32 %v703, 1.442695
      %v826 = vpow.pop %v825
      %v827 = vmul.f32 %v704, 1.442695
      %v828 = vpow.pop %v827
      %v829 = vmul.f32 %v705, 1.442695
      %v830 = vpow.pop %v829
      %v831 = vmul.f32 %v706, 1.442695
      %v832 = vpow.pop %v831
      %v833 = vmul.f32 %v707, 1.442695
      %v834 = vpow.pop %v833
      %v835 = vmul.f32 %v708, 1.442695
      %v836 = vpow.pop %v835
      %v837 = vadd.f32 %v710, 1.0
      %v838 = vadd.f32 %v712, 1.0
      %v839 = vadd.f32 %v714, 1.0
      %v840 = vadd.f32 %v716, 1.0
      %v841 = vadd.f32 %v718, 1.0
      %v842 = vadd.f32 %v720, 1.0
      %v843 = vadd.f32 %v722, 1.0
      %v844 = vadd.f32 %v724, 1.0
      %v845 = vadd.f32 %v726, 1.0
      %v846 = vadd.f32 %v728, 1.0
      %v847 = vadd.f32 %v730, 1.0
      %v848 = vadd.f32 %v732, 1.0
      %v849 = vadd.f32 %v734, 1.0
      %v850 = vadd.f32 %v736, 1.0
      %v851 = vadd.f32 %v738, 1.0
      %v852 = vadd.f32 %v740, 1.0
      %v853 = vadd.f32 %v742, 1.0
      %v854 = vadd.f32 %v744, 1.0
      %v855 = vadd.f32 %v746, 1.0
      %v856 = vadd.f32 %v748, 1.0
      %v857 = vadd.f32 %v750, 1.0
      %v858 = vadd.f32 %v752, 1.0
      %v859 = vadd.f32 %v754, 1.0
      %v860 = vadd.f32 %v756, 1.0
      %v861 = vadd.f32 %v758, 1.0
      %v862 = vadd.f32 %v760, 1.0
      %v863 = vadd.f32 %v762, 1.0
      %v864 = vadd.f32 %v764, 1.0
      %v865 = vadd.f32 %v766, 1.0
      %v866 = vadd.f32 %v768, 1.0
      %v867 = vadd.f32 %v770, 1.0
      %v868 = vadd.f32 %v772, 1.0
      %v869 = vadd.f32 %v774, 1.0
      %v870 = vadd.f32 %v776, 1.0
      %v871 = vadd.f32 %v778, 1.0
      %v872 = vadd.f32 %v780, 1.0
      %v873 = vadd.f32 %v782, 1.0
      %v874 = vadd.f32 %v784, 1.0
      %v875 = vadd.f32 %v786, 1.0
      %v876 = vadd.f32 %v788, 1.0
      %v877 = vadd.f32 %v790, 1.0
      %v878 = vadd.f32 %v792, 1.0
      %v879 = vadd.f32 %v794, 1.0
      %v880 = vadd.f32 %v796, 1.0
      %v881 = vadd.f32 %v798, 1.0
      %v882 = vadd.f32 %v800, 1.0
      %v883 = vadd.f32 %v802, 1.0
      %v884 = vadd.f32 %v804, 1.0
      %v885 = vadd.f32 %v806, 1.0
      %v886 = vadd.f32 %v808, 1.0
      %v887 = vadd.f32 %v810, 1.0
      %v888 = vadd.f32 %v812, 1.0
      %v889 = vadd.f32 %v814, 1.0
      %v890 = vadd.f32 %v816, 1.0
      %v891 = vadd.f32 %v818, 1.0
      %v892 = vadd.f32 %v820, 1.0
      %v893 = vadd.f32 %v822, 1.0
      %v894 = vadd.f32 %v824, 1.0
      %v895 = vadd.f32 %v826, 1.0
      %v896 = vadd.f32 %v828, 1.0
      %v897 = vadd.f32 %v830, 1.0
      %v898 = vadd.f32 %v832, 1.0
      %v899 = vadd.f32 %v834, 1.0
      %v900 = vadd.f32 %v836, 1.0
      %v901 = vrcp.pop %v837
      %v902 = vmul.f32 1.0, %v901
      %v903 = vrcp.pop %v838
      %v904 = vmul.f32 1.0, %v903
      %v905 = vrcp.pop %v839
      %v906 = vmul.f32 1.0, %v905
      %v907 = vrcp.pop %v840
      %v908 = vmul.f32 1.0, %v907
      %v909 = vrcp.pop %v841
      %v910 = vmul.f32 1.0, %v909
      %v911 = vrcp.pop %v842
      %v912 = vmul.f32 1.0, %v911
      %v913 = vrcp.pop %v843
      %v914 = vmul.f32 1.0, %v913
      %v915 = vrcp.pop %v844
      %v916 = vmul.f32 1.0, %v915
      %v917 = vrcp.pop %v845
      %v918 = vmul.f32 1.0, %v917
      %v919 = vrcp.pop %v846
      %v920 = vmul.f32 1.0, %v919
      %v921 = vrcp.pop %v847
      %v922 = vmul.f32 1.0, %v921
      %v923 = vrcp.pop %v848
      %v924 = vmul.f32 1.0, %v923
      %v925 = vrcp.pop %v849
      %v926 = vmul.f32 1.0, %v925
      %v927 = vrcp.pop %v850
      %v928 = vmul.f32 1.0, %v927
      %v929 = vrcp.pop %v851
      %v930 = vmul.f32 1.0, %v929
      %v931 = vrcp.pop %v852
      %v932 = vmul.f32 1.0, %v931
      %v933 = vrcp.pop %v853
      %v934 = vmul.f32 1.0, %v933
      %v935 = vrcp.pop %v854
      %v936 = vmul.f32 1.0, %v935
      %v937 = vrcp.pop %v855
      %v938 = vmul.f32 1.0, %v937
      %v939 = vrcp.pop %v856
      %v940 = vmul.f32 1.0, %v939
      %v941 = vrcp.pop %v857
      %v942 = vmul.f32 1.0, %v941
      %v943 = vrcp.pop %v858
      %v944 = vmul.f32 1.0, %v943
      %v945 = vrcp.pop %v859
      %v946 = vmul.f32 1.0, %v945
      %v947 = vrcp.pop %v860
      %v948 = vmul.f32 1.0, %v947
      %v949 = vrcp.pop %v861
      %v950 = vmul.f32 1.0, %v949
      %v951 = vrcp.pop %v862
      %v952 = vmul.f32 1.0, %v951
      %v953 = vrcp.pop %v863
      %v954 = vmul.f32 1.0, %v953
      %v955 = vrcp.pop %v864
      %v956 = vmul.f32 1.0, %v955
      %v957 = vrcp.pop %v865
      %v958 = vmul.f32 1.0, %v957
      %v959 = vrcp.pop %v866
      %v960 = vmul.f32 1.0, %v959
      %v961 = vrcp.pop %v867
      %v962 = vmul.f32 1.0, %v961
      %v963 = vrcp.pop %v868
      %v964 = vmul.f32 1.0, %v963
      %v965 = vrcp.pop %v869
      %v966 = vmul.f32 1.0, %v965
      %v967 = vrcp.pop %v870
      %v968 = vmul.f32 1.0, %v967
      %v969 = vrcp.pop %v871
      %v970 = vmul.f32 1.0, %v969
      %v971 = vrcp.pop %v872
      %v972 = vmul.f32 1.0, %v971
      %v973 = vrcp.pop %v873
      %v974 = vmul.f32 1.0, %v973
      %v975 = vrcp.pop %v874
      %v976 = vmul.f32 1.0, %v975
      %v977 = vrcp.pop %v875
      %v978 = vmul.f32 1.0, %v977
      %v979 = vrcp.pop %v876
      %v980 = vmul.f32 1.0, %v979
      %v981 = vrcp.pop %v877
      %v982 = vmul.f32 1.0, %v981
      %v983 = vrcp.pop %v878
      %v984 = vmul.f32 1.0, %v983
      %v985 = vrcp.pop %v879
      %v986 = vmul.f32 1.0, %v985
      %v987 = vrcp.pop %v880
      %v988 = vmul.f32 1.0, %v987
      %v989 = vrcp.pop %v881
      %v990 = vmul.f32 1.0, %v989
      %v991 = vrcp.pop %v882
      %v992 = vmul.f32 1.0, %v991
      %v993 = vrcp.pop %v883
      %v994 = vmul.f32 1.0, %v993
      %v995 = vrcp.pop %v884
      %v996 = vmul.f32 1.0, %v995
      %v997 = vrcp.pop %v885
      %v998 = vmul.f32 1.0, %v997
      %v999 = vrcp.pop %v886
      %v1000 = vmul.f32 1.0, %v999
      %v1001 = vrcp.pop %v887
      %v1002 = vmul.f32 1.0, %v1001
      %v1003 = vrcp.pop %v888
      %v1004 = vmul.f32 1.0, %v1003
      %v1005 = vrcp.pop %v889
      %v1006 = vmul.f32 1.0, %v1005
      %v1007 = vrcp.pop %v890
      %v1008 = vmul.f32 1.0, %v1007
      %v1009 = vrcp.pop %v891
      %v1010 = vmul.f32 1.0, %v1009
      %v1011 = vrcp.pop %v892
      %v1012 = vmul.f32 1.0, %v1011
      %v1013 = vrcp.pop %v893
      %v1014 = vmul.f32 1.0, %v1013
      %v1015 = vrcp.pop %v894
      %v1016 = vmul.f32 1.0, %v1015
      %v1017 = vrcp.pop %v895
      %v1018 = vmul.f32 1.0, %v1017
      %v1019 = vrcp.pop %v896
      %v1020 = vmul.f32 1.0, %v1019
      %v1021 = vrcp.pop %v897
      %v1022 = vmul.f32 1.0, %v1021
      %v1023 = vrcp.pop %v898
      %v1024 = vmul.f32 1.0, %v1023
      %v1025 = vrcp.pop %v899
      %v1026 = vmul.f32 1.0, %v1025
      %v1027 = vrcp.pop %v900
      %v1028 = vmul.f32 1.0, %v1027
      %v1029 = vmul.f32 %v487, %v902
      %v1030 = vmul.f32 %v489, %v904
      %v1031 = vmul.f32 %v491, %v906
      %v1032 = vmul.f32 %v493, %v908
      %v1033 = vmul.f32 %v497, %v910
      %v1034 = vmul.f32 %v499, %v912
      %v1035 = vmul.f32 %v501, %v914
      %v1036 = vmul.f32 %v503, %v916
      %v1037 = vmul.f32 %v507, %v918
      %v1038 = vmul.f32 %v509, %v920
      %v1039 = vmul.f32 %v511, %v922
      %v1040 = vmul.f32 %v513, %v924
      %v1041 = vmul.f32 %v517, %v926
      %v1042 = vmul.f32 %v519, %v928
      %v1043 = vmul.f32 %v521, %v930
      %v1044 = vmul.f32 %v523, %v932
      %v1045 = vmul.f32 %v527, %v934
      %v1046 = vmul.f32 %v529, %v936
      %v1047 = vmul.f32 %v531, %v938
      %v1048 = vmul.f32 %v533, %v940
      %v1049 = vmul.f32 %v537, %v942
      %v1050 = vmul.f32 %v539, %v944
      %v1051 = vmul.f32 %v541, %v946
      %v1052 = vmul.f32 %v543, %v948
      %v1053 = vmul.f32 %v547, %v950
      %v1054 = vmul.f32 %v549, %v952
      %v1055 = vmul.f32 %v551, %v954
      %v1056 = vmul.f32 %v553, %v956
      %v1057 = vmul.f32 %v557, %v958
      %v1058 = vmul.f32 %v559, %v960
      %v1059 = vmul.f32 %v561, %v962
      %v1060 = vmul.f32 %v563, %v964
      %v1061 = vmul.f32 %v567, %v966
      %v1062 = vmul.f32 %v569, %v968
      %v1063 = vmul.f32 %v571, %v970
      %v1064 = vmul.f32 %v573, %v972
      %v1065 = vmul.f32 %v577, %v974
      %v1066 = vmul.f32 %v579, %v976
      %v1067 = vmul.f32 %v581, %v978
      %v1068 = vmul.f32 %v583, %v980
      %v1069 = vmul.f32 %v587, %v982
      %v1070 = vmul.f32 %v589, %v984
      %v1071 = vmul.f32 %v591, %v986
      %v1072 = vmul.f32 %v593, %v988
      %v1073 = vmul.f32 %v597, %v990
      %v1074 = vmul.f32 %v599, %v992
      %v1075 = vmul.f32 %v601, %v994
      %v1076 = vmul.f32 %v603, %v996
      %v1077 = vmul.f32 %v607, %v998
      %v1078 = vmul.f32 %v609, %v1000
      %v1079 = vmul.f32 %v611, %v1002
      %v1080 = vmul.f32 %v613, %v1004
      %v1081 = vmul.f32 %v617, %v1006
      %v1082 = vmul.f32 %v619, %v1008
      %v1083 = vmul.f32 %v621, %v1010
      %v1084 = vmul.f32 %v623, %v1012
      %v1085 = vmul.f32 %v627, %v1014
      %v1086 = vmul.f32 %v629, %v1016
      %v1087 = vmul.f32 %v631, %v1018
      %v1088 = vmul.f32 %v633, %v1020
      %v1089 = vmul.f32 %v637, %v1022
      %v1090 = vmul.f32 %v639, %v1024
      %v1091 = vmul.f32 %v641, %v1026
      %v1092 = vmul.f32 %v643, %v1028
      %v1093 = vpack.c.bf16 %v1031, %v1029
      %v1094 = vpack.c.bf16 %v1035, %v1033
      %v1095 = vpack.c.bf16 %v1039, %v1037
      %v1096 = vpack.c.bf16 %v1043, %v1041
      %v1097 = vpack.c.bf16 %v1047, %v1045
      %v1098 = vpack.c.bf16 %v1051, %v1049
      %v1099 = vpack.c.bf16 %v1055, %v1053
      %v1100 = vpack.c.bf16 %v1059, %v1057
      %v1101 = vpack.c.bf16 %v1063, %v1061
      %v1102 = vpack.c.bf16 %v1067, %v1065
      %v1103 = vpack.c.bf16 %v1071, %v1069
      %v1104 = vpack.c.bf16 %v1075, %v1073
      %v1105 = vpack.c.bf16 %v1079, %v1077
      %v1106 = vpack.c.bf16 %v1083, %v1081
      %v1107 = vpack.c.bf16 %v1087, %v1085
      %v1108 = vpack.c.bf16 %v1091, %v1089
      %v1125 = vunpack.c.l.b16 %v1093
      %v1126 = vunpack.c.h.b16 %v1093
      %v1127 = vunpack.c.l.b16 %v1094
      %v1128 = vunpack.c.h.b16 %v1094
      %v1129 = vunpack.c.l.b16 %v1095
      %v1130 = vunpack.c.h.b16 %v1095
      %v1131 = vunpack.c.l.b16 %v1096
      %v1132 = vunpack.c.h.b16 %v1096
      %v1133 = vunpack.c.l.b16 %v1097
      %v1134 = vunpack.c.h.b16 %v1097
      %v1135 = vunpack.c.l.b16 %v1098
      %v1136 = vunpack.c.h.b16 %v1098
      %v1137 = vunpack.c.l.b16 %v1099
      %v1138 = vunpack.c.h.b16 %v1099
      %v1139 = vunpack.c.l.b16 %v1100
      %v1140 = vunpack.c.h.b16 %v1100
      %v1141 = vunpack.c.l.b16 %v1101
      %v1142 = vunpack.c.h.b16 %v1101
      %v1143 = vunpack.c.l.b16 %v1102
      %v1144 = vunpack.c.h.b16 %v1102
      %v1145 = vunpack.c.l.b16 %v1103
      %v1146 = vunpack.c.h.b16 %v1103
      %v1147 = vunpack.c.l.b16 %v1104
      %v1148 = vunpack.c.h.b16 %v1104
      %v1149 = vunpack.c.l.b16 %v1105
      %v1150 = vunpack.c.h.b16 %v1105
      %v1151 = vunpack.c.l.b16 %v1106
      %v1152 = vunpack.c.h.b16 %v1106
      %v1153 = vunpack.c.l.b16 %v1107
      %v1154 = vunpack.c.h.b16 %v1107
      %v1155 = vunpack.c.l.b16 %v1108
      %v1156 = vunpack.c.h.b16 %v1108
      %v1157 = vpack.c.b16 %v1125, %v1125
      %v1158 = vpack.c.b16 %v1126, %v1126
      %v1159 = vpack.c.b16 %v1127, %v1127
      %v1160 = vpack.c.b16 %v1128, %v1128
      %v1161 = vpack.c.b16 %v1129, %v1129
      %v1162 = vpack.c.b16 %v1130, %v1130
      %v1163 = vpack.c.b16 %v1131, %v1131
      %v1164 = vpack.c.b16 %v1132, %v1132
      %v1165 = vpack.c.b16 %v1133, %v1133
      %v1166 = vpack.c.b16 %v1134, %v1134
      %v1167 = vpack.c.b16 %v1135, %v1135
      %v1168 = vpack.c.b16 %v1136, %v1136
      %v1169 = vpack.c.b16 %v1137, %v1137
      %v1170 = vpack.c.b16 %v1138, %v1138
      %v1171 = vpack.c.b16 %v1139, %v1139
      %v1172 = vpack.c.b16 %v1140, %v1140
      %v1173 = vpack.c.b16 %v1141, %v1141
      %v1174 = vpack.c.b16 %v1142, %v1142
      %v1175 = vpack.c.b16 %v1143, %v1143
      %v1176 = vpack.c.b16 %v1144, %v1144
      %v1177 = vpack.c.b16 %v1145, %v1145
      %v1178 = vpack.c.b16 %v1146, %v1146
      %v1179 = vpack.c.b16 %v1147, %v1147
      %v1180 = vpack.c.b16 %v1148, %v1148
      %v1181 = vpack.c.b16 %v1149, %v1149
      %v1182 = vpack.c.b16 %v1150, %v1150
      %v1183 = vpack.c.b16 %v1151, %v1151
      %v1184 = vpack.c.b16 %v1152, %v1152
      %v1185 = vpack.c.b16 %v1153, %v1153
      %v1186 = vpack.c.b16 %v1154, %v1154
      %v1187 = vpack.c.b16 %v1155, %v1155
      %v1188 = vpack.c.b16 %v1156, %v1156
      %1221 = vst [vmem:[%s207] sm:$0xf] %v1157
      %1222 = vst [vmem:[%s207 + $0x4] sm:$0xf] %v1158
      %1223 = vst [vmem:[%s207 + $0x8] sm:$0xf] %v1159
      %1224 = vst [vmem:[%s207 + $0xc] sm:$0xf] %v1160
      %1225 = vst [vmem:[%s207 + $0x10] sm:$0xf] %v1161
      %1226 = vst [vmem:[%s207 + $0x14] sm:$0xf] %v1162
      %1227 = vst [vmem:[%s207 + $0x18] sm:$0xf] %v1163
      %1228 = vst [vmem:[%s207 + $0x1c] sm:$0xf] %v1164
      %1229 = vst [vmem:[%s207 + $0x20] sm:$0xf] %v1165
      %1230 = vst [vmem:[%s207 + $0x24] sm:$0xf] %v1166
      %1231 = vst [vmem:[%s207 + $0x28] sm:$0xf] %v1167
      %1232 = vst [vmem:[%s207 + $0x2c] sm:$0xf] %v1168
      %1233 = vst [vmem:[%s207 + $0x30] sm:$0xf] %v1169
      %1234 = vst [vmem:[%s207 + $0x34] sm:$0xf] %v1170
      %1235 = vst [vmem:[%s207 + $0x38] sm:$0xf] %v1171
      %1236 = vst [vmem:[%s207 + $0x3c] sm:$0xf] %v1172
      %1237 = vst [vmem:[%s207 + $0x40] sm:$0xf] %v1173
      %1238 = vst [vmem:[%s207 + $0x44] sm:$0xf] %v1174
      %1239 = vst [vmem:[%s207 + $0x48] sm:$0xf] %v1175
      %1240 = vst [vmem:[%s207 + $0x4c] sm:$0xf] %v1176
      %1241 = vst [vmem:[%s207 + $0x50] sm:$0xf] %v1177
      %1242 = vst [vmem:[%s207 + $0x54] sm:$0xf] %v1178
      %1243 = vst [vmem:[%s207 + $0x58] sm:$0xf] %v1179
      %1244 = vst [vmem:[%s207 + $0x5c] sm:$0xf] %v1180
      %1245 = vst [vmem:[%s207 + $0x60] sm:$0xf] %v1181
      %1246 = vst [vmem:[%s207 + $0x64] sm:$0xf] %v1182
      %1247 = vst [vmem:[%s207 + $0x68] sm:$0xf] %v1183
      %1248 = vst [vmem:[%s207 + $0x6c] sm:$0xf] %v1184
      %1249 = vst [vmem:[%s207 + $0x70] sm:$0xf] %v1185
      %1250 = vst [vmem:[%s207 + $0x74] sm:$0xf] %v1186
      %1251 = vst [vmem:[%s207 + $0x78] sm:$0xf] %v1187
      %1252 = vst [vmem:[%s207 + $0x7c] sm:$0xf] %v1188
      %v1253 = vpack.c.bf16 %v1032, %v1030
      %v1254 = vpack.c.bf16 %v1036, %v1034
      %v1255 = vpack.c.bf16 %v1040, %v1038
      %v1256 = vpack.c.bf16 %v1044, %v1042
      %v1257 = vpack.c.bf16 %v1048, %v1046
      %v1258 = vpack.c.bf16 %v1052, %v1050
      %v1259 = vpack.c.bf16 %v1056, %v1054
      %v1260 = vpack.c.bf16 %v1060, %v1058
      %v1261 = vpack.c.bf16 %v1064, %v1062
      %v1262 = vpack.c.bf16 %v1068, %v1066
      %v1263 = vpack.c.bf16 %v1072, %v1070
      %v1264 = vpack.c.bf16 %v1076, %v1074
      %v1265 = vpack.c.bf16 %v1080, %v1078
      %v1266 = vpack.c.bf16 %v1084, %v1082
      %v1267 = vpack.c.bf16 %v1088, %v1086
      %v1268 = vpack.c.bf16 %v1092, %v1090
      %v1285 = vunpack.c.l.b16 %v1253
      %v1286 = vunpack.c.h.b16 %v1253
      %v1287 = vunpack.c.l.b16 %v1254
      %v1288 = vunpack.c.h.b16 %v1254
      %v1289 = vunpack.c.l.b16 %v1255
      %v1290 = vunpack.c.h.b16 %v1255
      %v1291 = vunpack.c.l.b16 %v1256
      %v1292 = vunpack.c.h.b16 %v1256
      %v1293 = vunpack.c.l.b16 %v1257
      %v1294 = vunpack.c.h.b16 %v1257
      %v1295 = vunpack.c.l.b16 %v1258
      %v1296 = vunpack.c.h.b16 %v1258
      %v1297 = vunpack.c.l.b16 %v1259
      %v1298 = vunpack.c.h.b16 %v1259
      %v1299 = vunpack.c.l.b16 %v1260
      %v1300 = vunpack.c.h.b16 %v1260
      %v1301 = vunpack.c.l.b16 %v1261
      %v1302 = vunpack.c.h.b16 %v1261
      %v1303 = vunpack.c.l.b16 %v1262
      %v1304 = vunpack.c.h.b16 %v1262
      %v1305 = vunpack.c.l.b16 %v1263
      %v1306 = vunpack.c.h.b16 %v1263
      %v1307 = vunpack.c.l.b16 %v1264
      %v1308 = vunpack.c.h.b16 %v1264
      %v1309 = vunpack.c.l.b16 %v1265
      %v1310 = vunpack.c.h.b16 %v1265
      %v1311 = vunpack.c.l.b16 %v1266
      %v1312 = vunpack.c.h.b16 %v1266
      %v1313 = vunpack.c.l.b16 %v1267
      %v1314 = vunpack.c.h.b16 %v1267
      %v1315 = vunpack.c.l.b16 %v1268
      %v1316 = vunpack.c.h.b16 %v1268
      %v1317 = vpack.c.b16 %v1285, %v1285
      %v1318 = vpack.c.b16 %v1286, %v1286
      %v1319 = vpack.c.b16 %v1287, %v1287
      %v1320 = vpack.c.b16 %v1288, %v1288
      %v1321 = vpack.c.b16 %v1289, %v1289
      %v1322 = vpack.c.b16 %v1290, %v1290
      %v1323 = vpack.c.b16 %v1291, %v1291
      %v1324 = vpack.c.b16 %v1292, %v1292
      %v1325 = vpack.c.b16 %v1293, %v1293
      %v1326 = vpack.c.b16 %v1294, %v1294
      %v1327 = vpack.c.b16 %v1295, %v1295
      %v1328 = vpack.c.b16 %v1296, %v1296
      %v1329 = vpack.c.b16 %v1297, %v1297
      %v1330 = vpack.c.b16 %v1298, %v1298
      %v1331 = vpack.c.b16 %v1299, %v1299
      %v1332 = vpack.c.b16 %v1300, %v1300
      %v1333 = vpack.c.b16 %v1301, %v1301
      %v1334 = vpack.c.b16 %v1302, %v1302
      %v1335 = vpack.c.b16 %v1303, %v1303
      %v1336 = vpack.c.b16 %v1304, %v1304
      %v1337 = vpack.c.b16 %v1305, %v1305
      %v1338 = vpack.c.b16 %v1306, %v1306
      %v1339 = vpack.c.b16 %v1307, %v1307
      %v1340 = vpack.c.b16 %v1308, %v1308
      %v1341 = vpack.c.b16 %v1309, %v1309
      %v1342 = vpack.c.b16 %v1310, %v1310
      %v1343 = vpack.c.b16 %v1311, %v1311
      %v1344 = vpack.c.b16 %v1312, %v1312
      %v1345 = vpack.c.b16 %v1313, %v1313
      %v1346 = vpack.c.b16 %v1314, %v1314
      %v1347 = vpack.c.b16 %v1315, %v1315
      %v1348 = vpack.c.b16 %v1316, %v1316
      %1381 = vst [vmem:[%s213] sm:$0xf] %v1317
      %1382 = vst [vmem:[%s213 + $0x4] sm:$0xf] %v1318
      %1383 = vst [vmem:[%s213 + $0x8] sm:$0xf] %v1319
      %1384 = vst [vmem:[%s213 + $0xc] sm:$0xf] %v1320
      %1385 = vst [vmem:[%s213 + $0x10] sm:$0xf] %v1321
      %1386 = vst [vmem:[%s213 + $0x14] sm:$0xf] %v1322
      %1387 = vst [vmem:[%s213 + $0x18] sm:$0xf] %v1323
      %1388 = vst [vmem:[%s213 + $0x1c] sm:$0xf] %v1324
      %1389 = vst [vmem:[%s213 + $0x20] sm:$0xf] %v1325
      %1390 = vst [vmem:[%s213 + $0x24] sm:$0xf] %v1326
      %1391 = vst [vmem:[%s213 + $0x28] sm:$0xf] %v1327
      %1392 = vst [vmem:[%s213 + $0x2c] sm:$0xf] %v1328
      %1393 = vst [vmem:[%s213 + $0x30] sm:$0xf] %v1329
      %1394 = vst [vmem:[%s213 + $0x34] sm:$0xf] %v1330
      %1395 = vst [vmem:[%s213 + $0x38] sm:$0xf] %v1331
      %1396 = vst [vmem:[%s213 + $0x3c] sm:$0xf] %v1332
      %1397 = vst [vmem:[%s213 + $0x40] sm:$0xf] %v1333
      %1398 = vst [vmem:[%s213 + $0x44] sm:$0xf] %v1334
      %1399 = vst [vmem:[%s213 + $0x48] sm:$0xf] %v1335
      %1400 = vst [vmem:[%s213 + $0x4c] sm:$0xf] %v1336
      %1401 = vst [vmem:[%s213 + $0x50] sm:$0xf] %v1337
      %1402 = vst [vmem:[%s213 + $0x54] sm:$0xf] %v1338
      %1403 = vst [vmem:[%s213 + $0x58] sm:$0xf] %v1339
      %1404 = vst [vmem:[%s213 + $0x5c] sm:$0xf] %v1340
      %1405 = vst [vmem:[%s213 + $0x60] sm:$0xf] %v1341
      %1406 = vst [vmem:[%s213 + $0x64] sm:$0xf] %v1342
      %1407 = vst [vmem:[%s213 + $0x68] sm:$0xf] %v1343
      %1408 = vst [vmem:[%s213 + $0x6c] sm:$0xf] %v1344
      %1409 = vst [vmem:[%s213 + $0x70] sm:$0xf] %v1345
      %1410 = vst [vmem:[%s213 + $0x74] sm:$0xf] %v1346
      %1411 = vst [vmem:[%s213 + $0x78] sm:$0xf] %v1347
      %1412 = vst [vmem:[%s213 + $0x7c] sm:$0xf] %v1348
      %s1413 = smul.u32 32, %s16
      %p1414 = scmp.lt.s32.totalorder %s1413, 63
      %s1415 = scalar_select %p1414, %s1413, 63
      %s1416 = smul.addr %s1415, 4
      %s1417 = scalar_lea.vmem %s3, %s1416
      %s1418 = smul.u32 32, %s16
      %p1419 = scmp.lt.s32.totalorder %s1418, 63
      %s1420 = scalar_select %p1419, %s1418, 63
      %s1421 = smul.addr %s1420, 4
      %s1422 = scalar_lea.vmem %s4, %s1421
      // Predicated region
      $region33: #{c2f_lmsa_forward.3} parent=31 // pred_check
        %p1423 = pneg %p102
      $region34: #{c2f_lmsa_forward.3} parent=31 // pred_check_branch
        %1425 = sbr.rel (%p1423) target = $region36
      $region35: #{c2f_lmsa_forward.3} parent=31 // pred_region
        %s1426 = smul.u32 32, %s16
      $region36: #{c2f_lmsa_forward.3} parent=31 // pred_fallthru
        _
      // Predicated region
      $region37: #{c2f_lmsa_forward.3} parent=31 // pred_check
        %p1427 = pneg %p128
      $region38: #{c2f_lmsa_forward.3} parent=31 // pred_check_branch
        %1429 = sbr.rel (%p1427) target = $region40
      $region39: #{c2f_lmsa_forward.3} parent=31 // pred_region
        %s1430 = smul.u32 32, %s16
      $region40: #{c2f_lmsa_forward.3} parent=31 // pred_fallthru
        _
    $region32: #{c2f_lmsa_forward.3} parent=5 // pred_fallthru
      _
    %p1431 = scmp.le.s32.totalorder 2, %s11
    // Predicated region
    $region41: #{c2f_lmsa_forward.3} parent=5 // pred_check
      %p1432 = pneg %p1431
    $region42: #{c2f_lmsa_forward.3} parent=5 // pred_check_branch
      %1434 = sbr.rel (%p1432) target = $region44
    $region43: #{c2f_lmsa_forward.3} parent=5 // pred_region
      %s1435 = ssub.s32 %s11, 2
      // Predicated region
      $region45: #{c2f_lmsa_forward.3} parent=43 // pred_check
        %p1436 = pneg %p108
      $region46: #{c2f_lmsa_forward.3} parent=43 // pred_check_branch
        %1438 = sbr.rel (%p1436) target = $region48
      $region47: #{c2f_lmsa_forward.3} parent=43 // pred_region
        %s1439 = smul.u32 32, %s17
        %p1440 = scmp.lt.s32.totalorder %s1439, 63
        %s1441 = scalar_select %p1440, %s1439, 63
        %s1442 = smul.addr %s1441, 4
        %s1443 = scalar_lea.vmem %s3, %s1442
      $region48: #{c2f_lmsa_forward.3} parent=43 // pred_fallthru
        _
      // Predicated region
      $region49: #{c2f_lmsa_forward.3} parent=43 // pred_check
        %p1444 = pneg %p134
      $region50: #{c2f_lmsa_forward.3} parent=43 // pred_check_branch
        %1446 = sbr.rel (%p1444) target = $region52
      $region51: #{c2f_lmsa_forward.3} parent=43 // pred_region
        %s1447 = smul.u32 32, %s17
        %p1448 = scmp.lt.s32.totalorder %s1447, 63
        %s1449 = scalar_select %p1448, %s1447, 63
        %s1450 = smul.addr %s1449, 4
        %s1451 = scalar_lea.vmem %s4, %s1450
      $region52: #{c2f_lmsa_forward.3} parent=43 // pred_fallthru
        _
    $region44: #{c2f_lmsa_forward.3} parent=5 // pred_fallthru
      _
  $region6: #{c2f_lmsa_forward.3} parent=0 // loop_footer
    %s15 = sadd.s32 1, %s11
  $region7: #{c2f_lmsa_forward.3} parent=0 // loop_footer_branch
    %10 = sbr.rel target = $region3
  $region8: #{c2f_lmsa_forward.3} parent=0 // loop_exit
    _

// kernel: c2f_lmsa_forward.5
$region0: #{c2f_lmsa_forward.5}
  #allocation0 [shape = 'u32[]', space=smem, size = 0x4, offset = 0x4, fixed_abs, tag = 'smem constant byte address 0x4 - core index']
  #allocation1 [shape = 'u32[144,128]{1,0:T(1,128)}', space=vmem, size = 0x12000, scoped, tag = 'internal scratch']
  %s0 = inlined_call_operand.vmem [shape: bf16[512,128], index: 0, kind: input, shape index: {}]
  %s1 = inlined_call_operand.vmem [shape: bf16[512,128], index: 1, kind: input, shape index: {}]
  %s2 = inlined_call_operand.vmem [shape: bf16[512,128], index: 2, kind: input, shape index: {}]
  %s3 = inlined_call_operand.vmem [shape: bf16[384,128], index: 3, kind: input, shape index: {}]
  %s4 = inlined_call_operand.vmem [shape: f32[1,128], index: 4, kind: input, shape index: {}]
  %s5 = inlined_call_operand.vmem [shape: f32[512,128], index: 5, kind: output, shape index: {}]
  %s6 = sld [smem:[#allocation0]]
  $region53: #{c2f_lmsa_forward.5} parent=0
    _
  %s8 = ssub.s32 1, %s6
  %s9 = scalar_select 0, %s8, %s6
  loop: start=0, step=1, limit=4
  $region2: #{c2f_lmsa_forward.5} parent=0 // loop_pre_header
    _
  $region3: #{c2f_lmsa_forward.5} parent=0 // loop_header
    %s11 = sphi 0, %s15
    %p12 = scmp.ge.s32.totalorder %s11, 4
    %s21 = sphi 0, %s23
    %s24 = sphi 0, %s21
    %s25 = sphi 0, %s24
    %s41 = sphi 0, %s25
    %s47 = sphi 0, %s49
    %s50 = sphi 0, %s47
    %s51 = sphi 0, %s50
    %s67 = sphi 0, %s51
    %s73 = sphi 0, %s75
    %s76 = sphi 0, %s73
    %s77 = sphi 0, %s76
    %s93 = sphi 0, %s77
    %s97 = sphi 0, %s97
    %s99 = sphi 0, %s97
    %s100 = sphi 0, %s99
    %s114 = sphi 0, %s100
    %s118 = sphi 0, %s118
    %s120 = sphi 0, %s118
    %s121 = sphi 0, %s120
    %s135 = sphi 0, %s121
    %s141 = sphi 0, %s143
    %s144 = sphi 0, %s141
    %s145 = sphi 0, %s144
    %s161 = sphi 0, %s145
  $region4: #{c2f_lmsa_forward.5} parent=0 // loop_header_branch
    %14 = sbr.rel (%p12) target = $region8
  $region5: #{c2f_lmsa_forward.5} parent=0 // loop_body
    %s16 = ssub.s32 %s11, 1
    %s17 = ssub.s32 %s11, 2
    %s18 = sadd.s32 %s11, 1
    %s19 = ssub.s32 %s11, %s18
    %p20 = scmp.eq.s32.totalorder %s19, 0
    %s22 = sadd.s32 %s21, 1
    %s23 = scalar_select %p20, %s21, %s22
    %p26 = pneg %p20
    %p27 = scmp.eq.s32.totalorder %s11, 1
    %p28 = por %p26, %p27
    %p29 = scmp.ne.s32.totalorder %s21, %s24
    %p30 = scmp.eq.s32.totalorder %s11, 0
    %p31 = por %p29, %p30
    %p32 = scmp.ne.s32.totalorder %s21, %s24
    %p33 = scmp.eq.s32.totalorder %s16, 1
    %p34 = por %p32, %p33
    %p35 = scmp.ne.s32.totalorder %s24, %s25
    %p36 = scmp.eq.s32.totalorder %s16, 0
    %p37 = por %p35, %p36
    %p38 = scmp.ne.s32.totalorder %s24, %s25
    %p39 = scmp.eq.s32.totalorder %s17, 1
    %p40 = por %p38, %p39
    %p42 = scmp.ne.s32.totalorder %s25, %s41
    %p43 = scmp.eq.s32.totalorder %s17, 0
    %p44 = por %p42, %p43
    %s45 = ssub.s32 %s11, %s18
    %p46 = scmp.eq.s32.totalorder %s45, 0
    %s48 = sadd.s32 %s47, 1
    %s49 = scalar_select %p46, %s47, %s48
    %p52 = pneg %p46
    %p53 = scmp.eq.s32.totalorder %s11, 1
    %p54 = por %p52, %p53
    %p55 = scmp.ne.s32.totalorder %s47, %s50
    %p56 = scmp.eq.s32.totalorder %s11, 0
    %p57 = por %p55, %p56
    %p58 = scmp.ne.s32.totalorder %s47, %s50
    %p59 = scmp.eq.s32.totalorder %s16, 1
    %p60 = por %p58, %p59
    %p61 = scmp.ne.s32.totalorder %s50, %s51
    %p62 = scmp.eq.s32.totalorder %s16, 0
    %p63 = por %p61, %p62
    %p64 = scmp.ne.s32.totalorder %s50, %s51
    %p65 = scmp.eq.s32.totalorder %s17, 1
    %p66 = por %p64, %p65
    %p68 = scmp.ne.s32.totalorder %s51, %s67
    %p69 = scmp.eq.s32.totalorder %s17, 0
    %p70 = por %p68, %p69
    %s71 = ssub.s32 %s11, %s18
    %p72 = scmp.eq.s32.totalorder %s71, 0
    %s74 = sadd.s32 %s73, 1
    %s75 = scalar_select %p72, %s73, %s74
    %p78 = pneg %p72
    %p79 = scmp.eq.s32.totalorder %s11, 1
    %p80 = por %p78, %p79
    %p81 = scmp.ne.s32.totalorder %s73, %s76
    %p82 = scmp.eq.s32.totalorder %s11, 0
    %p83 = por %p81, %p82
    %p84 = scmp.ne.s32.totalorder %s73, %s76
    %p85 = scmp.eq.s32.totalorder %s16, 1
    %p86 = por %p84, %p85
    %p87 = scmp.ne.s32.totalorder %s76, %s77
    %p88 = scmp.eq.s32.totalorder %s16, 0
    %p89 = por %p87, %p88
    %p90 = scmp.ne.s32.totalorder %s76, %s77
    %p91 = scmp.eq.s32.totalorder %s17, 1
    %p92 = por %p90, %p91
    %p94 = scmp.ne.s32.totalorder %s77, %s93
    %p95 = scmp.eq.s32.totalorder %s17, 0
    %p96 = por %p94, %p95
    %s98 = sadd.s32 %s97, 1
    %p101 = scmp.eq.s32.totalorder %s11, 1
    %p102 = scmp.ne.s32.totalorder %s97, %s99
    %p103 = scmp.eq.s32.totalorder %s11, 0
    %p104 = por %p102, %p103
    %p105 = scmp.ne.s32.totalorder %s97, %s99
    %p106 = scmp.eq.s32.totalorder %s16, 1
    %p107 = por %p105, %p106
    %p108 = scmp.ne.s32.totalorder %s99, %s100
    %p109 = scmp.eq.s32.totalorder %s16, 0
    %p110 = por %p108, %p109
    %p111 = scmp.ne.s32.totalorder %s99, %s100
    %p112 = scmp.eq.s32.totalorder %s17, 1
    %p113 = por %p111, %p112
    %p115 = scmp.ne.s32.totalorder %s100, %s114
    %p116 = scmp.eq.s32.totalorder %s17, 0
    %p117 = por %p115, %p116
    %s119 = sadd.s32 %s118, 1
    %p122 = scmp.eq.s32.totalorder %s11, 1
    %p123 = scmp.ne.s32.totalorder %s118, %s120
    %p124 = scmp.eq.s32.totalorder %s11, 0
    %p125 = por %p123, %p124
    %p126 = scmp.ne.s32.totalorder %s118, %s120
    %p127 = scmp.eq.s32.totalorder %s16, 1
    %p128 = por %p126, %p127
    %p129 = scmp.ne.s32.totalorder %s120, %s121
    %p130 = scmp.eq.s32.totalorder %s16, 0
    %p131 = por %p129, %p130
    %p132 = scmp.ne.s32.totalorder %s120, %s121
    %p133 = scmp.eq.s32.totalorder %s17, 1
    %p134 = por %p132, %p133
    %p136 = scmp.ne.s32.totalorder %s121, %s135
    %p137 = scmp.eq.s32.totalorder %s17, 0
    %p138 = por %p136, %p137
    %s139 = ssub.s32 %s11, %s18
    %p140 = scmp.eq.s32.totalorder %s139, 0
    %s142 = sadd.s32 %s141, 1
    %s143 = scalar_select %p140, %s141, %s142
    %p146 = pneg %p140
    %p147 = scmp.eq.s32.totalorder %s11, 1
    %p148 = por %p146, %p147
    %p149 = scmp.ne.s32.totalorder %s141, %s144
    %p150 = scmp.eq.s32.totalorder %s11, 0
    %p151 = por %p149, %p150
    %p152 = scmp.ne.s32.totalorder %s141, %s144
    %p153 = scmp.eq.s32.totalorder %s16, 1
    %p154 = por %p152, %p153
    %p155 = scmp.ne.s32.totalorder %s144, %s145
    %p156 = scmp.eq.s32.totalorder %s16, 0
    %p157 = por %p155, %p156
    %p158 = scmp.ne.s32.totalorder %s144, %s145
    %p159 = scmp.eq.s32.totalorder %s17, 1
    %p160 = por %p158, %p159
    %p162 = scmp.ne.s32.totalorder %s145, %s161
    %p163 = scmp.eq.s32.totalorder %s17, 0
    %p164 = por %p162, %p163
    %p165 = scmp.le.s32.totalorder 1, %s11
    %p166 = scmp.lt.s32.totalorder %s11, 3
    %p167 = pnand %p165, %p166
    %p168 = pneg %p167
    // Predicated region
    $region9: #{c2f_lmsa_forward.5} parent=5 // pred_check
      _
    $region10: #{c2f_lmsa_forward.5} parent=5 // pred_check_branch
      %170 = sbr.rel (%p167) target = $region12
    $region11: #{c2f_lmsa_forward.5} parent=5 // pred_region
      %s171 = ssub.s32 %s11, 1
      // Predicated region
      $region13: #{c2f_lmsa_forward.5} parent=11 // pred_check
        %p172 = pneg %p110
      $region14: #{c2f_lmsa_forward.5} parent=11 // pred_check_branch
        %174 = sbr.rel (%p172) target = $region16
      $region15: #{c2f_lmsa_forward.5} parent=11 // pred_region
        _
      $region16: #{c2f_lmsa_forward.5} parent=11 // pred_fallthru
        _
      // Predicated region
      $region17: #{c2f_lmsa_forward.5} parent=11 // pred_check
        %p175 = pneg %p131
      $region18: #{c2f_lmsa_forward.5} parent=11 // pred_check_branch
        %177 = sbr.rel (%p175) target = $region20
      $region19: #{c2f_lmsa_forward.5} parent=11 // pred_region
        _
      $region20: #{c2f_lmsa_forward.5} parent=11 // pred_fallthru
        _
    $region12: #{c2f_lmsa_forward.5} parent=5 // pred_fallthru
      _
    %p178 = scmp.lt.s32.totalorder %s11, 2
    // Predicated region
    $region21: #{c2f_lmsa_forward.5} parent=5 // pred_check
      %p179 = pneg %p178
    $region22: #{c2f_lmsa_forward.5} parent=5 // pred_check_branch
      %181 = sbr.rel (%p179) target = $region24
    $region23: #{c2f_lmsa_forward.5} parent=5 // pred_region
      // Predicated region
      $region25: #{c2f_lmsa_forward.5} parent=23 // pred_check
        %p182 = pneg %p31
      $region26: #{c2f_lmsa_forward.5} parent=23 // pred_check_branch
        %184 = sbr.rel (%p182) target = $region28
      $region27: #{c2f_lmsa_forward.5} parent=23 // pred_region
        %s185 = smul.u32 32, %s11
        %p186 = scmp.lt.s32.totalorder %s185, 63
        %s187 = scalar_select %p186, %s185, 63
        %s188 = smul.addr %s187, 4
        %s189 = scalar_lea.vmem %s0, %s188
        %s190 = smul.u32 32, %s11
      $region28: #{c2f_lmsa_forward.5} parent=23 // pred_fallthru
        _
      // Predicated region
      $region29: #{c2f_lmsa_forward.5} parent=23 // pred_check
        %p191 = pneg %p57
      $region30: #{c2f_lmsa_forward.5} parent=23 // pred_check_branch
        %193 = sbr.rel (%p191) target = $region32
      $region31: #{c2f_lmsa_forward.5} parent=23 // pred_region
        %s194 = smul.u32 32, %s11
        %p195 = scmp.lt.s32.totalorder %s194, 63
        %s196 = scalar_select %p195, %s194, 63
        %s197 = smul.addr %s196, 4
        %s198 = scalar_lea.vmem %s1, %s197
        %s199 = smul.u32 32, %s11
      $region32: #{c2f_lmsa_forward.5} parent=23 // pred_fallthru
        _
      // Predicated region
      $region33: #{c2f_lmsa_forward.5} parent=23 // pred_check
        %p200 = pneg %p83
      $region34: #{c2f_lmsa_forward.5} parent=23 // pred_check_branch
        %202 = sbr.rel (%p200) target = $region36
      $region35: #{c2f_lmsa_forward.5} parent=23 // pred_region
        %s203 = smul.u32 32, %s11
        %p204 = scmp.lt.s32.totalorder %s203, 63
        %s205 = scalar_select %p204, %s203, 63
        %s206 = smul.addr %s205, 4
        %s207 = scalar_lea.vmem %s2, %s206
        %s208 = smul.u32 32, %s11
      $region36: #{c2f_lmsa_forward.5} parent=23 // pred_fallthru
        _
    $region24: #{c2f_lmsa_forward.5} parent=5 // pred_fallthru
      _
    %p209 = scmp.le.s32.totalorder 1, %s11
    %p210 = scmp.lt.s32.totalorder %s11, 3
    %p211 = pnand %p209, %p210
    %p212 = pneg %p211
    // Predicated region
    $region37: #{c2f_lmsa_forward.5} parent=5 // pred_check
      _
    $region38: #{c2f_lmsa_forward.5} parent=5 // pred_check_branch
      %214 = sbr.rel (%p211) target = $region40
    $region39: #{c2f_lmsa_forward.5} parent=5 // pred_region
      %s215 = ssub.s32 %s11, 1
      %s216 = smul.u32 32, %s16
      %p217 = scmp.lt.s32.totalorder %s216, 63
      %s218 = scalar_select %p217, %s216, 63
      %s219 = smul.addr %s218, 4
      %s220 = scalar_lea.vmem %s0, %s219
      %p221 = pneg %p37
      %p222 = pneg %p34
      %s223 = smul.u32 32, %s16
      %p224 = scmp.lt.s32.totalorder %s223, 63
      %s225 = scalar_select %p224, %s223, 63
      %s226 = smul.addr %s225, 4
      %s227 = scalar_lea.vmem %s1, %s226
      %p228 = pneg %p63
      %p229 = pneg %p60
      %s230 = smul.u32 32, %s16
      %p231 = scmp.lt.s32.totalorder %s230, 63
      %s232 = scalar_select %p231, %s230, 63
      %s233 = smul.addr %s232, 4
      %s234 = scalar_lea.vmem %s2, %s233
      %p235 = pneg %p89
      %p236 = pneg %p86
      %p237 = pneg %p110
      %p238 = pneg %p107
      %p239 = pneg %p131
      %p240 = pneg %p128
      %p241 = pneg %p157
      %p242 = pneg %p154
      %s243 = smul.u32 32, %s16
      %p244 = scmp.lt.s32.totalorder %s243, 63
      %s245 = scalar_select %p244, %s243, 63
      %s246 = smul.addr %s245, 8
      %s247 = scalar_lea.vmem %s5, %s246
      %s248 = smul.u32 32, %s16
      %p249 = scmp.lt.s32.totalorder %s248, 63
      %s250 = scalar_select %p249, %s248, 63
      %s251 = smul.addr %s250, 4
      %s252 = scalar_lea.vmem %s0, %s251
      %s253 = smul.u32 32, %s16
      %s254 = smul.u32 32, %s16
      %p255 = scmp.lt.s32.totalorder %s254, 63
      %s256 = scalar_select %p255, %s254, 63
      %s257 = smul.addr %s256, 4
      %s258 = scalar_lea.vmem %s1, %s257
      %s259 = smul.u32 32, %s16
      %s260 = smul.u32 32, %s16
      %p261 = scmp.lt.s32.totalorder %s260, 63
      %s262 = scalar_select %p261, %s260, 63
      %s263 = smul.addr %s262, 4
      %s264 = scalar_lea.vmem %s2, %s263
      %s265 = smul.u32 32, %s16
      %s266 = smul.u32 32, %s16
      %p267 = scmp.lt.s32.totalorder %s266, 63
      %s268 = scalar_select %p267, %s266, 63
      %s269 = smul.addr %s268, 8
      %s270 = scalar_lea.vmem %s5, %s269
      %s271 = smul.u32 32, %s16
      %v273 = vld [vmem:[%s252] sm:$0xf]
      %v274 = vld [vmem:[%s252 + $0x4] sm:$0xf]
      %v275 = vld [vmem:[%s252 + $0x8] sm:$0xf]
      %v276 = vld [vmem:[%s252 + $0xc] sm:$0xf]
      %v277 = vld [vmem:[%s252 + $0x10] sm:$0xf]
      %v278 = vld [vmem:[%s252 + $0x14] sm:$0xf]
      %v279 = vld [vmem:[%s252 + $0x18] sm:$0xf]
      %v280 = vld [vmem:[%s252 + $0x1c] sm:$0xf]
      %v281 = vld [vmem:[%s252 + $0x20] sm:$0xf]
      %v282 = vld [vmem:[%s252 + $0x24] sm:$0xf]
      %v283 = vld [vmem:[%s252 + $0x28] sm:$0xf]
      %v284 = vld [vmem:[%s252 + $0x2c] sm:$0xf]
      %v285 = vld [vmem:[%s252 + $0x30] sm:$0xf]
      %v286 = vld [vmem:[%s252 + $0x34] sm:$0xf]
      %v287 = vld [vmem:[%s252 + $0x38] sm:$0xf]
      %v288 = vld [vmem:[%s252 + $0x3c] sm:$0xf]
      %v289 = vld [vmem:[%s252 + $0x40] sm:$0xf]
      %v290 = vld [vmem:[%s252 + $0x44] sm:$0xf]
      %v291 = vld [vmem:[%s252 + $0x48] sm:$0xf]
      %v292 = vld [vmem:[%s252 + $0x4c] sm:$0xf]
      %v293 = vld [vmem:[%s252 + $0x50] sm:$0xf]
      %v294 = vld [vmem:[%s252 + $0x54] sm:$0xf]
      %v295 = vld [vmem:[%s252 + $0x58] sm:$0xf]
      %v296 = vld [vmem:[%s252 + $0x5c] sm:$0xf]
      %v297 = vld [vmem:[%s252 + $0x60] sm:$0xf]
      %v298 = vld [vmem:[%s252 + $0x64] sm:$0xf]
      %v299 = vld [vmem:[%s252 + $0x68] sm:$0xf]
      %v300 = vld [vmem:[%s252 + $0x6c] sm:$0xf]
      %v301 = vld [vmem:[%s252 + $0x70] sm:$0xf]
      %v302 = vld [vmem:[%s252 + $0x74] sm:$0xf]
      %v303 = vld [vmem:[%s252 + $0x78] sm:$0xf]
      %v304 = vld [vmem:[%s252 + $0x7c] sm:$0xf]
      %v305 = vld [vmem:[%s258] sm:$0xf]
      %v306 = vld [vmem:[%s258 + $0x4] sm:$0xf]
      %v307 = vld [vmem:[%s258 + $0x8] sm:$0xf]
      %v308 = vld [vmem:[%s258 + $0xc] sm:$0xf]
      %v309 = vld [vmem:[%s258 + $0x10] sm:$0xf]
      %v310 = vld [vmem:[%s258 + $0x14] sm:$0xf]
      %v311 = vld [vmem:[%s258 + $0x18] sm:$0xf]
      %v312 = vld [vmem:[%s258 + $0x1c] sm:$0xf]
      %v313 = vld [vmem:[%s258 + $0x20] sm:$0xf]
      %v314 = vld [vmem:[%s258 + $0x24] sm:$0xf]
      %v315 = vld [vmem:[%s258 + $0x28] sm:$0xf]
      %v316 = vld [vmem:[%s258 + $0x2c] sm:$0xf]
      %v317 = vld [vmem:[%s258 + $0x30] sm:$0xf]
      %v318 = vld [vmem:[%s258 + $0x34] sm:$0xf]
      %v319 = vld [vmem:[%s258 + $0x38] sm:$0xf]
      %v320 = vld [vmem:[%s258 + $0x3c] sm:$0xf]
      %v321 = vld [vmem:[%s258 + $0x40] sm:$0xf]
      %v322 = vld [vmem:[%s258 + $0x44] sm:$0xf]
      %v323 = vld [vmem:[%s258 + $0x48] sm:$0xf]
      %v324 = vld [vmem:[%s258 + $0x4c] sm:$0xf]
      %v325 = vld [vmem:[%s258 + $0x50] sm:$0xf]
      %v326 = vld [vmem:[%s258 + $0x54] sm:$0xf]
      %v327 = vld [vmem:[%s258 + $0x58] sm:$0xf]
      %v328 = vld [vmem:[%s258 + $0x5c] sm:$0xf]
      %v329 = vld [vmem:[%s258 + $0x60] sm:$0xf]
      %v330 = vld [vmem:[%s258 + $0x64] sm:$0xf]
      %v331 = vld [vmem:[%s258 + $0x68] sm:$0xf]
      %v332 = vld [vmem:[%s258 + $0x6c] sm:$0xf]
      %v333 = vld [vmem:[%s258 + $0x70] sm:$0xf]
      %v334 = vld [vmem:[%s258 + $0x74] sm:$0xf]
      %v335 = vld [vmem:[%s258 + $0x78] sm:$0xf]
      %v336 = vld [vmem:[%s258 + $0x7c] sm:$0xf]
      %v337 = vld [vmem:[%s264] sm:$0xf]
      %v338 = vld [vmem:[%s264 + $0x4] sm:$0xf]
      %v339 = vld [vmem:[%s264 + $0x8] sm:$0xf]
      %v340 = vld [vmem:[%s264 + $0xc] sm:$0xf]
      %v341 = vld [vmem:[%s264 + $0x10] sm:$0xf]
      %v342 = vld [vmem:[%s264 + $0x14] sm:$0xf]
      %v343 = vld [vmem:[%s264 + $0x18] sm:$0xf]
      %v344 = vld [vmem:[%s264 + $0x1c] sm:$0xf]
      %v345 = vld [vmem:[%s264 + $0x20] sm:$0xf]
      %v346 = vld [vmem:[%s264 + $0x24] sm:$0xf]
      %v347 = vld [vmem:[%s264 + $0x28] sm:$0xf]
      %v348 = vld [vmem:[%s264 + $0x2c] sm:$0xf]
      %v349 = vld [vmem:[%s264 + $0x30] sm:$0xf]
      %v350 = vld [vmem:[%s264 + $0x34] sm:$0xf]
      %v351 = vld [vmem:[%s264 + $0x38] sm:$0xf]
      %v352 = vld [vmem:[%s264 + $0x3c] sm:$0xf]
      %v353 = vld [vmem:[%s264 + $0x40] sm:$0xf]
      %v354 = vld [vmem:[%s264 + $0x44] sm:$0xf]
      %v355 = vld [vmem:[%s264 + $0x48] sm:$0xf]
      %v356 = vld [vmem:[%s264 + $0x4c] sm:$0xf]
      %v357 = vld [vmem:[%s264 + $0x50] sm:$0xf]
      %v358 = vld [vmem:[%s264 + $0x54] sm:$0xf]
      %v359 = vld [vmem:[%s264 + $0x58] sm:$0xf]
      %v360 = vld [vmem:[%s264 + $0x5c] sm:$0xf]
      %v361 = vld [vmem:[%s264 + $0x60] sm:$0xf]
      %v362 = vld [vmem:[%s264 + $0x64] sm:$0xf]
      %v363 = vld [vmem:[%s264 + $0x68] sm:$0xf]
      %v364 = vld [vmem:[%s264 + $0x6c] sm:$0xf]
      %v365 = vld [vmem:[%s264 + $0x70] sm:$0xf]
      %v366 = vld [vmem:[%s264 + $0x74] sm:$0xf]
      %v367 = vld [vmem:[%s264 + $0x78] sm:$0xf]
      %v368 = vld [vmem:[%s264 + $0x7c] sm:$0xf]
      %v401 = vunpack.c.l.b16 %v273
      %v402 = vunpack.c.l.b16 %v274
      %v403 = vunpack.c.l.b16 %v275
      %v404 = vunpack.c.l.b16 %v276
      %v405 = vunpack.c.l.b16 %v277
      %v406 = vunpack.c.l.b16 %v278
      %v407 = vunpack.c.l.b16 %v279
      %v408 = vunpack.c.l.b16 %v280
      %v409 = vunpack.c.l.b16 %v281
      %v410 = vunpack.c.l.b16 %v282
      %v411 = vunpack.c.l.b16 %v283
      %v412 = vunpack.c.l.b16 %v284
      %v413 = vunpack.c.l.b16 %v285
      %v414 = vunpack.c.l.b16 %v286
      %v415 = vunpack.c.l.b16 %v287
      %v416 = vunpack.c.l.b16 %v288
      %v417 = vunpack.c.l.b16 %v289
      %v418 = vunpack.c.l.b16 %v290
      %v419 = vunpack.c.l.b16 %v291
      %v420 = vunpack.c.l.b16 %v292
      %v421 = vunpack.c.l.b16 %v293
      %v422 = vunpack.c.l.b16 %v294
      %v423 = vunpack.c.l.b16 %v295
      %v424 = vunpack.c.l.b16 %v296
      %v425 = vunpack.c.l.b16 %v297
      %v426 = vunpack.c.l.b16 %v298
      %v427 = vunpack.c.l.b16 %v299
      %v428 = vunpack.c.l.b16 %v300
      %v429 = vunpack.c.l.b16 %v301
      %v430 = vunpack.c.l.b16 %v302
      %v431 = vunpack.c.l.b16 %v303
      %v432 = vunpack.c.l.b16 %v304
      %v433 = vpack.c.b16 %v402, %v401
      %v434 = vpack.c.b16 %v404, %v403
      %v435 = vpack.c.b16 %v406, %v405
      %v436 = vpack.c.b16 %v408, %v407
      %v437 = vpack.c.b16 %v410, %v409
      %v438 = vpack.c.b16 %v412, %v411
      %v439 = vpack.c.b16 %v414, %v413
      %v440 = vpack.c.b16 %v416, %v415
      %v441 = vpack.c.b16 %v418, %v417
      %v442 = vpack.c.b16 %v420, %v419
      %v443 = vpack.c.b16 %v422, %v421
      %v444 = vpack.c.b16 %v424, %v423
      %v445 = vpack.c.b16 %v426, %v425
      %v446 = vpack.c.b16 %v428, %v427
      %v447 = vpack.c.b16 %v430, %v429
      %v448 = vpack.c.b16 %v432, %v431
      %v497 = vunpack.c.l.b16 %v305
      %v498 = vunpack.c.l.b16 %v306
      %v499 = vunpack.c.l.b16 %v307
      %v500 = vunpack.c.l.b16 %v308
      %v501 = vunpack.c.l.b16 %v309
      %v502 = vunpack.c.l.b16 %v310
      %v503 = vunpack.c.l.b16 %v311
      %v504 = vunpack.c.l.b16 %v312
      %v505 = vunpack.c.l.b16 %v313
      %v506 = vunpack.c.l.b16 %v314
      %v507 = vunpack.c.l.b16 %v315
      %v508 = vunpack.c.l.b16 %v316
      %v509 = vunpack.c.l.b16 %v317
      %v510 = vunpack.c.l.b16 %v318
      %v511 = vunpack.c.l.b16 %v319
      %v512 = vunpack.c.l.b16 %v320
      %v513 = vunpack.c.l.b16 %v321
      %v514 = vunpack.c.l.b16 %v322
      %v515 = vunpack.c.l.b16 %v323
      %v516 = vunpack.c.l.b16 %v324
      %v517 = vunpack.c.l.b16 %v325
      %v518 = vunpack.c.l.b16 %v326
      %v519 = vunpack.c.l.b16 %v327
      %v520 = vunpack.c.l.b16 %v328
      %v521 = vunpack.c.l.b16 %v329
      %v522 = vunpack.c.l.b16 %v330
      %v523 = vunpack.c.l.b16 %v331
      %v524 = vunpack.c.l.b16 %v332
      %v525 = vunpack.c.l.b16 %v333
      %v526 = vunpack.c.l.b16 %v334
      %v527 = vunpack.c.l.b16 %v335
      %v528 = vunpack.c.l.b16 %v336
      %v529 = vpack.c.b16 %v498, %v497
      %v530 = vpack.c.b16 %v500, %v499
      %v531 = vpack.c.b16 %v502, %v501
      %v532 = vpack.c.b16 %v504, %v503
      %v533 = vpack.c.b16 %v506, %v505
      %v534 = vpack.c.b16 %v508, %v507
      %v535 = vpack.c.b16 %v510, %v509
      %v536 = vpack.c.b16 %v512, %v511
      %v537 = vpack.c.b16 %v514, %v513
      %v538 = vpack.c.b16 %v516, %v515
      %v539 = vpack.c.b16 %v518, %v517
      %v540 = vpack.c.b16 %v520, %v519
      %v541 = vpack.c.b16 %v522, %v521
      %v542 = vpack.c.b16 %v524, %v523
      %v543 = vpack.c.b16 %v526, %v525
      %v544 = vpack.c.b16 %v528, %v527
      %v593 = vunpack.c.l.b16 %v337
      %v594 = vunpack.c.l.b16 %v338
      %v595 = vunpack.c.l.b16 %v339
      %v596 = vunpack.c.l.b16 %v340
      %v597 = vunpack.c.l.b16 %v341
      %v598 = vunpack.c.l.b16 %v342
      %v599 = vunpack.c.l.b16 %v343
      %v600 = vunpack.c.l.b16 %v344
      %v601 = vunpack.c.l.b16 %v345
      %v602 = vunpack.c.l.b16 %v346
      %v603 = vunpack.c.l.b16 %v347
      %v604 = vunpack.c.l.b16 %v348
      %v605 = vunpack.c.l.b16 %v349
      %v606 = vunpack.c.l.b16 %v350
      %v607 = vunpack.c.l.b16 %v351
      %v608 = vunpack.c.l.b16 %v352
      %v609 = vunpack.c.l.b16 %v353
      %v610 = vunpack.c.l.b16 %v354
      %v611 = vunpack.c.l.b16 %v355
      %v612 = vunpack.c.l.b16 %v356
      %v613 = vunpack.c.l.b16 %v357
      %v614 = vunpack.c.l.b16 %v358
      %v615 = vunpack.c.l.b16 %v359
      %v616 = vunpack.c.l.b16 %v360
      %v617 = vunpack.c.l.b16 %v361
      %v618 = vunpack.c.l.b16 %v362
      %v619 = vunpack.c.l.b16 %v363
      %v620 = vunpack.c.l.b16 %v364
      %v621 = vunpack.c.l.b16 %v365
      %v622 = vunpack.c.l.b16 %v366
      %v623 = vunpack.c.l.b16 %v367
      %v624 = vunpack.c.l.b16 %v368
      %v625 = vpack.c.b16 %v594, %v593
      %v626 = vpack.c.b16 %v596, %v595
      %v627 = vpack.c.b16 %v598, %v597
      %v628 = vpack.c.b16 %v600, %v599
      %v629 = vpack.c.b16 %v602, %v601
      %v630 = vpack.c.b16 %v604, %v603
      %v631 = vpack.c.b16 %v606, %v605
      %v632 = vpack.c.b16 %v608, %v607
      %v633 = vpack.c.b16 %v610, %v609
      %v634 = vpack.c.b16 %v612, %v611
      %v635 = vpack.c.b16 %v614, %v613
      %v636 = vpack.c.b16 %v616, %v615
      %v637 = vpack.c.b16 %v618, %v617
      %v638 = vpack.c.b16 %v620, %v619
      %v639 = vpack.c.b16 %v622, %v621
      %v640 = vpack.c.b16 %v624, %v623
      %v657 = vld [vmem:[%s3] sm:$0xf]
      %v658 = vld [vmem:[%s3 + $0x4] sm:$0xf]
      %v659 = vld [vmem:[%s3 + $0x8] sm:$0xf]
      %v660 = vld [vmem:[%s3 + $0xc] sm:$0xf]
      %v661 = vld [vmem:[%s3 + $0x10] sm:$0xf]
      %v662 = vld [vmem:[%s3 + $0x14] sm:$0xf]
      %v663 = vld [vmem:[%s3 + $0x18] sm:$0xf]
      %v664 = vld [vmem:[%s3 + $0x1c] sm:$0xf]
      %v665 = vld [vmem:[%s3 + $0x20] sm:$0xf]
      %v666 = vld [vmem:[%s3 + $0x24] sm:$0xf]
      %v667 = vld [vmem:[%s3 + $0x28] sm:$0xf]
      %v668 = vld [vmem:[%s3 + $0x2c] sm:$0xf]
      %v669 = vld [vmem:[%s3 + $0x30] sm:$0xf]
      %v670 = vld [vmem:[%s3 + $0x34] sm:$0xf]
      %v671 = vld [vmem:[%s3 + $0x38] sm:$0xf]
      %v672 = vld [vmem:[%s3 + $0x3c] sm:$0xf]
      %v673 = vld [vmem:[%s3 + $0x40] sm:$0xf]
      %v674 = vld [vmem:[%s3 + $0x44] sm:$0xf]
      %v675 = vld [vmem:[%s3 + $0x48] sm:$0xf]
      %v676 = vld [vmem:[%s3 + $0x4c] sm:$0xf]
      %v677 = vld [vmem:[%s3 + $0x50] sm:$0xf]
      %v678 = vld [vmem:[%s3 + $0x54] sm:$0xf]
      %v679 = vld [vmem:[%s3 + $0x58] sm:$0xf]
      %v680 = vld [vmem:[%s3 + $0x5c] sm:$0xf]
      %v681 = vld [vmem:[%s3 + $0x60] sm:$0xf]
      %v682 = vld [vmem:[%s3 + $0x64] sm:$0xf]
      %v683 = vld [vmem:[%s3 + $0x68] sm:$0xf]
      %v684 = vld [vmem:[%s3 + $0x6c] sm:$0xf]
      %v685 = vld [vmem:[%s3 + $0x70] sm:$0xf]
      %v686 = vld [vmem:[%s3 + $0x74] sm:$0xf]
      %v687 = vld [vmem:[%s3 + $0x78] sm:$0xf]
      %v688 = vld [vmem:[%s3 + $0x7c] sm:$0xf]
      %v689 = vld [vmem:[%s3 + $0x80] sm:$0xf]
      %v690 = vld [vmem:[%s3 + $0x84] sm:$0xf]
      %v691 = vld [vmem:[%s3 + $0x88] sm:$0xf]
      %v692 = vld [vmem:[%s3 + $0x8c] sm:$0xf]
      %v693 = vld [vmem:[%s3 + $0x90] sm:$0xf]
      %v694 = vld [vmem:[%s3 + $0x94] sm:$0xf]
      %v695 = vld [vmem:[%s3 + $0x98] sm:$0xf]
      %v696 = vld [vmem:[%s3 + $0x9c] sm:$0xf]
      %v697 = vld [vmem:[%s3 + $0xa0] sm:$0xf]
      %v698 = vld [vmem:[%s3 + $0xa4] sm:$0xf]
      %v699 = vld [vmem:[%s3 + $0xa8] sm:$0xf]
      %v700 = vld [vmem:[%s3 + $0xac] sm:$0xf]
      %v701 = vld [vmem:[%s3 + $0xb0] sm:$0xf]
      %v702 = vld [vmem:[%s3 + $0xb4] sm:$0xf]
      %v703 = vld [vmem:[%s3 + $0xb8] sm:$0xf]
      %v704 = vld [vmem:[%s3 + $0xbc] sm:$0xf]
      %v705 = vld [vmem:[%s4] sm:$0x1]
      %v707 = vlaneseq
      %v708 = vshrl.u32 %v707, 7
      %v709 = vsub.s32 0, %v708
      %v710 = vrot.slane %v705, %v709
      %v760 = vunpack.c.l.b16 %v657
      %v761 = vunpack.c.l.b16 %v658
      %v762 = vunpack.c.l.b16 %v659
      %v763 = vunpack.c.l.b16 %v660
      %v764 = vunpack.c.l.b16 %v661
      %v765 = vunpack.c.l.b16 %v662
      %v766 = vunpack.c.l.b16 %v663
      %v767 = vunpack.c.l.b16 %v664
      %v768 = vunpack.c.l.b16 %v665
      %v769 = vunpack.c.l.b16 %v666
      %v770 = vunpack.c.l.b16 %v667
      %v771 = vunpack.c.l.b16 %v668
      %v772 = vunpack.c.l.b16 %v669
      %v773 = vunpack.c.l.b16 %v670
      %v774 = vunpack.c.l.b16 %v671
      %v775 = vunpack.c.l.b16 %v672
      %v776 = vunpack.c.l.b16 %v673
      %v777 = vunpack.c.l.b16 %v674
      %v778 = vunpack.c.l.b16 %v675
      %v779 = vunpack.c.l.b16 %v676
      %v780 = vunpack.c.l.b16 %v677
      %v781 = vunpack.c.l.b16 %v678
      %v782 = vunpack.c.l.b16 %v679
      %v783 = vunpack.c.l.b16 %v680
      %v784 = vunpack.c.l.b16 %v681
      %v785 = vunpack.c.l.b16 %v682
      %v786 = vunpack.c.l.b16 %v683
      %v787 = vunpack.c.l.b16 %v684
      %v788 = vunpack.c.l.b16 %v685
      %v789 = vunpack.c.l.b16 %v686
      %v790 = vunpack.c.l.b16 %v687
      %v791 = vunpack.c.l.b16 %v688
      %v792 = vunpack.c.l.b16 %v689
      %v793 = vunpack.c.l.b16 %v690
      %v794 = vunpack.c.l.b16 %v691
      %v795 = vunpack.c.l.b16 %v692
      %v796 = vunpack.c.l.b16 %v693
      %v797 = vunpack.c.l.b16 %v694
      %v798 = vunpack.c.l.b16 %v695
      %v799 = vunpack.c.l.b16 %v696
      %v800 = vunpack.c.l.b16 %v697
      %v801 = vunpack.c.l.b16 %v698
      %v802 = vunpack.c.l.b16 %v699
      %v803 = vunpack.c.l.b16 %v700
      %v804 = vunpack.c.l.b16 %v701
      %v805 = vunpack.c.l.b16 %v702
      %v806 = vunpack.c.l.b16 %v703
      %v807 = vunpack.c.l.b16 %v704
      %v808 = vpack.c.b16 %v761, %v760
      %v809 = vpack.c.b16 %v763, %v762
      %v810 = vpack.c.b16 %v765, %v764
      %v811 = vpack.c.b16 %v767, %v766
      %v812 = vpack.c.b16 %v769, %v768
      %v813 = vpack.c.b16 %v771, %v770
      %v814 = vpack.c.b16 %v773, %v772
      %v815 = vpack.c.b16 %v775, %v774
      %v816 = vpack.c.b16 %v777, %v776
      %v817 = vpack.c.b16 %v779, %v778
      %v818 = vpack.c.b16 %v781, %v780
      %v819 = vpack.c.b16 %v783, %v782
      %v820 = vpack.c.b16 %v785, %v784
      %v821 = vpack.c.b16 %v787, %v786
      %v822 = vpack.c.b16 %v789, %v788
      %v823 = vpack.c.b16 %v791, %v790
      %v824 = vpack.c.b16 %v793, %v792
      %v825 = vpack.c.b16 %v795, %v794
      %v826 = vpack.c.b16 %v797, %v796
      %v827 = vpack.c.b16 %v799, %v798
      %v828 = vpack.c.b16 %v801, %v800
      %v829 = vpack.c.b16 %v803, %v802
      %v830 = vpack.c.b16 %v805, %v804
      %v831 = vpack.c.b16 %v807, %v806
      %856 = vmatprep.subr.bf16.mxu0 0
      %857 = vmatpush1.bf16.msra.mxu0 %v808
      %858 = vmatprep.subr.bf16.mxu0 0
      %859 = vmatpush1.bf16.msra.mxu0 %v809
      %860 = vmatprep.subr.bf16.mxu0 0
      %861 = vmatpush1.bf16.msra.mxu0 %v810
      %862 = vmatprep.subr.bf16.mxu0 0
      %863 = vmatpush1.bf16.msra.mxu0 %v811
      %864 = vmatprep.subr.bf16.mxu0 0
      %865 = vmatpush1.bf16.msra.mxu0 %v812
      %866 = vmatprep.subr.bf16.mxu0 0
      %867 = vmatpush1.bf16.msra.mxu0 %v813
      %868 = vmatprep.subr.bf16.mxu0 0
      %869 = vmatpush1.bf16.msra.mxu0 %v814
      %870 = vmatprep.subr.bf16.mxu0 0
      %871 = vmatpush1.bf16.msra.mxu0 %v815
      %872 = vmatprep.subr.bf16.mxu0 0
      %873 = vmatpush1.bf16.msra.mxu0 %v816
      %874 = vmatprep.subr.bf16.mxu0 0
      %875 = vmatpush1.bf16.msra.mxu0 %v817
      %876 = vmatprep.subr.bf16.mxu0 0
      %877 = vmatpush1.bf16.msra.mxu0 %v818
      %878 = vmatprep.subr.bf16.mxu0 0
      %879 = vmatpush1.bf16.msra.mxu0 %v819
      %880 = vmatprep.subr.bf16.mxu0 0
      %881 = vmatpush1.bf16.msra.mxu0 %v820
      %882 = vmatprep.subr.bf16.mxu0 0
      %883 = vmatpush1.bf16.msra.mxu0 %v821
      %884 = vmatprep.subr.bf16.mxu0 0
      %885 = vmatpush1.bf16.msra.mxu0 %v822
      %886 = vmatprep.subr.bf16.mxu0 0
      %887 = vmatpush1.bf16.msra.mxu0 %v823
      %888 = vmatprep.mubr.bf16.mxu0 %v529
      %889 = vmatmul.mubr.bf16.gmra.mrb[0].mxu0 %v433
      %v890 = vpop.f32.mrb[0].mxu0
      %v891 = vadd.f32 %v710, %v890
      %v892 = vpop.f32.mrb[0].mxu0
      %v893 = vpop.f32.mrb[0].mxu0
      %v894 = vadd.f32 %v710, %v893
      %v895 = vpop.f32.mrb[0].mxu0
      %896 = vmatprep.mubr.bf16.mxu0 %v530
      %897 = vmatmul.mubr.bf16.gmra.mrb[0].mxu0 %v434
      %v898 = vpop.f32.mrb[0].mxu0
      %v899 = vadd.f32 %v710, %v898
      %v900 = vpop.f32.mrb[0].mxu0
      %v901 = vpop.f32.mrb[0].mxu0
      %v902 = vadd.f32 %v710, %v901
      %v903 = vpop.f32.mrb[0].mxu0
      %904 = vmatprep.mubr.bf16.mxu0 %v531
      %905 = vmatmul.mubr.bf16.gmra.mrb[0].mxu0 %v435
      %v906 = vpop.f32.mrb[0].mxu0
      %v907 = vadd.f32 %v710, %v906
      %v908 = vpop.f32.mrb[0].mxu0
      %v909 = vpop.f32.mrb[0].mxu0
      %v910 = vadd.f32 %v710, %v909
      %v911 = vpop.f32.mrb[0].mxu0
      %912 = vmatprep.mubr.bf16.mxu0 %v532
      %913 = vmatmul.mubr.bf16.gmra.mrb[0].mxu0 %v436
      %v914 = vpop.f32.mrb[0].mxu0
      %v915 = vadd.f32 %v710, %v914
      %v916 = vpop.f32.mrb[0].mxu0
      %v917 = vpop.f32.mrb[0].mxu0
      %v918 = vadd.f32 %v710, %v917
      %v919 = vpop.f32.mrb[0].mxu0
      %920 = vmatprep.mubr.bf16.mxu0 %v533
      %921 = vmatmul.mubr.bf16.gmra.mrb[0].mxu0 %v437
      %v922 = vpop.f32.mrb[0].mxu0
      %v923 = vadd.f32 %v710, %v922
      %v924 = vpop.f32.mrb[0].mxu0
      %v925 = vpop.f32.mrb[0].mxu0
      %v926 = vadd.f32 %v710, %v925
      %v927 = vpop.f32.mrb[0].mxu0
      %928 = vmatprep.mubr.bf16.mxu0 %v534
      %929 = vmatmul.mubr.bf16.gmra.mrb[0].mxu0 %v438
      %v930 = vpop.f32.mrb[0].mxu0
      %v931 = vadd.f32 %v710, %v930
      %v932 = vpop.f32.mrb[0].mxu0
      %v933 = vpop.f32.mrb[0].mxu0
      %v934 = vadd.f32 %v710, %v933
      %v935 = vpop.f32.mrb[0].mxu0
      %936 = vmatprep.mubr.bf16.mxu0 %v535
      %937 = vmatmul.mubr.bf16.gmra.mrb[0].mxu0 %v439
      %v938 = vpop.f32.mrb[0].mxu0
      %v939 = vadd.f32 %v710, %v938
      %v940 = vpop.f32.mrb[0].mxu0
      %v941 = vpop.f32.mrb[0].mxu0
      %v942 = vadd.f32 %v710, %v941
      %v943 = vpop.f32.mrb[0].mxu0
      %944 = vmatprep.mubr.bf16.mxu0 %v536
      %945 = vmatmul.mubr.bf16.gmra.mrb[0].mxu0 %v440
      %v946 = vpop.f32.mrb[0].mxu0
      %v947 = vadd.f32 %v710, %v946
      %v948 = vpop.f32.mrb[0].mxu0
      %v949 = vpop.f32.mrb[0].mxu0
      %v950 = vadd.f32 %v710, %v949
      %v951 = vpop.f32.mrb[0].mxu0
      %952 = vmatprep.mubr.bf16.mxu0 %v537
      %953 = vmatmul.mubr.bf16.gmra.mrb[0].mxu0 %v441
      %v954 = vpop.f32.mrb[0].mxu0
      %v955 = vadd.f32 %v710, %v954
      %v956 = vpop.f32.mrb[0].mxu0
      %v957 = vpop.f32.mrb[0].mxu0
      %v958 = vadd.f32 %v710, %v957
      %v959 = vpop.f32.mrb[0].mxu0
      %960 = vmatprep.mubr.bf16.mxu0 %v538
      %961 = vmatmul.mubr.bf16.gmra.mrb[0].mxu0 %v442
      %v962 = vpop.f32.mrb[0].mxu0
      %v963 = vadd.f32 %v710, %v962
      %v964 = vpop.f32.mrb[0].mxu0
      %v965 = vpop.f32.mrb[0].mxu0
      %v966 = vadd.f32 %v710, %v965
      %v967 = vpop.f32.mrb[0].mxu0
      %968 = vmatprep.mubr.bf16.mxu0 %v539
      %969 = vmatmul.mubr.bf16.gmra.mrb[0].mxu0 %v443
      %v970 = vpop.f32.mrb[0].mxu0
      %v971 = vadd.f32 %v710, %v970
      %v972 = vpop.f32.mrb[0].mxu0
      %v973 = vpop.f32.mrb[0].mxu0
      %v974 = vadd.f32 %v710, %v973
      %v975 = vpop.f32.mrb[0].mxu0
      %976 = vmatprep.mubr.bf16.mxu0 %v540
      %977 = vmatmul.mubr.bf16.gmra.mrb[0].mxu0 %v444
      %v978 = vpop.f32.mrb[0].mxu0
      %v979 = vadd.f32 %v710, %v978
      %v980 = vpop.f32.mrb[0].mxu0
      %v981 = vpop.f32.mrb[0].mxu0
      %v982 = vadd.f32 %v710, %v981
      %v983 = vpop.f32.mrb[0].mxu0
      %984 = vmatprep.mubr.bf16.mxu0 %v541
      %985 = vmatmul.mubr.bf16.gmra.mrb[0].mxu0 %v445
      %v986 = vpop.f32.mrb[0].mxu0
      %v987 = vadd.f32 %v710, %v986
      %v988 = vpop.f32.mrb[0].mxu0
      %v989 = vpop.f32.mrb[0].mxu0
      %v990 = vadd.f32 %v710, %v989
      %v991 = vpop.f32.mrb[0].mxu0
      %992 = vmatprep.mubr.bf16.mxu0 %v542
      %993 = vmatmul.mubr.bf16.gmra.mrb[0].mxu0 %v446
      %v994 = vpop.f32.mrb[0].mxu0
      %v995 = vadd.f32 %v710, %v994
      %v996 = vpop.f32.mrb[0].mxu0
      %v997 = vpop.f32.mrb[0].mxu0
      %v998 = vadd.f32 %v710, %v997
      %v999 = vpop.f32.mrb[0].mxu0
      %1000 = vmatprep.mubr.bf16.mxu0 %v543
      %1001 = vmatmul.mubr.bf16.gmra.mrb[0].mxu0 %v447
      %v1002 = vpop.f32.mrb[0].mxu0
      %v1003 = vadd.f32 %v710, %v1002
      %v1004 = vpop.f32.mrb[0].mxu0
      %v1005 = vpop.f32.mrb[0].mxu0
      %v1006 = vadd.f32 %v710, %v1005
      %v1007 = vpop.f32.mrb[0].mxu0
      %1008 = vmatprep.mubr.bf16.mxu0 %v544
      %1009 = vmatmul.mubr.bf16.gmra.mrb[0].mxu0 %v448
      %v1010 = vpop.f32.mrb[0].mxu0
      %v1011 = vadd.f32 %v710, %v1010
      %v1012 = vpop.f32.mrb[0].mxu0
      %v1013 = vpop.f32.mrb[0].mxu0
      %v1014 = vadd.f32 %v710, %v1013
      %v1015 = vpop.f32.mrb[0].mxu0
      %1016 = vdwg.mxu0
      %1017 = vmatprep.subr.bf16.mxu0 0
      %1018 = vmatpush1.bf16.msra.mxu0 %v824
      %1019 = vmatprep.subr.bf16.mxu0 0
      %1020 = vmatpush1.bf16.msra.mxu0 %v825
      %1021 = vmatprep.subr.bf16.mxu0 0
      %1022 = vmatpush1.bf16.msra.mxu0 %v826
      %1023 = vmatprep.subr.bf16.mxu0 0
      %1024 = vmatpush1.bf16.msra.mxu0 %v827
      %1025 = vmatprep.subr.bf16.mxu0 0
      %1026 = vmatpush1.bf16.msra.mxu0 %v828
      %1027 = vmatprep.subr.bf16.mxu0 0
      %1028 = vmatpush1.bf16.msra.mxu0 %v829
      %1029 = vmatprep.subr.bf16.mxu0 0
      %1030 = vmatpush1.bf16.msra.mxu0 %v830
      %1031 = vmatprep.subr.bf16.mxu0 0
      %1032 = vmatpush1.bf16.msra.mxu0 %v831
      %1033 = vmatprep.subr.bf16.mxu0 0
      %1034 = vmatpush1.bf16.msra.mxu0 0
      %1035 = vmatprep.subr.bf16.mxu0 0
      %1036 = vmatpush1.bf16.msra.mxu0 0
      %1037 = vmatprep.subr.bf16.mxu0 0
      %1038 = vmatpush1.bf16.msra.mxu0 0
      %1039 = vmatprep.subr.bf16.mxu0 0
      %1040 = vmatpush1.bf16.msra.mxu0 0
      %1041 = vmatprep.subr.bf16.mxu0 0
      %1042 = vmatpush1.bf16.msra.mxu0 0
      %1043 = vmatprep.subr.bf16.mxu0 0
      %1044 = vmatpush1.bf16.msra.mxu0 0
      %1045 = vmatprep.subr.bf16.mxu0 0
      %1046 = vmatpush1.bf16.msra.mxu0 0
      %1047 = vmatprep.subr.bf16.mxu0 0
      %1048 = vmatpush1.bf16.msra.mxu0 0
      %1049 = vmatprep.mubr.bf16.mxu0 0
      %1050 = vmatmul.mubr.bf16.gmra.mrb[0].mxu0 %v625
      %v1051 = vpop.f32.mrb[0].mxu0
      %v1052 = vadd.f32 %v891, %v1051
      %v1053 = vpop.f32.mrb[0].mxu0
      %v1054 = vpop.f32.mrb[0].mxu0
      %v1055 = vadd.f32 %v894, %v1054
      %v1056 = vpop.f32.mrb[0].mxu0
      %1057 = vmatprep.mubr.bf16.mxu0 0
      %1058 = vmatmul.mubr.bf16.gmra.mrb[0].mxu0 %v626
      %v1059 = vpop.f32.mrb[0].mxu0
      %v1060 = vadd.f32 %v899, %v1059
      %v1061 = vpop.f32.mrb[0].mxu0
      %v1062 = vpop.f32.mrb[0].mxu0
      %v1063 = vadd.f32 %v902, %v1062
      %v1064 = vpop.f32.mrb[0].mxu0
      %1065 = vmatprep.mubr.bf16.mxu0 0
      %1066 = vmatmul.mubr.bf16.gmra.mrb[0].mxu0 %v627
      %v1067 = vpop.f32.mrb[0].mxu0
      %v1068 = vadd.f32 %v907, %v1067
      %v1069 = vpop.f32.mrb[0].mxu0
      %v1070 = vpop.f32.mrb[0].mxu0
      %v1071 = vadd.f32 %v910, %v1070
      %v1072 = vpop.f32.mrb[0].mxu0
      %1073 = vmatprep.mubr.bf16.mxu0 0
      %1074 = vmatmul.mubr.bf16.gmra.mrb[0].mxu0 %v628
      %v1075 = vpop.f32.mrb[0].mxu0
      %v1076 = vadd.f32 %v915, %v1075
      %v1077 = vpop.f32.mrb[0].mxu0
      %v1078 = vpop.f32.mrb[0].mxu0
      %v1079 = vadd.f32 %v918, %v1078
      %v1080 = vpop.f32.mrb[0].mxu0
      %1081 = vmatprep.mubr.bf16.mxu0 0
      %1082 = vmatmul.mubr.bf16.gmra.mrb[0].mxu0 %v629
      %v1083 = vpop.f32.mrb[0].mxu0
      %v1084 = vadd.f32 %v923, %v1083
      %v1085 = vpop.f32.mrb[0].mxu0
      %v1086 = vpop.f32.mrb[0].mxu0
      %v1087 = vadd.f32 %v926, %v1086
      %v1088 = vpop.f32.mrb[0].mxu0
      %1089 = vmatprep.mubr.bf16.mxu0 0
      %1090 = vmatmul.mubr.bf16.gmra.mrb[0].mxu0 %v630
      %v1091 = vpop.f32.mrb[0].mxu0
      %v1092 = vadd.f32 %v931, %v1091
      %v1093 = vpop.f32.mrb[0].mxu0
      %v1094 = vpop.f32.mrb[0].mxu0
      %v1095 = vadd.f32 %v934, %v1094
      %v1096 = vpop.f32.mrb[0].mxu0
      %1097 = vmatprep.mubr.bf16.mxu0 0
      %1098 = vmatmul.mubr.bf16.gmra.mrb[0].mxu0 %v631
      %v1099 = vpop.f32.mrb[0].mxu0
      %v1100 = vadd.f32 %v939, %v1099
      %v1101 = vpop.f32.mrb[0].mxu0
      %v1102 = vpop.f32.mrb[0].mxu0
      %v1103 = vadd.f32 %v942, %v1102
      %v1104 = vpop.f32.mrb[0].mxu0
      %1105 = vmatprep.mubr.bf16.mxu0 0
      %1106 = vmatmul.mubr.bf16.gmra.mrb[0].mxu0 %v632
      %v1107 = vpop.f32.mrb[0].mxu0
      %v1108 = vadd.f32 %v947, %v1107
      %v1109 = vpop.f32.mrb[0].mxu0
      %v1110 = vpop.f32.mrb[0].mxu0
      %v1111 = vadd.f32 %v950, %v1110
      %v1112 = vpop.f32.mrb[0].mxu0
      %1113 = vmatprep.mubr.bf16.mxu0 0
      %1114 = vmatmul.mubr.bf16.gmra.mrb[0].mxu0 %v633
      %v1115 = vpop.f32.mrb[0].mxu0
      %v1116 = vadd.f32 %v955, %v1115
      %v1117 = vpop.f32.mrb[0].mxu0
      %v1118 = vpop.f32.mrb[0].mxu0
      %v1119 = vadd.f32 %v958, %v1118
      %v1120 = vpop.f32.mrb[0].mxu0
      %1121 = vmatprep.mubr.bf16.mxu0 0
      %1122 = vmatmul.mubr.bf16.gmra.mrb[0].mxu0 %v634
      %v1123 = vpop.f32.mrb[0].mxu0
      %v1124 = vadd.f32 %v963, %v1123
      %v1125 = vpop.f32.mrb[0].mxu0
      %v1126 = vpop.f32.mrb[0].mxu0
      %v1127 = vadd.f32 %v966, %v1126
      %v1128 = vpop.f32.mrb[0].mxu0
      %1129 = vmatprep.mubr.bf16.mxu0 0
      %1130 = vmatmul.mubr.bf16.gmra.mrb[0].mxu0 %v635
      %v1131 = vpop.f32.mrb[0].mxu0
      %v1132 = vadd.f32 %v971, %v1131
      %v1133 = vpop.f32.mrb[0].mxu0
      %v1134 = vpop.f32.mrb[0].mxu0
      %v1135 = vadd.f32 %v974, %v1134
      %v1136 = vpop.f32.mrb[0].mxu0
      %1137 = vmatprep.mubr.bf16.mxu0 0
      %1138 = vmatmul.mubr.bf16.gmra.mrb[0].mxu0 %v636
      %v1139 = vpop.f32.mrb[0].mxu0
      %v1140 = vadd.f32 %v979, %v1139
      %v1141 = vpop.f32.mrb[0].mxu0
      %v1142 = vpop.f32.mrb[0].mxu0
      %v1143 = vadd.f32 %v982, %v1142
      %v1144 = vpop.f32.mrb[0].mxu0
      %1145 = vmatprep.mubr.bf16.mxu0 0
      %1146 = vmatmul.mubr.bf16.gmra.mrb[0].mxu0 %v637
      %v1147 = vpop.f32.mrb[0].mxu0
      %v1148 = vadd.f32 %v987, %v1147
      %v1149 = vpop.f32.mrb[0].mxu0
      %v1150 = vpop.f32.mrb[0].mxu0
      %v1151 = vadd.f32 %v990, %v1150
      %v1152 = vpop.f32.mrb[0].mxu0
      %1153 = vmatprep.mubr.bf16.mxu0 0
      %1154 = vmatmul.mubr.bf16.gmra.mrb[0].mxu0 %v638
      %v1155 = vpop.f32.mrb[0].mxu0
      %v1156 = vadd.f32 %v995, %v1155
      %v1157 = vpop.f32.mrb[0].mxu0
      %v1158 = vpop.f32.mrb[0].mxu0
      %v1159 = vadd.f32 %v998, %v1158
      %v1160 = vpop.f32.mrb[0].mxu0
      %1161 = vmatprep.mubr.bf16.mxu0 0
      %1162 = vmatmul.mubr.bf16.gmra.mrb[0].mxu0 %v639
      %v1163 = vpop.f32.mrb[0].mxu0
      %v1164 = vadd.f32 %v1003, %v1163
      %v1165 = vpop.f32.mrb[0].mxu0
      %v1166 = vpop.f32.mrb[0].mxu0
      %v1167 = vadd.f32 %v1006, %v1166
      %v1168 = vpop.f32.mrb[0].mxu0
      %1169 = vmatprep.mubr.bf16.mxu0 0
      %1170 = vmatmul.mubr.bf16.gmra.mrb[0].mxu0 %v640
      %v1171 = vpop.f32.mrb[0].mxu0
      %v1172 = vadd.f32 %v1011, %v1171
      %v1173 = vpop.f32.mrb[0].mxu0
      %v1174 = vpop.f32.mrb[0].mxu0
      %v1175 = vadd.f32 %v1014, %v1174
      %v1176 = vpop.f32.mrb[0].mxu0
      %1177 = vdwg.mxu0
      %v1178 = vsub.f32 0.0, %v1052
      %v1179 = vsub.f32 0.0, %v1055
      %v1180 = vsub.f32 0.0, %v1060
      %v1181 = vsub.f32 0.0, %v1063
      %v1182 = vsub.f32 0.0, %v1068
      %v1183 = vsub.f32 0.0, %v1071
      %v1184 = vsub.f32 0.0, %v1076
      %v1185 = vsub.f32 0.0, %v1079
      %v1186 = vsub.f32 0.0, %v1084
      %v1187 = vsub.f32 0.0, %v1087
      %v1188 = vsub.f32 0.0, %v1092
      %v1189 = vsub.f32 0.0, %v1095
      %v1190 = vsub.f32 0.0, %v1100
      %v1191 = vsub.f32 0.0, %v1103
      %v1192 = vsub.f32 0.0, %v1108
      %v1193 = vsub.f32 0.0, %v1111
      %v1194 = vsub.f32 0.0, %v1116
      %v1195 = vsub.f32 0.0, %v1119
      %v1196 = vsub.f32 0.0, %v1124
      %v1197 = vsub.f32 0.0, %v1127
      %v1198 = vsub.f32 0.0, %v1132
      %v1199 = vsub.f32 0.0, %v1135
      %v1200 = vsub.f32 0.0, %v1140
      %v1201 = vsub.f32 0.0, %v1143
      %v1202 = vsub.f32 0.0, %v1148
      %v1203 = vsub.f32 0.0, %v1151
      %v1204 = vsub.f32 0.0, %v1156
      %v1205 = vsub.f32 0.0, %v1159
      %v1206 = vsub.f32 0.0, %v1164
      %v1207 = vsub.f32 0.0, %v1167
      %v1208 = vsub.f32 0.0, %v1172
      %v1209 = vsub.f32 0.0, %v1175
      %v1210 = vmul.f32 %v1178, 1.442695
      %v1211 = vpow.pop %v1210
      %v1212 = vmul.f32 %v1179, 1.442695
      %v1213 = vpow.pop %v1212
      %v1214 = vmul.f32 %v1180, 1.442695
      %v1215 = vpow.pop %v1214
      %v1216 = vmul.f32 %v1181, 1.442695
      %v1217 = vpow.pop %v1216
      %v1218 = vmul.f32 %v1182, 1.442695
      %v1219 = vpow.pop %v1218
      %v1220 = vmul.f32 %v1183, 1.442695
      %v1221 = vpow.pop %v1220
      %v1222 = vmul.f32 %v1184, 1.442695
      %v1223 = vpow.pop %v1222
      %v1224 = vmul.f32 %v1185, 1.442695
      %v1225 = vpow.pop %v1224
      %v1226 = vmul.f32 %v1186, 1.442695
      %v1227 = vpow.pop %v1226
      %v1228 = vmul.f32 %v1187, 1.442695
      %v1229 = vpow.pop %v1228
      %v1230 = vmul.f32 %v1188, 1.442695
      %v1231 = vpow.pop %v1230
      %v1232 = vmul.f32 %v1189, 1.442695
      %v1233 = vpow.pop %v1232
      %v1234 = vmul.f32 %v1190, 1.442695
      %v1235 = vpow.pop %v1234
      %v1236 = vmul.f32 %v1191, 1.442695
      %v1237 = vpow.pop %v1236
      %v1238 = vmul.f32 %v1192, 1.442695
      %v1239 = vpow.pop %v1238
      %v1240 = vmul.f32 %v1193, 1.442695
      %v1241 = vpow.pop %v1240
      %v1242 = vmul.f32 %v1194, 1.442695
      %v1243 = vpow.pop %v1242
      %v1244 = vmul.f32 %v1195, 1.442695
      %v1245 = vpow.pop %v1244
      %v1246 = vmul.f32 %v1196, 1.442695
      %v1247 = vpow.pop %v1246
      %v1248 = vmul.f32 %v1197, 1.442695
      %v1249 = vpow.pop %v1248
      %v1250 = vmul.f32 %v1198, 1.442695
      %v1251 = vpow.pop %v1250
      %v1252 = vmul.f32 %v1199, 1.442695
      %v1253 = vpow.pop %v1252
      %v1254 = vmul.f32 %v1200, 1.442695
      %v1255 = vpow.pop %v1254
      %v1256 = vmul.f32 %v1201, 1.442695
      %v1257 = vpow.pop %v1256
      %v1258 = vmul.f32 %v1202, 1.442695
      %v1259 = vpow.pop %v1258
      %v1260 = vmul.f32 %v1203, 1.442695
      %v1261 = vpow.pop %v1260
      %v1262 = vmul.f32 %v1204, 1.442695
      %v1263 = vpow.pop %v1262
      %v1264 = vmul.f32 %v1205, 1.442695
      %v1265 = vpow.pop %v1264
      %v1266 = vmul.f32 %v1206, 1.442695
      %v1267 = vpow.pop %v1266
      %v1268 = vmul.f32 %v1207, 1.442695
      %v1269 = vpow.pop %v1268
      %v1270 = vmul.f32 %v1208, 1.442695
      %v1271 = vpow.pop %v1270
      %v1272 = vmul.f32 %v1209, 1.442695
      %v1273 = vpow.pop %v1272
      %v1274 = vadd.f32 %v1211, 1.0
      %v1275 = vadd.f32 %v1213, 1.0
      %v1276 = vadd.f32 %v1215, 1.0
      %v1277 = vadd.f32 %v1217, 1.0
      %v1278 = vadd.f32 %v1219, 1.0
      %v1279 = vadd.f32 %v1221, 1.0
      %v1280 = vadd.f32 %v1223, 1.0
      %v1281 = vadd.f32 %v1225, 1.0
      %v1282 = vadd.f32 %v1227, 1.0
      %v1283 = vadd.f32 %v1229, 1.0
      %v1284 = vadd.f32 %v1231, 1.0
      %v1285 = vadd.f32 %v1233, 1.0
      %v1286 = vadd.f32 %v1235, 1.0
      %v1287 = vadd.f32 %v1237, 1.0
      %v1288 = vadd.f32 %v1239, 1.0
      %v1289 = vadd.f32 %v1241, 1.0
      %v1290 = vadd.f32 %v1243, 1.0
      %v1291 = vadd.f32 %v1245, 1.0
      %v1292 = vadd.f32 %v1247, 1.0
      %v1293 = vadd.f32 %v1249, 1.0
      %v1294 = vadd.f32 %v1251, 1.0
      %v1295 = vadd.f32 %v1253, 1.0
      %v1296 = vadd.f32 %v1255, 1.0
      %v1297 = vadd.f32 %v1257, 1.0
      %v1298 = vadd.f32 %v1259, 1.0
      %v1299 = vadd.f32 %v1261, 1.0
      %v1300 = vadd.f32 %v1263, 1.0
      %v1301 = vadd.f32 %v1265, 1.0
      %v1302 = vadd.f32 %v1267, 1.0
      %v1303 = vadd.f32 %v1269, 1.0
      %v1304 = vadd.f32 %v1271, 1.0
      %v1305 = vadd.f32 %v1273, 1.0
      %v1306 = vrcp.pop %v1274
      %v1307 = vmul.f32 1.0, %v1306
      %v1308 = vrcp.pop %v1275
      %v1309 = vmul.f32 1.0, %v1308
      %v1310 = vrcp.pop %v1276
      %v1311 = vmul.f32 1.0, %v1310
      %v1312 = vrcp.pop %v1277
      %v1313 = vmul.f32 1.0, %v1312
      %v1314 = vrcp.pop %v1278
      %v1315 = vmul.f32 1.0, %v1314
      %v1316 = vrcp.pop %v1279
      %v1317 = vmul.f32 1.0, %v1316
      %v1318 = vrcp.pop %v1280
      %v1319 = vmul.f32 1.0, %v1318
      %v1320 = vrcp.pop %v1281
      %v1321 = vmul.f32 1.0, %v1320
      %v1322 = vrcp.pop %v1282
      %v1323 = vmul.f32 1.0, %v1322
      %v1324 = vrcp.pop %v1283
      %v1325 = vmul.f32 1.0, %v1324
      %v1326 = vrcp.pop %v1284
      %v1327 = vmul.f32 1.0, %v1326
      %v1328 = vrcp.pop %v1285
      %v1329 = vmul.f32 1.0, %v1328
      %v1330 = vrcp.pop %v1286
      %v1331 = vmul.f32 1.0, %v1330
      %v1332 = vrcp.pop %v1287
      %v1333 = vmul.f32 1.0, %v1332
      %v1334 = vrcp.pop %v1288
      %v1335 = vmul.f32 1.0, %v1334
      %v1336 = vrcp.pop %v1289
      %v1337 = vmul.f32 1.0, %v1336
      %v1338 = vrcp.pop %v1290
      %v1339 = vmul.f32 1.0, %v1338
      %v1340 = vrcp.pop %v1291
      %v1341 = vmul.f32 1.0, %v1340
      %v1342 = vrcp.pop %v1292
      %v1343 = vmul.f32 1.0, %v1342
      %v1344 = vrcp.pop %v1293
      %v1345 = vmul.f32 1.0, %v1344
      %v1346 = vrcp.pop %v1294
      %v1347 = vmul.f32 1.0, %v1346
      %v1348 = vrcp.pop %v1295
      %v1349 = vmul.f32 1.0, %v1348
      %v1350 = vrcp.pop %v1296
      %v1351 = vmul.f32 1.0, %v1350
      %v1352 = vrcp.pop %v1297
      %v1353 = vmul.f32 1.0, %v1352
      %v1354 = vrcp.pop %v1298
      %v1355 = vmul.f32 1.0, %v1354
      %v1356 = vrcp.pop %v1299
      %v1357 = vmul.f32 1.0, %v1356
      %v1358 = vrcp.pop %v1300
      %v1359 = vmul.f32 1.0, %v1358
      %v1360 = vrcp.pop %v1301
      %v1361 = vmul.f32 1.0, %v1360
      %v1362 = vrcp.pop %v1302
      %v1363 = vmul.f32 1.0, %v1362
      %v1364 = vrcp.pop %v1303
      %v1365 = vmul.f32 1.0, %v1364
      %v1366 = vrcp.pop %v1304
      %v1367 = vmul.f32 1.0, %v1366
      %v1368 = vrcp.pop %v1305
      %v1369 = vmul.f32 1.0, %v1368
      %v1370 = vmul.f32 %v1052, %v1307
      %v1371 = vmul.f32 %v1055, %v1309
      %v1372 = vmul.f32 %v1060, %v1311
      %v1373 = vmul.f32 %v1063, %v1313
      %v1374 = vmul.f32 %v1068, %v1315
      %v1375 = vmul.f32 %v1071, %v1317
      %v1376 = vmul.f32 %v1076, %v1319
      %v1377 = vmul.f32 %v1079, %v1321
      %v1378 = vmul.f32 %v1084, %v1323
      %v1379 = vmul.f32 %v1087, %v1325
      %v1380 = vmul.f32 %v1092, %v1327
      %v1381 = vmul.f32 %v1095, %v1329
      %v1382 = vmul.f32 %v1100, %v1331
      %v1383 = vmul.f32 %v1103, %v1333
      %v1384 = vmul.f32 %v1108, %v1335
      %v1385 = vmul.f32 %v1111, %v1337
      %v1386 = vmul.f32 %v1116, %v1339
      %v1387 = vmul.f32 %v1119, %v1341
      %v1388 = vmul.f32 %v1124, %v1343
      %v1389 = vmul.f32 %v1127, %v1345
      %v1390 = vmul.f32 %v1132, %v1347
      %v1391 = vmul.f32 %v1135, %v1349
      %v1392 = vmul.f32 %v1140, %v1351
      %v1393 = vmul.f32 %v1143, %v1353
      %v1394 = vmul.f32 %v1148, %v1355
      %v1395 = vmul.f32 %v1151, %v1357
      %v1396 = vmul.f32 %v1156, %v1359
      %v1397 = vmul.f32 %v1159, %v1361
      %v1398 = vmul.f32 %v1164, %v1363
      %v1399 = vmul.f32 %v1167, %v1365
      %v1400 = vmul.f32 %v1172, %v1367
      %v1401 = vmul.f32 %v1175, %v1369
      %1402 = vst [vmem:[%s270] sm:$0xff] %v1370
      %1403 = vst [vmem:[%s270 + $0x8] sm:$0xff] %v1371
      %1404 = vst [vmem:[%s270 + $0x10] sm:$0xff] %v1372
      %1405 = vst [vmem:[%s270 + $0x18] sm:$0xff] %v1373
      %1406 = vst [vmem:[%s270 + $0x20] sm:$0xff] %v1374
      %1407 = vst [vmem:[%s270 + $0x28] sm:$0xff] %v1375
      %1408 = vst [vmem:[%s270 + $0x30] sm:$0xff] %v1376
      %1409 = vst [vmem:[%s270 + $0x38] sm:$0xff] %v1377
      %1410 = vst [vmem:[%s270 + $0x40] sm:$0xff] %v1378
      %1411 = vst [vmem:[%s270 + $0x48] sm:$0xff] %v1379
      %1412 = vst [vmem:[%s270 + $0x50] sm:$0xff] %v1380
      %1413 = vst [vmem:[%s270 + $0x58] sm:$0xff] %v1381
      %1414 = vst [vmem:[%s270 + $0x60] sm:$0xff] %v1382
      %1415 = vst [vmem:[%s270 + $0x68] sm:$0xff] %v1383
      %1416 = vst [vmem:[%s270 + $0x70] sm:$0xff] %v1384
      %1417 = vst [vmem:[%s270 + $0x78] sm:$0xff] %v1385
      %1418 = vst [vmem:[%s270 + $0x80] sm:$0xff] %v1386
      %1419 = vst [vmem:[%s270 + $0x88] sm:$0xff] %v1387
      %1420 = vst [vmem:[%s270 + $0x90] sm:$0xff] %v1388
      %1421 = vst [vmem:[%s270 + $0x98] sm:$0xff] %v1389
      %1422 = vst [vmem:[%s270 + $0xa0] sm:$0xff] %v1390
      %1423 = vst [vmem:[%s270 + $0xa8] sm:$0xff] %v1391
      %1424 = vst [vmem:[%s270 + $0xb0] sm:$0xff] %v1392
      %1425 = vst [vmem:[%s270 + $0xb8] sm:$0xff] %v1393
      %1426 = vst [vmem:[%s270 + $0xc0] sm:$0xff] %v1394
      %1427 = vst [vmem:[%s270 + $0xc8] sm:$0xff] %v1395
      %1428 = vst [vmem:[%s270 + $0xd0] sm:$0xff] %v1396
      %1429 = vst [vmem:[%s270 + $0xd8] sm:$0xff] %v1397
      %1430 = vst [vmem:[%s270 + $0xe0] sm:$0xff] %v1398
      %1431 = vst [vmem:[%s270 + $0xe8] sm:$0xff] %v1399
      %1432 = vst [vmem:[%s270 + $0xf0] sm:$0xff] %v1400
      %1433 = vst [vmem:[%s270 + $0xf8] sm:$0xff] %v1401
      %s1434 = smul.u32 32, %s16
      %p1435 = scmp.lt.s32.totalorder %s1434, 63
      %s1436 = scalar_select %p1435, %s1434, 63
      %s1437 = smul.addr %s1436, 8
      %s1438 = scalar_lea.vmem %s5, %s1437
      // Predicated region
      $region41: #{c2f_lmsa_forward.5} parent=39 // pred_check
        %p1439 = pneg %p154
      $region42: #{c2f_lmsa_forward.5} parent=39 // pred_check_branch
        %1441 = sbr.rel (%p1439) target = $region44
      $region43: #{c2f_lmsa_forward.5} parent=39 // pred_region
        %s1442 = smul.u32 32, %s16
      $region44: #{c2f_lmsa_forward.5} parent=39 // pred_fallthru
        _
    $region40: #{c2f_lmsa_forward.5} parent=5 // pred_fallthru
      _
    %p1443 = scmp.le.s32.totalorder 2, %s11
    // Predicated region
    $region45: #{c2f_lmsa_forward.5} parent=5 // pred_check
      %p1444 = pneg %p1443
    $region46: #{c2f_lmsa_forward.5} parent=5 // pred_check_branch
      %1446 = sbr.rel (%p1444) target = $region48
    $region47: #{c2f_lmsa_forward.5} parent=5 // pred_region
      %s1447 = ssub.s32 %s11, 2
      // Predicated region
      $region49: #{c2f_lmsa_forward.5} parent=47 // pred_check
        %p1448 = pneg %p160
      $region50: #{c2f_lmsa_forward.5} parent=47 // pred_check_branch
        %1450 = sbr.rel (%p1448) target = $region52
      $region51: #{c2f_lmsa_forward.5} parent=47 // pred_region
        %s1451 = smul.u32 32, %s17
        %p1452 = scmp.lt.s32.totalorder %s1451, 63
        %s1453 = scalar_select %p1452, %s1451, 63
        %s1454 = smul.addr %s1453, 8
        %s1455 = scalar_lea.vmem %s5, %s1454
      $region52: #{c2f_lmsa_forward.5} parent=47 // pred_fallthru
        _
    $region48: #{c2f_lmsa_forward.5} parent=5 // pred_fallthru
      _
  $region6: #{c2f_lmsa_forward.5} parent=0 // loop_footer
    %s15 = sadd.s32 1, %s11
  $region7: #{c2f_lmsa_forward.5} parent=0 // loop_footer_branch
    %10 = sbr.rel target = $region3
  $region8: #{c2f_lmsa_forward.5} parent=0 // loop_exit
    _

// kernel: c2f_lmsa_forward.4
$region0: #{c2f_lmsa_forward.4}
  #allocation0 [shape = 'u32[]', space=smem, size = 0x4, offset = 0x4, fixed_abs, tag = 'smem constant byte address 0x4 - core index']
  #allocation1 [shape = 'u32[144,128]{1,0:T(1,128)}', space=vmem, size = 0x12000, scoped, tag = 'internal scratch']
  #allocation2 [shape = 'bf16[18,16,128]{2,1,0:T(16,128)(2,1)}', space=vmem, size = 0x12000, scoped, tag = 'scratch operand']
  %s0 = inlined_call_operand.vmem [shape: bf16[2,16,16,128], index: 0, kind: input, shape index: {}]
  %s1 = inlined_call_operand.vmem [shape: bf16[3,384,128], index: 1, kind: input, shape index: {}]
  %s2 = inlined_call_operand.vmem [shape: f32[1,128], index: 2, kind: input, shape index: {}]
  %s3 = inlined_call_operand.vmem [shape: bf16[3,384,128], index: 3, kind: input, shape index: {}]
  %s4 = inlined_call_operand.vmem [shape: f32[1,128], index: 4, kind: input, shape index: {}]
  %s5 = inlined_call_operand.vmem [shape: bf16[2,16,16,128], index: 5, kind: output, shape index: {}]
  %s6 = sld [smem:[#allocation0]]
  $region53: #{c2f_lmsa_forward.4} parent=0
    _
  %s8 = ssub.s32 1, %s6
  %s9 = scalar_select 0, %s8, %s6
  loop: start=0, step=1, limit=4
  $region2: #{c2f_lmsa_forward.4} parent=0 // loop_pre_header
    _
  $region3: #{c2f_lmsa_forward.4} parent=0 // loop_header
    %s11 = sphi 0, %s15
    %p12 = scmp.ge.s32.totalorder %s11, 4
    %s21 = sphi 0, %s23
    %s24 = sphi 0, %s21
    %s25 = sphi 0, %s24
    %s41 = sphi 0, %s25
    %s45 = sphi 0, %s45
    %s47 = sphi 0, %s45
    %s48 = sphi 0, %s47
    %s62 = sphi 0, %s48
    %s66 = sphi 0, %s66
    %s68 = sphi 0, %s66
    %s69 = sphi 0, %s68
    %s83 = sphi 0, %s69
    %s87 = sphi 0, %s87
    %s89 = sphi 0, %s87
    %s90 = sphi 0, %s89
    %s104 = sphi 0, %s90
    %s108 = sphi 0, %s108
    %s110 = sphi 0, %s108
    %s111 = sphi 0, %s110
    %s125 = sphi 0, %s111
    %s131 = sphi 0, %s133
    %s134 = sphi 0, %s131
    %s135 = sphi 0, %s134
    %s151 = sphi 0, %s135
  $region4: #{c2f_lmsa_forward.4} parent=0 // loop_header_branch
    %14 = sbr.rel (%p12) target = $region8
  $region5: #{c2f_lmsa_forward.4} parent=0 // loop_body
    %s16 = ssub.s32 %s11, 1
    %s17 = ssub.s32 %s11, 2
    %s18 = sadd.s32 %s11, 1
    %s19 = ssub.s32 %s11, %s18
    %p20 = scmp.eq.s32.totalorder %s19, 0
    %s22 = sadd.s32 %s21, 1
    %s23 = scalar_select %p20, %s21, %s22
    %p26 = pneg %p20
    %p27 = scmp.eq.s32.totalorder %s11, 1
    %p28 = por %p26, %p27
    %p29 = scmp.ne.s32.totalorder %s21, %s24
    %p30 = scmp.eq.s32.totalorder %s11, 0
    %p31 = por %p29, %p30
    %p32 = scmp.ne.s32.totalorder %s21, %s24
    %p33 = scmp.eq.s32.totalorder %s16, 1
    %p34 = por %p32, %p33
    %p35 = scmp.ne.s32.totalorder %s24, %s25
    %p36 = scmp.eq.s32.totalorder %s16, 0
    %p37 = por %p35, %p36
    %p38 = scmp.ne.s32.totalorder %s24, %s25
    %p39 = scmp.eq.s32.totalorder %s17, 1
    %p40 = por %p38, %p39
    %p42 = scmp.ne.s32.totalorder %s25, %s41
    %p43 = scmp.eq.s32.totalorder %s17, 0
    %p44 = por %p42, %p43
    %s46 = sadd.s32 %s45, 1
    %p49 = scmp.eq.s32.totalorder %s11, 1
    %p50 = scmp.ne.s32.totalorder %s45, %s47
    %p51 = scmp.eq.s32.totalorder %s11, 0
    %p52 = por %p50, %p51
    %p53 = scmp.ne.s32.totalorder %s45, %s47
    %p54 = scmp.eq.s32.totalorder %s16, 1
    %p55 = por %p53, %p54
    %p56 = scmp.ne.s32.totalorder %s47, %s48
    %p57 = scmp.eq.s32.totalorder %s16, 0
    %p58 = por %p56, %p57
    %p59 = scmp.ne.s32.totalorder %s47, %s48
    %p60 = scmp.eq.s32.totalorder %s17, 1
    %p61 = por %p59, %p60
    %p63 = scmp.ne.s32.totalorder %s48, %s62
    %p64 = scmp.eq.s32.totalorder %s17, 0
    %p65 = por %p63, %p64
    %s67 = sadd.s32 %s66, 1
    %p70 = scmp.eq.s32.totalorder %s11, 1
    %p71 = scmp.ne.s32.totalorder %s66, %s68
    %p72 = scmp.eq.s32.totalorder %s11, 0
    %p73 = por %p71, %p72
    %p74 = scmp.ne.s32.totalorder %s66, %s68
    %p75 = scmp.eq.s32.totalorder %s16, 1
    %p76 = por %p74, %p75
    %p77 = scmp.ne.s32.totalorder %s68, %s69
    %p78 = scmp.eq.s32.totalorder %s16, 0
    %p79 = por %p77, %p78
    %p80 = scmp.ne.s32.totalorder %s68, %s69
    %p81 = scmp.eq.s32.totalorder %s17, 1
    %p82 = por %p80, %p81
    %p84 = scmp.ne.s32.totalorder %s69, %s83
    %p85 = scmp.eq.s32.totalorder %s17, 0
    %p86 = por %p84, %p85
    %s88 = sadd.s32 %s87, 1
    %p91 = scmp.eq.s32.totalorder %s11, 1
    %p92 = scmp.ne.s32.totalorder %s87, %s89
    %p93 = scmp.eq.s32.totalorder %s11, 0
    %p94 = por %p92, %p93
    %p95 = scmp.ne.s32.totalorder %s87, %s89
    %p96 = scmp.eq.s32.totalorder %s16, 1
    %p97 = por %p95, %p96
    %p98 = scmp.ne.s32.totalorder %s89, %s90
    %p99 = scmp.eq.s32.totalorder %s16, 0
    %p100 = por %p98, %p99
    %p101 = scmp.ne.s32.totalorder %s89, %s90
    %p102 = scmp.eq.s32.totalorder %s17, 1
    %p103 = por %p101, %p102
    %p105 = scmp.ne.s32.totalorder %s90, %s104
    %p106 = scmp.eq.s32.totalorder %s17, 0
    %p107 = por %p105, %p106
    %s109 = sadd.s32 %s108, 1
    %p112 = scmp.eq.s32.totalorder %s11, 1
    %p113 = scmp.ne.s32.totalorder %s108, %s110
    %p114 = scmp.eq.s32.totalorder %s11, 0
    %p115 = por %p113, %p114
    %p116 = scmp.ne.s32.totalorder %s108, %s110
    %p117 = scmp.eq.s32.totalorder %s16, 1
    %p118 = por %p116, %p117
    %p119 = scmp.ne.s32.totalorder %s110, %s111
    %p120 = scmp.eq.s32.totalorder %s16, 0
    %p121 = por %p119, %p120
    %p122 = scmp.ne.s32.totalorder %s110, %s111
    %p123 = scmp.eq.s32.totalorder %s17, 1
    %p124 = por %p122, %p123
    %p126 = scmp.ne.s32.totalorder %s111, %s125
    %p127 = scmp.eq.s32.totalorder %s17, 0
    %p128 = por %p126, %p127
    %s129 = ssub.s32 %s11, %s18
    %p130 = scmp.eq.s32.totalorder %s129, 0
    %s132 = sadd.s32 %s131, 1
    %s133 = scalar_select %p130, %s131, %s132
    %p136 = pneg %p130
    %p137 = scmp.eq.s32.totalorder %s11, 1
    %p138 = por %p136, %p137
    %p139 = scmp.ne.s32.totalorder %s131, %s134
    %p140 = scmp.eq.s32.totalorder %s11, 0
    %p141 = por %p139, %p140
    %p142 = scmp.ne.s32.totalorder %s131, %s134
    %p143 = scmp.eq.s32.totalorder %s16, 1
    %p144 = por %p142, %p143
    %p145 = scmp.ne.s32.totalorder %s134, %s135
    %p146 = scmp.eq.s32.totalorder %s16, 0
    %p147 = por %p145, %p146
    %p148 = scmp.ne.s32.totalorder %s134, %s135
    %p149 = scmp.eq.s32.totalorder %s17, 1
    %p150 = por %p148, %p149
    %p152 = scmp.ne.s32.totalorder %s135, %s151
    %p153 = scmp.eq.s32.totalorder %s17, 0
    %p154 = por %p152, %p153
    %p155 = scmp.le.s32.totalorder 1, %s11
    %p156 = scmp.lt.s32.totalorder %s11, 3
    %p157 = pnand %p155, %p156
    %p158 = pneg %p157
    // Predicated region
    $region9: #{c2f_lmsa_forward.4} parent=5 // pred_check
      _
    $region10: #{c2f_lmsa_forward.4} parent=5 // pred_check_branch
      %160 = sbr.rel (%p157) target = $region12
    $region11: #{c2f_lmsa_forward.4} parent=5 // pred_region
      %s161 = ssub.s32 %s11, 1
      // Predicated region
      $region13: #{c2f_lmsa_forward.4} parent=11 // pred_check
        %p162 = pneg %p58
      $region14: #{c2f_lmsa_forward.4} parent=11 // pred_check_branch
        %164 = sbr.rel (%p162) target = $region16
      $region15: #{c2f_lmsa_forward.4} parent=11 // pred_region
        _
      $region16: #{c2f_lmsa_forward.4} parent=11 // pred_fallthru
        _
      // Predicated region
      $region17: #{c2f_lmsa_forward.4} parent=11 // pred_check
        %p165 = pneg %p79
      $region18: #{c2f_lmsa_forward.4} parent=11 // pred_check_branch
        %167 = sbr.rel (%p165) target = $region20
      $region19: #{c2f_lmsa_forward.4} parent=11 // pred_region
        _
      $region20: #{c2f_lmsa_forward.4} parent=11 // pred_fallthru
        _
      // Predicated region
      $region21: #{c2f_lmsa_forward.4} parent=11 // pred_check
        %p168 = pneg %p100
      $region22: #{c2f_lmsa_forward.4} parent=11 // pred_check_branch
        %170 = sbr.rel (%p168) target = $region24
      $region23: #{c2f_lmsa_forward.4} parent=11 // pred_region
        _
      $region24: #{c2f_lmsa_forward.4} parent=11 // pred_fallthru
        _
      // Predicated region
      $region25: #{c2f_lmsa_forward.4} parent=11 // pred_check
        %p171 = pneg %p121
      $region26: #{c2f_lmsa_forward.4} parent=11 // pred_check_branch
        %173 = sbr.rel (%p171) target = $region28
      $region27: #{c2f_lmsa_forward.4} parent=11 // pred_region
        _
      $region28: #{c2f_lmsa_forward.4} parent=11 // pred_fallthru
        _
    $region12: #{c2f_lmsa_forward.4} parent=5 // pred_fallthru
      _
    %p174 = scmp.lt.s32.totalorder %s11, 2
    // Predicated region
    $region29: #{c2f_lmsa_forward.4} parent=5 // pred_check
      %p175 = pneg %p174
    $region30: #{c2f_lmsa_forward.4} parent=5 // pred_check_branch
      %177 = sbr.rel (%p175) target = $region32
    $region31: #{c2f_lmsa_forward.4} parent=5 // pred_region
      // Predicated region
      $region33: #{c2f_lmsa_forward.4} parent=31 // pred_check
        %p178 = pneg %p31
      $region34: #{c2f_lmsa_forward.4} parent=31 // pred_check_branch
        %180 = sbr.rel (%p178) target = $region36
      $region35: #{c2f_lmsa_forward.4} parent=31 // pred_region
        %p181 = scmp.lt.s32.totalorder %s11, 1
        %s182 = scalar_select %p181, %s11, 1
        %s183 = smul.addr %s182, 32
        %s184 = smul.addr %s183, 4
        %s185 = scalar_lea.vmem %s0, %s184
      $region36: #{c2f_lmsa_forward.4} parent=31 // pred_fallthru
        _
    $region32: #{c2f_lmsa_forward.4} parent=5 // pred_fallthru
      _
    %p186 = scmp.le.s32.totalorder 1, %s11
    %p187 = scmp.lt.s32.totalorder %s11, 3
    %p188 = pnand %p186, %p187
    %p189 = pneg %p188
    // Predicated region
    $region37: #{c2f_lmsa_forward.4} parent=5 // pred_check
      _
    $region38: #{c2f_lmsa_forward.4} parent=5 // pred_check_branch
      %191 = sbr.rel (%p188) target = $region40
    $region39: #{c2f_lmsa_forward.4} parent=5 // pred_region
      %s192 = ssub.s32 %s11, 1
      %p193 = scmp.lt.s32.totalorder %s16, 1
      %s194 = scalar_select %p193, %s16, 1
      %s195 = smul.addr %s194, 32
      %s196 = smul.addr %s195, 4
      %s197 = scalar_lea.vmem %s0, %s196
      %p198 = pneg %p37
      %p199 = pneg %p34
      %p200 = pneg %p58
      %p201 = pneg %p55
      %p202 = pneg %p79
      %p203 = pneg %p76
      %p204 = pneg %p100
      %p205 = pneg %p97
      %p206 = pneg %p121
      %p207 = pneg %p118
      %p208 = pneg %p147
      %p209 = pneg %p144
      %p210 = scmp.lt.s32.totalorder %s16, 1
      %s211 = scalar_select %p210, %s16, 1
      %s212 = smul.addr %s211, 32
      %s213 = smul.addr %s212, 4
      %s214 = scalar_lea.vmem %s5, %s213
      %p215 = scmp.lt.s32.totalorder %s16, 1
      %s216 = scalar_select %p215, %s16, 1
      %s217 = smul.addr %s216, 32
      %s218 = smul.addr %s217, 4
      %s219 = scalar_lea.vmem %s0, %s218
      %p220 = scmp.lt.s32.totalorder %s16, 1
      %s221 = scalar_select %p220, %s16, 1
      %s222 = smul.addr %s221, 32
      %s223 = smul.addr %s222, 4
      %s224 = scalar_lea.vmem %s5, %s223
      %226 = vst [vmem:[#allocation2] sm:$0xff] 0
      %s227 = scalar_lea.vmem [#allocation2], 136
      %228 = vst [vmem:[%s227] sm:$0xff] 0
      %v229 = vld [vmem:[%s219] sm:$0xf]
      %v230 = vld [vmem:[%s219 + $0x4] sm:$0xf]
      %v231 = vld [vmem:[%s219 + $0x8] sm:$0xf]
      %v232 = vld [vmem:[%s219 + $0xc] sm:$0xf]
      %v233 = vld [vmem:[%s219 + $0x10] sm:$0xf]
      %v234 = vld [vmem:[%s219 + $0x14] sm:$0xf]
      %v235 = vld [vmem:[%s219 + $0x18] sm:$0xf]
      %v236 = vld [vmem:[%s219 + $0x1c] sm:$0xf]
      %v237 = vld [vmem:[%s219 + $0x20] sm:$0xf]
      %v238 = vld [vmem:[%s219 + $0x24] sm:$0xf]
      %v239 = vld [vmem:[%s219 + $0x28] sm:$0xf]
      %v240 = vld [vmem:[%s219 + $0x2c] sm:$0xf]
      %v241 = vld [vmem:[%s219 + $0x30] sm:$0xf]
      %v242 = vld [vmem:[%s219 + $0x34] sm:$0xf]
      %v243 = vld [vmem:[%s219 + $0x38] sm:$0xf]
      %v244 = vld [vmem:[%s219 + $0x3c] sm:$0xf]
      %v245 = vld [vmem:[%s219 + $0x40] sm:$0xf]
      %v246 = vld [vmem:[%s219 + $0x44] sm:$0xf]
      %v247 = vld [vmem:[%s219 + $0x48] sm:$0xf]
      %v248 = vld [vmem:[%s219 + $0x4c] sm:$0xf]
      %v249 = vld [vmem:[%s219 + $0x50] sm:$0xf]
      %v250 = vld [vmem:[%s219 + $0x54] sm:$0xf]
      %v251 = vld [vmem:[%s219 + $0x58] sm:$0xf]
      %v252 = vld [vmem:[%s219 + $0x5c] sm:$0xf]
      %v253 = vld [vmem:[%s219 + $0x60] sm:$0xf]
      %v254 = vld [vmem:[%s219 + $0x64] sm:$0xf]
      %v255 = vld [vmem:[%s219 + $0x68] sm:$0xf]
      %v256 = vld [vmem:[%s219 + $0x6c] sm:$0xf]
      %v257 = vld [vmem:[%s219 + $0x70] sm:$0xf]
      %v258 = vld [vmem:[%s219 + $0x74] sm:$0xf]
      %v259 = vld [vmem:[%s219 + $0x78] sm:$0xf]
      %v260 = vld [vmem:[%s219 + $0x7c] sm:$0xf]
      %v293 = vunpack.c.l.b16 %v229
      %v294 = vunpack.c.l.b16 %v230
      %v295 = vunpack.c.l.b16 %v231
      %v296 = vunpack.c.l.b16 %v232
      %v297 = vunpack.c.l.b16 %v233
      %v298 = vunpack.c.l.b16 %v234
      %v299 = vunpack.c.l.b16 %v235
      %v300 = vunpack.c.l.b16 %v236
      %v301 = vunpack.c.l.b16 %v237
      %v302 = vunpack.c.l.b16 %v238
      %v303 = vunpack.c.l.b16 %v239
      %v304 = vunpack.c.l.b16 %v240
      %v305 = vunpack.c.l.b16 %v241
      %v306 = vunpack.c.l.b16 %v242
      %v307 = vunpack.c.l.b16 %v243
      %v308 = vunpack.c.l.b16 %v244
      %v309 = vunpack.c.l.b16 %v245
      %v310 = vunpack.c.l.b16 %v246
      %v311 = vunpack.c.l.b16 %v247
      %v312 = vunpack.c.l.b16 %v248
      %v313 = vunpack.c.l.b16 %v249
      %v314 = vunpack.c.l.b16 %v250
      %v315 = vunpack.c.l.b16 %v251
      %v316 = vunpack.c.l.b16 %v252
      %v317 = vunpack.c.l.b16 %v253
      %v318 = vunpack.c.l.b16 %v254
      %v319 = vunpack.c.l.b16 %v255
      %v320 = vunpack.c.l.b16 %v256
      %v321 = vunpack.c.l.b16 %v257
      %v322 = vunpack.c.l.b16 %v258
      %v323 = vunpack.c.l.b16 %v259
      %v324 = vunpack.c.l.b16 %v260
      %v325 = vpack.c.b16 %v294, %v293
      %v326 = vpack.c.b16 %v296, %v295
      %v327 = vpack.c.b16 %v298, %v297
      %v328 = vpack.c.b16 %v300, %v299
      %v329 = vpack.c.b16 %v302, %v301
      %v330 = vpack.c.b16 %v304, %v303
      %v331 = vpack.c.b16 %v306, %v305
      %v332 = vpack.c.b16 %v308, %v307
      %v333 = vpack.c.b16 %v310, %v309
      %v334 = vpack.c.b16 %v312, %v311
      %v335 = vpack.c.b16 %v314, %v313
      %v336 = vpack.c.b16 %v316, %v315
      %v337 = vpack.c.b16 %v318, %v317
      %v338 = vpack.c.b16 %v320, %v319
      %v339 = vpack.c.b16 %v322, %v321
      %v340 = vpack.c.b16 %v324, %v323
      %s357 = scalar_lea.vmem [#allocation2], 8
      %358 = vst [vmem:[%s357] sm:$0xff] %v325
      %359 = vst [vmem:[%s357 + $0x8] sm:$0xff] %v326
      %360 = vst [vmem:[%s357 + $0x10] sm:$0xff] %v327
      %361 = vst [vmem:[%s357 + $0x18] sm:$0xff] %v328
      %362 = vst [vmem:[%s357 + $0x20] sm:$0xff] %v329
      %363 = vst [vmem:[%s357 + $0x28] sm:$0xff] %v330
      %364 = vst [vmem:[%s357 + $0x30] sm:$0xff] %v331
      %365 = vst [vmem:[%s357 + $0x38] sm:$0xff] %v332
      %366 = vst [vmem:[%s357 + $0x40] sm:$0xff] %v333
      %367 = vst [vmem:[%s357 + $0x48] sm:$0xff] %v334
      %368 = vst [vmem:[%s357 + $0x50] sm:$0xff] %v335
      %369 = vst [vmem:[%s357 + $0x58] sm:$0xff] %v336
      %370 = vst [vmem:[%s357 + $0x60] sm:$0xff] %v337
      %371 = vst [vmem:[%s357 + $0x68] sm:$0xff] %v338
      %372 = vst [vmem:[%s357 + $0x70] sm:$0xff] %v339
      %373 = vst [vmem:[%s357 + $0x78] sm:$0xff] %v340
      %v374 = vld [vmem:[#allocation2] sm:$0xff]
      %v375 = vld [vmem:[#allocation2 + $0x8] sm:$0xff]
      %v376 = vld [vmem:[#allocation2 + $0x10] sm:$0xff]
      %v377 = vld [vmem:[#allocation2 + $0x18] sm:$0xff]
      %v378 = vld [vmem:[#allocation2 + $0x20] sm:$0xff]
      %v379 = vld [vmem:[#allocation2 + $0x28] sm:$0xff]
      %v380 = vld [vmem:[#allocation2 + $0x30] sm:$0xff]
      %v381 = vld [vmem:[#allocation2 + $0x38] sm:$0xff]
      %v382 = vld [vmem:[#allocation2 + $0x40] sm:$0xff]
      %v383 = vld [vmem:[#allocation2 + $0x48] sm:$0xff]
      %v384 = vld [vmem:[#allocation2 + $0x50] sm:$0xff]
      %v385 = vld [vmem:[#allocation2 + $0x58] sm:$0xff]
      %v386 = vld [vmem:[#allocation2 + $0x60] sm:$0xff]
      %v387 = vld [vmem:[#allocation2 + $0x68] sm:$0xff]
      %v388 = vld [vmem:[#allocation2 + $0x70] sm:$0xff]
      %v389 = vld [vmem:[#allocation2 + $0x78] sm:$0xff]
      %v391 = vshrl.u32 %v374, 16
      %v393 = vrot.slane %v391, 7
      %v394 = vshll.u32 %v374, 16
      %v396 = vor.u32 %v393, %v394
      %v398 = vshrl.u32 %v375, 16
      %v400 = vrot.slane %v398, 7
      %v401 = vshll.u32 %v375, 16
      %v403 = vor.u32 %v400, %v401
      %v405 = vshrl.u32 %v376, 16
      %v407 = vrot.slane %v405, 7
      %v408 = vshll.u32 %v376, 16
      %v410 = vor.u32 %v407, %v408
      %v412 = vshrl.u32 %v377, 16
      %v414 = vrot.slane %v412, 7
      %v415 = vshll.u32 %v377, 16
      %v417 = vor.u32 %v414, %v415
      %v419 = vshrl.u32 %v378, 16
      %v421 = vrot.slane %v419, 7
      %v422 = vshll.u32 %v378, 16
      %v424 = vor.u32 %v421, %v422
      %v426 = vshrl.u32 %v379, 16
      %v428 = vrot.slane %v426, 7
      %v429 = vshll.u32 %v379, 16
      %v431 = vor.u32 %v428, %v429
      %v433 = vshrl.u32 %v380, 16
      %v435 = vrot.slane %v433, 7
      %v436 = vshll.u32 %v380, 16
      %v438 = vor.u32 %v435, %v436
      %v440 = vshrl.u32 %v381, 16
      %v442 = vrot.slane %v440, 7
      %v443 = vshll.u32 %v381, 16
      %v445 = vor.u32 %v442, %v443
      %v447 = vshrl.u32 %v382, 16
      %v449 = vrot.slane %v447, 7
      %v450 = vshll.u32 %v382, 16
      %v452 = vor.u32 %v449, %v450
      %v454 = vshrl.u32 %v383, 16
      %v456 = vrot.slane %v454, 7
      %v457 = vshll.u32 %v383, 16
      %v459 = vor.u32 %v456, %v457
      %v461 = vshrl.u32 %v384, 16
      %v463 = vrot.slane %v461, 7
      %v464 = vshll.u32 %v384, 16
      %v466 = vor.u32 %v463, %v464
      %v468 = vshrl.u32 %v385, 16
      %v470 = vrot.slane %v468, 7
      %v471 = vshll.u32 %v385, 16
      %v473 = vor.u32 %v470, %v471
      %v475 = vshrl.u32 %v386, 16
      %v477 = vrot.slane %v475, 7
      %v478 = vshll.u32 %v386, 16
      %v480 = vor.u32 %v477, %v478
      %v482 = vshrl.u32 %v387, 16
      %v484 = vrot.slane %v482, 7
      %v485 = vshll.u32 %v387, 16
      %v487 = vor.u32 %v484, %v485
      %v489 = vshrl.u32 %v388, 16
      %v491 = vrot.slane %v489, 7
      %v492 = vshll.u32 %v388, 16
      %v494 = vor.u32 %v491, %v492
      %v496 = vshrl.u32 %v389, 16
      %v498 = vrot.slane %v496, 7
      %v499 = vshll.u32 %v389, 16
      %v501 = vor.u32 %v498, %v499
      %vm518 = vcmask 1040384
      %vm519 = vsmask.f32 256
      %vm520 = vmand %vm518, %vm519
      %v521 = vsel %vm520, 0, %v396
      %v522 = vsel %vm520, 0, %v403
      %v523 = vsel %vm520, 0, %v410
      %v524 = vsel %vm520, 0, %v417
      %v525 = vsel %vm520, 0, %v424
      %v526 = vsel %vm520, 0, %v431
      %v527 = vsel %vm520, 0, %v438
      %v528 = vsel %vm520, 0, %v445
      %v529 = vsel %vm520, 0, %v452
      %v530 = vsel %vm520, 0, %v459
      %v531 = vsel %vm520, 0, %v466
      %v532 = vsel %vm520, 0, %v473
      %v533 = vsel %vm520, 0, %v480
      %v534 = vsel %vm520, 0, %v487
      %v535 = vsel %vm520, 0, %v494
      %v536 = vsel %vm520, 0, %v501
      %v537 = vrot.slane %v394, 1
      %v538 = vor.u32 %v391, %v537
      %v539 = vrot.slane %v401, 1
      %v540 = vor.u32 %v398, %v539
      %v541 = vrot.slane %v408, 1
      %v542 = vor.u32 %v405, %v541
      %v543 = vrot.slane %v415, 1
      %v544 = vor.u32 %v412, %v543
      %v545 = vrot.slane %v422, 1
      %v546 = vor.u32 %v419, %v545
      %v547 = vrot.slane %v429, 1
      %v548 = vor.u32 %v426, %v547
      %v549 = vrot.slane %v436, 1
      %v550 = vor.u32 %v433, %v549
      %v551 = vrot.slane %v443, 1
      %v552 = vor.u32 %v440, %v551
      %v553 = vrot.slane %v450, 1
      %v554 = vor.u32 %v447, %v553
      %v555 = vrot.slane %v457, 1
      %v556 = vor.u32 %v454, %v555
      %v557 = vrot.slane %v464, 1
      %v558 = vor.u32 %v461, %v557
      %v559 = vrot.slane %v471, 1
      %v560 = vor.u32 %v468, %v559
      %v561 = vrot.slane %v478, 1
      %v562 = vor.u32 %v475, %v561
      %v563 = vrot.slane %v485, 1
      %v564 = vor.u32 %v482, %v563
      %v565 = vrot.slane %v492, 1
      %v566 = vor.u32 %v489, %v565
      %v567 = vrot.slane %v499, 1
      %v568 = vor.u32 %v496, %v567
      %vm585 = vcmask 1047552
      %vm586 = vsmask.f32 7424
      %vm587 = vmand %vm585, %vm586
      %v588 = vsel %vm587, %v538, 0
      %v589 = vsel %vm587, %v540, 0
      %v590 = vsel %vm587, %v542, 0
      %v591 = vsel %vm587, %v544, 0
      %v592 = vsel %vm587, %v546, 0
      %v593 = vsel %vm587, %v548, 0
      %v594 = vsel %vm587, %v550, 0
      %v595 = vsel %vm587, %v552, 0
      %v596 = vsel %vm587, %v554, 0
      %v597 = vsel %vm587, %v556, 0
      %v598 = vsel %vm587, %v558, 0
      %v599 = vsel %vm587, %v560, 0
      %v600 = vsel %vm587, %v562, 0
      %v601 = vsel %vm587, %v564, 0
      %v602 = vsel %vm587, %v566, 0
      %v603 = vsel %vm587, %v568, 0
      %v604 = vld [vmem:[%s1] sm:$0xf]
      %v605 = vld [vmem:[%s1 + $0x4] sm:$0xf]
      %v606 = vld [vmem:[%s1 + $0x8] sm:$0xf]
      %v607 = vld [vmem:[%s1 + $0xc] sm:$0xf]
      %v608 = vld [vmem:[%s1 + $0x10] sm:$0xf]
      %v609 = vld [vmem:[%s1 + $0x14] sm:$0xf]
      %v610 = vld [vmem:[%s1 + $0x18] sm:$0xf]
      %v611 = vld [vmem:[%s1 + $0x1c] sm:$0xf]
      %v612 = vld [vmem:[%s1 + $0x20] sm:$0xf]
      %v613 = vld [vmem:[%s1 + $0x24] sm:$0xf]
      %v614 = vld [vmem:[%s1 + $0x28] sm:$0xf]
      %v615 = vld [vmem:[%s1 + $0x2c] sm:$0xf]
      %v616 = vld [vmem:[%s1 + $0x30] sm:$0xf]
      %v617 = vld [vmem:[%s1 + $0x34] sm:$0xf]
      %v618 = vld [vmem:[%s1 + $0x38] sm:$0xf]
      %v619 = vld [vmem:[%s1 + $0x3c] sm:$0xf]
      %v620 = vld [vmem:[%s1 + $0x40] sm:$0xf]
      %v621 = vld [vmem:[%s1 + $0x44] sm:$0xf]
      %v622 = vld [vmem:[%s1 + $0x48] sm:$0xf]
      %v623 = vld [vmem:[%s1 + $0x4c] sm:$0xf]
      %v624 = vld [vmem:[%s1 + $0x50] sm:$0xf]
      %v625 = vld [vmem:[%s1 + $0x54] sm:$0xf]
      %v626 = vld [vmem:[%s1 + $0x58] sm:$0xf]
      %v627 = vld [vmem:[%s1 + $0x5c] sm:$0xf]
      %v628 = vld [vmem:[%s1 + $0x60] sm:$0xf]
      %v629 = vld [vmem:[%s1 + $0x64] sm:$0xf]
      %v630 = vld [vmem:[%s1 + $0x68] sm:$0xf]
      %v631 = vld [vmem:[%s1 + $0x6c] sm:$0xf]
      %v632 = vld [vmem:[%s1 + $0x70] sm:$0xf]
      %v633 = vld [vmem:[%s1 + $0x74] sm:$0xf]
      %v634 = vld [vmem:[%s1 + $0x78] sm:$0xf]
      %v635 = vld [vmem:[%s1 + $0x7c] sm:$0xf]
      %v636 = vld [vmem:[%s1 + $0x80] sm:$0xf]
      %v637 = vld [vmem:[%s1 + $0x84] sm:$0xf]
      %v638 = vld [vmem:[%s1 + $0x88] sm:$0xf]
      %v639 = vld [vmem:[%s1 + $0x8c] sm:$0xf]
      %v640 = vld [vmem:[%s1 + $0x90] sm:$0xf]
      %v641 = vld [vmem:[%s1 + $0x94] sm:$0xf]
      %v642 = vld [vmem:[%s1 + $0x98] sm:$0xf]
      %v643 = vld [vmem:[%s1 + $0x9c] sm:$0xf]
      %v644 = vld [vmem:[%s1 + $0xa0] sm:$0xf]
      %v645 = vld [vmem:[%s1 + $0xa4] sm:$0xf]
      %v646 = vld [vmem:[%s1 + $0xa8] sm:$0xf]
      %v647 = vld [vmem:[%s1 + $0xac] sm:$0xf]
      %v648 = vld [vmem:[%s1 + $0xb0] sm:$0xf]
      %v649 = vld [vmem:[%s1 + $0xb4] sm:$0xf]
      %v650 = vld [vmem:[%s1 + $0xb8] sm:$0xf]
      %v651 = vld [vmem:[%s1 + $0xbc] sm:$0xf]
      %v652 = vld [vmem:[%s357] sm:$0xff]
      %v653 = vld [vmem:[%s357 + $0x8] sm:$0xff]
      %v654 = vld [vmem:[%s357 + $0x10] sm:$0xff]
      %v655 = vld [vmem:[%s357 + $0x18] sm:$0xff]
      %v656 = vld [vmem:[%s357 + $0x20] sm:$0xff]
      %v657 = vld [vmem:[%s357 + $0x28] sm:$0xff]
      %v658 = vld [vmem:[%s357 + $0x30] sm:$0xff]
      %v659 = vld [vmem:[%s357 + $0x38] sm:$0xff]
      %v660 = vld [vmem:[%s357 + $0x40] sm:$0xff]
      %v661 = vld [vmem:[%s357 + $0x48] sm:$0xff]
      %v662 = vld [vmem:[%s357 + $0x50] sm:$0xff]
      %v663 = vld [vmem:[%s357 + $0x58] sm:$0xff]
      %v664 = vld [vmem:[%s357 + $0x60] sm:$0xff]
      %v665 = vld [vmem:[%s357 + $0x68] sm:$0xff]
      %v666 = vld [vmem:[%s357 + $0x70] sm:$0xff]
      %v667 = vld [vmem:[%s357 + $0x78] sm:$0xff]
      %v669 = vshrl.u32 %v652, 16
      %v671 = vrot.slane %v669, 7
      %v672 = vshll.u32 %v652, 16
      %v674 = vor.u32 %v671, %v672
      %v676 = vshrl.u32 %v653, 16
      %v678 = vrot.slane %v676, 7
      %v679 = vshll.u32 %v653, 16
      %v681 = vor.u32 %v678, %v679
      %v683 = vshrl.u32 %v654, 16
      %v685 = vrot.slane %v683, 7
      %v686 = vshll.u32 %v654, 16
      %v688 = vor.u32 %v685, %v686
      %v690 = vshrl.u32 %v655, 16
      %v692 = vrot.slane %v690, 7
      %v693 = vshll.u32 %v655, 16
      %v695 = vor.u32 %v692, %v693
      %v697 = vshrl.u32 %v656, 16
      %v699 = vrot.slane %v697, 7
      %v700 = vshll.u32 %v656, 16
      %v702 = vor.u32 %v699, %v700
      %v704 = vshrl.u32 %v657, 16
      %v706 = vrot.slane %v704, 7
      %v707 = vshll.u32 %v657, 16
      %v709 = vor.u32 %v706, %v707
      %v711 = vshrl.u32 %v658, 16
      %v713 = vrot.slane %v711, 7
      %v714 = vshll.u32 %v658, 16
      %v716 = vor.u32 %v713, %v714
      %v718 = vshrl.u32 %v659, 16
      %v720 = vrot.slane %v718, 7
      %v721 = vshll.u32 %v659, 16
      %v723 = vor.u32 %v720, %v721
      %v725 = vshrl.u32 %v660, 16
      %v727 = vrot.slane %v725, 7
      %v728 = vshll.u32 %v660, 16
      %v730 = vor.u32 %v727, %v728
      %v732 = vshrl.u32 %v661, 16
      %v734 = vrot.slane %v732, 7
      %v735 = vshll.u32 %v661, 16
      %v737 = vor.u32 %v734, %v735
      %v739 = vshrl.u32 %v662, 16
      %v741 = vrot.slane %v739, 7
      %v742 = vshll.u32 %v662, 16
      %v744 = vor.u32 %v741, %v742
      %v746 = vshrl.u32 %v663, 16
      %v748 = vrot.slane %v746, 7
      %v749 = vshll.u32 %v663, 16
      %v751 = vor.u32 %v748, %v749
      %v753 = vshrl.u32 %v664, 16
      %v755 = vrot.slane %v753, 7
      %v756 = vshll.u32 %v664, 16
      %v758 = vor.u32 %v755, %v756
      %v760 = vshrl.u32 %v665, 16
      %v762 = vrot.slane %v760, 7
      %v763 = vshll.u32 %v665, 16
      %v765 = vor.u32 %v762, %v763
      %v767 = vshrl.u32 %v666, 16
      %v769 = vrot.slane %v767, 7
      %v770 = vshll.u32 %v666, 16
      %v772 = vor.u32 %v769, %v770
      %v774 = vshrl.u32 %v667, 16
      %v776 = vrot.slane %v774, 7
      %v777 = vshll.u32 %v667, 16
      %v779 = vor.u32 %v776, %v777
      %v796 = vsel %vm520, 0, %v674
      %v797 = vsel %vm520, 0, %v681
      %v798 = vsel %vm520, 0, %v688
      %v799 = vsel %vm520, 0, %v695
      %v800 = vsel %vm520, 0, %v702
      %v801 = vsel %vm520, 0, %v709
      %v802 = vsel %vm520, 0, %v716
      %v803 = vsel %vm520, 0, %v723
      %v804 = vsel %vm520, 0, %v730
      %v805 = vsel %vm520, 0, %v737
      %v806 = vsel %vm520, 0, %v744
      %v807 = vsel %vm520, 0, %v751
      %v808 = vsel %vm520, 0, %v758
      %v809 = vsel %vm520, 0, %v765
      %v810 = vsel %vm520, 0, %v772
      %v811 = vsel %vm520, 0, %v779
      %v812 = vrot.slane %v672, 1
      %v813 = vor.u32 %v669, %v812
      %v814 = vrot.slane %v679, 1
      %v815 = vor.u32 %v676, %v814
      %v816 = vrot.slane %v686, 1
      %v817 = vor.u32 %v683, %v816
      %v818 = vrot.slane %v693, 1
      %v819 = vor.u32 %v690, %v818
      %v820 = vrot.slane %v700, 1
      %v821 = vor.u32 %v697, %v820
      %v822 = vrot.slane %v707, 1
      %v823 = vor.u32 %v704, %v822
      %v824 = vrot.slane %v714, 1
      %v825 = vor.u32 %v711, %v824
      %v826 = vrot.slane %v721, 1
      %v827 = vor.u32 %v718, %v826
      %v828 = vrot.slane %v728, 1
      %v829 = vor.u32 %v725, %v828
      %v830 = vrot.slane %v735, 1
      %v831 = vor.u32 %v732, %v830
      %v832 = vrot.slane %v742, 1
      %v833 = vor.u32 %v739, %v832
      %v834 = vrot.slane %v749, 1
      %v835 = vor.u32 %v746, %v834
      %v836 = vrot.slane %v756, 1
      %v837 = vor.u32 %v753, %v836
      %v838 = vrot.slane %v763, 1
      %v839 = vor.u32 %v760, %v838
      %v840 = vrot.slane %v770, 1
      %v841 = vor.u32 %v767, %v840
      %v842 = vrot.slane %v777, 1
      %v843 = vor.u32 %v774, %v842
      %v860 = vsel %vm587, %v813, 0
      %v861 = vsel %vm587, %v815, 0
      %v862 = vsel %vm587, %v817, 0
      %v863 = vsel %vm587, %v819, 0
      %v864 = vsel %vm587, %v821, 0
      %v865 = vsel %vm587, %v823, 0
      %v866 = vsel %vm587, %v825, 0
      %v867 = vsel %vm587, %v827, 0
      %v868 = vsel %vm587, %v829, 0
      %v869 = vsel %vm587, %v831, 0
      %v870 = vsel %vm587, %v833, 0
      %v871 = vsel %vm587, %v835, 0
      %v872 = vsel %vm587, %v837, 0
      %v873 = vsel %vm587, %v839, 0
      %v874 = vsel %vm587, %v841, 0
      %v875 = vsel %vm587, %v843, 0
      %s876 = scalar_lea.vmem %s1, 192
      %v877 = vld [vmem:[%s876] sm:$0xf]
      %v878 = vld [vmem:[%s876 + $0x4] sm:$0xf]
      %v879 = vld [vmem:[%s876 + $0x8] sm:$0xf]
      %v880 = vld [vmem:[%s876 + $0xc] sm:$0xf]
      %v881 = vld [vmem:[%s876 + $0x10] sm:$0xf]
      %v882 = vld [vmem:[%s876 + $0x14] sm:$0xf]
      %v883 = vld [vmem:[%s876 + $0x18] sm:$0xf]
      %v884 = vld [vmem:[%s876 + $0x1c] sm:$0xf]
      %v885 = vld [vmem:[%s876 + $0x20] sm:$0xf]
      %v886 = vld [vmem:[%s876 + $0x24] sm:$0xf]
      %v887 = vld [vmem:[%s876 + $0x28] sm:$0xf]
      %v888 = vld [vmem:[%s876 + $0x2c] sm:$0xf]
      %v889 = vld [vmem:[%s876 + $0x30] sm:$0xf]
      %v890 = vld [vmem:[%s876 + $0x34] sm:$0xf]
      %v891 = vld [vmem:[%s876 + $0x38] sm:$0xf]
      %v892 = vld [vmem:[%s876 + $0x3c] sm:$0xf]
      %v893 = vld [vmem:[%s876 + $0x40] sm:$0xf]
      %v894 = vld [vmem:[%s876 + $0x44] sm:$0xf]
      %v895 = vld [vmem:[%s876 + $0x48] sm:$0xf]
      %v896 = vld [vmem:[%s876 + $0x4c] sm:$0xf]
      %v897 = vld [vmem:[%s876 + $0x50] sm:$0xf]
      %v898 = vld [vmem:[%s876 + $0x54] sm:$0xf]
      %v899 = vld [vmem:[%s876 + $0x58] sm:$0xf]
      %v900 = vld [vmem:[%s876 + $0x5c] sm:$0xf]
      %v901 = vld [vmem:[%s876 + $0x60] sm:$0xf]
      %v902 = vld [vmem:[%s876 + $0x64] sm:$0xf]
      %v903 = vld [vmem:[%s876 + $0x68] sm:$0xf]
      %v904 = vld [vmem:[%s876 + $0x6c] sm:$0xf]
      %v905 = vld [vmem:[%s876 + $0x70] sm:$0xf]
      %v906 = vld [vmem:[%s876 + $0x74] sm:$0xf]
      %v907 = vld [vmem:[%s876 + $0x78] sm:$0xf]
      %v908 = vld [vmem:[%s876 + $0x7c] sm:$0xf]
      %v909 = vld [vmem:[%s876 + $0x80] sm:$0xf]
      %v910 = vld [vmem:[%s876 + $0x84] sm:$0xf]
      %v911 = vld [vmem:[%s876 + $0x88] sm:$0xf]
      %v912 = vld [vmem:[%s876 + $0x8c] sm:$0xf]
      %v913 = vld [vmem:[%s876 + $0x90] sm:$0xf]
      %v914 = vld [vmem:[%s876 + $0x94] sm:$0xf]
      %v915 = vld [vmem:[%s876 + $0x98] sm:$0xf]
      %v916 = vld [vmem:[%s876 + $0x9c] sm:$0xf]
      %v917 = vld [vmem:[%s876 + $0xa0] sm:$0xf]
      %v918 = vld [vmem:[%s876 + $0xa4] sm:$0xf]
      %v919 = vld [vmem:[%s876 + $0xa8] sm:$0xf]
      %v920 = vld [vmem:[%s876 + $0xac] sm:$0xf]
      %v921 = vld [vmem:[%s876 + $0xb0] sm:$0xf]
      %v922 = vld [vmem:[%s876 + $0xb4] sm:$0xf]
      %v923 = vld [vmem:[%s876 + $0xb8] sm:$0xf]
      %v924 = vld [vmem:[%s876 + $0xbc] sm:$0xf]
      %v973 = vunpack.c.l.b16 %v877
      %v974 = vunpack.c.l.b16 %v878
      %v975 = vunpack.c.l.b16 %v879
      %v976 = vunpack.c.l.b16 %v880
      %v977 = vunpack.c.l.b16 %v881
      %v978 = vunpack.c.l.b16 %v882
      %v979 = vunpack.c.l.b16 %v883
      %v980 = vunpack.c.l.b16 %v884
      %v981 = vunpack.c.l.b16 %v885
      %v982 = vunpack.c.l.b16 %v886
      %v983 = vunpack.c.l.b16 %v887
      %v984 = vunpack.c.l.b16 %v888
      %v985 = vunpack.c.l.b16 %v889
      %v986 = vunpack.c.l.b16 %v890
      %v987 = vunpack.c.l.b16 %v891
      %v988 = vunpack.c.l.b16 %v892
      %v989 = vunpack.c.l.b16 %v893
      %v990 = vunpack.c.l.b16 %v894
      %v991 = vunpack.c.l.b16 %v895
      %v992 = vunpack.c.l.b16 %v896
      %v993 = vunpack.c.l.b16 %v897
      %v994 = vunpack.c.l.b16 %v898
      %v995 = vunpack.c.l.b16 %v899
      %v996 = vunpack.c.l.b16 %v900
      %v997 = vunpack.c.l.b16 %v901
      %v998 = vunpack.c.l.b16 %v902
      %v999 = vunpack.c.l.b16 %v903
      %v1000 = vunpack.c.l.b16 %v904
      %v1001 = vunpack.c.l.b16 %v905
      %v1002 = vunpack.c.l.b16 %v906
      %v1003 = vunpack.c.l.b16 %v907
      %v1004 = vunpack.c.l.b16 %v908
      %v1005 = vunpack.c.l.b16 %v909
      %v1006 = vunpack.c.l.b16 %v910
      %v1007 = vunpack.c.l.b16 %v911
      %v1008 = vunpack.c.l.b16 %v912
      %v1009 = vunpack.c.l.b16 %v913
      %v1010 = vunpack.c.l.b16 %v914
      %v1011 = vunpack.c.l.b16 %v915
      %v1012 = vunpack.c.l.b16 %v916
      %v1013 = vunpack.c.l.b16 %v917
      %v1014 = vunpack.c.l.b16 %v918
      %v1015 = vunpack.c.l.b16 %v919
      %v1016 = vunpack.c.l.b16 %v920
      %v1017 = vunpack.c.l.b16 %v921
      %v1018 = vunpack.c.l.b16 %v922
      %v1019 = vunpack.c.l.b16 %v923
      %v1020 = vunpack.c.l.b16 %v924
      %v1021 = vpack.c.b16 %v974, %v973
      %v1022 = vpack.c.b16 %v976, %v975
      %v1023 = vpack.c.b16 %v978, %v977
      %v1024 = vpack.c.b16 %v980, %v979
      %v1025 = vpack.c.b16 %v982, %v981
      %v1026 = vpack.c.b16 %v984, %v983
      %v1027 = vpack.c.b16 %v986, %v985
      %v1028 = vpack.c.b16 %v988, %v987
      %v1029 = vpack.c.b16 %v990, %v989
      %v1030 = vpack.c.b16 %v992, %v991
      %v1031 = vpack.c.b16 %v994, %v993
      %v1032 = vpack.c.b16 %v996, %v995
      %v1033 = vpack.c.b16 %v998, %v997
      %v1034 = vpack.c.b16 %v1000, %v999
      %v1035 = vpack.c.b16 %v1002, %v1001
      %v1036 = vpack.c.b16 %v1004, %v1003
      %v1037 = vpack.c.b16 %v1006, %v1005
      %v1038 = vpack.c.b16 %v1008, %v1007
      %v1039 = vpack.c.b16 %v1010, %v1009
      %v1040 = vpack.c.b16 %v1012, %v1011
      %v1041 = vpack.c.b16 %v1014, %v1013
      %v1042 = vpack.c.b16 %v1016, %v1015
      %v1043 = vpack.c.b16 %v1018, %v1017
      %v1044 = vpack.c.b16 %v1020, %v1019
      %1069 = vmatprep.subr.bf16.mxu0 0
      %1070 = vmatpush1.bf16.msra.mxu0 %v1021
      %1071 = vmatprep.subr.bf16.mxu0 0
      %1072 = vmatpush1.bf16.msra.mxu0 %v1022
      %1073 = vmatprep.subr.bf16.mxu0 0
      %1074 = vmatpush1.bf16.msra.mxu0 %v1023
      %1075 = vmatprep.subr.bf16.mxu0 0
      %1076 = vmatpush1.bf16.msra.mxu0 %v1024
      %1077 = vmatprep.subr.bf16.mxu0 0
      %1078 = vmatpush1.bf16.msra.mxu0 %v1025
      %1079 = vmatprep.subr.bf16.mxu0 0
      %1080 = vmatpush1.bf16.msra.mxu0 %v1026
      %1081 = vmatprep.subr.bf16.mxu0 0
      %1082 = vmatpush1.bf16.msra.mxu0 %v1027
      %1083 = vmatprep.subr.bf16.mxu0 0
      %1084 = vmatpush1.bf16.msra.mxu0 %v1028
      %1085 = vmatprep.subr.bf16.mxu0 0
      %1086 = vmatpush1.bf16.msra.mxu0 %v1029
      %1087 = vmatprep.subr.bf16.mxu0 0
      %1088 = vmatpush1.bf16.msra.mxu0 %v1030
      %1089 = vmatprep.subr.bf16.mxu0 0
      %1090 = vmatpush1.bf16.msra.mxu0 %v1031
      %1091 = vmatprep.subr.bf16.mxu0 0
      %1092 = vmatpush1.bf16.msra.mxu0 %v1032
      %1093 = vmatprep.subr.bf16.mxu0 0
      %1094 = vmatpush1.bf16.msra.mxu0 %v1033
      %1095 = vmatprep.subr.bf16.mxu0 0
      %1096 = vmatpush1.bf16.msra.mxu0 %v1034
      %1097 = vmatprep.subr.bf16.mxu0 0
      %1098 = vmatpush1.bf16.msra.mxu0 %v1035
      %1099 = vmatprep.subr.bf16.mxu0 0
      %1100 = vmatpush1.bf16.msra.mxu0 %v1036
      %1101 = vmatprep.mubr.bf16.mxu0 %v652
      %1102 = vmatmul.mubr.bf16.gmra.mrb[0].mxu0 %v796
      %v1103 = vpop.f32.mrb[0].mxu0
      %v1104 = vadd.f32 0.0, %v1103
      %v1105 = vpop.f32.mrb[0].mxu0
      %v1106 = vpop.f32.mrb[0].mxu0
      %v1107 = vadd.f32 0.0, %v1106
      %v1108 = vpop.f32.mrb[0].mxu0
      %1109 = vmatprep.mubr.bf16.mxu0 %v653
      %1110 = vmatmul.mubr.bf16.gmra.mrb[0].mxu0 %v797
      %v1111 = vpop.f32.mrb[0].mxu0
      %v1112 = vadd.f32 0.0, %v1111
      %v1113 = vpop.f32.mrb[0].mxu0
      %v1114 = vpop.f32.mrb[0].mxu0
      %v1115 = vadd.f32 0.0, %v1114
      %v1116 = vpop.f32.mrb[0].mxu0
      %1117 = vmatprep.mubr.bf16.mxu0 %v654
      %1118 = vmatmul.mubr.bf16.gmra.mrb[0].mxu0 %v798
      %v1119 = vpop.f32.mrb[0].mxu0
      %v1120 = vadd.f32 0.0, %v1119
      %v1121 = vpop.f32.mrb[0].mxu0
      %v1122 = vpop.f32.mrb[0].mxu0
      %v1123 = vadd.f32 0.0, %v1122
      %v1124 = vpop.f32.mrb[0].mxu0
      %1125 = vmatprep.mubr.bf16.mxu0 %v655
      %1126 = vmatmul.mubr.bf16.gmra.mrb[0].mxu0 %v799
      %v1127 = vpop.f32.mrb[0].mxu0
      %v1128 = vadd.f32 0.0, %v1127
      %v1129 = vpop.f32.mrb[0].mxu0
      %v1130 = vpop.f32.mrb[0].mxu0
      %v1131 = vadd.f32 0.0, %v1130
      %v1132 = vpop.f32.mrb[0].mxu0
      %1133 = vmatprep.mubr.bf16.mxu0 %v656
      %1134 = vmatmul.mubr.bf16.gmra.mrb[0].mxu0 %v800
      %v1135 = vpop.f32.mrb[0].mxu0
      %v1136 = vadd.f32 0.0, %v1135
      %v1137 = vpop.f32.mrb[0].mxu0
      %v1138 = vpop.f32.mrb[0].mxu0
      %v1139 = vadd.f32 0.0, %v1138
      %v1140 = vpop.f32.mrb[0].mxu0
      %1141 = vmatprep.mubr.bf16.mxu0 %v657
      %1142 = vmatmul.mubr.bf16.gmra.mrb[0].mxu0 %v801
      %v1143 = vpop.f32.mrb[0].mxu0
      %v1144 = vadd.f32 0.0, %v1143
      %v1145 = vpop.f32.mrb[0].mxu0
      %v1146 = vpop.f32.mrb[0].mxu0
      %v1147 = vadd.f32 0.0, %v1146
      %v1148 = vpop.f32.mrb[0].mxu0
      %1149 = vmatprep.mubr.bf16.mxu0 %v658
      %1150 = vmatmul.mubr.bf16.gmra.mrb[0].mxu0 %v802
      %v1151 = vpop.f32.mrb[0].mxu0
      %v1152 = vadd.f32 0.0, %v1151
      %v1153 = vpop.f32.mrb[0].mxu0
      %v1154 = vpop.f32.mrb[0].mxu0
      %v1155 = vadd.f32 0.0, %v1154
      %v1156 = vpop.f32.mrb[0].mxu0
      %1157 = vmatprep.mubr.bf16.mxu0 %v659
      %1158 = vmatmul.mubr.bf16.gmra.mrb[0].mxu0 %v803
      %v1159 = vpop.f32.mrb[0].mxu0
      %v1160 = vadd.f32 0.0, %v1159
      %v1161 = vpop.f32.mrb[0].mxu0
      %v1162 = vpop.f32.mrb[0].mxu0
      %v1163 = vadd.f32 0.0, %v1162
      %v1164 = vpop.f32.mrb[0].mxu0
      %1165 = vmatprep.mubr.bf16.mxu0 %v660
      %1166 = vmatmul.mubr.bf16.gmra.mrb[0].mxu0 %v804
      %v1167 = vpop.f32.mrb[0].mxu0
      %v1168 = vadd.f32 0.0, %v1167
      %v1169 = vpop.f32.mrb[0].mxu0
      %v1170 = vpop.f32.mrb[0].mxu0
      %v1171 = vadd.f32 0.0, %v1170
      %v1172 = vpop.f32.mrb[0].mxu0
      %1173 = vmatprep.mubr.bf16.mxu0 %v661
      %1174 = vmatmul.mubr.bf16.gmra.mrb[0].mxu0 %v805
      %v1175 = vpop.f32.mrb[0].mxu0
      %v1176 = vadd.f32 0.0, %v1175
      %v1177 = vpop.f32.mrb[0].mxu0
      %v1178 = vpop.f32.mrb[0].mxu0
      %v1179 = vadd.f32 0.0, %v1178
      %v1180 = vpop.f32.mrb[0].mxu0
      %1181 = vmatprep.mubr.bf16.mxu0 %v662
      %1182 = vmatmul.mubr.bf16.gmra.mrb[0].mxu0 %v806
      %v1183 = vpop.f32.mrb[0].mxu0
      %v1184 = vadd.f32 0.0, %v1183
      %v1185 = vpop.f32.mrb[0].mxu0
      %v1186 = vpop.f32.mrb[0].mxu0
      %v1187 = vadd.f32 0.0, %v1186
      %v1188 = vpop.f32.mrb[0].mxu0
      %1189 = vmatprep.mubr.bf16.mxu0 %v663
      %1190 = vmatmul.mubr.bf16.gmra.mrb[0].mxu0 %v807
      %v1191 = vpop.f32.mrb[0].mxu0
      %v1192 = vadd.f32 0.0, %v1191
      %v1193 = vpop.f32.mrb[0].mxu0
      %v1194 = vpop.f32.mrb[0].mxu0
      %v1195 = vadd.f32 0.0, %v1194
      %v1196 = vpop.f32.mrb[0].mxu0
      %1197 = vmatprep.mubr.bf16.mxu0 %v664
      %1198 = vmatmul.mubr.bf16.gmra.mrb[0].mxu0 %v808
      %v1199 = vpop.f32.mrb[0].mxu0
      %v1200 = vadd.f32 0.0, %v1199
      %v1201 = vpop.f32.mrb[0].mxu0
      %v1202 = vpop.f32.mrb[0].mxu0
      %v1203 = vadd.f32 0.0, %v1202
      %v1204 = vpop.f32.mrb[0].mxu0
      %1205 = vmatprep.mubr.bf16.mxu0 %v665
      %1206 = vmatmul.mubr.bf16.gmra.mrb[0].mxu0 %v809
      %v1207 = vpop.f32.mrb[0].mxu0
      %v1208 = vadd.f32 0.0, %v1207
      %v1209 = vpop.f32.mrb[0].mxu0
      %v1210 = vpop.f32.mrb[0].mxu0
      %v1211 = vadd.f32 0.0, %v1210
      %v1212 = vpop.f32.mrb[0].mxu0
      %1213 = vmatprep.mubr.bf16.mxu0 %v666
      %1214 = vmatmul.mubr.bf16.gmra.mrb[0].mxu0 %v810
      %v1215 = vpop.f32.mrb[0].mxu0
      %v1216 = vadd.f32 0.0, %v1215
      %v1217 = vpop.f32.mrb[0].mxu0
      %v1218 = vpop.f32.mrb[0].mxu0
      %v1219 = vadd.f32 0.0, %v1218
      %v1220 = vpop.f32.mrb[0].mxu0
      %1221 = vmatprep.mubr.bf16.mxu0 %v667
      %1222 = vmatmul.mubr.bf16.gmra.mrb[0].mxu0 %v811
      %v1223 = vpop.f32.mrb[0].mxu0
      %v1224 = vadd.f32 0.0, %v1223
      %v1225 = vpop.f32.mrb[0].mxu0
      %v1226 = vpop.f32.mrb[0].mxu0
      %v1227 = vadd.f32 0.0, %v1226
      %v1228 = vpop.f32.mrb[0].mxu0
      %1229 = vdwg.mxu0
      %1230 = vmatprep.subr.bf16.mxu0 0
      %1231 = vmatpush1.bf16.msra.mxu0 %v1037
      %1232 = vmatprep.subr.bf16.mxu0 0
      %1233 = vmatpush1.bf16.msra.mxu0 %v1038
      %1234 = vmatprep.subr.bf16.mxu0 0
      %1235 = vmatpush1.bf16.msra.mxu0 %v1039
      %1236 = vmatprep.subr.bf16.mxu0 0
      %1237 = vmatpush1.bf16.msra.mxu0 %v1040
      %1238 = vmatprep.subr.bf16.mxu0 0
      %1239 = vmatpush1.bf16.msra.mxu0 %v1041
      %1240 = vmatprep.subr.bf16.mxu0 0
      %1241 = vmatpush1.bf16.msra.mxu0 %v1042
      %1242 = vmatprep.subr.bf16.mxu0 0
      %1243 = vmatpush1.bf16.msra.mxu0 %v1043
      %1244 = vmatprep.subr.bf16.mxu0 0
      %1245 = vmatpush1.bf16.msra.mxu0 %v1044
      %1246 = vmatprep.subr.bf16.mxu0 0
      %1247 = vmatpush1.bf16.msra.mxu0 0
      %1248 = vmatprep.subr.bf16.mxu0 0
      %1249 = vmatpush1.bf16.msra.mxu0 0
      %1250 = vmatprep.subr.bf16.mxu0 0
      %1251 = vmatpush1.bf16.msra.mxu0 0
      %1252 = vmatprep.subr.bf16.mxu0 0
      %1253 = vmatpush1.bf16.msra.mxu0 0
      %1254 = vmatprep.subr.bf16.mxu0 0
      %1255 = vmatpush1.bf16.msra.mxu0 0
      %1256 = vmatprep.subr.bf16.mxu0 0
      %1257 = vmatpush1.bf16.msra.mxu0 0
      %1258 = vmatprep.subr.bf16.mxu0 0
      %1259 = vmatpush1.bf16.msra.mxu0 0
      %1260 = vmatprep.subr.bf16.mxu0 0
      %1261 = vmatpush1.bf16.msra.mxu0 0
      %1262 = vmatprep.mubr.bf16.mxu0 0
      %1263 = vmatmul.mubr.bf16.gmra.mrb[0].mxu0 %v860
      %v1264 = vpop.f32.mrb[0].mxu0
      %v1265 = vadd.f32 %v1104, %v1264
      %v1266 = vpop.f32.mrb[0].mxu0
      %v1267 = vpop.f32.mrb[0].mxu0
      %v1268 = vadd.f32 %v1107, %v1267
      %v1269 = vpop.f32.mrb[0].mxu0
      %1270 = vmatprep.mubr.bf16.mxu0 0
      %1271 = vmatmul.mubr.bf16.gmra.mrb[0].mxu0 %v861
      %v1272 = vpop.f32.mrb[0].mxu0
      %v1273 = vadd.f32 %v1112, %v1272
      %v1274 = vpop.f32.mrb[0].mxu0
      %v1275 = vpop.f32.mrb[0].mxu0
      %v1276 = vadd.f32 %v1115, %v1275
      %v1277 = vpop.f32.mrb[0].mxu0
      %1278 = vmatprep.mubr.bf16.mxu0 0
      %1279 = vmatmul.mubr.bf16.gmra.mrb[0].mxu0 %v862
      %v1280 = vpop.f32.mrb[0].mxu0
      %v1281 = vadd.f32 %v1120, %v1280
      %v1282 = vpop.f32.mrb[0].mxu0
      %v1283 = vpop.f32.mrb[0].mxu0
      %v1284 = vadd.f32 %v1123, %v1283
      %v1285 = vpop.f32.mrb[0].mxu0
      %1286 = vmatprep.mubr.bf16.mxu0 0
      %1287 = vmatmul.mubr.bf16.gmra.mrb[0].mxu0 %v863
      %v1288 = vpop.f32.mrb[0].mxu0
      %v1289 = vadd.f32 %v1128, %v1288
      %v1290 = vpop.f32.mrb[0].mxu0
      %v1291 = vpop.f32.mrb[0].mxu0
      %v1292 = vadd.f32 %v1131, %v1291
      %v1293 = vpop.f32.mrb[0].mxu0
      %1294 = vmatprep.mubr.bf16.mxu0 0
      %1295 = vmatmul.mubr.bf16.gmra.mrb[0].mxu0 %v864
      %v1296 = vpop.f32.mrb[0].mxu0
      %v1297 = vadd.f32 %v1136, %v1296
      %v1298 = vpop.f32.mrb[0].mxu0
      %v1299 = vpop.f32.mrb[0].mxu0
      %v1300 = vadd.f32 %v1139, %v1299
      %v1301 = vpop.f32.mrb[0].mxu0
      %1302 = vmatprep.mubr.bf16.mxu0 0
      %1303 = vmatmul.mubr.bf16.gmra.mrb[0].mxu0 %v865
      %v1304 = vpop.f32.mrb[0].mxu0
      %v1305 = vadd.f32 %v1144, %v1304
      %v1306 = vpop.f32.mrb[0].mxu0
      %v1307 = vpop.f32.mrb[0].mxu0
      %v1308 = vadd.f32 %v1147, %v1307
      %v1309 = vpop.f32.mrb[0].mxu0
      %1310 = vmatprep.mubr.bf16.mxu0 0
      %1311 = vmatmul.mubr.bf16.gmra.mrb[0].mxu0 %v866
      %v1312 = vpop.f32.mrb[0].mxu0
      %v1313 = vadd.f32 %v1152, %v1312
      %v1314 = vpop.f32.mrb[0].mxu0
      %v1315 = vpop.f32.mrb[0].mxu0
      %v1316 = vadd.f32 %v1155, %v1315
      %v1317 = vpop.f32.mrb[0].mxu0
      %1318 = vmatprep.mubr.bf16.mxu0 0
      %1319 = vmatmul.mubr.bf16.gmra.mrb[0].mxu0 %v867
      %v1320 = vpop.f32.mrb[0].mxu0
      %v1321 = vadd.f32 %v1160, %v1320
      %v1322 = vpop.f32.mrb[0].mxu0
      %v1323 = vpop.f32.mrb[0].mxu0
      %v1324 = vadd.f32 %v1163, %v1323
      %v1325 = vpop.f32.mrb[0].mxu0
      %1326 = vmatprep.mubr.bf16.mxu0 0
      %1327 = vmatmul.mubr.bf16.gmra.mrb[0].mxu0 %v868
      %v1328 = vpop.f32.mrb[0].mxu0
      %v1329 = vadd.f32 %v1168, %v1328
      %v1330 = vpop.f32.mrb[0].mxu0
      %v1331 = vpop.f32.mrb[0].mxu0
      %v1332 = vadd.f32 %v1171, %v1331
      %v1333 = vpop.f32.mrb[0].mxu0
      %1334 = vmatprep.mubr.bf16.mxu0 0
      %1335 = vmatmul.mubr.bf16.gmra.mrb[0].mxu0 %v869
      %v1336 = vpop.f32.mrb[0].mxu0
      %v1337 = vadd.f32 %v1176, %v1336
      %v1338 = vpop.f32.mrb[0].mxu0
      %v1339 = vpop.f32.mrb[0].mxu0
      %v1340 = vadd.f32 %v1179, %v1339
      %v1341 = vpop.f32.mrb[0].mxu0
      %1342 = vmatprep.mubr.bf16.mxu0 0
      %1343 = vmatmul.mubr.bf16.gmra.mrb[0].mxu0 %v870
      %v1344 = vpop.f32.mrb[0].mxu0
      %v1345 = vadd.f32 %v1184, %v1344
      %v1346 = vpop.f32.mrb[0].mxu0
      %v1347 = vpop.f32.mrb[0].mxu0
      %v1348 = vadd.f32 %v1187, %v1347
      %v1349 = vpop.f32.mrb[0].mxu0
      %1350 = vmatprep.mubr.bf16.mxu0 0
      %1351 = vmatmul.mubr.bf16.gmra.mrb[0].mxu0 %v871
      %v1352 = vpop.f32.mrb[0].mxu0
      %v1353 = vadd.f32 %v1192, %v1352
      %v1354 = vpop.f32.mrb[0].mxu0
      %v1355 = vpop.f32.mrb[0].mxu0
      %v1356 = vadd.f32 %v1195, %v1355
      %v1357 = vpop.f32.mrb[0].mxu0
      %1358 = vmatprep.mubr.bf16.mxu0 0
      %1359 = vmatmul.mubr.bf16.gmra.mrb[0].mxu0 %v872
      %v1360 = vpop.f32.mrb[0].mxu0
      %v1361 = vadd.f32 %v1200, %v1360
      %v1362 = vpop.f32.mrb[0].mxu0
      %v1363 = vpop.f32.mrb[0].mxu0
      %v1364 = vadd.f32 %v1203, %v1363
      %v1365 = vpop.f32.mrb[0].mxu0
      %1366 = vmatprep.mubr.bf16.mxu0 0
      %1367 = vmatmul.mubr.bf16.gmra.mrb[0].mxu0 %v873
      %v1368 = vpop.f32.mrb[0].mxu0
      %v1369 = vadd.f32 %v1208, %v1368
      %v1370 = vpop.f32.mrb[0].mxu0
      %v1371 = vpop.f32.mrb[0].mxu0
      %v1372 = vadd.f32 %v1211, %v1371
      %v1373 = vpop.f32.mrb[0].mxu0
      %1374 = vmatprep.mubr.bf16.mxu0 0
      %1375 = vmatmul.mubr.bf16.gmra.mrb[0].mxu0 %v874
      %v1376 = vpop.f32.mrb[0].mxu0
      %v1377 = vadd.f32 %v1216, %v1376
      %v1378 = vpop.f32.mrb[0].mxu0
      %v1379 = vpop.f32.mrb[0].mxu0
      %v1380 = vadd.f32 %v1219, %v1379
      %v1381 = vpop.f32.mrb[0].mxu0
      %1382 = vmatprep.mubr.bf16.mxu0 0
      %1383 = vmatmul.mubr.bf16.gmra.mrb[0].mxu0 %v875
      %v1384 = vpop.f32.mrb[0].mxu0
      %v1385 = vadd.f32 %v1224, %v1384
      %v1386 = vpop.f32.mrb[0].mxu0
      %v1387 = vpop.f32.mrb[0].mxu0
      %v1388 = vadd.f32 %v1227, %v1387
      %v1389 = vpop.f32.mrb[0].mxu0
      %1390 = vdwg.mxu0
      %v1439 = vunpack.c.l.b16 %v604
      %v1440 = vunpack.c.l.b16 %v605
      %v1441 = vunpack.c.l.b16 %v606
      %v1442 = vunpack.c.l.b16 %v607
      %v1443 = vunpack.c.l.b16 %v608
      %v1444 = vunpack.c.l.b16 %v609
      %v1445 = vunpack.c.l.b16 %v610
      %v1446 = vunpack.c.l.b16 %v611
      %v1447 = vunpack.c.l.b16 %v612
      %v1448 = vunpack.c.l.b16 %v613
      %v1449 = vunpack.c.l.b16 %v614
      %v1450 = vunpack.c.l.b16 %v615
      %v1451 = vunpack.c.l.b16 %v616
      %v1452 = vunpack.c.l.b16 %v617
      %v1453 = vunpack.c.l.b16 %v618
      %v1454 = vunpack.c.l.b16 %v619
      %v1455 = vunpack.c.l.b16 %v620
      %v1456 = vunpack.c.l.b16 %v621
      %v1457 = vunpack.c.l.b16 %v622
      %v1458 = vunpack.c.l.b16 %v623
      %v1459 = vunpack.c.l.b16 %v624
      %v1460 = vunpack.c.l.b16 %v625
      %v1461 = vunpack.c.l.b16 %v626
      %v1462 = vunpack.c.l.b16 %v627
      %v1463 = vunpack.c.l.b16 %v628
      %v1464 = vunpack.c.l.b16 %v629
      %v1465 = vunpack.c.l.b16 %v630
      %v1466 = vunpack.c.l.b16 %v631
      %v1467 = vunpack.c.l.b16 %v632
      %v1468 = vunpack.c.l.b16 %v633
      %v1469 = vunpack.c.l.b16 %v634
      %v1470 = vunpack.c.l.b16 %v635
      %v1471 = vunpack.c.l.b16 %v636
      %v1472 = vunpack.c.l.b16 %v637
      %v1473 = vunpack.c.l.b16 %v638
      %v1474 = vunpack.c.l.b16 %v639
      %v1475 = vunpack.c.l.b16 %v640
      %v1476 = vunpack.c.l.b16 %v641
      %v1477 = vunpack.c.l.b16 %v642
      %v1478 = vunpack.c.l.b16 %v643
      %v1479 = vunpack.c.l.b16 %v644
      %v1480 = vunpack.c.l.b16 %v645
      %v1481 = vunpack.c.l.b16 %v646
      %v1482 = vunpack.c.l.b16 %v647
      %v1483 = vunpack.c.l.b16 %v648
      %v1484 = vunpack.c.l.b16 %v649
      %v1485 = vunpack.c.l.b16 %v650
      %v1486 = vunpack.c.l.b16 %v651
      %v1487 = vpack.c.b16 %v1440, %v1439
      %v1488 = vpack.c.b16 %v1442, %v1441
      %v1489 = vpack.c.b16 %v1444, %v1443
      %v1490 = vpack.c.b16 %v1446, %v1445
      %v1491 = vpack.c.b16 %v1448, %v1447
      %v1492 = vpack.c.b16 %v1450, %v1449
      %v1493 = vpack.c.b16 %v1452, %v1451
      %v1494 = vpack.c.b16 %v1454, %v1453
      %v1495 = vpack.c.b16 %v1456, %v1455
      %v1496 = vpack.c.b16 %v1458, %v1457
      %v1497 = vpack.c.b16 %v1460, %v1459
      %v1498 = vpack.c.b16 %v1462, %v1461
      %v1499 = vpack.c.b16 %v1464, %v1463
      %v1500 = vpack.c.b16 %v1466, %v1465
      %v1501 = vpack.c.b16 %v1468, %v1467
      %v1502 = vpack.c.b16 %v1470, %v1469
      %v1503 = vpack.c.b16 %v1472, %v1471
      %v1504 = vpack.c.b16 %v1474, %v1473
      %v1505 = vpack.c.b16 %v1476, %v1475
      %v1506 = vpack.c.b16 %v1478, %v1477
      %v1507 = vpack.c.b16 %v1480, %v1479
      %v1508 = vpack.c.b16 %v1482, %v1481
      %v1509 = vpack.c.b16 %v1484, %v1483
      %v1510 = vpack.c.b16 %v1486, %v1485
      %1535 = vmatprep.subr.bf16.mxu0 0
      %1536 = vmatpush1.bf16.msra.mxu0 %v1487
      %1537 = vmatprep.subr.bf16.mxu0 0
      %1538 = vmatpush1.bf16.msra.mxu0 %v1488
      %1539 = vmatprep.subr.bf16.mxu0 0
      %1540 = vmatpush1.bf16.msra.mxu0 %v1489
      %1541 = vmatprep.subr.bf16.mxu0 0
      %1542 = vmatpush1.bf16.msra.mxu0 %v1490
      %1543 = vmatprep.subr.bf16.mxu0 0
      %1544 = vmatpush1.bf16.msra.mxu0 %v1491
      %1545 = vmatprep.subr.bf16.mxu0 0
      %1546 = vmatpush1.bf16.msra.mxu0 %v1492
      %1547 = vmatprep.subr.bf16.mxu0 0
      %1548 = vmatpush1.bf16.msra.mxu0 %v1493
      %1549 = vmatprep.subr.bf16.mxu0 0
      %1550 = vmatpush1.bf16.msra.mxu0 %v1494
      %1551 = vmatprep.subr.bf16.mxu0 0
      %1552 = vmatpush1.bf16.msra.mxu0 %v1495
      %1553 = vmatprep.subr.bf16.mxu0 0
      %1554 = vmatpush1.bf16.msra.mxu0 %v1496
      %1555 = vmatprep.subr.bf16.mxu0 0
      %1556 = vmatpush1.bf16.msra.mxu0 %v1497
      %1557 = vmatprep.subr.bf16.mxu0 0
      %1558 = vmatpush1.bf16.msra.mxu0 %v1498
      %1559 = vmatprep.subr.bf16.mxu0 0
      %1560 = vmatpush1.bf16.msra.mxu0 %v1499
      %1561 = vmatprep.subr.bf16.mxu0 0
      %1562 = vmatpush1.bf16.msra.mxu0 %v1500
      %1563 = vmatprep.subr.bf16.mxu0 0
      %1564 = vmatpush1.bf16.msra.mxu0 %v1501
      %1565 = vmatprep.subr.bf16.mxu0 0
      %1566 = vmatpush1.bf16.msra.mxu0 %v1502
      %1567 = vmatprep.mubr.bf16.mxu0 %v374
      %1568 = vmatmul.mubr.bf16.gmra.mrb[0].mxu0 %v521
      %v1569 = vpop.f32.mrb[0].mxu0
      %v1570 = vadd.f32 %v1265, %v1569
      %v1571 = vpop.f32.mrb[0].mxu0
      %v1572 = vpop.f32.mrb[0].mxu0
      %v1573 = vadd.f32 %v1268, %v1572
      %v1574 = vpop.f32.mrb[0].mxu0
      %1575 = vmatprep.mubr.bf16.mxu0 %v375
      %1576 = vmatmul.mubr.bf16.gmra.mrb[0].mxu0 %v522
      %v1577 = vpop.f32.mrb[0].mxu0
      %v1578 = vadd.f32 %v1273, %v1577
      %v1579 = vpop.f32.mrb[0].mxu0
      %v1580 = vpop.f32.mrb[0].mxu0
      %v1581 = vadd.f32 %v1276, %v1580
      %v1582 = vpop.f32.mrb[0].mxu0
      %1583 = vmatprep.mubr.bf16.mxu0 %v376
      %1584 = vmatmul.mubr.bf16.gmra.mrb[0].mxu0 %v523
      %v1585 = vpop.f32.mrb[0].mxu0
      %v1586 = vadd.f32 %v1281, %v1585
      %v1587 = vpop.f32.mrb[0].mxu0
      %v1588 = vpop.f32.mrb[0].mxu0
      %v1589 = vadd.f32 %v1284, %v1588
      %v1590 = vpop.f32.mrb[0].mxu0
      %1591 = vmatprep.mubr.bf16.mxu0 %v377
      %1592 = vmatmul.mubr.bf16.gmra.mrb[0].mxu0 %v524
      %v1593 = vpop.f32.mrb[0].mxu0
      %v1594 = vadd.f32 %v1289, %v1593
      %v1595 = vpop.f32.mrb[0].mxu0
      %v1596 = vpop.f32.mrb[0].mxu0
      %v1597 = vadd.f32 %v1292, %v1596
      %v1598 = vpop.f32.mrb[0].mxu0
      %1599 = vmatprep.mubr.bf16.mxu0 %v378
      %1600 = vmatmul.mubr.bf16.gmra.mrb[0].mxu0 %v525
      %v1601 = vpop.f32.mrb[0].mxu0
      %v1602 = vadd.f32 %v1297, %v1601
      %v1603 = vpop.f32.mrb[0].mxu0
      %v1604 = vpop.f32.mrb[0].mxu0
      %v1605 = vadd.f32 %v1300, %v1604
      %v1606 = vpop.f32.mrb[0].mxu0
      %1607 = vmatprep.mubr.bf16.mxu0 %v379
      %1608 = vmatmul.mubr.bf16.gmra.mrb[0].mxu0 %v526
      %v1609 = vpop.f32.mrb[0].mxu0
      %v1610 = vadd.f32 %v1305, %v1609
      %v1611 = vpop.f32.mrb[0].mxu0
      %v1612 = vpop.f32.mrb[0].mxu0
      %v1613 = vadd.f32 %v1308, %v1612
      %v1614 = vpop.f32.mrb[0].mxu0
      %1615 = vmatprep.mubr.bf16.mxu0 %v380
      %1616 = vmatmul.mubr.bf16.gmra.mrb[0].mxu0 %v527
      %v1617 = vpop.f32.mrb[0].mxu0
      %v1618 = vadd.f32 %v1313, %v1617
      %v1619 = vpop.f32.mrb[0].mxu0
      %v1620 = vpop.f32.mrb[0].mxu0
      %v1621 = vadd.f32 %v1316, %v1620
      %v1622 = vpop.f32.mrb[0].mxu0
      %1623 = vmatprep.mubr.bf16.mxu0 %v381
      %1624 = vmatmul.mubr.bf16.gmra.mrb[0].mxu0 %v528
      %v1625 = vpop.f32.mrb[0].mxu0
      %v1626 = vadd.f32 %v1321, %v1625
      %v1627 = vpop.f32.mrb[0].mxu0
      %v1628 = vpop.f32.mrb[0].mxu0
      %v1629 = vadd.f32 %v1324, %v1628
      %v1630 = vpop.f32.mrb[0].mxu0
      %1631 = vmatprep.mubr.bf16.mxu0 %v382
      %1632 = vmatmul.mubr.bf16.gmra.mrb[0].mxu0 %v529
      %v1633 = vpop.f32.mrb[0].mxu0
      %v1634 = vadd.f32 %v1329, %v1633
      %v1635 = vpop.f32.mrb[0].mxu0
      %v1636 = vpop.f32.mrb[0].mxu0
      %v1637 = vadd.f32 %v1332, %v1636
      %v1638 = vpop.f32.mrb[0].mxu0
      %1639 = vmatprep.mubr.bf16.mxu0 %v383
      %1640 = vmatmul.mubr.bf16.gmra.mrb[0].mxu0 %v530
      %v1641 = vpop.f32.mrb[0].mxu0
      %v1642 = vadd.f32 %v1337, %v1641
      %v1643 = vpop.f32.mrb[0].mxu0
      %v1644 = vpop.f32.mrb[0].mxu0
      %v1645 = vadd.f32 %v1340, %v1644
      %v1646 = vpop.f32.mrb[0].mxu0
      %1647 = vmatprep.mubr.bf16.mxu0 %v384
      %1648 = vmatmul.mubr.bf16.gmra.mrb[0].mxu0 %v531
      %v1649 = vpop.f32.mrb[0].mxu0
      %v1650 = vadd.f32 %v1345, %v1649
      %v1651 = vpop.f32.mrb[0].mxu0
      %v1652 = vpop.f32.mrb[0].mxu0
      %v1653 = vadd.f32 %v1348, %v1652
      %v1654 = vpop.f32.mrb[0].mxu0
      %1655 = vmatprep.mubr.bf16.mxu0 %v385
      %1656 = vmatmul.mubr.bf16.gmra.mrb[0].mxu0 %v532
      %v1657 = vpop.f32.mrb[0].mxu0
      %v1658 = vadd.f32 %v1353, %v1657
      %v1659 = vpop.f32.mrb[0].mxu0
      %v1660 = vpop.f32.mrb[0].mxu0
      %v1661 = vadd.f32 %v1356, %v1660
      %v1662 = vpop.f32.mrb[0].mxu0
      %1663 = vmatprep.mubr.bf16.mxu0 %v386
      %1664 = vmatmul.mubr.bf16.gmra.mrb[0].mxu0 %v533
      %v1665 = vpop.f32.mrb[0].mxu0
      %v1666 = vadd.f32 %v1361, %v1665
      %v1667 = vpop.f32.mrb[0].mxu0
      %v1668 = vpop.f32.mrb[0].mxu0
      %v1669 = vadd.f32 %v1364, %v1668
      %v1670 = vpop.f32.mrb[0].mxu0
      %1671 = vmatprep.mubr.bf16.mxu0 %v387
      %1672 = vmatmul.mubr.bf16.gmra.mrb[0].mxu0 %v534
      %v1673 = vpop.f32.mrb[0].mxu0
      %v1674 = vadd.f32 %v1369, %v1673
      %v1675 = vpop.f32.mrb[0].mxu0
      %v1676 = vpop.f32.mrb[0].mxu0
      %v1677 = vadd.f32 %v1372, %v1676
      %v1678 = vpop.f32.mrb[0].mxu0
      %1679 = vmatprep.mubr.bf16.mxu0 %v388
      %1680 = vmatmul.mubr.bf16.gmra.mrb[0].mxu0 %v535
      %v1681 = vpop.f32.mrb[0].mxu0
      %v1682 = vadd.f32 %v1377, %v1681
      %v1683 = vpop.f32.mrb[0].mxu0
      %v1684 = vpop.f32.mrb[0].mxu0
      %v1685 = vadd.f32 %v1380, %v1684
      %v1686 = vpop.f32.mrb[0].mxu0
      %1687 = vmatprep.mubr.bf16.mxu0 %v389
      %1688 = vmatmul.mubr.bf16.gmra.mrb[0].mxu0 %v536
      %v1689 = vpop.f32.mrb[0].mxu0
      %v1690 = vadd.f32 %v1385, %v1689
      %v1691 = vpop.f32.mrb[0].mxu0
      %v1692 = vpop.f32.mrb[0].mxu0
      %v1693 = vadd.f32 %v1388, %v1692
      %v1694 = vpop.f32.mrb[0].mxu0
      %1695 = vdwg.mxu0
      %1696 = vmatprep.subr.bf16.mxu0 0
      %1697 = vmatpush1.bf16.msra.mxu0 %v1503
      %1698 = vmatprep.subr.bf16.mxu0 0
      %1699 = vmatpush1.bf16.msra.mxu0 %v1504
      %1700 = vmatprep.subr.bf16.mxu0 0
      %1701 = vmatpush1.bf16.msra.mxu0 %v1505
      %1702 = vmatprep.subr.bf16.mxu0 0
      %1703 = vmatpush1.bf16.msra.mxu0 %v1506
      %1704 = vmatprep.subr.bf16.mxu0 0
      %1705 = vmatpush1.bf16.msra.mxu0 %v1507
      %1706 = vmatprep.subr.bf16.mxu0 0
      %1707 = vmatpush1.bf16.msra.mxu0 %v1508
      %1708 = vmatprep.subr.bf16.mxu0 0
      %1709 = vmatpush1.bf16.msra.mxu0 %v1509
      %1710 = vmatprep.subr.bf16.mxu0 0
      %1711 = vmatpush1.bf16.msra.mxu0 %v1510
      %1712 = vmatprep.subr.bf16.mxu0 0
      %1713 = vmatpush1.bf16.msra.mxu0 0
      %1714 = vmatprep.subr.bf16.mxu0 0
      %1715 = vmatpush1.bf16.msra.mxu0 0
      %1716 = vmatprep.subr.bf16.mxu0 0
      %1717 = vmatpush1.bf16.msra.mxu0 0
      %1718 = vmatprep.subr.bf16.mxu0 0
      %1719 = vmatpush1.bf16.msra.mxu0 0
      %1720 = vmatprep.subr.bf16.mxu0 0
      %1721 = vmatpush1.bf16.msra.mxu0 0
      %1722 = vmatprep.subr.bf16.mxu0 0
      %1723 = vmatpush1.bf16.msra.mxu0 0
      %1724 = vmatprep.subr.bf16.mxu0 0
      %1725 = vmatpush1.bf16.msra.mxu0 0
      %1726 = vmatprep.subr.bf16.mxu0 0
      %1727 = vmatpush1.bf16.msra.mxu0 0
      %1728 = vmatprep.mubr.bf16.mxu0 0
      %1729 = vmatmul.mubr.bf16.gmra.mrb[0].mxu0 %v588
      %v1730 = vpop.f32.mrb[0].mxu0
      %v1731 = vadd.f32 %v1570, %v1730
      %v1732 = vpop.f32.mrb[0].mxu0
      %v1733 = vpop.f32.mrb[0].mxu0
      %v1734 = vadd.f32 %v1573, %v1733
      %v1735 = vpop.f32.mrb[0].mxu0
      %1736 = vmatprep.mubr.bf16.mxu0 0
      %1737 = vmatmul.mubr.bf16.gmra.mrb[0].mxu0 %v589
      %v1738 = vpop.f32.mrb[0].mxu0
      %v1739 = vadd.f32 %v1578, %v1738
      %v1740 = vpop.f32.mrb[0].mxu0
      %v1741 = vpop.f32.mrb[0].mxu0
      %v1742 = vadd.f32 %v1581, %v1741
      %v1743 = vpop.f32.mrb[0].mxu0
      %1744 = vmatprep.mubr.bf16.mxu0 0
      %1745 = vmatmul.mubr.bf16.gmra.mrb[0].mxu0 %v590
      %v1746 = vpop.f32.mrb[0].mxu0
      %v1747 = vadd.f32 %v1586, %v1746
      %v1748 = vpop.f32.mrb[0].mxu0
      %v1749 = vpop.f32.mrb[0].mxu0
      %v1750 = vadd.f32 %v1589, %v1749
      %v1751 = vpop.f32.mrb[0].mxu0
      %1752 = vmatprep.mubr.bf16.mxu0 0
      %1753 = vmatmul.mubr.bf16.gmra.mrb[0].mxu0 %v591
      %v1754 = vpop.f32.mrb[0].mxu0
      %v1755 = vadd.f32 %v1594, %v1754
      %v1756 = vpop.f32.mrb[0].mxu0
      %v1757 = vpop.f32.mrb[0].mxu0
      %v1758 = vadd.f32 %v1597, %v1757
      %v1759 = vpop.f32.mrb[0].mxu0
      %1760 = vmatprep.mubr.bf16.mxu0 0
      %1761 = vmatmul.mubr.bf16.gmra.mrb[0].mxu0 %v592
      %v1762 = vpop.f32.mrb[0].mxu0
      %v1763 = vadd.f32 %v1602, %v1762
      %v1764 = vpop.f32.mrb[0].mxu0
      %v1765 = vpop.f32.mrb[0].mxu0
      %v1766 = vadd.f32 %v1605, %v1765
      %v1767 = vpop.f32.mrb[0].mxu0
      %1768 = vmatprep.mubr.bf16.mxu0 0
      %1769 = vmatmul.mubr.bf16.gmra.mrb[0].mxu0 %v593
      %v1770 = vpop.f32.mrb[0].mxu0
      %v1771 = vadd.f32 %v1610, %v1770
      %v1772 = vpop.f32.mrb[0].mxu0
      %v1773 = vpop.f32.mrb[0].mxu0
      %v1774 = vadd.f32 %v1613, %v1773
      %v1775 = vpop.f32.mrb[0].mxu0
      %1776 = vmatprep.mubr.bf16.mxu0 0
      %1777 = vmatmul.mubr.bf16.gmra.mrb[0].mxu0 %v594
      %v1778 = vpop.f32.mrb[0].mxu0
      %v1779 = vadd.f32 %v1618, %v1778
      %v1780 = vpop.f32.mrb[0].mxu0
      %v1781 = vpop.f32.mrb[0].mxu0
      %v1782 = vadd.f32 %v1621, %v1781
      %v1783 = vpop.f32.mrb[0].mxu0
      %1784 = vmatprep.mubr.bf16.mxu0 0
      %1785 = vmatmul.mubr.bf16.gmra.mrb[0].mxu0 %v595
      %v1786 = vpop.f32.mrb[0].mxu0
      %v1787 = vadd.f32 %v1626, %v1786
      %v1788 = vpop.f32.mrb[0].mxu0
      %v1789 = vpop.f32.mrb[0].mxu0
      %v1790 = vadd.f32 %v1629, %v1789
      %v1791 = vpop.f32.mrb[0].mxu0
      %1792 = vmatprep.mubr.bf16.mxu0 0
      %1793 = vmatmul.mubr.bf16.gmra.mrb[0].mxu0 %v596
      %v1794 = vpop.f32.mrb[0].mxu0
      %v1795 = vadd.f32 %v1634, %v1794
      %v1796 = vpop.f32.mrb[0].mxu0
      %v1797 = vpop.f32.mrb[0].mxu0
      %v1798 = vadd.f32 %v1637, %v1797
      %v1799 = vpop.f32.mrb[0].mxu0
      %1800 = vmatprep.mubr.bf16.mxu0 0
      %1801 = vmatmul.mubr.bf16.gmra.mrb[0].mxu0 %v597
      %v1802 = vpop.f32.mrb[0].mxu0
      %v1803 = vadd.f32 %v1642, %v1802
      %v1804 = vpop.f32.mrb[0].mxu0
      %v1805 = vpop.f32.mrb[0].mxu0
      %v1806 = vadd.f32 %v1645, %v1805
      %v1807 = vpop.f32.mrb[0].mxu0
      %1808 = vmatprep.mubr.bf16.mxu0 0
      %1809 = vmatmul.mubr.bf16.gmra.mrb[0].mxu0 %v598
      %v1810 = vpop.f32.mrb[0].mxu0
      %v1811 = vadd.f32 %v1650, %v1810
      %v1812 = vpop.f32.mrb[0].mxu0
      %v1813 = vpop.f32.mrb[0].mxu0
      %v1814 = vadd.f32 %v1653, %v1813
      %v1815 = vpop.f32.mrb[0].mxu0
      %1816 = vmatprep.mubr.bf16.mxu0 0
      %1817 = vmatmul.mubr.bf16.gmra.mrb[0].mxu0 %v599
      %v1818 = vpop.f32.mrb[0].mxu0
      %v1819 = vadd.f32 %v1658, %v1818
      %v1820 = vpop.f32.mrb[0].mxu0
      %v1821 = vpop.f32.mrb[0].mxu0
      %v1822 = vadd.f32 %v1661, %v1821
      %v1823 = vpop.f32.mrb[0].mxu0
      %1824 = vmatprep.mubr.bf16.mxu0 0
      %1825 = vmatmul.mubr.bf16.gmra.mrb[0].mxu0 %v600
      %v1826 = vpop.f32.mrb[0].mxu0
      %v1827 = vadd.f32 %v1666, %v1826
      %v1828 = vpop.f32.mrb[0].mxu0
      %v1829 = vpop.f32.mrb[0].mxu0
      %v1830 = vadd.f32 %v1669, %v1829
      %v1831 = vpop.f32.mrb[0].mxu0
      %1832 = vmatprep.mubr.bf16.mxu0 0
      %1833 = vmatmul.mubr.bf16.gmra.mrb[0].mxu0 %v601
      %v1834 = vpop.f32.mrb[0].mxu0
      %v1835 = vadd.f32 %v1674, %v1834
      %v1836 = vpop.f32.mrb[0].mxu0
      %v1837 = vpop.f32.mrb[0].mxu0
      %v1838 = vadd.f32 %v1677, %v1837
      %v1839 = vpop.f32.mrb[0].mxu0
      %1840 = vmatprep.mubr.bf16.mxu0 0
      %1841 = vmatmul.mubr.bf16.gmra.mrb[0].mxu0 %v602
      %v1842 = vpop.f32.mrb[0].mxu0
      %v1843 = vadd.f32 %v1682, %v1842
      %v1844 = vpop.f32.mrb[0].mxu0
      %v1845 = vpop.f32.mrb[0].mxu0
      %v1846 = vadd.f32 %v1685, %v1845
      %v1847 = vpop.f32.mrb[0].mxu0
      %1848 = vmatprep.mubr.bf16.mxu0 0
      %1849 = vmatmul.mubr.bf16.gmra.mrb[0].mxu0 %v603
      %v1850 = vpop.f32.mrb[0].mxu0
      %v1851 = vadd.f32 %v1690, %v1850
      %v1852 = vpop.f32.mrb[0].mxu0
      %v1853 = vpop.f32.mrb[0].mxu0
      %v1854 = vadd.f32 %v1693, %v1853
      %v1855 = vpop.f32.mrb[0].mxu0
      %1856 = vdwg.mxu0
      %s1857 = scalar_lea.vmem [#allocation2], 16
      %v1858 = vld [vmem:[%s1857] sm:$0xff]
      %v1859 = vld [vmem:[%s1857 + $0x8] sm:$0xff]
      %v1860 = vld [vmem:[%s1857 + $0x10] sm:$0xff]
      %v1861 = vld [vmem:[%s1857 + $0x18] sm:$0xff]
      %v1862 = vld [vmem:[%s1857 + $0x20] sm:$0xff]
      %v1863 = vld [vmem:[%s1857 + $0x28] sm:$0xff]
      %v1864 = vld [vmem:[%s1857 + $0x30] sm:$0xff]
      %v1865 = vld [vmem:[%s1857 + $0x38] sm:$0xff]
      %v1866 = vld [vmem:[%s1857 + $0x40] sm:$0xff]
      %v1867 = vld [vmem:[%s1857 + $0x48] sm:$0xff]
      %v1868 = vld [vmem:[%s1857 + $0x50] sm:$0xff]
      %v1869 = vld [vmem:[%s1857 + $0x58] sm:$0xff]
      %v1870 = vld [vmem:[%s1857 + $0x60] sm:$0xff]
      %v1871 = vld [vmem:[%s1857 + $0x68] sm:$0xff]
      %v1872 = vld [vmem:[%s1857 + $0x70] sm:$0xff]
      %v1873 = vld [vmem:[%s1857 + $0x78] sm:$0xff]
      %v1875 = vshrl.u32 %v1858, 16
      %v1877 = vrot.slane %v1875, 7
      %v1878 = vshll.u32 %v1858, 16
      %v1880 = vor.u32 %v1877, %v1878
      %v1882 = vshrl.u32 %v1859, 16
      %v1884 = vrot.slane %v1882, 7
      %v1885 = vshll.u32 %v1859, 16
      %v1887 = vor.u32 %v1884, %v1885
      %v1889 = vshrl.u32 %v1860, 16
      %v1891 = vrot.slane %v1889, 7
      %v1892 = vshll.u32 %v1860, 16
      %v1894 = vor.u32 %v1891, %v1892
      %v1896 = vshrl.u32 %v1861, 16
      %v1898 = vrot.slane %v1896, 7
      %v1899 = vshll.u32 %v1861, 16
      %v1901 = vor.u32 %v1898, %v1899
      %v1903 = vshrl.u32 %v1862, 16
      %v1905 = vrot.slane %v1903, 7
      %v1906 = vshll.u32 %v1862, 16
      %v1908 = vor.u32 %v1905, %v1906
      %v1910 = vshrl.u32 %v1863, 16
      %v1912 = vrot.slane %v1910, 7
      %v1913 = vshll.u32 %v1863, 16
      %v1915 = vor.u32 %v1912, %v1913
      %v1917 = vshrl.u32 %v1864, 16
      %v1919 = vrot.slane %v1917, 7
      %v1920 = vshll.u32 %v1864, 16
      %v1922 = vor.u32 %v1919, %v1920
      %v1924 = vshrl.u32 %v1865, 16
      %v1926 = vrot.slane %v1924, 7
      %v1927 = vshll.u32 %v1865, 16
      %v1929 = vor.u32 %v1926, %v1927
      %v1931 = vshrl.u32 %v1866, 16
      %v1933 = vrot.slane %v1931, 7
      %v1934 = vshll.u32 %v1866, 16
      %v1936 = vor.u32 %v1933, %v1934
      %v1938 = vshrl.u32 %v1867, 16
      %v1940 = vrot.slane %v1938, 7
      %v1941 = vshll.u32 %v1867, 16
      %v1943 = vor.u32 %v1940, %v1941
      %v1945 = vshrl.u32 %v1868, 16
      %v1947 = vrot.slane %v1945, 7
      %v1948 = vshll.u32 %v1868, 16
      %v1950 = vor.u32 %v1947, %v1948
      %v1952 = vshrl.u32 %v1869, 16
      %v1954 = vrot.slane %v1952, 7
      %v1955 = vshll.u32 %v1869, 16
      %v1957 = vor.u32 %v1954, %v1955
      %v1959 = vshrl.u32 %v1870, 16
      %v1961 = vrot.slane %v1959, 7
      %v1962 = vshll.u32 %v1870, 16
      %v1964 = vor.u32 %v1961, %v1962
      %v1966 = vshrl.u32 %v1871, 16
      %v1968 = vrot.slane %v1966, 7
      %v1969 = vshll.u32 %v1871, 16
      %v1971 = vor.u32 %v1968, %v1969
      %v1973 = vshrl.u32 %v1872, 16
      %v1975 = vrot.slane %v1973, 7
      %v1976 = vshll.u32 %v1872, 16
      %v1978 = vor.u32 %v1975, %v1976
      %v1980 = vshrl.u32 %v1873, 16
      %v1982 = vrot.slane %v1980, 7
      %v1983 = vshll.u32 %v1873, 16
      %v1985 = vor.u32 %v1982, %v1983
      %v2002 = vsel %vm520, 0, %v1880
      %v2003 = vsel %vm520, 0, %v1887
      %v2004 = vsel %vm520, 0, %v1894
      %v2005 = vsel %vm520, 0, %v1901
      %v2006 = vsel %vm520, 0, %v1908
      %v2007 = vsel %vm520, 0, %v1915
      %v2008 = vsel %vm520, 0, %v1922
      %v2009 = vsel %vm520, 0, %v1929
      %v2010 = vsel %vm520, 0, %v1936
      %v2011 = vsel %vm520, 0, %v1943
      %v2012 = vsel %vm520, 0, %v1950
      %v2013 = vsel %vm520, 0, %v1957
      %v2014 = vsel %vm520, 0, %v1964
      %v2015 = vsel %vm520, 0, %v1971
      %v2016 = vsel %vm520, 0, %v1978
      %v2017 = vsel %vm520, 0, %v1985
      %v2018 = vrot.slane %v1878, 1
      %v2019 = vor.u32 %v1875, %v2018
      %v2020 = vrot.slane %v1885, 1
      %v2021 = vor.u32 %v1882, %v2020
      %v2022 = vrot.slane %v1892, 1
      %v2023 = vor.u32 %v1889, %v2022
      %v2024 = vrot.slane %v1899, 1
      %v2025 = vor.u32 %v1896, %v2024
      %v2026 = vrot.slane %v1906, 1
      %v2027 = vor.u32 %v1903, %v2026
      %v2028 = vrot.slane %v1913, 1
      %v2029 = vor.u32 %v1910, %v2028
      %v2030 = vrot.slane %v1920, 1
      %v2031 = vor.u32 %v1917, %v2030
      %v2032 = vrot.slane %v1927, 1
      %v2033 = vor.u32 %v1924, %v2032
      %v2034 = vrot.slane %v1934, 1
      %v2035 = vor.u32 %v1931, %v2034
      %v2036 = vrot.slane %v1941, 1
      %v2037 = vor.u32 %v1938, %v2036
      %v2038 = vrot.slane %v1948, 1
      %v2039 = vor.u32 %v1945, %v2038
      %v2040 = vrot.slane %v1955, 1
      %v2041 = vor.u32 %v1952, %v2040
      %v2042 = vrot.slane %v1962, 1
      %v2043 = vor.u32 %v1959, %v2042
      %v2044 = vrot.slane %v1969, 1
      %v2045 = vor.u32 %v1966, %v2044
      %v2046 = vrot.slane %v1976, 1
      %v2047 = vor.u32 %v1973, %v2046
      %v2048 = vrot.slane %v1983, 1
      %v2049 = vor.u32 %v1980, %v2048
      %v2066 = vsel %vm587, %v2019, 0
      %v2067 = vsel %vm587, %v2021, 0
      %v2068 = vsel %vm587, %v2023, 0
      %v2069 = vsel %vm587, %v2025, 0
      %v2070 = vsel %vm587, %v2027, 0
      %v2071 = vsel %vm587, %v2029, 0
      %v2072 = vsel %vm587, %v2031, 0
      %v2073 = vsel %vm587, %v2033, 0
      %v2074 = vsel %vm587, %v2035, 0
      %v2075 = vsel %vm587, %v2037, 0
      %v2076 = vsel %vm587, %v2039, 0
      %v2077 = vsel %vm587, %v2041, 0
      %v2078 = vsel %vm587, %v2043, 0
      %v2079 = vsel %vm587, %v2045, 0
      %v2080 = vsel %vm587, %v2047, 0
      %v2081 = vsel %vm587, %v2049, 0
      %s2082 = scalar_lea.vmem %s1, 384
      %v2083 = vld [vmem:[%s2082] sm:$0xf]
      %v2084 = vld [vmem:[%s2082 + $0x4] sm:$0xf]
      %v2085 = vld [vmem:[%s2082 + $0x8] sm:$0xf]
      %v2086 = vld [vmem:[%s2082 + $0xc] sm:$0xf]
      %v2087 = vld [vmem:[%s2082 + $0x10] sm:$0xf]
      %v2088 = vld [vmem:[%s2082 + $0x14] sm:$0xf]
      %v2089 = vld [vmem:[%s2082 + $0x18] sm:$0xf]
      %v2090 = vld [vmem:[%s2082 + $0x1c] sm:$0xf]
      %v2091 = vld [vmem:[%s2082 + $0x20] sm:$0xf]
      %v2092 = vld [vmem:[%s2082 + $0x24] sm:$0xf]
      %v2093 = vld [vmem:[%s2082 + $0x28] sm:$0xf]
      %v2094 = vld [vmem:[%s2082 + $0x2c] sm:$0xf]
      %v2095 = vld [vmem:[%s2082 + $0x30] sm:$0xf]
      %v2096 = vld [vmem:[%s2082 + $0x34] sm:$0xf]
      %v2097 = vld [vmem:[%s2082 + $0x38] sm:$0xf]
      %v2098 = vld [vmem:[%s2082 + $0x3c] sm:$0xf]
      %v2099 = vld [vmem:[%s2082 + $0x40] sm:$0xf]
      %v2100 = vld [vmem:[%s2082 + $0x44] sm:$0xf]
      %v2101 = vld [vmem:[%s2082 + $0x48] sm:$0xf]
      %v2102 = vld [vmem:[%s2082 + $0x4c] sm:$0xf]
      %v2103 = vld [vmem:[%s2082 + $0x50] sm:$0xf]
      %v2104 = vld [vmem:[%s2082 + $0x54] sm:$0xf]
      %v2105 = vld [vmem:[%s2082 + $0x58] sm:$0xf]
      %v2106 = vld [vmem:[%s2082 + $0x5c] sm:$0xf]
      %v2107 = vld [vmem:[%s2082 + $0x60] sm:$0xf]
      %v2108 = vld [vmem:[%s2082 + $0x64] sm:$0xf]
      %v2109 = vld [vmem:[%s2082 + $0x68] sm:$0xf]
      %v2110 = vld [vmem:[%s2082 + $0x6c] sm:$0xf]
      %v2111 = vld [vmem:[%s2082 + $0x70] sm:$0xf]
      %v2112 = vld [vmem:[%s2082 + $0x74] sm:$0xf]
      %v2113 = vld [vmem:[%s2082 + $0x78] sm:$0xf]
      %v2114 = vld [vmem:[%s2082 + $0x7c] sm:$0xf]
      %v2115 = vld [vmem:[%s2082 + $0x80] sm:$0xf]
      %v2116 = vld [vmem:[%s2082 + $0x84] sm:$0xf]
      %v2117 = vld [vmem:[%s2082 + $0x88] sm:$0xf]
      %v2118 = vld [vmem:[%s2082 + $0x8c] sm:$0xf]
      %v2119 = vld [vmem:[%s2082 + $0x90] sm:$0xf]
      %v2120 = vld [vmem:[%s2082 + $0x94] sm:$0xf]
      %v2121 = vld [vmem:[%s2082 + $0x98] sm:$0xf]
      %v2122 = vld [vmem:[%s2082 + $0x9c] sm:$0xf]
      %v2123 = vld [vmem:[%s2082 + $0xa0] sm:$0xf]
      %v2124 = vld [vmem:[%s2082 + $0xa4] sm:$0xf]
      %v2125 = vld [vmem:[%s2082 + $0xa8] sm:$0xf]
      %v2126 = vld [vmem:[%s2082 + $0xac] sm:$0xf]
      %v2127 = vld [vmem:[%s2082 + $0xb0] sm:$0xf]
      %v2128 = vld [vmem:[%s2082 + $0xb4] sm:$0xf]
      %v2129 = vld [vmem:[%s2082 + $0xb8] sm:$0xf]
      %v2130 = vld [vmem:[%s2082 + $0xbc] sm:$0xf]
      %v2179 = vunpack.c.l.b16 %v2083
      %v2180 = vunpack.c.l.b16 %v2084
      %v2181 = vunpack.c.l.b16 %v2085
      %v2182 = vunpack.c.l.b16 %v2086
      %v2183 = vunpack.c.l.b16 %v2087
      %v2184 = vunpack.c.l.b16 %v2088
      %v2185 = vunpack.c.l.b16 %v2089
      %v2186 = vunpack.c.l.b16 %v2090
      %v2187 = vunpack.c.l.b16 %v2091
      %v2188 = vunpack.c.l.b16 %v2092
      %v2189 = vunpack.c.l.b16 %v2093
      %v2190 = vunpack.c.l.b16 %v2094
      %v2191 = vunpack.c.l.b16 %v2095
      %v2192 = vunpack.c.l.b16 %v2096
      %v2193 = vunpack.c.l.b16 %v2097
      %v2194 = vunpack.c.l.b16 %v2098
      %v2195 = vunpack.c.l.b16 %v2099
      %v2196 = vunpack.c.l.b16 %v2100
      %v2197 = vunpack.c.l.b16 %v2101
      %v2198 = vunpack.c.l.b16 %v2102
      %v2199 = vunpack.c.l.b16 %v2103
      %v2200 = vunpack.c.l.b16 %v2104
      %v2201 = vunpack.c.l.b16 %v2105
      %v2202 = vunpack.c.l.b16 %v2106
      %v2203 = vunpack.c.l.b16 %v2107
      %v2204 = vunpack.c.l.b16 %v2108
      %v2205 = vunpack.c.l.b16 %v2109
      %v2206 = vunpack.c.l.b16 %v2110
      %v2207 = vunpack.c.l.b16 %v2111
      %v2208 = vunpack.c.l.b16 %v2112
      %v2209 = vunpack.c.l.b16 %v2113
      %v2210 = vunpack.c.l.b16 %v2114
      %v2211 = vunpack.c.l.b16 %v2115
      %v2212 = vunpack.c.l.b16 %v2116
      %v2213 = vunpack.c.l.b16 %v2117
      %v2214 = vunpack.c.l.b16 %v2118
      %v2215 = vunpack.c.l.b16 %v2119
      %v2216 = vunpack.c.l.b16 %v2120
      %v2217 = vunpack.c.l.b16 %v2121
      %v2218 = vunpack.c.l.b16 %v2122
      %v2219 = vunpack.c.l.b16 %v2123
      %v2220 = vunpack.c.l.b16 %v2124
      %v2221 = vunpack.c.l.b16 %v2125
      %v2222 = vunpack.c.l.b16 %v2126
      %v2223 = vunpack.c.l.b16 %v2127
      %v2224 = vunpack.c.l.b16 %v2128
      %v2225 = vunpack.c.l.b16 %v2129
      %v2226 = vunpack.c.l.b16 %v2130
      %v2227 = vpack.c.b16 %v2180, %v2179
      %v2228 = vpack.c.b16 %v2182, %v2181
      %v2229 = vpack.c.b16 %v2184, %v2183
      %v2230 = vpack.c.b16 %v2186, %v2185
      %v2231 = vpack.c.b16 %v2188, %v2187
      %v2232 = vpack.c.b16 %v2190, %v2189
      %v2233 = vpack.c.b16 %v2192, %v2191
      %v2234 = vpack.c.b16 %v2194, %v2193
      %v2235 = vpack.c.b16 %v2196, %v2195
      %v2236 = vpack.c.b16 %v2198, %v2197
      %v2237 = vpack.c.b16 %v2200, %v2199
      %v2238 = vpack.c.b16 %v2202, %v2201
      %v2239 = vpack.c.b16 %v2204, %v2203
      %v2240 = vpack.c.b16 %v2206, %v2205
      %v2241 = vpack.c.b16 %v2208, %v2207
      %v2242 = vpack.c.b16 %v2210, %v2209
      %v2243 = vpack.c.b16 %v2212, %v2211
      %v2244 = vpack.c.b16 %v2214, %v2213
      %v2245 = vpack.c.b16 %v2216, %v2215
      %v2246 = vpack.c.b16 %v2218, %v2217
      %v2247 = vpack.c.b16 %v2220, %v2219
      %v2248 = vpack.c.b16 %v2222, %v2221
      %v2249 = vpack.c.b16 %v2224, %v2223
      %v2250 = vpack.c.b16 %v2226, %v2225
      %2275 = vmatprep.subr.bf16.mxu0 0
      %2276 = vmatpush1.bf16.msra.mxu0 %v2227
      %2277 = vmatprep.subr.bf16.mxu0 0
      %2278 = vmatpush1.bf16.msra.mxu0 %v2228
      %2279 = vmatprep.subr.bf16.mxu0 0
      %2280 = vmatpush1.bf16.msra.mxu0 %v2229
      %2281 = vmatprep.subr.bf16.mxu0 0
      %2282 = vmatpush1.bf16.msra.mxu0 %v2230
      %2283 = vmatprep.subr.bf16.mxu0 0
      %2284 = vmatpush1.bf16.msra.mxu0 %v2231
      %2285 = vmatprep.subr.bf16.mxu0 0
      %2286 = vmatpush1.bf16.msra.mxu0 %v2232
      %2287 = vmatprep.subr.bf16.mxu0 0
      %2288 = vmatpush1.bf16.msra.mxu0 %v2233
      %2289 = vmatprep.subr.bf16.mxu0 0
      %2290 = vmatpush1.bf16.msra.mxu0 %v2234
      %2291 = vmatprep.subr.bf16.mxu0 0
      %2292 = vmatpush1.bf16.msra.mxu0 %v2235
      %2293 = vmatprep.subr.bf16.mxu0 0
      %2294 = vmatpush1.bf16.msra.mxu0 %v2236
      %2295 = vmatprep.subr.bf16.mxu0 0
      %2296 = vmatpush1.bf16.msra.mxu0 %v2237
      %2297 = vmatprep.subr.bf16.mxu0 0
      %2298 = vmatpush1.bf16.msra.mxu0 %v2238
      %2299 = vmatprep.subr.bf16.mxu0 0
      %2300 = vmatpush1.bf16.msra.mxu0 %v2239
      %2301 = vmatprep.subr.bf16.mxu0 0
      %2302 = vmatpush1.bf16.msra.mxu0 %v2240
      %2303 = vmatprep.subr.bf16.mxu0 0
      %2304 = vmatpush1.bf16.msra.mxu0 %v2241
      %2305 = vmatprep.subr.bf16.mxu0 0
      %2306 = vmatpush1.bf16.msra.mxu0 %v2242
      %2307 = vmatprep.mubr.bf16.mxu0 %v1858
      %2308 = vmatmul.mubr.bf16.gmra.mrb[0].mxu0 %v2002
      %v2309 = vpop.f32.mrb[0].mxu0
      %v2310 = vadd.f32 0.0, %v2309
      %v2311 = vpop.f32.mrb[0].mxu0
      %v2312 = vpop.f32.mrb[0].mxu0
      %v2313 = vadd.f32 0.0, %v2312
      %v2314 = vpop.f32.mrb[0].mxu0
      %2315 = vmatprep.mubr.bf16.mxu0 %v1859
      %2316 = vmatmul.mubr.bf16.gmra.mrb[0].mxu0 %v2003
      %v2317 = vpop.f32.mrb[0].mxu0
      %v2318 = vadd.f32 0.0, %v2317
      %v2319 = vpop.f32.mrb[0].mxu0
      %v2320 = vpop.f32.mrb[0].mxu0
      %v2321 = vadd.f32 0.0, %v2320
      %v2322 = vpop.f32.mrb[0].mxu0
      %2323 = vmatprep.mubr.bf16.mxu0 %v1860
      %2324 = vmatmul.mubr.bf16.gmra.mrb[0].mxu0 %v2004
      %v2325 = vpop.f32.mrb[0].mxu0
      %v2326 = vadd.f32 0.0, %v2325
      %v2327 = vpop.f32.mrb[0].mxu0
      %v2328 = vpop.f32.mrb[0].mxu0
      %v2329 = vadd.f32 0.0, %v2328
      %v2330 = vpop.f32.mrb[0].mxu0
      %2331 = vmatprep.mubr.bf16.mxu0 %v1861
      %2332 = vmatmul.mubr.bf16.gmra.mrb[0].mxu0 %v2005
      %v2333 = vpop.f32.mrb[0].mxu0
      %v2334 = vadd.f32 0.0, %v2333
      %v2335 = vpop.f32.mrb[0].mxu0
      %v2336 = vpop.f32.mrb[0].mxu0
      %v2337 = vadd.f32 0.0, %v2336
      %v2338 = vpop.f32.mrb[0].mxu0
      %2339 = vmatprep.mubr.bf16.mxu0 %v1862
      %2340 = vmatmul.mubr.bf16.gmra.mrb[0].mxu0 %v2006
      %v2341 = vpop.f32.mrb[0].mxu0
      %v2342 = vadd.f32 0.0, %v2341
      %v2343 = vpop.f32.mrb[0].mxu0
      %v2344 = vpop.f32.mrb[0].mxu0
      %v2345 = vadd.f32 0.0, %v2344
      %v2346 = vpop.f32.mrb[0].mxu0
      %2347 = vmatprep.mubr.bf16.mxu0 %v1863
      %2348 = vmatmul.mubr.bf16.gmra.mrb[0].mxu0 %v2007
      %v2349 = vpop.f32.mrb[0].mxu0
      %v2350 = vadd.f32 0.0, %v2349
      %v2351 = vpop.f32.mrb[0].mxu0
      %v2352 = vpop.f32.mrb[0].mxu0
      %v2353 = vadd.f32 0.0, %v2352
      %v2354 = vpop.f32.mrb[0].mxu0
      %2355 = vmatprep.mubr.bf16.mxu0 %v1864
      %2356 = vmatmul.mubr.bf16.gmra.mrb[0].mxu0 %v2008
      %v2357 = vpop.f32.mrb[0].mxu0
      %v2358 = vadd.f32 0.0, %v2357
      %v2359 = vpop.f32.mrb[0].mxu0
      %v2360 = vpop.f32.mrb[0].mxu0
      %v2361 = vadd.f32 0.0, %v2360
      %v2362 = vpop.f32.mrb[0].mxu0
      %2363 = vmatprep.mubr.bf16.mxu0 %v1865
      %2364 = vmatmul.mubr.bf16.gmra.mrb[0].mxu0 %v2009
      %v2365 = vpop.f32.mrb[0].mxu0
      %v2366 = vadd.f32 0.0, %v2365
      %v2367 = vpop.f32.mrb[0].mxu0
      %v2368 = vpop.f32.mrb[0].mxu0
      %v2369 = vadd.f32 0.0, %v2368
      %v2370 = vpop.f32.mrb[0].mxu0
      %2371 = vmatprep.mubr.bf16.mxu0 %v1866
      %2372 = vmatmul.mubr.bf16.gmra.mrb[0].mxu0 %v2010
      %v2373 = vpop.f32.mrb[0].mxu0
      %v2374 = vadd.f32 0.0, %v2373
      %v2375 = vpop.f32.mrb[0].mxu0
      %v2376 = vpop.f32.mrb[0].mxu0
      %v2377 = vadd.f32 0.0, %v2376
      %v2378 = vpop.f32.mrb[0].mxu0
      %2379 = vmatprep.mubr.bf16.mxu0 %v1867
      %2380 = vmatmul.mubr.bf16.gmra.mrb[0].mxu0 %v2011
      %v2381 = vpop.f32.mrb[0].mxu0
      %v2382 = vadd.f32 0.0, %v2381
      %v2383 = vpop.f32.mrb[0].mxu0
      %v2384 = vpop.f32.mrb[0].mxu0
      %v2385 = vadd.f32 0.0, %v2384
      %v2386 = vpop.f32.mrb[0].mxu0
      %2387 = vmatprep.mubr.bf16.mxu0 %v1868
      %2388 = vmatmul.mubr.bf16.gmra.mrb[0].mxu0 %v2012
      %v2389 = vpop.f32.mrb[0].mxu0
      %v2390 = vadd.f32 0.0, %v2389
      %v2391 = vpop.f32.mrb[0].mxu0
      %v2392 = vpop.f32.mrb[0].mxu0
      %v2393 = vadd.f32 0.0, %v2392
      %v2394 = vpop.f32.mrb[0].mxu0
      %2395 = vmatprep.mubr.bf16.mxu0 %v1869
      %2396 = vmatmul.mubr.bf16.gmra.mrb[0].mxu0 %v2013
      %v2397 = vpop.f32.mrb[0].mxu0
      %v2398 = vadd.f32 0.0, %v2397
      %v2399 = vpop.f32.mrb[0].mxu0
      %v2400 = vpop.f32.mrb[0].mxu0
      %v2401 = vadd.f32 0.0, %v2400
      %v2402 = vpop.f32.mrb[0].mxu0
      %2403 = vmatprep.mubr.bf16.mxu0 %v1870
      %2404 = vmatmul.mubr.bf16.gmra.mrb[0].mxu0 %v2014
      %v2405 = vpop.f32.mrb[0].mxu0
      %v2406 = vadd.f32 0.0, %v2405
      %v2407 = vpop.f32.mrb[0].mxu0
      %v2408 = vpop.f32.mrb[0].mxu0
      %v2409 = vadd.f32 0.0, %v2408
      %v2410 = vpop.f32.mrb[0].mxu0
      %2411 = vmatprep.mubr.bf16.mxu0 %v1871
      %2412 = vmatmul.mubr.bf16.gmra.mrb[0].mxu0 %v2015
      %v2413 = vpop.f32.mrb[0].mxu0
      %v2414 = vadd.f32 0.0, %v2413
      %v2415 = vpop.f32.mrb[0].mxu0
      %v2416 = vpop.f32.mrb[0].mxu0
      %v2417 = vadd.f32 0.0, %v2416
      %v2418 = vpop.f32.mrb[0].mxu0
      %2419 = vmatprep.mubr.bf16.mxu0 %v1872
      %2420 = vmatmul.mubr.bf16.gmra.mrb[0].mxu0 %v2016
      %v2421 = vpop.f32.mrb[0].mxu0
      %v2422 = vadd.f32 0.0, %v2421
      %v2423 = vpop.f32.mrb[0].mxu0
      %v2424 = vpop.f32.mrb[0].mxu0
      %v2425 = vadd.f32 0.0, %v2424
      %v2426 = vpop.f32.mrb[0].mxu0
      %2427 = vmatprep.mubr.bf16.mxu0 %v1873
      %2428 = vmatmul.mubr.bf16.gmra.mrb[0].mxu0 %v2017
      %v2429 = vpop.f32.mrb[0].mxu0
      %v2430 = vadd.f32 0.0, %v2429
      %v2431 = vpop.f32.mrb[0].mxu0
      %v2432 = vpop.f32.mrb[0].mxu0
      %v2433 = vadd.f32 0.0, %v2432
      %v2434 = vpop.f32.mrb[0].mxu0
      %2435 = vdwg.mxu0
      %2436 = vmatprep.subr.bf16.mxu0 0
      %2437 = vmatpush1.bf16.msra.mxu0 %v2243
      %2438 = vmatprep.subr.bf16.mxu0 0
      %2439 = vmatpush1.bf16.msra.mxu0 %v2244
      %2440 = vmatprep.subr.bf16.mxu0 0
      %2441 = vmatpush1.bf16.msra.mxu0 %v2245
      %2442 = vmatprep.subr.bf16.mxu0 0
      %2443 = vmatpush1.bf16.msra.mxu0 %v2246
      %2444 = vmatprep.subr.bf16.mxu0 0
      %2445 = vmatpush1.bf16.msra.mxu0 %v2247
      %2446 = vmatprep.subr.bf16.mxu0 0
      %2447 = vmatpush1.bf16.msra.mxu0 %v2248
      %2448 = vmatprep.subr.bf16.mxu0 0
      %2449 = vmatpush1.bf16.msra.mxu0 %v2249
      %2450 = vmatprep.subr.bf16.mxu0 0
      %2451 = vmatpush1.bf16.msra.mxu0 %v2250
      %2452 = vmatprep.subr.bf16.mxu0 0
      %2453 = vmatpush1.bf16.msra.mxu0 0
      %2454 = vmatprep.subr.bf16.mxu0 0
      %2455 = vmatpush1.bf16.msra.mxu0 0
      %2456 = vmatprep.subr.bf16.mxu0 0
      %2457 = vmatpush1.bf16.msra.mxu0 0
      %2458 = vmatprep.subr.bf16.mxu0 0
      %2459 = vmatpush1.bf16.msra.mxu0 0
      %2460 = vmatprep.subr.bf16.mxu0 0
      %2461 = vmatpush1.bf16.msra.mxu0 0
      %2462 = vmatprep.subr.bf16.mxu0 0
      %2463 = vmatpush1.bf16.msra.mxu0 0
      %2464 = vmatprep.subr.bf16.mxu0 0
      %2465 = vmatpush1.bf16.msra.mxu0 0
      %2466 = vmatprep.subr.bf16.mxu0 0
      %2467 = vmatpush1.bf16.msra.mxu0 0
      %2468 = vmatprep.mubr.bf16.mxu0 0
      %2469 = vmatmul.mubr.bf16.gmra.mrb[0].mxu0 %v2066
      %v2470 = vpop.f32.mrb[0].mxu0
      %v2471 = vadd.f32 %v2310, %v2470
      %v2472 = vpop.f32.mrb[0].mxu0
      %v2473 = vpop.f32.mrb[0].mxu0
      %v2474 = vadd.f32 %v2313, %v2473
      %v2475 = vpop.f32.mrb[0].mxu0
      %2476 = vmatprep.mubr.bf16.mxu0 0
      %2477 = vmatmul.mubr.bf16.gmra.mrb[0].mxu0 %v2067
      %v2478 = vpop.f32.mrb[0].mxu0
      %v2479 = vadd.f32 %v2318, %v2478
      %v2480 = vpop.f32.mrb[0].mxu0
      %v2481 = vpop.f32.mrb[0].mxu0
      %v2482 = vadd.f32 %v2321, %v2481
      %v2483 = vpop.f32.mrb[0].mxu0
      %2484 = vmatprep.mubr.bf16.mxu0 0
      %2485 = vmatmul.mubr.bf16.gmra.mrb[0].mxu0 %v2068
      %v2486 = vpop.f32.mrb[0].mxu0
      %v2487 = vadd.f32 %v2326, %v2486
      %v2488 = vpop.f32.mrb[0].mxu0
      %v2489 = vpop.f32.mrb[0].mxu0
      %v2490 = vadd.f32 %v2329, %v2489
      %v2491 = vpop.f32.mrb[0].mxu0
      %2492 = vmatprep.mubr.bf16.mxu0 0
      %2493 = vmatmul.mubr.bf16.gmra.mrb[0].mxu0 %v2069
      %v2494 = vpop.f32.mrb[0].mxu0
      %v2495 = vadd.f32 %v2334, %v2494
      %v2496 = vpop.f32.mrb[0].mxu0
      %v2497 = vpop.f32.mrb[0].mxu0
      %v2498 = vadd.f32 %v2337, %v2497
      %v2499 = vpop.f32.mrb[0].mxu0
      %2500 = vmatprep.mubr.bf16.mxu0 0
      %2501 = vmatmul.mubr.bf16.gmra.mrb[0].mxu0 %v2070
      %v2502 = vpop.f32.mrb[0].mxu0
      %v2503 = vadd.f32 %v2342, %v2502
      %v2504 = vpop.f32.mrb[0].mxu0
      %v2505 = vpop.f32.mrb[0].mxu0
      %v2506 = vadd.f32 %v2345, %v2505
      %v2507 = vpop.f32.mrb[0].mxu0
      %2508 = vmatprep.mubr.bf16.mxu0 0
      %2509 = vmatmul.mubr.bf16.gmra.mrb[0].mxu0 %v2071
      %v2510 = vpop.f32.mrb[0].mxu0
      %v2511 = vadd.f32 %v2350, %v2510
      %v2512 = vpop.f32.mrb[0].mxu0
      %v2513 = vpop.f32.mrb[0].mxu0
      %v2514 = vadd.f32 %v2353, %v2513
      %v2515 = vpop.f32.mrb[0].mxu0
      %2516 = vmatprep.mubr.bf16.mxu0 0
      %2517 = vmatmul.mubr.bf16.gmra.mrb[0].mxu0 %v2072
      %v2518 = vpop.f32.mrb[0].mxu0
      %v2519 = vadd.f32 %v2358, %v2518
      %v2520 = vpop.f32.mrb[0].mxu0
      %v2521 = vpop.f32.mrb[0].mxu0
      %v2522 = vadd.f32 %v2361, %v2521
      %v2523 = vpop.f32.mrb[0].mxu0
      %2524 = vmatprep.mubr.bf16.mxu0 0
      %2525 = vmatmul.mubr.bf16.gmra.mrb[0].mxu0 %v2073
      %v2526 = vpop.f32.mrb[0].mxu0
      %v2527 = vadd.f32 %v2366, %v2526
      %v2528 = vpop.f32.mrb[0].mxu0
      %v2529 = vpop.f32.mrb[0].mxu0
      %v2530 = vadd.f32 %v2369, %v2529
      %v2531 = vpop.f32.mrb[0].mxu0
      %2532 = vmatprep.mubr.bf16.mxu0 0
      %2533 = vmatmul.mubr.bf16.gmra.mrb[0].mxu0 %v2074
      %v2534 = vpop.f32.mrb[0].mxu0
      %v2535 = vadd.f32 %v2374, %v2534
      %v2536 = vpop.f32.mrb[0].mxu0
      %v2537 = vpop.f32.mrb[0].mxu0
      %v2538 = vadd.f32 %v2377, %v2537
      %v2539 = vpop.f32.mrb[0].mxu0
      %2540 = vmatprep.mubr.bf16.mxu0 0
      %2541 = vmatmul.mubr.bf16.gmra.mrb[0].mxu0 %v2075
      %v2542 = vpop.f32.mrb[0].mxu0
      %v2543 = vadd.f32 %v2382, %v2542
      %v2544 = vpop.f32.mrb[0].mxu0
      %v2545 = vpop.f32.mrb[0].mxu0
      %v2546 = vadd.f32 %v2385, %v2545
      %v2547 = vpop.f32.mrb[0].mxu0
      %2548 = vmatprep.mubr.bf16.mxu0 0
      %2549 = vmatmul.mubr.bf16.gmra.mrb[0].mxu0 %v2076
      %v2550 = vpop.f32.mrb[0].mxu0
      %v2551 = vadd.f32 %v2390, %v2550
      %v2552 = vpop.f32.mrb[0].mxu0
      %v2553 = vpop.f32.mrb[0].mxu0
      %v2554 = vadd.f32 %v2393, %v2553
      %v2555 = vpop.f32.mrb[0].mxu0
      %2556 = vmatprep.mubr.bf16.mxu0 0
      %2557 = vmatmul.mubr.bf16.gmra.mrb[0].mxu0 %v2077
      %v2558 = vpop.f32.mrb[0].mxu0
      %v2559 = vadd.f32 %v2398, %v2558
      %v2560 = vpop.f32.mrb[0].mxu0
      %v2561 = vpop.f32.mrb[0].mxu0
      %v2562 = vadd.f32 %v2401, %v2561
      %v2563 = vpop.f32.mrb[0].mxu0
      %2564 = vmatprep.mubr.bf16.mxu0 0
      %2565 = vmatmul.mubr.bf16.gmra.mrb[0].mxu0 %v2078
      %v2566 = vpop.f32.mrb[0].mxu0
      %v2567 = vadd.f32 %v2406, %v2566
      %v2568 = vpop.f32.mrb[0].mxu0
      %v2569 = vpop.f32.mrb[0].mxu0
      %v2570 = vadd.f32 %v2409, %v2569
      %v2571 = vpop.f32.mrb[0].mxu0
      %2572 = vmatprep.mubr.bf16.mxu0 0
      %2573 = vmatmul.mubr.bf16.gmra.mrb[0].mxu0 %v2079
      %v2574 = vpop.f32.mrb[0].mxu0
      %v2575 = vadd.f32 %v2414, %v2574
      %v2576 = vpop.f32.mrb[0].mxu0
      %v2577 = vpop.f32.mrb[0].mxu0
      %v2578 = vadd.f32 %v2417, %v2577
      %v2579 = vpop.f32.mrb[0].mxu0
      %2580 = vmatprep.mubr.bf16.mxu0 0
      %2581 = vmatmul.mubr.bf16.gmra.mrb[0].mxu0 %v2080
      %v2582 = vpop.f32.mrb[0].mxu0
      %v2583 = vadd.f32 %v2422, %v2582
      %v2584 = vpop.f32.mrb[0].mxu0
      %v2585 = vpop.f32.mrb[0].mxu0
      %v2586 = vadd.f32 %v2425, %v2585
      %v2587 = vpop.f32.mrb[0].mxu0
      %2588 = vmatprep.mubr.bf16.mxu0 0
      %2589 = vmatmul.mubr.bf16.gmra.mrb[0].mxu0 %v2081
      %v2590 = vpop.f32.mrb[0].mxu0
      %v2591 = vadd.f32 %v2430, %v2590
      %v2592 = vpop.f32.mrb[0].mxu0
      %v2593 = vpop.f32.mrb[0].mxu0
      %v2594 = vadd.f32 %v2433, %v2593
      %v2595 = vpop.f32.mrb[0].mxu0
      %2596 = vdwg.mxu0
      %v2597 = vadd.f32 %v1731, %v2471
      %v2598 = vadd.f32 %v1734, %v2474
      %v2599 = vadd.f32 %v1739, %v2479
      %v2600 = vadd.f32 %v1742, %v2482
      %v2601 = vadd.f32 %v1747, %v2487
      %v2602 = vadd.f32 %v1750, %v2490
      %v2603 = vadd.f32 %v1755, %v2495
      %v2604 = vadd.f32 %v1758, %v2498
      %v2605 = vadd.f32 %v1763, %v2503
      %v2606 = vadd.f32 %v1766, %v2506
      %v2607 = vadd.f32 %v1771, %v2511
      %v2608 = vadd.f32 %v1774, %v2514
      %v2609 = vadd.f32 %v1779, %v2519
      %v2610 = vadd.f32 %v1782, %v2522
      %v2611 = vadd.f32 %v1787, %v2527
      %v2612 = vadd.f32 %v1790, %v2530
      %v2613 = vadd.f32 %v1795, %v2535
      %v2614 = vadd.f32 %v1798, %v2538
      %v2615 = vadd.f32 %v1803, %v2543
      %v2616 = vadd.f32 %v1806, %v2546
      %v2617 = vadd.f32 %v1811, %v2551
      %v2618 = vadd.f32 %v1814, %v2554
      %v2619 = vadd.f32 %v1819, %v2559
      %v2620 = vadd.f32 %v1822, %v2562
      %v2621 = vadd.f32 %v1827, %v2567
      %v2622 = vadd.f32 %v1830, %v2570
      %v2623 = vadd.f32 %v1835, %v2575
      %v2624 = vadd.f32 %v1838, %v2578
      %v2625 = vadd.f32 %v1843, %v2583
      %v2626 = vadd.f32 %v1846, %v2586
      %v2627 = vadd.f32 %v1851, %v2591
      %v2628 = vadd.f32 %v1854, %v2594
      %v2629 = vld [vmem:[%s2] sm:$0x1]
      %v2631 = vlaneseq
      %v2632 = vshrl.u32 %v2631, 7
      %v2633 = vsub.s32 0, %v2632
      %v2634 = vrot.slane %v2629, %v2633
      %v2636 = vadd.f32 %v2597, %v2634
      %v2637 = vadd.f32 %v2598, %v2634
      %v2638 = vadd.f32 %v2599, %v2634
      %v2639 = vadd.f32 %v2600, %v2634
      %v2640 = vadd.f32 %v2601, %v2634
      %v2641 = vadd.f32 %v2602, %v2634
      %v2642 = vadd.f32 %v2603, %v2634
      %v2643 = vadd.f32 %v2604, %v2634
      %v2644 = vadd.f32 %v2605, %v2634
      %v2645 = vadd.f32 %v2606, %v2634
      %v2646 = vadd.f32 %v2607, %v2634
      %v2647 = vadd.f32 %v2608, %v2634
      %v2648 = vadd.f32 %v2609, %v2634
      %v2649 = vadd.f32 %v2610, %v2634
      %v2650 = vadd.f32 %v2611, %v2634
      %v2651 = vadd.f32 %v2612, %v2634
      %v2652 = vadd.f32 %v2613, %v2634
      %v2653 = vadd.f32 %v2614, %v2634
      %v2654 = vadd.f32 %v2615, %v2634
      %v2655 = vadd.f32 %v2616, %v2634
      %v2656 = vadd.f32 %v2617, %v2634
      %v2657 = vadd.f32 %v2618, %v2634
      %v2658 = vadd.f32 %v2619, %v2634
      %v2659 = vadd.f32 %v2620, %v2634
      %v2660 = vadd.f32 %v2621, %v2634
      %v2661 = vadd.f32 %v2622, %v2634
      %v2662 = vadd.f32 %v2623, %v2634
      %v2663 = vadd.f32 %v2624, %v2634
      %v2664 = vadd.f32 %v2625, %v2634
      %v2665 = vadd.f32 %v2626, %v2634
      %v2666 = vadd.f32 %v2627, %v2634
      %v2667 = vadd.f32 %v2628, %v2634
      %v2668 = vsub.f32 0.0, %v2636
      %v2669 = vsub.f32 0.0, %v2637
      %v2670 = vsub.f32 0.0, %v2638
      %v2671 = vsub.f32 0.0, %v2639
      %v2672 = vsub.f32 0.0, %v2640
      %v2673 = vsub.f32 0.0, %v2641
      %v2674 = vsub.f32 0.0, %v2642
      %v2675 = vsub.f32 0.0, %v2643
      %v2676 = vsub.f32 0.0, %v2644
      %v2677 = vsub.f32 0.0, %v2645
      %v2678 = vsub.f32 0.0, %v2646
      %v2679 = vsub.f32 0.0, %v2647
      %v2680 = vsub.f32 0.0, %v2648
      %v2681 = vsub.f32 0.0, %v2649
      %v2682 = vsub.f32 0.0, %v2650
      %v2683 = vsub.f32 0.0, %v2651
      %v2684 = vsub.f32 0.0, %v2652
      %v2685 = vsub.f32 0.0, %v2653
      %v2686 = vsub.f32 0.0, %v2654
      %v2687 = vsub.f32 0.0, %v2655
      %v2688 = vsub.f32 0.0, %v2656
      %v2689 = vsub.f32 0.0, %v2657
      %v2690 = vsub.f32 0.0, %v2658
      %v2691 = vsub.f32 0.0, %v2659
      %v2692 = vsub.f32 0.0, %v2660
      %v2693 = vsub.f32 0.0, %v2661
      %v2694 = vsub.f32 0.0, %v2662
      %v2695 = vsub.f32 0.0, %v2663
      %v2696 = vsub.f32 0.0, %v2664
      %v2697 = vsub.f32 0.0, %v2665
      %v2698 = vsub.f32 0.0, %v2666
      %v2699 = vsub.f32 0.0, %v2667
      %v2700 = vmul.f32 %v2668, 1.442695
      %v2701 = vpow.pop %v2700
      %v2702 = vmul.f32 %v2669, 1.442695
      %v2703 = vpow.pop %v2702
      %v2704 = vmul.f32 %v2670, 1.442695
      %v2705 = vpow.pop %v2704
      %v2706 = vmul.f32 %v2671, 1.442695
      %v2707 = vpow.pop %v2706
      %v2708 = vmul.f32 %v2672, 1.442695
      %v2709 = vpow.pop %v2708
      %v2710 = vmul.f32 %v2673, 1.442695
      %v2711 = vpow.pop %v2710
      %v2712 = vmul.f32 %v2674, 1.442695
      %v2713 = vpow.pop %v2712
      %v2714 = vmul.f32 %v2675, 1.442695
      %v2715 = vpow.pop %v2714
      %v2716 = vmul.f32 %v2676, 1.442695
      %v2717 = vpow.pop %v2716
      %v2718 = vmul.f32 %v2677, 1.442695
      %v2719 = vpow.pop %v2718
      %v2720 = vmul.f32 %v2678, 1.442695
      %v2721 = vpow.pop %v2720
      %v2722 = vmul.f32 %v2679, 1.442695
      %v2723 = vpow.pop %v2722
      %v2724 = vmul.f32 %v2680, 1.442695
      %v2725 = vpow.pop %v2724
      %v2726 = vmul.f32 %v2681, 1.442695
      %v2727 = vpow.pop %v2726
      %v2728 = vmul.f32 %v2682, 1.442695
      %v2729 = vpow.pop %v2728
      %v2730 = vmul.f32 %v2683, 1.442695
      %v2731 = vpow.pop %v2730
      %v2732 = vmul.f32 %v2684, 1.442695
      %v2733 = vpow.pop %v2732
      %v2734 = vmul.f32 %v2685, 1.442695
      %v2735 = vpow.pop %v2734
      %v2736 = vmul.f32 %v2686, 1.442695
      %v2737 = vpow.pop %v2736
      %v2738 = vmul.f32 %v2687, 1.442695
      %v2739 = vpow.pop %v2738
      %v2740 = vmul.f32 %v2688, 1.442695
      %v2741 = vpow.pop %v2740
      %v2742 = vmul.f32 %v2689, 1.442695
      %v2743 = vpow.pop %v2742
      %v2744 = vmul.f32 %v2690, 1.442695
      %v2745 = vpow.pop %v2744
      %v2746 = vmul.f32 %v2691, 1.442695
      %v2747 = vpow.pop %v2746
      %v2748 = vmul.f32 %v2692, 1.442695
      %v2749 = vpow.pop %v2748
      %v2750 = vmul.f32 %v2693, 1.442695
      %v2751 = vpow.pop %v2750
      %v2752 = vmul.f32 %v2694, 1.442695
      %v2753 = vpow.pop %v2752
      %v2754 = vmul.f32 %v2695, 1.442695
      %v2755 = vpow.pop %v2754
      %v2756 = vmul.f32 %v2696, 1.442695
      %v2757 = vpow.pop %v2756
      %v2758 = vmul.f32 %v2697, 1.442695
      %v2759 = vpow.pop %v2758
      %v2760 = vmul.f32 %v2698, 1.442695
      %v2761 = vpow.pop %v2760
      %v2762 = vmul.f32 %v2699, 1.442695
      %v2763 = vpow.pop %v2762
      %v2764 = vadd.f32 %v2701, 1.0
      %v2765 = vadd.f32 %v2703, 1.0
      %v2766 = vadd.f32 %v2705, 1.0
      %v2767 = vadd.f32 %v2707, 1.0
      %v2768 = vadd.f32 %v2709, 1.0
      %v2769 = vadd.f32 %v2711, 1.0
      %v2770 = vadd.f32 %v2713, 1.0
      %v2771 = vadd.f32 %v2715, 1.0
      %v2772 = vadd.f32 %v2717, 1.0
      %v2773 = vadd.f32 %v2719, 1.0
      %v2774 = vadd.f32 %v2721, 1.0
      %v2775 = vadd.f32 %v2723, 1.0
      %v2776 = vadd.f32 %v2725, 1.0
      %v2777 = vadd.f32 %v2727, 1.0
      %v2778 = vadd.f32 %v2729, 1.0
      %v2779 = vadd.f32 %v2731, 1.0
      %v2780 = vadd.f32 %v2733, 1.0
      %v2781 = vadd.f32 %v2735, 1.0
      %v2782 = vadd.f32 %v2737, 1.0
      %v2783 = vadd.f32 %v2739, 1.0
      %v2784 = vadd.f32 %v2741, 1.0
      %v2785 = vadd.f32 %v2743, 1.0
      %v2786 = vadd.f32 %v2745, 1.0
      %v2787 = vadd.f32 %v2747, 1.0
      %v2788 = vadd.f32 %v2749, 1.0
      %v2789 = vadd.f32 %v2751, 1.0
      %v2790 = vadd.f32 %v2753, 1.0
      %v2791 = vadd.f32 %v2755, 1.0
      %v2792 = vadd.f32 %v2757, 1.0
      %v2793 = vadd.f32 %v2759, 1.0
      %v2794 = vadd.f32 %v2761, 1.0
      %v2795 = vadd.f32 %v2763, 1.0
      %v2796 = vrcp.pop %v2764
      %v2797 = vmul.f32 1.0, %v2796
      %v2798 = vrcp.pop %v2765
      %v2799 = vmul.f32 1.0, %v2798
      %v2800 = vrcp.pop %v2766
      %v2801 = vmul.f32 1.0, %v2800
      %v2802 = vrcp.pop %v2767
      %v2803 = vmul.f32 1.0, %v2802
      %v2804 = vrcp.pop %v2768
      %v2805 = vmul.f32 1.0, %v2804
      %v2806 = vrcp.pop %v2769
      %v2807 = vmul.f32 1.0, %v2806
      %v2808 = vrcp.pop %v2770
      %v2809 = vmul.f32 1.0, %v2808
      %v2810 = vrcp.pop %v2771
      %v2811 = vmul.f32 1.0, %v2810
      %v2812 = vrcp.pop %v2772
      %v2813 = vmul.f32 1.0, %v2812
      %v2814 = vrcp.pop %v2773
      %v2815 = vmul.f32 1.0, %v2814
      %v2816 = vrcp.pop %v2774
      %v2817 = vmul.f32 1.0, %v2816
      %v2818 = vrcp.pop %v2775
      %v2819 = vmul.f32 1.0, %v2818
      %v2820 = vrcp.pop %v2776
      %v2821 = vmul.f32 1.0, %v2820
      %v2822 = vrcp.pop %v2777
      %v2823 = vmul.f32 1.0, %v2822
      %v2824 = vrcp.pop %v2778
      %v2825 = vmul.f32 1.0, %v2824
      %v2826 = vrcp.pop %v2779
      %v2827 = vmul.f32 1.0, %v2826
      %v2828 = vrcp.pop %v2780
      %v2829 = vmul.f32 1.0, %v2828
      %v2830 = vrcp.pop %v2781
      %v2831 = vmul.f32 1.0, %v2830
      %v2832 = vrcp.pop %v2782
      %v2833 = vmul.f32 1.0, %v2832
      %v2834 = vrcp.pop %v2783
      %v2835 = vmul.f32 1.0, %v2834
      %v2836 = vrcp.pop %v2784
      %v2837 = vmul.f32 1.0, %v2836
      %v2838 = vrcp.pop %v2785
      %v2839 = vmul.f32 1.0, %v2838
      %v2840 = vrcp.pop %v2786
      %v2841 = vmul.f32 1.0, %v2840
      %v2842 = vrcp.pop %v2787
      %v2843 = vmul.f32 1.0, %v2842
      %v2844 = vrcp.pop %v2788
      %v2845 = vmul.f32 1.0, %v2844
      %v2846 = vrcp.pop %v2789
      %v2847 = vmul.f32 1.0, %v2846
      %v2848 = vrcp.pop %v2790
      %v2849 = vmul.f32 1.0, %v2848
      %v2850 = vrcp.pop %v2791
      %v2851 = vmul.f32 1.0, %v2850
      %v2852 = vrcp.pop %v2792
      %v2853 = vmul.f32 1.0, %v2852
      %v2854 = vrcp.pop %v2793
      %v2855 = vmul.f32 1.0, %v2854
      %v2856 = vrcp.pop %v2794
      %v2857 = vmul.f32 1.0, %v2856
      %v2858 = vrcp.pop %v2795
      %v2859 = vmul.f32 1.0, %v2858
      %v2860 = vmul.f32 %v2636, %v2797
      %v2861 = vmul.f32 %v2637, %v2799
      %v2862 = vmul.f32 %v2638, %v2801
      %v2863 = vmul.f32 %v2639, %v2803
      %v2864 = vmul.f32 %v2640, %v2805
      %v2865 = vmul.f32 %v2641, %v2807
      %v2866 = vmul.f32 %v2642, %v2809
      %v2867 = vmul.f32 %v2643, %v2811
      %v2868 = vmul.f32 %v2644, %v2813
      %v2869 = vmul.f32 %v2645, %v2815
      %v2870 = vmul.f32 %v2646, %v2817
      %v2871 = vmul.f32 %v2647, %v2819
      %v2872 = vmul.f32 %v2648, %v2821
      %v2873 = vmul.f32 %v2649, %v2823
      %v2874 = vmul.f32 %v2650, %v2825
      %v2875 = vmul.f32 %v2651, %v2827
      %v2876 = vmul.f32 %v2652, %v2829
      %v2877 = vmul.f32 %v2653, %v2831
      %v2878 = vmul.f32 %v2654, %v2833
      %v2879 = vmul.f32 %v2655, %v2835
      %v2880 = vmul.f32 %v2656, %v2837
      %v2881 = vmul.f32 %v2657, %v2839
      %v2882 = vmul.f32 %v2658, %v2841
      %v2883 = vmul.f32 %v2659, %v2843
      %v2884 = vmul.f32 %v2660, %v2845
      %v2885 = vmul.f32 %v2661, %v2847
      %v2886 = vmul.f32 %v2662, %v2849
      %v2887 = vmul.f32 %v2663, %v2851
      %v2888 = vmul.f32 %v2664, %v2853
      %v2889 = vmul.f32 %v2665, %v2855
      %v2890 = vmul.f32 %v2666, %v2857
      %v2891 = vmul.f32 %v2667, %v2859
      %v2892 = vpack.c.bf16 %v2861, %v2860
      %v2893 = vpack.c.bf16 %v2863, %v2862
      %v2894 = vpack.c.bf16 %v2865, %v2864
      %v2895 = vpack.c.bf16 %v2867, %v2866
      %v2896 = vpack.c.bf16 %v2869, %v2868
      %v2897 = vpack.c.bf16 %v2871, %v2870
      %v2898 = vpack.c.bf16 %v2873, %v2872
      %v2899 = vpack.c.bf16 %v2875, %v2874
      %v2900 = vpack.c.bf16 %v2877, %v2876
      %v2901 = vpack.c.bf16 %v2879, %v2878
      %v2902 = vpack.c.bf16 %v2881, %v2880
      %v2903 = vpack.c.bf16 %v2883, %v2882
      %v2904 = vpack.c.bf16 %v2885, %v2884
      %v2905 = vpack.c.bf16 %v2887, %v2886
      %v2906 = vpack.c.bf16 %v2889, %v2888
      %v2907 = vpack.c.bf16 %v2891, %v2890
      %2908 = vst [vmem:[%s357] sm:$0xff] %v2892
      %2909 = vst [vmem:[%s357 + $0x8] sm:$0xff] %v2893
      %2910 = vst [vmem:[%s357 + $0x10] sm:$0xff] %v2894
      %2911 = vst [vmem:[%s357 + $0x18] sm:$0xff] %v2895
      %2912 = vst [vmem:[%s357 + $0x20] sm:$0xff] %v2896
      %2913 = vst [vmem:[%s357 + $0x28] sm:$0xff] %v2897
      %2914 = vst [vmem:[%s357 + $0x30] sm:$0xff] %v2898
      %2915 = vst [vmem:[%s357 + $0x38] sm:$0xff] %v2899
      %2916 = vst [vmem:[%s357 + $0x40] sm:$0xff] %v2900
      %2917 = vst [vmem:[%s357 + $0x48] sm:$0xff] %v2901
      %2918 = vst [vmem:[%s357 + $0x50] sm:$0xff] %v2902
      %2919 = vst [vmem:[%s357 + $0x58] sm:$0xff] %v2903
      %2920 = vst [vmem:[%s357 + $0x60] sm:$0xff] %v2904
      %2921 = vst [vmem:[%s357 + $0x68] sm:$0xff] %v2905
      %2922 = vst [vmem:[%s357 + $0x70] sm:$0xff] %v2906
      %2923 = vst [vmem:[%s357 + $0x78] sm:$0xff] %v2907
      %v2924 = vld [vmem:[#allocation2] sm:$0xff]
      %v2925 = vld [vmem:[#allocation2 + $0x8] sm:$0xff]
      %v2926 = vld [vmem:[#allocation2 + $0x10] sm:$0xff]
      %v2927 = vld [vmem:[#allocation2 + $0x18] sm:$0xff]
      %v2928 = vld [vmem:[#allocation2 + $0x20] sm:$0xff]
      %v2929 = vld [vmem:[#allocation2 + $0x28] sm:$0xff]
      %v2930 = vld [vmem:[#allocation2 + $0x30] sm:$0xff]
      %v2931 = vld [vmem:[#allocation2 + $0x38] sm:$0xff]
      %v2932 = vld [vmem:[#allocation2 + $0x40] sm:$0xff]
      %v2933 = vld [vmem:[#allocation2 + $0x48] sm:$0xff]
      %v2934 = vld [vmem:[#allocation2 + $0x50] sm:$0xff]
      %v2935 = vld [vmem:[#allocation2 + $0x58] sm:$0xff]
      %v2936 = vld [vmem:[#allocation2 + $0x60] sm:$0xff]
      %v2937 = vld [vmem:[#allocation2 + $0x68] sm:$0xff]
      %v2938 = vld [vmem:[#allocation2 + $0x70] sm:$0xff]
      %v2939 = vld [vmem:[#allocation2 + $0x78] sm:$0xff]
      %v2941 = vshrl.u32 %v2924, 16
      %v2943 = vrot.slane %v2941, 7
      %v2944 = vshll.u32 %v2924, 16
      %v2946 = vor.u32 %v2943, %v2944
      %v2948 = vshrl.u32 %v2925, 16
      %v2950 = vrot.slane %v2948, 7
      %v2951 = vshll.u32 %v2925, 16
      %v2953 = vor.u32 %v2950, %v2951
      %v2955 = vshrl.u32 %v2926, 16
      %v2957 = vrot.slane %v2955, 7
      %v2958 = vshll.u32 %v2926, 16
      %v2960 = vor.u32 %v2957, %v2958
      %v2962 = vshrl.u32 %v2927, 16
      %v2964 = vrot.slane %v2962, 7
      %v2965 = vshll.u32 %v2927, 16
      %v2967 = vor.u32 %v2964, %v2965
      %v2969 = vshrl.u32 %v2928, 16
      %v2971 = vrot.slane %v2969, 7
      %v2972 = vshll.u32 %v2928, 16
      %v2974 = vor.u32 %v2971, %v2972
      %v2976 = vshrl.u32 %v2929, 16
      %v2978 = vrot.slane %v2976, 7
      %v2979 = vshll.u32 %v2929, 16
      %v2981 = vor.u32 %v2978, %v2979
      %v2983 = vshrl.u32 %v2930, 16
      %v2985 = vrot.slane %v2983, 7
      %v2986 = vshll.u32 %v2930, 16
      %v2988 = vor.u32 %v2985, %v2986
      %v2990 = vshrl.u32 %v2931, 16
      %v2992 = vrot.slane %v2990, 7
      %v2993 = vshll.u32 %v2931, 16
      %v2995 = vor.u32 %v2992, %v2993
      %v2997 = vshrl.u32 %v2932, 16
      %v2999 = vrot.slane %v2997, 7
      %v3000 = vshll.u32 %v2932, 16
      %v3002 = vor.u32 %v2999, %v3000
      %v3004 = vshrl.u32 %v2933, 16
      %v3006 = vrot.slane %v3004, 7
      %v3007 = vshll.u32 %v2933, 16
      %v3009 = vor.u32 %v3006, %v3007
      %v3011 = vshrl.u32 %v2934, 16
      %v3013 = vrot.slane %v3011, 7
      %v3014 = vshll.u32 %v2934, 16
      %v3016 = vor.u32 %v3013, %v3014
      %v3018 = vshrl.u32 %v2935, 16
      %v3020 = vrot.slane %v3018, 7
      %v3021 = vshll.u32 %v2935, 16
      %v3023 = vor.u32 %v3020, %v3021
      %v3025 = vshrl.u32 %v2936, 16
      %v3027 = vrot.slane %v3025, 7
      %v3028 = vshll.u32 %v2936, 16
      %v3030 = vor.u32 %v3027, %v3028
      %v3032 = vshrl.u32 %v2937, 16
      %v3034 = vrot.slane %v3032, 7
      %v3035 = vshll.u32 %v2937, 16
      %v3037 = vor.u32 %v3034, %v3035
      %v3039 = vshrl.u32 %v2938, 16
      %v3041 = vrot.slane %v3039, 7
      %v3042 = vshll.u32 %v2938, 16
      %v3044 = vor.u32 %v3041, %v3042
      %v3046 = vshrl.u32 %v2939, 16
      %v3048 = vrot.slane %v3046, 7
      %v3049 = vshll.u32 %v2939, 16
      %v3051 = vor.u32 %v3048, %v3049
      %v3068 = vsel %vm520, 0, %v2946
      %v3069 = vsel %vm520, 0, %v2953
      %v3070 = vsel %vm520, 0, %v2960
      %v3071 = vsel %vm520, 0, %v2967
      %v3072 = vsel %vm520, 0, %v2974
      %v3073 = vsel %vm520, 0, %v2981
      %v3074 = vsel %vm520, 0, %v2988
      %v3075 = vsel %vm520, 0, %v2995
      %v3076 = vsel %vm520, 0, %v3002
      %v3077 = vsel %vm520, 0, %v3009
      %v3078 = vsel %vm520, 0, %v3016
      %v3079 = vsel %vm520, 0, %v3023
      %v3080 = vsel %vm520, 0, %v3030
      %v3081 = vsel %vm520, 0, %v3037
      %v3082 = vsel %vm520, 0, %v3044
      %v3083 = vsel %vm520, 0, %v3051
      %v3084 = vrot.slane %v2944, 1
      %v3085 = vor.u32 %v2941, %v3084
      %v3086 = vrot.slane %v2951, 1
      %v3087 = vor.u32 %v2948, %v3086
      %v3088 = vrot.slane %v2958, 1
      %v3089 = vor.u32 %v2955, %v3088
      %v3090 = vrot.slane %v2965, 1
      %v3091 = vor.u32 %v2962, %v3090
      %v3092 = vrot.slane %v2972, 1
      %v3093 = vor.u32 %v2969, %v3092
      %v3094 = vrot.slane %v2979, 1
      %v3095 = vor.u32 %v2976, %v3094
      %v3096 = vrot.slane %v2986, 1
      %v3097 = vor.u32 %v2983, %v3096
      %v3098 = vrot.slane %v2993, 1
      %v3099 = vor.u32 %v2990, %v3098
      %v3100 = vrot.slane %v3000, 1
      %v3101 = vor.u32 %v2997, %v3100
      %v3102 = vrot.slane %v3007, 1
      %v3103 = vor.u32 %v3004, %v3102
      %v3104 = vrot.slane %v3014, 1
      %v3105 = vor.u32 %v3011, %v3104
      %v3106 = vrot.slane %v3021, 1
      %v3107 = vor.u32 %v3018, %v3106
      %v3108 = vrot.slane %v3028, 1
      %v3109 = vor.u32 %v3025, %v3108
      %v3110 = vrot.slane %v3035, 1
      %v3111 = vor.u32 %v3032, %v3110
      %v3112 = vrot.slane %v3042, 1
      %v3113 = vor.u32 %v3039, %v3112
      %v3114 = vrot.slane %v3049, 1
      %v3115 = vor.u32 %v3046, %v3114
      %v3132 = vsel %vm587, %v3085, 0
      %v3133 = vsel %vm587, %v3087, 0
      %v3134 = vsel %vm587, %v3089, 0
      %v3135 = vsel %vm587, %v3091, 0
      %v3136 = vsel %vm587, %v3093, 0
      %v3137 = vsel %vm587, %v3095, 0
      %v3138 = vsel %vm587, %v3097, 0
      %v3139 = vsel %vm587, %v3099, 0
      %v3140 = vsel %vm587, %v3101, 0
      %v3141 = vsel %vm587, %v3103, 0
      %v3142 = vsel %vm587, %v3105, 0
      %v3143 = vsel %vm587, %v3107, 0
      %v3144 = vsel %vm587, %v3109, 0
      %v3145 = vsel %vm587, %v3111, 0
      %v3146 = vsel %vm587, %v3113, 0
      %v3147 = vsel %vm587, %v3115, 0
      %v3148 = vld [vmem:[%s3] sm:$0xf]
      %v3149 = vld [vmem:[%s3 + $0x4] sm:$0xf]
      %v3150 = vld [vmem:[%s3 + $0x8] sm:$0xf]
      %v3151 = vld [vmem:[%s3 + $0xc] sm:$0xf]
      %v3152 = vld [vmem:[%s3 + $0x10] sm:$0xf]
      %v3153 = vld [vmem:[%s3 + $0x14] sm:$0xf]
      %v3154 = vld [vmem:[%s3 + $0x18] sm:$0xf]
      %v3155 = vld [vmem:[%s3 + $0x1c] sm:$0xf]
      %v3156 = vld [vmem:[%s3 + $0x20] sm:$0xf]
      %v3157 = vld [vmem:[%s3 + $0x24] sm:$0xf]
      %v3158 = vld [vmem:[%s3 + $0x28] sm:$0xf]
      %v3159 = vld [vmem:[%s3 + $0x2c] sm:$0xf]
      %v3160 = vld [vmem:[%s3 + $0x30] sm:$0xf]
      %v3161 = vld [vmem:[%s3 + $0x34] sm:$0xf]
      %v3162 = vld [vmem:[%s3 + $0x38] sm:$0xf]
      %v3163 = vld [vmem:[%s3 + $0x3c] sm:$0xf]
      %v3164 = vld [vmem:[%s3 + $0x40] sm:$0xf]
      %v3165 = vld [vmem:[%s3 + $0x44] sm:$0xf]
      %v3166 = vld [vmem:[%s3 + $0x48] sm:$0xf]
      %v3167 = vld [vmem:[%s3 + $0x4c] sm:$0xf]
      %v3168 = vld [vmem:[%s3 + $0x50] sm:$0xf]
      %v3169 = vld [vmem:[%s3 + $0x54] sm:$0xf]
      %v3170 = vld [vmem:[%s3 + $0x58] sm:$0xf]
      %v3171 = vld [vmem:[%s3 + $0x5c] sm:$0xf]
      %v3172 = vld [vmem:[%s3 + $0x60] sm:$0xf]
      %v3173 = vld [vmem:[%s3 + $0x64] sm:$0xf]
      %v3174 = vld [vmem:[%s3 + $0x68] sm:$0xf]
      %v3175 = vld [vmem:[%s3 + $0x6c] sm:$0xf]
      %v3176 = vld [vmem:[%s3 + $0x70] sm:$0xf]
      %v3177 = vld [vmem:[%s3 + $0x74] sm:$0xf]
      %v3178 = vld [vmem:[%s3 + $0x78] sm:$0xf]
      %v3179 = vld [vmem:[%s3 + $0x7c] sm:$0xf]
      %v3180 = vld [vmem:[%s3 + $0x80] sm:$0xf]
      %v3181 = vld [vmem:[%s3 + $0x84] sm:$0xf]
      %v3182 = vld [vmem:[%s3 + $0x88] sm:$0xf]
      %v3183 = vld [vmem:[%s3 + $0x8c] sm:$0xf]
      %v3184 = vld [vmem:[%s3 + $0x90] sm:$0xf]
      %v3185 = vld [vmem:[%s3 + $0x94] sm:$0xf]
      %v3186 = vld [vmem:[%s3 + $0x98] sm:$0xf]
      %v3187 = vld [vmem:[%s3 + $0x9c] sm:$0xf]
      %v3188 = vld [vmem:[%s3 + $0xa0] sm:$0xf]
      %v3189 = vld [vmem:[%s3 + $0xa4] sm:$0xf]
      %v3190 = vld [vmem:[%s3 + $0xa8] sm:$0xf]
      %v3191 = vld [vmem:[%s3 + $0xac] sm:$0xf]
      %v3192 = vld [vmem:[%s3 + $0xb0] sm:$0xf]
      %v3193 = vld [vmem:[%s3 + $0xb4] sm:$0xf]
      %v3194 = vld [vmem:[%s3 + $0xb8] sm:$0xf]
      %v3195 = vld [vmem:[%s3 + $0xbc] sm:$0xf]
      %v3196 = vld [vmem:[%s357] sm:$0xff]
      %v3197 = vld [vmem:[%s357 + $0x8] sm:$0xff]
      %v3198 = vld [vmem:[%s357 + $0x10] sm:$0xff]
      %v3199 = vld [vmem:[%s357 + $0x18] sm:$0xff]
      %v3200 = vld [vmem:[%s357 + $0x20] sm:$0xff]
      %v3201 = vld [vmem:[%s357 + $0x28] sm:$0xff]
      %v3202 = vld [vmem:[%s357 + $0x30] sm:$0xff]
      %v3203 = vld [vmem:[%s357 + $0x38] sm:$0xff]
      %v3204 = vld [vmem:[%s357 + $0x40] sm:$0xff]
      %v3205 = vld [vmem:[%s357 + $0x48] sm:$0xff]
      %v3206 = vld [vmem:[%s357 + $0x50] sm:$0xff]
      %v3207 = vld [vmem:[%s357 + $0x58] sm:$0xff]
      %v3208 = vld [vmem:[%s357 + $0x60] sm:$0xff]
      %v3209 = vld [vmem:[%s357 + $0x68] sm:$0xff]
      %v3210 = vld [vmem:[%s357 + $0x70] sm:$0xff]
      %v3211 = vld [vmem:[%s357 + $0x78] sm:$0xff]
      %v3213 = vshrl.u32 %v3196, 16
      %v3215 = vrot.slane %v3213, 7
      %v3216 = vshll.u32 %v3196, 16
      %v3218 = vor.u32 %v3215, %v3216
      %v3220 = vshrl.u32 %v3197, 16
      %v3222 = vrot.slane %v3220, 7
      %v3223 = vshll.u32 %v3197, 16
      %v3225 = vor.u32 %v3222, %v3223
      %v3227 = vshrl.u32 %v3198, 16
      %v3229 = vrot.slane %v3227, 7
      %v3230 = vshll.u32 %v3198, 16
      %v3232 = vor.u32 %v3229, %v3230
      %v3234 = vshrl.u32 %v3199, 16
      %v3236 = vrot.slane %v3234, 7
      %v3237 = vshll.u32 %v3199, 16
      %v3239 = vor.u32 %v3236, %v3237
      %v3241 = vshrl.u32 %v3200, 16
      %v3243 = vrot.slane %v3241, 7
      %v3244 = vshll.u32 %v3200, 16
      %v3246 = vor.u32 %v3243, %v3244
      %v3248 = vshrl.u32 %v3201, 16
      %v3250 = vrot.slane %v3248, 7
      %v3251 = vshll.u32 %v3201, 16
      %v3253 = vor.u32 %v3250, %v3251
      %v3255 = vshrl.u32 %v3202, 16
      %v3257 = vrot.slane %v3255, 7
      %v3258 = vshll.u32 %v3202, 16
      %v3260 = vor.u32 %v3257, %v3258
      %v3262 = vshrl.u32 %v3203, 16
      %v3264 = vrot.slane %v3262, 7
      %v3265 = vshll.u32 %v3203, 16
      %v3267 = vor.u32 %v3264, %v3265
      %v3269 = vshrl.u32 %v3204, 16
      %v3271 = vrot.slane %v3269, 7
      %v3272 = vshll.u32 %v3204, 16
      %v3274 = vor.u32 %v3271, %v3272
      %v3276 = vshrl.u32 %v3205, 16
      %v3278 = vrot.slane %v3276, 7
      %v3279 = vshll.u32 %v3205, 16
      %v3281 = vor.u32 %v3278, %v3279
      %v3283 = vshrl.u32 %v3206, 16
      %v3285 = vrot.slane %v3283, 7
      %v3286 = vshll.u32 %v3206, 16
      %v3288 = vor.u32 %v3285, %v3286
      %v3290 = vshrl.u32 %v3207, 16
      %v3292 = vrot.slane %v3290, 7
      %v3293 = vshll.u32 %v3207, 16
      %v3295 = vor.u32 %v3292, %v3293
      %v3297 = vshrl.u32 %v3208, 16
      %v3299 = vrot.slane %v3297, 7
      %v3300 = vshll.u32 %v3208, 16
      %v3302 = vor.u32 %v3299, %v3300
      %v3304 = vshrl.u32 %v3209, 16
      %v3306 = vrot.slane %v3304, 7
      %v3307 = vshll.u32 %v3209, 16
      %v3309 = vor.u32 %v3306, %v3307
      %v3311 = vshrl.u32 %v3210, 16
      %v3313 = vrot.slane %v3311, 7
      %v3314 = vshll.u32 %v3210, 16
      %v3316 = vor.u32 %v3313, %v3314
      %v3318 = vshrl.u32 %v3211, 16
      %v3320 = vrot.slane %v3318, 7
      %v3321 = vshll.u32 %v3211, 16
      %v3323 = vor.u32 %v3320, %v3321
      %v3340 = vsel %vm520, 0, %v3218
      %v3341 = vsel %vm520, 0, %v3225
      %v3342 = vsel %vm520, 0, %v3232
      %v3343 = vsel %vm520, 0, %v3239
      %v3344 = vsel %vm520, 0, %v3246
      %v3345 = vsel %vm520, 0, %v3253
      %v3346 = vsel %vm520, 0, %v3260
      %v3347 = vsel %vm520, 0, %v3267
      %v3348 = vsel %vm520, 0, %v3274
      %v3349 = vsel %vm520, 0, %v3281
      %v3350 = vsel %vm520, 0, %v3288
      %v3351 = vsel %vm520, 0, %v3295
      %v3352 = vsel %vm520, 0, %v3302
      %v3353 = vsel %vm520, 0, %v3309
      %v3354 = vsel %vm520, 0, %v3316
      %v3355 = vsel %vm520, 0, %v3323
      %v3356 = vrot.slane %v3216, 1
      %v3357 = vor.u32 %v3213, %v3356
      %v3358 = vrot.slane %v3223, 1
      %v3359 = vor.u32 %v3220, %v3358
      %v3360 = vrot.slane %v3230, 1
      %v3361 = vor.u32 %v3227, %v3360
      %v3362 = vrot.slane %v3237, 1
      %v3363 = vor.u32 %v3234, %v3362
      %v3364 = vrot.slane %v3244, 1
      %v3365 = vor.u32 %v3241, %v3364
      %v3366 = vrot.slane %v3251, 1
      %v3367 = vor.u32 %v3248, %v3366
      %v3368 = vrot.slane %v3258, 1
      %v3369 = vor.u32 %v3255, %v3368
      %v3370 = vrot.slane %v3265, 1
      %v3371 = vor.u32 %v3262, %v3370
      %v3372 = vrot.slane %v3272, 1
      %v3373 = vor.u32 %v3269, %v3372
      %v3374 = vrot.slane %v3279, 1
      %v3375 = vor.u32 %v3276, %v3374
      %v3376 = vrot.slane %v3286, 1
      %v3377 = vor.u32 %v3283, %v3376
      %v3378 = vrot.slane %v3293, 1
      %v3379 = vor.u32 %v3290, %v3378
      %v3380 = vrot.slane %v3300, 1
      %v3381 = vor.u32 %v3297, %v3380
      %v3382 = vrot.slane %v3307, 1
      %v3383 = vor.u32 %v3304, %v3382
      %v3384 = vrot.slane %v3314, 1
      %v3385 = vor.u32 %v3311, %v3384
      %v3386 = vrot.slane %v3321, 1
      %v3387 = vor.u32 %v3318, %v3386
      %v3404 = vsel %vm587, %v3357, 0
      %v3405 = vsel %vm587, %v3359, 0
      %v3406 = vsel %vm587, %v3361, 0
      %v3407 = vsel %vm587, %v3363, 0
      %v3408 = vsel %vm587, %v3365, 0
      %v3409 = vsel %vm587, %v3367, 0
      %v3410 = vsel %vm587, %v3369, 0
      %v3411 = vsel %vm587, %v3371, 0
      %v3412 = vsel %vm587, %v3373, 0
      %v3413 = vsel %vm587, %v3375, 0
      %v3414 = vsel %vm587, %v3377, 0
      %v3415 = vsel %vm587, %v3379, 0
      %v3416 = vsel %vm587, %v3381, 0
      %v3417 = vsel %vm587, %v3383, 0
      %v3418 = vsel %vm587, %v3385, 0
      %v3419 = vsel %vm587, %v3387, 0
      %s3420 = scalar_lea.vmem %s3, 192
      %v3421 = vld [vmem:[%s3420] sm:$0xf]
      %v3422 = vld [vmem:[%s3420 + $0x4] sm:$0xf]
      %v3423 = vld [vmem:[%s3420 + $0x8] sm:$0xf]
      %v3424 = vld [vmem:[%s3420 + $0xc] sm:$0xf]
      %v3425 = vld [vmem:[%s3420 + $0x10] sm:$0xf]
      %v3426 = vld [vmem:[%s3420 + $0x14] sm:$0xf]
      %v3427 = vld [vmem:[%s3420 + $0x18] sm:$0xf]
      %v3428 = vld [vmem:[%s3420 + $0x1c] sm:$0xf]
      %v3429 = vld [vmem:[%s3420 + $0x20] sm:$0xf]
      %v3430 = vld [vmem:[%s3420 + $0x24] sm:$0xf]
      %v3431 = vld [vmem:[%s3420 + $0x28] sm:$0xf]
      %v3432 = vld [vmem:[%s3420 + $0x2c] sm:$0xf]
      %v3433 = vld [vmem:[%s3420 + $0x30] sm:$0xf]
      %v3434 = vld [vmem:[%s3420 + $0x34] sm:$0xf]
      %v3435 = vld [vmem:[%s3420 + $0x38] sm:$0xf]
      %v3436 = vld [vmem:[%s3420 + $0x3c] sm:$0xf]
      %v3437 = vld [vmem:[%s3420 + $0x40] sm:$0xf]
      %v3438 = vld [vmem:[%s3420 + $0x44] sm:$0xf]
      %v3439 = vld [vmem:[%s3420 + $0x48] sm:$0xf]
      %v3440 = vld [vmem:[%s3420 + $0x4c] sm:$0xf]
      %v3441 = vld [vmem:[%s3420 + $0x50] sm:$0xf]
      %v3442 = vld [vmem:[%s3420 + $0x54] sm:$0xf]
      %v3443 = vld [vmem:[%s3420 + $0x58] sm:$0xf]
      %v3444 = vld [vmem:[%s3420 + $0x5c] sm:$0xf]
      %v3445 = vld [vmem:[%s3420 + $0x60] sm:$0xf]
      %v3446 = vld [vmem:[%s3420 + $0x64] sm:$0xf]
      %v3447 = vld [vmem:[%s3420 + $0x68] sm:$0xf]
      %v3448 = vld [vmem:[%s3420 + $0x6c] sm:$0xf]
      %v3449 = vld [vmem:[%s3420 + $0x70] sm:$0xf]
      %v3450 = vld [vmem:[%s3420 + $0x74] sm:$0xf]
      %v3451 = vld [vmem:[%s3420 + $0x78] sm:$0xf]
      %v3452 = vld [vmem:[%s3420 + $0x7c] sm:$0xf]
      %v3453 = vld [vmem:[%s3420 + $0x80] sm:$0xf]
      %v3454 = vld [vmem:[%s3420 + $0x84] sm:$0xf]
      %v3455 = vld [vmem:[%s3420 + $0x88] sm:$0xf]
      %v3456 = vld [vmem:[%s3420 + $0x8c] sm:$0xf]
      %v3457 = vld [vmem:[%s3420 + $0x90] sm:$0xf]
      %v3458 = vld [vmem:[%s3420 + $0x94] sm:$0xf]
      %v3459 = vld [vmem:[%s3420 + $0x98] sm:$0xf]
      %v3460 = vld [vmem:[%s3420 + $0x9c] sm:$0xf]
      %v3461 = vld [vmem:[%s3420 + $0xa0] sm:$0xf]
      %v3462 = vld [vmem:[%s3420 + $0xa4] sm:$0xf]
      %v3463 = vld [vmem:[%s3420 + $0xa8] sm:$0xf]
      %v3464 = vld [vmem:[%s3420 + $0xac] sm:$0xf]
      %v3465 = vld [vmem:[%s3420 + $0xb0] sm:$0xf]
      %v3466 = vld [vmem:[%s3420 + $0xb4] sm:$0xf]
      %v3467 = vld [vmem:[%s3420 + $0xb8] sm:$0xf]
      %v3468 = vld [vmem:[%s3420 + $0xbc] sm:$0xf]
      %v3517 = vunpack.c.l.b16 %v3421
      %v3518 = vunpack.c.l.b16 %v3422
      %v3519 = vunpack.c.l.b16 %v3423
      %v3520 = vunpack.c.l.b16 %v3424
      %v3521 = vunpack.c.l.b16 %v3425
      %v3522 = vunpack.c.l.b16 %v3426
      %v3523 = vunpack.c.l.b16 %v3427
      %v3524 = vunpack.c.l.b16 %v3428
      %v3525 = vunpack.c.l.b16 %v3429
      %v3526 = vunpack.c.l.b16 %v3430
      %v3527 = vunpack.c.l.b16 %v3431
      %v3528 = vunpack.c.l.b16 %v3432
      %v3529 = vunpack.c.l.b16 %v3433
      %v3530 = vunpack.c.l.b16 %v3434
      %v3531 = vunpack.c.l.b16 %v3435
      %v3532 = vunpack.c.l.b16 %v3436
      %v3533 = vunpack.c.l.b16 %v3437
      %v3534 = vunpack.c.l.b16 %v3438
      %v3535 = vunpack.c.l.b16 %v3439
      %v3536 = vunpack.c.l.b16 %v3440
      %v3537 = vunpack.c.l.b16 %v3441
      %v3538 = vunpack.c.l.b16 %v3442
      %v3539 = vunpack.c.l.b16 %v3443
      %v3540 = vunpack.c.l.b16 %v3444
      %v3541 = vunpack.c.l.b16 %v3445
      %v3542 = vunpack.c.l.b16 %v3446
      %v3543 = vunpack.c.l.b16 %v3447
      %v3544 = vunpack.c.l.b16 %v3448
      %v3545 = vunpack.c.l.b16 %v3449
      %v3546 = vunpack.c.l.b16 %v3450
      %v3547 = vunpack.c.l.b16 %v3451
      %v3548 = vunpack.c.l.b16 %v3452
      %v3549 = vunpack.c.l.b16 %v3453
      %v3550 = vunpack.c.l.b16 %v3454
      %v3551 = vunpack.c.l.b16 %v3455
      %v3552 = vunpack.c.l.b16 %v3456
      %v3553 = vunpack.c.l.b16 %v3457
      %v3554 = vunpack.c.l.b16 %v3458
      %v3555 = vunpack.c.l.b16 %v3459
      %v3556 = vunpack.c.l.b16 %v3460
      %v3557 = vunpack.c.l.b16 %v3461
      %v3558 = vunpack.c.l.b16 %v3462
      %v3559 = vunpack.c.l.b16 %v3463
      %v3560 = vunpack.c.l.b16 %v3464
      %v3561 = vunpack.c.l.b16 %v3465
      %v3562 = vunpack.c.l.b16 %v3466
      %v3563 = vunpack.c.l.b16 %v3467
      %v3564 = vunpack.c.l.b16 %v3468
      %v3565 = vpack.c.b16 %v3518, %v3517
      %v3566 = vpack.c.b16 %v3520, %v3519
      %v3567 = vpack.c.b16 %v3522, %v3521
      %v3568 = vpack.c.b16 %v3524, %v3523
      %v3569 = vpack.c.b16 %v3526, %v3525
      %v3570 = vpack.c.b16 %v3528, %v3527
      %v3571 = vpack.c.b16 %v3530, %v3529
      %v3572 = vpack.c.b16 %v3532, %v3531
      %v3573 = vpack.c.b16 %v3534, %v3533
      %v3574 = vpack.c.b16 %v3536, %v3535
      %v3575 = vpack.c.b16 %v3538, %v3537
      %v3576 = vpack.c.b16 %v3540, %v3539
      %v3577 = vpack.c.b16 %v3542, %v3541
      %v3578 = vpack.c.b16 %v3544, %v3543
      %v3579 = vpack.c.b16 %v3546, %v3545
      %v3580 = vpack.c.b16 %v3548, %v3547
      %v3581 = vpack.c.b16 %v3550, %v3549
      %v3582 = vpack.c.b16 %v3552, %v3551
      %v3583 = vpack.c.b16 %v3554, %v3553
      %v3584 = vpack.c.b16 %v3556, %v3555
      %v3585 = vpack.c.b16 %v3558, %v3557
      %v3586 = vpack.c.b16 %v3560, %v3559
      %v3587 = vpack.c.b16 %v3562, %v3561
      %v3588 = vpack.c.b16 %v3564, %v3563
      %3613 = vmatprep.subr.bf16.mxu0 0
      %3614 = vmatpush1.bf16.msra.mxu0 %v3565
      %3615 = vmatprep.subr.bf16.mxu0 0
      %3616 = vmatpush1.bf16.msra.mxu0 %v3566
      %3617 = vmatprep.subr.bf16.mxu0 0
      %3618 = vmatpush1.bf16.msra.mxu0 %v3567
      %3619 = vmatprep.subr.bf16.mxu0 0
      %3620 = vmatpush1.bf16.msra.mxu0 %v3568
      %3621 = vmatprep.subr.bf16.mxu0 0
      %3622 = vmatpush1.bf16.msra.mxu0 %v3569
      %3623 = vmatprep.subr.bf16.mxu0 0
      %3624 = vmatpush1.bf16.msra.mxu0 %v3570
      %3625 = vmatprep.subr.bf16.mxu0 0
      %3626 = vmatpush1.bf16.msra.mxu0 %v3571
      %3627 = vmatprep.subr.bf16.mxu0 0
      %3628 = vmatpush1.bf16.msra.mxu0 %v3572
      %3629 = vmatprep.subr.bf16.mxu0 0
      %3630 = vmatpush1.bf16.msra.mxu0 %v3573
      %3631 = vmatprep.subr.bf16.mxu0 0
      %3632 = vmatpush1.bf16.msra.mxu0 %v3574
      %3633 = vmatprep.subr.bf16.mxu0 0
      %3634 = vmatpush1.bf16.msra.mxu0 %v3575
      %3635 = vmatprep.subr.bf16.mxu0 0
      %3636 = vmatpush1.bf16.msra.mxu0 %v3576
      %3637 = vmatprep.subr.bf16.mxu0 0
      %3638 = vmatpush1.bf16.msra.mxu0 %v3577
      %3639 = vmatprep.subr.bf16.mxu0 0
      %3640 = vmatpush1.bf16.msra.mxu0 %v3578
      %3641 = vmatprep.subr.bf16.mxu0 0
      %3642 = vmatpush1.bf16.msra.mxu0 %v3579
      %3643 = vmatprep.subr.bf16.mxu0 0
      %3644 = vmatpush1.bf16.msra.mxu0 %v3580
      %3645 = vmatprep.mubr.bf16.mxu0 %v3196
      %3646 = vmatmul.mubr.bf16.gmra.mrb[0].mxu0 %v3340
      %v3647 = vpop.f32.mrb[0].mxu0
      %v3648 = vadd.f32 0.0, %v3647
      %v3649 = vpop.f32.mrb[0].mxu0
      %v3650 = vpop.f32.mrb[0].mxu0
      %v3651 = vadd.f32 0.0, %v3650
      %v3652 = vpop.f32.mrb[0].mxu0
      %3653 = vmatprep.mubr.bf16.mxu0 %v3197
      %3654 = vmatmul.mubr.bf16.gmra.mrb[0].mxu0 %v3341
      %v3655 = vpop.f32.mrb[0].mxu0
      %v3656 = vadd.f32 0.0, %v3655
      %v3657 = vpop.f32.mrb[0].mxu0
      %v3658 = vpop.f32.mrb[0].mxu0
      %v3659 = vadd.f32 0.0, %v3658
      %v3660 = vpop.f32.mrb[0].mxu0
      %3661 = vmatprep.mubr.bf16.mxu0 %v3198
      %3662 = vmatmul.mubr.bf16.gmra.mrb[0].mxu0 %v3342
      %v3663 = vpop.f32.mrb[0].mxu0
      %v3664 = vadd.f32 0.0, %v3663
      %v3665 = vpop.f32.mrb[0].mxu0
      %v3666 = vpop.f32.mrb[0].mxu0
      %v3667 = vadd.f32 0.0, %v3666
      %v3668 = vpop.f32.mrb[0].mxu0
      %3669 = vmatprep.mubr.bf16.mxu0 %v3199
      %3670 = vmatmul.mubr.bf16.gmra.mrb[0].mxu0 %v3343
      %v3671 = vpop.f32.mrb[0].mxu0
      %v3672 = vadd.f32 0.0, %v3671
      %v3673 = vpop.f32.mrb[0].mxu0
      %v3674 = vpop.f32.mrb[0].mxu0
      %v3675 = vadd.f32 0.0, %v3674
      %v3676 = vpop.f32.mrb[0].mxu0
      %3677 = vmatprep.mubr.bf16.mxu0 %v3200
      %3678 = vmatmul.mubr.bf16.gmra.mrb[0].mxu0 %v3344
      %v3679 = vpop.f32.mrb[0].mxu0
      %v3680 = vadd.f32 0.0, %v3679
      %v3681 = vpop.f32.mrb[0].mxu0
      %v3682 = vpop.f32.mrb[0].mxu0
      %v3683 = vadd.f32 0.0, %v3682
      %v3684 = vpop.f32.mrb[0].mxu0
      %3685 = vmatprep.mubr.bf16.mxu0 %v3201
      %3686 = vmatmul.mubr.bf16.gmra.mrb[0].mxu0 %v3345
      %v3687 = vpop.f32.mrb[0].mxu0
      %v3688 = vadd.f32 0.0, %v3687
      %v3689 = vpop.f32.mrb[0].mxu0
      %v3690 = vpop.f32.mrb[0].mxu0
      %v3691 = vadd.f32 0.0, %v3690
      %v3692 = vpop.f32.mrb[0].mxu0
      %3693 = vmatprep.mubr.bf16.mxu0 %v3202
      %3694 = vmatmul.mubr.bf16.gmra.mrb[0].mxu0 %v3346
      %v3695 = vpop.f32.mrb[0].mxu0
      %v3696 = vadd.f32 0.0, %v3695
      %v3697 = vpop.f32.mrb[0].mxu0
      %v3698 = vpop.f32.mrb[0].mxu0
      %v3699 = vadd.f32 0.0, %v3698
      %v3700 = vpop.f32.mrb[0].mxu0
      %3701 = vmatprep.mubr.bf16.mxu0 %v3203
      %3702 = vmatmul.mubr.bf16.gmra.mrb[0].mxu0 %v3347
      %v3703 = vpop.f32.mrb[0].mxu0
      %v3704 = vadd.f32 0.0, %v3703
      %v3705 = vpop.f32.mrb[0].mxu0
      %v3706 = vpop.f32.mrb[0].mxu0
      %v3707 = vadd.f32 0.0, %v3706
      %v3708 = vpop.f32.mrb[0].mxu0
      %3709 = vmatprep.mubr.bf16.mxu0 %v3204
      %3710 = vmatmul.mubr.bf16.gmra.mrb[0].mxu0 %v3348
      %v3711 = vpop.f32.mrb[0].mxu0
      %v3712 = vadd.f32 0.0, %v3711
      %v3713 = vpop.f32.mrb[0].mxu0
      %v3714 = vpop.f32.mrb[0].mxu0
      %v3715 = vadd.f32 0.0, %v3714
      %v3716 = vpop.f32.mrb[0].mxu0
      %3717 = vmatprep.mubr.bf16.mxu0 %v3205
      %3718 = vmatmul.mubr.bf16.gmra.mrb[0].mxu0 %v3349
      %v3719 = vpop.f32.mrb[0].mxu0
      %v3720 = vadd.f32 0.0, %v3719
      %v3721 = vpop.f32.mrb[0].mxu0
      %v3722 = vpop.f32.mrb[0].mxu0
      %v3723 = vadd.f32 0.0, %v3722
      %v3724 = vpop.f32.mrb[0].mxu0
      %3725 = vmatprep.mubr.bf16.mxu0 %v3206
      %3726 = vmatmul.mubr.bf16.gmra.mrb[0].mxu0 %v3350
      %v3727 = vpop.f32.mrb[0].mxu0
      %v3728 = vadd.f32 0.0, %v3727
      %v3729 = vpop.f32.mrb[0].mxu0
      %v3730 = vpop.f32.mrb[0].mxu0
      %v3731 = vadd.f32 0.0, %v3730
      %v3732 = vpop.f32.mrb[0].mxu0
      %3733 = vmatprep.mubr.bf16.mxu0 %v3207
      %3734 = vmatmul.mubr.bf16.gmra.mrb[0].mxu0 %v3351
      %v3735 = vpop.f32.mrb[0].mxu0
      %v3736 = vadd.f32 0.0, %v3735
      %v3737 = vpop.f32.mrb[0].mxu0
      %v3738 = vpop.f32.mrb[0].mxu0
      %v3739 = vadd.f32 0.0, %v3738
      %v3740 = vpop.f32.mrb[0].mxu0
      %3741 = vmatprep.mubr.bf16.mxu0 %v3208
      %3742 = vmatmul.mubr.bf16.gmra.mrb[0].mxu0 %v3352
      %v3743 = vpop.f32.mrb[0].mxu0
      %v3744 = vadd.f32 0.0, %v3743
      %v3745 = vpop.f32.mrb[0].mxu0
      %v3746 = vpop.f32.mrb[0].mxu0
      %v3747 = vadd.f32 0.0, %v3746
      %v3748 = vpop.f32.mrb[0].mxu0
      %3749 = vmatprep.mubr.bf16.mxu0 %v3209
      %3750 = vmatmul.mubr.bf16.gmra.mrb[0].mxu0 %v3353
      %v3751 = vpop.f32.mrb[0].mxu0
      %v3752 = vadd.f32 0.0, %v3751
      %v3753 = vpop.f32.mrb[0].mxu0
      %v3754 = vpop.f32.mrb[0].mxu0
      %v3755 = vadd.f32 0.0, %v3754
      %v3756 = vpop.f32.mrb[0].mxu0
      %3757 = vmatprep.mubr.bf16.mxu0 %v3210
      %3758 = vmatmul.mubr.bf16.gmra.mrb[0].mxu0 %v3354
      %v3759 = vpop.f32.mrb[0].mxu0
      %v3760 = vadd.f32 0.0, %v3759
      %v3761 = vpop.f32.mrb[0].mxu0
      %v3762 = vpop.f32.mrb[0].mxu0
      %v3763 = vadd.f32 0.0, %v3762
      %v3764 = vpop.f32.mrb[0].mxu0
      %3765 = vmatprep.mubr.bf16.mxu0 %v3211
      %3766 = vmatmul.mubr.bf16.gmra.mrb[0].mxu0 %v3355
      %v3767 = vpop.f32.mrb[0].mxu0
      %v3768 = vadd.f32 0.0, %v3767
      %v3769 = vpop.f32.mrb[0].mxu0
      %v3770 = vpop.f32.mrb[0].mxu0
      %v3771 = vadd.f32 0.0, %v3770
      %v3772 = vpop.f32.mrb[0].mxu0
      %3773 = vdwg.mxu0
      %3774 = vmatprep.subr.bf16.mxu0 0
      %3775 = vmatpush1.bf16.msra.mxu0 %v3581
      %3776 = vmatprep.subr.bf16.mxu0 0
      %3777 = vmatpush1.bf16.msra.mxu0 %v3582
      %3778 = vmatprep.subr.bf16.mxu0 0
      %3779 = vmatpush1.bf16.msra.mxu0 %v3583
      %3780 = vmatprep.subr.bf16.mxu0 0
      %3781 = vmatpush1.bf16.msra.mxu0 %v3584
      %3782 = vmatprep.subr.bf16.mxu0 0
      %3783 = vmatpush1.bf16.msra.mxu0 %v3585
      %3784 = vmatprep.subr.bf16.mxu0 0
      %3785 = vmatpush1.bf16.msra.mxu0 %v3586
      %3786 = vmatprep.subr.bf16.mxu0 0
      %3787 = vmatpush1.bf16.msra.mxu0 %v3587
      %3788 = vmatprep.subr.bf16.mxu0 0
      %3789 = vmatpush1.bf16.msra.mxu0 %v3588
      %3790 = vmatprep.subr.bf16.mxu0 0
      %3791 = vmatpush1.bf16.msra.mxu0 0
      %3792 = vmatprep.subr.bf16.mxu0 0
      %3793 = vmatpush1.bf16.msra.mxu0 0
      %3794 = vmatprep.subr.bf16.mxu0 0
      %3795 = vmatpush1.bf16.msra.mxu0 0
      %3796 = vmatprep.subr.bf16.mxu0 0
      %3797 = vmatpush1.bf16.msra.mxu0 0
      %3798 = vmatprep.subr.bf16.mxu0 0
      %3799 = vmatpush1.bf16.msra.mxu0 0
      %3800 = vmatprep.subr.bf16.mxu0 0
      %3801 = vmatpush1.bf16.msra.mxu0 0
      %3802 = vmatprep.subr.bf16.mxu0 0
      %3803 = vmatpush1.bf16.msra.mxu0 0
      %3804 = vmatprep.subr.bf16.mxu0 0
      %3805 = vmatpush1.bf16.msra.mxu0 0
      %3806 = vmatprep.mubr.bf16.mxu0 0
      %3807 = vmatmul.mubr.bf16.gmra.mrb[0].mxu0 %v3404
      %v3808 = vpop.f32.mrb[0].mxu0
      %v3809 = vadd.f32 %v3648, %v3808
      %v3810 = vpop.f32.mrb[0].mxu0
      %v3811 = vpop.f32.mrb[0].mxu0
      %v3812 = vadd.f32 %v3651, %v3811
      %v3813 = vpop.f32.mrb[0].mxu0
      %3814 = vmatprep.mubr.bf16.mxu0 0
      %3815 = vmatmul.mubr.bf16.gmra.mrb[0].mxu0 %v3405
      %v3816 = vpop.f32.mrb[0].mxu0
      %v3817 = vadd.f32 %v3656, %v3816
      %v3818 = vpop.f32.mrb[0].mxu0
      %v3819 = vpop.f32.mrb[0].mxu0
      %v3820 = vadd.f32 %v3659, %v3819
      %v3821 = vpop.f32.mrb[0].mxu0
      %3822 = vmatprep.mubr.bf16.mxu0 0
      %3823 = vmatmul.mubr.bf16.gmra.mrb[0].mxu0 %v3406
      %v3824 = vpop.f32.mrb[0].mxu0
      %v3825 = vadd.f32 %v3664, %v3824
      %v3826 = vpop.f32.mrb[0].mxu0
      %v3827 = vpop.f32.mrb[0].mxu0
      %v3828 = vadd.f32 %v3667, %v3827
      %v3829 = vpop.f32.mrb[0].mxu0
      %3830 = vmatprep.mubr.bf16.mxu0 0
      %3831 = vmatmul.mubr.bf16.gmra.mrb[0].mxu0 %v3407
      %v3832 = vpop.f32.mrb[0].mxu0
      %v3833 = vadd.f32 %v3672, %v3832
      %v3834 = vpop.f32.mrb[0].mxu0
      %v3835 = vpop.f32.mrb[0].mxu0
      %v3836 = vadd.f32 %v3675, %v3835
      %v3837 = vpop.f32.mrb[0].mxu0
      %3838 = vmatprep.mubr.bf16.mxu0 0
      %3839 = vmatmul.mubr.bf16.gmra.mrb[0].mxu0 %v3408
      %v3840 = vpop.f32.mrb[0].mxu0
      %v3841 = vadd.f32 %v3680, %v3840
      %v3842 = vpop.f32.mrb[0].mxu0
      %v3843 = vpop.f32.mrb[0].mxu0
      %v3844 = vadd.f32 %v3683, %v3843
      %v3845 = vpop.f32.mrb[0].mxu0
      %3846 = vmatprep.mubr.bf16.mxu0 0
      %3847 = vmatmul.mubr.bf16.gmra.mrb[0].mxu0 %v3409
      %v3848 = vpop.f32.mrb[0].mxu0
      %v3849 = vadd.f32 %v3688, %v3848
      %v3850 = vpop.f32.mrb[0].mxu0
      %v3851 = vpop.f32.mrb[0].mxu0
      %v3852 = vadd.f32 %v3691, %v3851
      %v3853 = vpop.f32.mrb[0].mxu0
      %3854 = vmatprep.mubr.bf16.mxu0 0
      %3855 = vmatmul.mubr.bf16.gmra.mrb[0].mxu0 %v3410
      %v3856 = vpop.f32.mrb[0].mxu0
      %v3857 = vadd.f32 %v3696, %v3856
      %v3858 = vpop.f32.mrb[0].mxu0
      %v3859 = vpop.f32.mrb[0].mxu0
      %v3860 = vadd.f32 %v3699, %v3859
      %v3861 = vpop.f32.mrb[0].mxu0
      %3862 = vmatprep.mubr.bf16.mxu0 0
      %3863 = vmatmul.mubr.bf16.gmra.mrb[0].mxu0 %v3411
      %v3864 = vpop.f32.mrb[0].mxu0
      %v3865 = vadd.f32 %v3704, %v3864
      %v3866 = vpop.f32.mrb[0].mxu0
      %v3867 = vpop.f32.mrb[0].mxu0
      %v3868 = vadd.f32 %v3707, %v3867
      %v3869 = vpop.f32.mrb[0].mxu0
      %3870 = vmatprep.mubr.bf16.mxu0 0
      %3871 = vmatmul.mubr.bf16.gmra.mrb[0].mxu0 %v3412
      %v3872 = vpop.f32.mrb[0].mxu0
      %v3873 = vadd.f32 %v3712, %v3872
      %v3874 = vpop.f32.mrb[0].mxu0
      %v3875 = vpop.f32.mrb[0].mxu0
      %v3876 = vadd.f32 %v3715, %v3875
      %v3877 = vpop.f32.mrb[0].mxu0
      %3878 = vmatprep.mubr.bf16.mxu0 0
      %3879 = vmatmul.mubr.bf16.gmra.mrb[0].mxu0 %v3413
      %v3880 = vpop.f32.mrb[0].mxu0
      %v3881 = vadd.f32 %v3720, %v3880
      %v3882 = vpop.f32.mrb[0].mxu0
      %v3883 = vpop.f32.mrb[0].mxu0
      %v3884 = vadd.f32 %v3723, %v3883
      %v3885 = vpop.f32.mrb[0].mxu0
      %3886 = vmatprep.mubr.bf16.mxu0 0
      %3887 = vmatmul.mubr.bf16.gmra.mrb[0].mxu0 %v3414
      %v3888 = vpop.f32.mrb[0].mxu0
      %v3889 = vadd.f32 %v3728, %v3888
      %v3890 = vpop.f32.mrb[0].mxu0
      %v3891 = vpop.f32.mrb[0].mxu0
      %v3892 = vadd.f32 %v3731, %v3891
      %v3893 = vpop.f32.mrb[0].mxu0
      %3894 = vmatprep.mubr.bf16.mxu0 0
      %3895 = vmatmul.mubr.bf16.gmra.mrb[0].mxu0 %v3415
      %v3896 = vpop.f32.mrb[0].mxu0
      %v3897 = vadd.f32 %v3736, %v3896
      %v3898 = vpop.f32.mrb[0].mxu0
      %v3899 = vpop.f32.mrb[0].mxu0
      %v3900 = vadd.f32 %v3739, %v3899
      %v3901 = vpop.f32.mrb[0].mxu0
      %3902 = vmatprep.mubr.bf16.mxu0 0
      %3903 = vmatmul.mubr.bf16.gmra.mrb[0].mxu0 %v3416
      %v3904 = vpop.f32.mrb[0].mxu0
      %v3905 = vadd.f32 %v3744, %v3904
      %v3906 = vpop.f32.mrb[0].mxu0
      %v3907 = vpop.f32.mrb[0].mxu0
      %v3908 = vadd.f32 %v3747, %v3907
      %v3909 = vpop.f32.mrb[0].mxu0
      %3910 = vmatprep.mubr.bf16.mxu0 0
      %3911 = vmatmul.mubr.bf16.gmra.mrb[0].mxu0 %v3417
      %v3912 = vpop.f32.mrb[0].mxu0
      %v3913 = vadd.f32 %v3752, %v3912
      %v3914 = vpop.f32.mrb[0].mxu0
      %v3915 = vpop.f32.mrb[0].mxu0
      %v3916 = vadd.f32 %v3755, %v3915
      %v3917 = vpop.f32.mrb[0].mxu0
      %3918 = vmatprep.mubr.bf16.mxu0 0
      %3919 = vmatmul.mubr.bf16.gmra.mrb[0].mxu0 %v3418
      %v3920 = vpop.f32.mrb[0].mxu0
      %v3921 = vadd.f32 %v3760, %v3920
      %v3922 = vpop.f32.mrb[0].mxu0
      %v3923 = vpop.f32.mrb[0].mxu0
      %v3924 = vadd.f32 %v3763, %v3923
      %v3925 = vpop.f32.mrb[0].mxu0
      %3926 = vmatprep.mubr.bf16.mxu0 0
      %3927 = vmatmul.mubr.bf16.gmra.mrb[0].mxu0 %v3419
      %v3928 = vpop.f32.mrb[0].mxu0
      %v3929 = vadd.f32 %v3768, %v3928
      %v3930 = vpop.f32.mrb[0].mxu0
      %v3931 = vpop.f32.mrb[0].mxu0
      %v3932 = vadd.f32 %v3771, %v3931
      %v3933 = vpop.f32.mrb[0].mxu0
      %3934 = vdwg.mxu0
      %v3983 = vunpack.c.l.b16 %v3148
      %v3984 = vunpack.c.l.b16 %v3149
      %v3985 = vunpack.c.l.b16 %v3150
      %v3986 = vunpack.c.l.b16 %v3151
      %v3987 = vunpack.c.l.b16 %v3152
      %v3988 = vunpack.c.l.b16 %v3153
      %v3989 = vunpack.c.l.b16 %v3154
      %v3990 = vunpack.c.l.b16 %v3155
      %v3991 = vunpack.c.l.b16 %v3156
      %v3992 = vunpack.c.l.b16 %v3157
      %v3993 = vunpack.c.l.b16 %v3158
      %v3994 = vunpack.c.l.b16 %v3159
      %v3995 = vunpack.c.l.b16 %v3160
      %v3996 = vunpack.c.l.b16 %v3161
      %v3997 = vunpack.c.l.b16 %v3162
      %v3998 = vunpack.c.l.b16 %v3163
      %v3999 = vunpack.c.l.b16 %v3164
      %v4000 = vunpack.c.l.b16 %v3165
      %v4001 = vunpack.c.l.b16 %v3166
      %v4002 = vunpack.c.l.b16 %v3167
      %v4003 = vunpack.c.l.b16 %v3168
      %v4004 = vunpack.c.l.b16 %v3169
      %v4005 = vunpack.c.l.b16 %v3170
      %v4006 = vunpack.c.l.b16 %v3171
      %v4007 = vunpack.c.l.b16 %v3172
      %v4008 = vunpack.c.l.b16 %v3173
      %v4009 = vunpack.c.l.b16 %v3174
      %v4010 = vunpack.c.l.b16 %v3175
      %v4011 = vunpack.c.l.b16 %v3176
      %v4012 = vunpack.c.l.b16 %v3177
      %v4013 = vunpack.c.l.b16 %v3178
      %v4014 = vunpack.c.l.b16 %v3179
      %v4015 = vunpack.c.l.b16 %v3180
      %v4016 = vunpack.c.l.b16 %v3181
      %v4017 = vunpack.c.l.b16 %v3182
      %v4018 = vunpack.c.l.b16 %v3183
      %v4019 = vunpack.c.l.b16 %v3184
      %v4020 = vunpack.c.l.b16 %v3185
      %v4021 = vunpack.c.l.b16 %v3186
      %v4022 = vunpack.c.l.b16 %v3187
      %v4023 = vunpack.c.l.b16 %v3188
      %v4024 = vunpack.c.l.b16 %v3189
      %v4025 = vunpack.c.l.b16 %v3190
      %v4026 = vunpack.c.l.b16 %v3191
      %v4027 = vunpack.c.l.b16 %v3192
      %v4028 = vunpack.c.l.b16 %v3193
      %v4029 = vunpack.c.l.b16 %v3194
      %v4030 = vunpack.c.l.b16 %v3195
      %v4031 = vpack.c.b16 %v3984, %v3983
      %v4032 = vpack.c.b16 %v3986, %v3985
      %v4033 = vpack.c.b16 %v3988, %v3987
      %v4034 = vpack.c.b16 %v3990, %v3989
      %v4035 = vpack.c.b16 %v3992, %v3991
      %v4036 = vpack.c.b16 %v3994, %v3993
      %v4037 = vpack.c.b16 %v3996, %v3995
      %v4038 = vpack.c.b16 %v3998, %v3997
      %v4039 = vpack.c.b16 %v4000, %v3999
      %v4040 = vpack.c.b16 %v4002, %v4001
      %v4041 = vpack.c.b16 %v4004, %v4003
      %v4042 = vpack.c.b16 %v4006, %v4005
      %v4043 = vpack.c.b16 %v4008, %v4007
      %v4044 = vpack.c.b16 %v4010, %v4009
      %v4045 = vpack.c.b16 %v4012, %v4011
      %v4046 = vpack.c.b16 %v4014, %v4013
      %v4047 = vpack.c.b16 %v4016, %v4015
      %v4048 = vpack.c.b16 %v4018, %v4017
      %v4049 = vpack.c.b16 %v4020, %v4019
      %v4050 = vpack.c.b16 %v4022, %v4021
      %v4051 = vpack.c.b16 %v4024, %v4023
      %v4052 = vpack.c.b16 %v4026, %v4025
      %v4053 = vpack.c.b16 %v4028, %v4027
      %v4054 = vpack.c.b16 %v4030, %v4029
      %4079 = vmatprep.subr.bf16.mxu0 0
      %4080 = vmatpush1.bf16.msra.mxu0 %v4031
      %4081 = vmatprep.subr.bf16.mxu0 0
      %4082 = vmatpush1.bf16.msra.mxu0 %v4032
      %4083 = vmatprep.subr.bf16.mxu0 0
      %4084 = vmatpush1.bf16.msra.mxu0 %v4033
      %4085 = vmatprep.subr.bf16.mxu0 0
      %4086 = vmatpush1.bf16.msra.mxu0 %v4034
      %4087 = vmatprep.subr.bf16.mxu0 0
      %4088 = vmatpush1.bf16.msra.mxu0 %v4035
      %4089 = vmatprep.subr.bf16.mxu0 0
      %4090 = vmatpush1.bf16.msra.mxu0 %v4036
      %4091 = vmatprep.subr.bf16.mxu0 0
      %4092 = vmatpush1.bf16.msra.mxu0 %v4037
      %4093 = vmatprep.subr.bf16.mxu0 0
      %4094 = vmatpush1.bf16.msra.mxu0 %v4038
      %4095 = vmatprep.subr.bf16.mxu0 0
      %4096 = vmatpush1.bf16.msra.mxu0 %v4039
      %4097 = vmatprep.subr.bf16.mxu0 0
      %4098 = vmatpush1.bf16.msra.mxu0 %v4040
      %4099 = vmatprep.subr.bf16.mxu0 0
      %4100 = vmatpush1.bf16.msra.mxu0 %v4041
      %4101 = vmatprep.subr.bf16.mxu0 0
      %4102 = vmatpush1.bf16.msra.mxu0 %v4042
      %4103 = vmatprep.subr.bf16.mxu0 0
      %4104 = vmatpush1.bf16.msra.mxu0 %v4043
      %4105 = vmatprep.subr.bf16.mxu0 0
      %4106 = vmatpush1.bf16.msra.mxu0 %v4044
      %4107 = vmatprep.subr.bf16.mxu0 0
      %4108 = vmatpush1.bf16.msra.mxu0 %v4045
      %4109 = vmatprep.subr.bf16.mxu0 0
      %4110 = vmatpush1.bf16.msra.mxu0 %v4046
      %4111 = vmatprep.mubr.bf16.mxu0 %v2924
      %4112 = vmatmul.mubr.bf16.gmra.mrb[0].mxu0 %v3068
      %v4113 = vpop.f32.mrb[0].mxu0
      %v4114 = vadd.f32 %v3809, %v4113
      %v4115 = vpop.f32.mrb[0].mxu0
      %v4116 = vpop.f32.mrb[0].mxu0
      %v4117 = vadd.f32 %v3812, %v4116
      %v4118 = vpop.f32.mrb[0].mxu0
      %4119 = vmatprep.mubr.bf16.mxu0 %v2925
      %4120 = vmatmul.mubr.bf16.gmra.mrb[0].mxu0 %v3069
      %v4121 = vpop.f32.mrb[0].mxu0
      %v4122 = vadd.f32 %v3817, %v4121
      %v4123 = vpop.f32.mrb[0].mxu0
      %v4124 = vpop.f32.mrb[0].mxu0
      %v4125 = vadd.f32 %v3820, %v4124
      %v4126 = vpop.f32.mrb[0].mxu0
      %4127 = vmatprep.mubr.bf16.mxu0 %v2926
      %4128 = vmatmul.mubr.bf16.gmra.mrb[0].mxu0 %v3070
      %v4129 = vpop.f32.mrb[0].mxu0
      %v4130 = vadd.f32 %v3825, %v4129
      %v4131 = vpop.f32.mrb[0].mxu0
      %v4132 = vpop.f32.mrb[0].mxu0
      %v4133 = vadd.f32 %v3828, %v4132
      %v4134 = vpop.f32.mrb[0].mxu0
      %4135 = vmatprep.mubr.bf16.mxu0 %v2927
      %4136 = vmatmul.mubr.bf16.gmra.mrb[0].mxu0 %v3071
      %v4137 = vpop.f32.mrb[0].mxu0
      %v4138 = vadd.f32 %v3833, %v4137
      %v4139 = vpop.f32.mrb[0].mxu0
      %v4140 = vpop.f32.mrb[0].mxu0
      %v4141 = vadd.f32 %v3836, %v4140
      %v4142 = vpop.f32.mrb[0].mxu0
      %4143 = vmatprep.mubr.bf16.mxu0 %v2928
      %4144 = vmatmul.mubr.bf16.gmra.mrb[0].mxu0 %v3072
      %v4145 = vpop.f32.mrb[0].mxu0
      %v4146 = vadd.f32 %v3841, %v4145
      %v4147 = vpop.f32.mrb[0].mxu0
      %v4148 = vpop.f32.mrb[0].mxu0
      %v4149 = vadd.f32 %v3844, %v4148
      %v4150 = vpop.f32.mrb[0].mxu0
      %4151 = vmatprep.mubr.bf16.mxu0 %v2929
      %4152 = vmatmul.mubr.bf16.gmra.mrb[0].mxu0 %v3073
      %v4153 = vpop.f32.mrb[0].mxu0
      %v4154 = vadd.f32 %v3849, %v4153
      %v4155 = vpop.f32.mrb[0].mxu0
      %v4156 = vpop.f32.mrb[0].mxu0
      %v4157 = vadd.f32 %v3852, %v4156
      %v4158 = vpop.f32.mrb[0].mxu0
      %4159 = vmatprep.mubr.bf16.mxu0 %v2930
      %4160 = vmatmul.mubr.bf16.gmra.mrb[0].mxu0 %v3074
      %v4161 = vpop.f32.mrb[0].mxu0
      %v4162 = vadd.f32 %v3857, %v4161
      %v4163 = vpop.f32.mrb[0].mxu0
      %v4164 = vpop.f32.mrb[0].mxu0
      %v4165 = vadd.f32 %v3860, %v4164
      %v4166 = vpop.f32.mrb[0].mxu0
      %4167 = vmatprep.mubr.bf16.mxu0 %v2931
      %4168 = vmatmul.mubr.bf16.gmra.mrb[0].mxu0 %v3075
      %v4169 = vpop.f32.mrb[0].mxu0
      %v4170 = vadd.f32 %v3865, %v4169
      %v4171 = vpop.f32.mrb[0].mxu0
      %v4172 = vpop.f32.mrb[0].mxu0
      %v4173 = vadd.f32 %v3868, %v4172
      %v4174 = vpop.f32.mrb[0].mxu0
      %4175 = vmatprep.mubr.bf16.mxu0 %v2932
      %4176 = vmatmul.mubr.bf16.gmra.mrb[0].mxu0 %v3076
      %v4177 = vpop.f32.mrb[0].mxu0
      %v4178 = vadd.f32 %v3873, %v4177
      %v4179 = vpop.f32.mrb[0].mxu0
      %v4180 = vpop.f32.mrb[0].mxu0
      %v4181 = vadd.f32 %v3876, %v4180
      %v4182 = vpop.f32.mrb[0].mxu0
      %4183 = vmatprep.mubr.bf16.mxu0 %v2933
      %4184 = vmatmul.mubr.bf16.gmra.mrb[0].mxu0 %v3077
      %v4185 = vpop.f32.mrb[0].mxu0
      %v4186 = vadd.f32 %v3881, %v4185
      %v4187 = vpop.f32.mrb[0].mxu0
      %v4188 = vpop.f32.mrb[0].mxu0
      %v4189 = vadd.f32 %v3884, %v4188
      %v4190 = vpop.f32.mrb[0].mxu0
      %4191 = vmatprep.mubr.bf16.mxu0 %v2934
      %4192 = vmatmul.mubr.bf16.gmra.mrb[0].mxu0 %v3078
      %v4193 = vpop.f32.mrb[0].mxu0
      %v4194 = vadd.f32 %v3889, %v4193
      %v4195 = vpop.f32.mrb[0].mxu0
      %v4196 = vpop.f32.mrb[0].mxu0
      %v4197 = vadd.f32 %v3892, %v4196
      %v4198 = vpop.f32.mrb[0].mxu0
      %4199 = vmatprep.mubr.bf16.mxu0 %v2935
      %4200 = vmatmul.mubr.bf16.gmra.mrb[0].mxu0 %v3079
      %v4201 = vpop.f32.mrb[0].mxu0
      %v4202 = vadd.f32 %v3897, %v4201
      %v4203 = vpop.f32.mrb[0].mxu0
      %v4204 = vpop.f32.mrb[0].mxu0
      %v4205 = vadd.f32 %v3900, %v4204
      %v4206 = vpop.f32.mrb[0].mxu0
      %4207 = vmatprep.mubr.bf16.mxu0 %v2936
      %4208 = vmatmul.mubr.bf16.gmra.mrb[0].mxu0 %v3080
      %v4209 = vpop.f32.mrb[0].mxu0
      %v4210 = vadd.f32 %v3905, %v4209
      %v4211 = vpop.f32.mrb[0].mxu0
      %v4212 = vpop.f32.mrb[0].mxu0
      %v4213 = vadd.f32 %v3908, %v4212
      %v4214 = vpop.f32.mrb[0].mxu0
      %4215 = vmatprep.mubr.bf16.mxu0 %v2937
      %4216 = vmatmul.mubr.bf16.gmra.mrb[0].mxu0 %v3081
      %v4217 = vpop.f32.mrb[0].mxu0
      %v4218 = vadd.f32 %v3913, %v4217
      %v4219 = vpop.f32.mrb[0].mxu0
      %v4220 = vpop.f32.mrb[0].mxu0
      %v4221 = vadd.f32 %v3916, %v4220
      %v4222 = vpop.f32.mrb[0].mxu0
      %4223 = vmatprep.mubr.bf16.mxu0 %v2938
      %4224 = vmatmul.mubr.bf16.gmra.mrb[0].mxu0 %v3082
      %v4225 = vpop.f32.mrb[0].mxu0
      %v4226 = vadd.f32 %v3921, %v4225
      %v4227 = vpop.f32.mrb[0].mxu0
      %v4228 = vpop.f32.mrb[0].mxu0
      %v4229 = vadd.f32 %v3924, %v4228
      %v4230 = vpop.f32.mrb[0].mxu0
      %4231 = vmatprep.mubr.bf16.mxu0 %v2939
      %4232 = vmatmul.mubr.bf16.gmra.mrb[0].mxu0 %v3083
      %v4233 = vpop.f32.mrb[0].mxu0
      %v4234 = vadd.f32 %v3929, %v4233
      %v4235 = vpop.f32.mrb[0].mxu0
      %v4236 = vpop.f32.mrb[0].mxu0
      %v4237 = vadd.f32 %v3932, %v4236
      %v4238 = vpop.f32.mrb[0].mxu0
      %4239 = vdwg.mxu0
      %4240 = vmatprep.subr.bf16.mxu0 0
      %4241 = vmatpush1.bf16.msra.mxu0 %v4047
      %4242 = vmatprep.subr.bf16.mxu0 0
      %4243 = vmatpush1.bf16.msra.mxu0 %v4048
      %4244 = vmatprep.subr.bf16.mxu0 0
      %4245 = vmatpush1.bf16.msra.mxu0 %v4049
      %4246 = vmatprep.subr.bf16.mxu0 0
      %4247 = vmatpush1.bf16.msra.mxu0 %v4050
      %4248 = vmatprep.subr.bf16.mxu0 0
      %4249 = vmatpush1.bf16.msra.mxu0 %v4051
      %4250 = vmatprep.subr.bf16.mxu0 0
      %4251 = vmatpush1.bf16.msra.mxu0 %v4052
      %4252 = vmatprep.subr.bf16.mxu0 0
      %4253 = vmatpush1.bf16.msra.mxu0 %v4053
      %4254 = vmatprep.subr.bf16.mxu0 0
      %4255 = vmatpush1.bf16.msra.mxu0 %v4054
      %4256 = vmatprep.subr.bf16.mxu0 0
      %4257 = vmatpush1.bf16.msra.mxu0 0
      %4258 = vmatprep.subr.bf16.mxu0 0
      %4259 = vmatpush1.bf16.msra.mxu0 0
      %4260 = vmatprep.subr.bf16.mxu0 0
      %4261 = vmatpush1.bf16.msra.mxu0 0
      %4262 = vmatprep.subr.bf16.mxu0 0
      %4263 = vmatpush1.bf16.msra.mxu0 0
      %4264 = vmatprep.subr.bf16.mxu0 0
      %4265 = vmatpush1.bf16.msra.mxu0 0
      %4266 = vmatprep.subr.bf16.mxu0 0
      %4267 = vmatpush1.bf16.msra.mxu0 0
      %4268 = vmatprep.subr.bf16.mxu0 0
      %4269 = vmatpush1.bf16.msra.mxu0 0
      %4270 = vmatprep.subr.bf16.mxu0 0
      %4271 = vmatpush1.bf16.msra.mxu0 0
      %4272 = vmatprep.mubr.bf16.mxu0 0
      %4273 = vmatmul.mubr.bf16.gmra.mrb[0].mxu0 %v3132
      %v4274 = vpop.f32.mrb[0].mxu0
      %v4275 = vadd.f32 %v4114, %v4274
      %v4276 = vpop.f32.mrb[0].mxu0
      %v4277 = vpop.f32.mrb[0].mxu0
      %v4278 = vadd.f32 %v4117, %v4277
      %v4279 = vpop.f32.mrb[0].mxu0
      %4280 = vmatprep.mubr.bf16.mxu0 0
      %4281 = vmatmul.mubr.bf16.gmra.mrb[0].mxu0 %v3133
      %v4282 = vpop.f32.mrb[0].mxu0
      %v4283 = vadd.f32 %v4122, %v4282
      %v4284 = vpop.f32.mrb[0].mxu0
      %v4285 = vpop.f32.mrb[0].mxu0
      %v4286 = vadd.f32 %v4125, %v4285
      %v4287 = vpop.f32.mrb[0].mxu0
      %4288 = vmatprep.mubr.bf16.mxu0 0
      %4289 = vmatmul.mubr.bf16.gmra.mrb[0].mxu0 %v3134
      %v4290 = vpop.f32.mrb[0].mxu0
      %v4291 = vadd.f32 %v4130, %v4290
      %v4292 = vpop.f32.mrb[0].mxu0
      %v4293 = vpop.f32.mrb[0].mxu0
      %v4294 = vadd.f32 %v4133, %v4293
      %v4295 = vpop.f32.mrb[0].mxu0
      %4296 = vmatprep.mubr.bf16.mxu0 0
      %4297 = vmatmul.mubr.bf16.gmra.mrb[0].mxu0 %v3135
      %v4298 = vpop.f32.mrb[0].mxu0
      %v4299 = vadd.f32 %v4138, %v4298
      %v4300 = vpop.f32.mrb[0].mxu0
      %v4301 = vpop.f32.mrb[0].mxu0
      %v4302 = vadd.f32 %v4141, %v4301
      %v4303 = vpop.f32.mrb[0].mxu0
      %4304 = vmatprep.mubr.bf16.mxu0 0
      %4305 = vmatmul.mubr.bf16.gmra.mrb[0].mxu0 %v3136
      %v4306 = vpop.f32.mrb[0].mxu0
      %v4307 = vadd.f32 %v4146, %v4306
      %v4308 = vpop.f32.mrb[0].mxu0
      %v4309 = vpop.f32.mrb[0].mxu0
      %v4310 = vadd.f32 %v4149, %v4309
      %v4311 = vpop.f32.mrb[0].mxu0
      %4312 = vmatprep.mubr.bf16.mxu0 0
      %4313 = vmatmul.mubr.bf16.gmra.mrb[0].mxu0 %v3137
      %v4314 = vpop.f32.mrb[0].mxu0
      %v4315 = vadd.f32 %v4154, %v4314
      %v4316 = vpop.f32.mrb[0].mxu0
      %v4317 = vpop.f32.mrb[0].mxu0
      %v4318 = vadd.f32 %v4157, %v4317
      %v4319 = vpop.f32.mrb[0].mxu0
      %4320 = vmatprep.mubr.bf16.mxu0 0
      %4321 = vmatmul.mubr.bf16.gmra.mrb[0].mxu0 %v3138
      %v4322 = vpop.f32.mrb[0].mxu0
      %v4323 = vadd.f32 %v4162, %v4322
      %v4324 = vpop.f32.mrb[0].mxu0
      %v4325 = vpop.f32.mrb[0].mxu0
      %v4326 = vadd.f32 %v4165, %v4325
      %v4327 = vpop.f32.mrb[0].mxu0
      %4328 = vmatprep.mubr.bf16.mxu0 0
      %4329 = vmatmul.mubr.bf16.gmra.mrb[0].mxu0 %v3139
      %v4330 = vpop.f32.mrb[0].mxu0
      %v4331 = vadd.f32 %v4170, %v4330
      %v4332 = vpop.f32.mrb[0].mxu0
      %v4333 = vpop.f32.mrb[0].mxu0
      %v4334 = vadd.f32 %v4173, %v4333
      %v4335 = vpop.f32.mrb[0].mxu0
      %4336 = vmatprep.mubr.bf16.mxu0 0
      %4337 = vmatmul.mubr.bf16.gmra.mrb[0].mxu0 %v3140
      %v4338 = vpop.f32.mrb[0].mxu0
      %v4339 = vadd.f32 %v4178, %v4338
      %v4340 = vpop.f32.mrb[0].mxu0
      %v4341 = vpop.f32.mrb[0].mxu0
      %v4342 = vadd.f32 %v4181, %v4341
      %v4343 = vpop.f32.mrb[0].mxu0
      %4344 = vmatprep.mubr.bf16.mxu0 0
      %4345 = vmatmul.mubr.bf16.gmra.mrb[0].mxu0 %v3141
      %v4346 = vpop.f32.mrb[0].mxu0
      %v4347 = vadd.f32 %v4186, %v4346
      %v4348 = vpop.f32.mrb[0].mxu0
      %v4349 = vpop.f32.mrb[0].mxu0
      %v4350 = vadd.f32 %v4189, %v4349
      %v4351 = vpop.f32.mrb[0].mxu0
      %4352 = vmatprep.mubr.bf16.mxu0 0
      %4353 = vmatmul.mubr.bf16.gmra.mrb[0].mxu0 %v3142
      %v4354 = vpop.f32.mrb[0].mxu0
      %v4355 = vadd.f32 %v4194, %v4354
      %v4356 = vpop.f32.mrb[0].mxu0
      %v4357 = vpop.f32.mrb[0].mxu0
      %v4358 = vadd.f32 %v4197, %v4357
      %v4359 = vpop.f32.mrb[0].mxu0
      %4360 = vmatprep.mubr.bf16.mxu0 0
      %4361 = vmatmul.mubr.bf16.gmra.mrb[0].mxu0 %v3143
      %v4362 = vpop.f32.mrb[0].mxu0
      %v4363 = vadd.f32 %v4202, %v4362
      %v4364 = vpop.f32.mrb[0].mxu0
      %v4365 = vpop.f32.mrb[0].mxu0
      %v4366 = vadd.f32 %v4205, %v4365
      %v4367 = vpop.f32.mrb[0].mxu0
      %4368 = vmatprep.mubr.bf16.mxu0 0
      %4369 = vmatmul.mubr.bf16.gmra.mrb[0].mxu0 %v3144
      %v4370 = vpop.f32.mrb[0].mxu0
      %v4371 = vadd.f32 %v4210, %v4370
      %v4372 = vpop.f32.mrb[0].mxu0
      %v4373 = vpop.f32.mrb[0].mxu0
      %v4374 = vadd.f32 %v4213, %v4373
      %v4375 = vpop.f32.mrb[0].mxu0
      %4376 = vmatprep.mubr.bf16.mxu0 0
      %4377 = vmatmul.mubr.bf16.gmra.mrb[0].mxu0 %v3145
      %v4378 = vpop.f32.mrb[0].mxu0
      %v4379 = vadd.f32 %v4218, %v4378
      %v4380 = vpop.f32.mrb[0].mxu0
      %v4381 = vpop.f32.mrb[0].mxu0
      %v4382 = vadd.f32 %v4221, %v4381
      %v4383 = vpop.f32.mrb[0].mxu0
      %4384 = vmatprep.mubr.bf16.mxu0 0
      %4385 = vmatmul.mubr.bf16.gmra.mrb[0].mxu0 %v3146
      %v4386 = vpop.f32.mrb[0].mxu0
      %v4387 = vadd.f32 %v4226, %v4386
      %v4388 = vpop.f32.mrb[0].mxu0
      %v4389 = vpop.f32.mrb[0].mxu0
      %v4390 = vadd.f32 %v4229, %v4389
      %v4391 = vpop.f32.mrb[0].mxu0
      %4392 = vmatprep.mubr.bf16.mxu0 0
      %4393 = vmatmul.mubr.bf16.gmra.mrb[0].mxu0 %v3147
      %v4394 = vpop.f32.mrb[0].mxu0
      %v4395 = vadd.f32 %v4234, %v4394
      %v4396 = vpop.f32.mrb[0].mxu0
      %v4397 = vpop.f32.mrb[0].mxu0
      %v4398 = vadd.f32 %v4237, %v4397
      %v4399 = vpop.f32.mrb[0].mxu0
      %4400 = vdwg.mxu0
      %v4401 = vld [vmem:[%s1857] sm:$0xff]
      %v4402 = vld [vmem:[%s1857 + $0x8] sm:$0xff]
      %v4403 = vld [vmem:[%s1857 + $0x10] sm:$0xff]
      %v4404 = vld [vmem:[%s1857 + $0x18] sm:$0xff]
      %v4405 = vld [vmem:[%s1857 + $0x20] sm:$0xff]
      %v4406 = vld [vmem:[%s1857 + $0x28] sm:$0xff]
      %v4407 = vld [vmem:[%s1857 + $0x30] sm:$0xff]
      %v4408 = vld [vmem:[%s1857 + $0x38] sm:$0xff]
      %v4409 = vld [vmem:[%s1857 + $0x40] sm:$0xff]
      %v4410 = vld [vmem:[%s1857 + $0x48] sm:$0xff]
      %v4411 = vld [vmem:[%s1857 + $0x50] sm:$0xff]
      %v4412 = vld [vmem:[%s1857 + $0x58] sm:$0xff]
      %v4413 = vld [vmem:[%s1857 + $0x60] sm:$0xff]
      %v4414 = vld [vmem:[%s1857 + $0x68] sm:$0xff]
      %v4415 = vld [vmem:[%s1857 + $0x70] sm:$0xff]
      %v4416 = vld [vmem:[%s1857 + $0x78] sm:$0xff]
      %v4418 = vshrl.u32 %v4401, 16
      %v4420 = vrot.slane %v4418, 7
      %v4421 = vshll.u32 %v4401, 16
      %v4423 = vor.u32 %v4420, %v4421
      %v4425 = vshrl.u32 %v4402, 16
      %v4427 = vrot.slane %v4425, 7
      %v4428 = vshll.u32 %v4402, 16
      %v4430 = vor.u32 %v4427, %v4428
      %v4432 = vshrl.u32 %v4403, 16
      %v4434 = vrot.slane %v4432, 7
      %v4435 = vshll.u32 %v4403, 16
      %v4437 = vor.u32 %v4434, %v4435
      %v4439 = vshrl.u32 %v4404, 16
      %v4441 = vrot.slane %v4439, 7
      %v4442 = vshll.u32 %v4404, 16
      %v4444 = vor.u32 %v4441, %v4442
      %v4446 = vshrl.u32 %v4405, 16
      %v4448 = vrot.slane %v4446, 7
      %v4449 = vshll.u32 %v4405, 16
      %v4451 = vor.u32 %v4448, %v4449
      %v4453 = vshrl.u32 %v4406, 16
      %v4455 = vrot.slane %v4453, 7
      %v4456 = vshll.u32 %v4406, 16
      %v4458 = vor.u32 %v4455, %v4456
      %v4460 = vshrl.u32 %v4407, 16
      %v4462 = vrot.slane %v4460, 7
      %v4463 = vshll.u32 %v4407, 16
      %v4465 = vor.u32 %v4462, %v4463
      %v4467 = vshrl.u32 %v4408, 16
      %v4469 = vrot.slane %v4467, 7
      %v4470 = vshll.u32 %v4408, 16
      %v4472 = vor.u32 %v4469, %v4470
      %v4474 = vshrl.u32 %v4409, 16
      %v4476 = vrot.slane %v4474, 7
      %v4477 = vshll.u32 %v4409, 16
      %v4479 = vor.u32 %v4476, %v4477
      %v4481 = vshrl.u32 %v4410, 16
      %v4483 = vrot.slane %v4481, 7
      %v4484 = vshll.u32 %v4410, 16
      %v4486 = vor.u32 %v4483, %v4484
      %v4488 = vshrl.u32 %v4411, 16
      %v4490 = vrot.slane %v4488, 7
      %v4491 = vshll.u32 %v4411, 16
      %v4493 = vor.u32 %v4490, %v4491
      %v4495 = vshrl.u32 %v4412, 16
      %v4497 = vrot.slane %v4495, 7
      %v4498 = vshll.u32 %v4412, 16
      %v4500 = vor.u32 %v4497, %v4498
      %v4502 = vshrl.u32 %v4413, 16
      %v4504 = vrot.slane %v4502, 7
      %v4505 = vshll.u32 %v4413, 16
      %v4507 = vor.u32 %v4504, %v4505
      %v4509 = vshrl.u32 %v4414, 16
      %v4511 = vrot.slane %v4509, 7
      %v4512 = vshll.u32 %v4414, 16
      %v4514 = vor.u32 %v4511, %v4512
      %v4516 = vshrl.u32 %v4415, 16
      %v4518 = vrot.slane %v4516, 7
      %v4519 = vshll.u32 %v4415, 16
      %v4521 = vor.u32 %v4518, %v4519
      %v4523 = vshrl.u32 %v4416, 16
      %v4525 = vrot.slane %v4523, 7
      %v4526 = vshll.u32 %v4416, 16
      %v4528 = vor.u32 %v4525, %v4526
      %v4545 = vsel %vm520, 0, %v4423
      %v4546 = vsel %vm520, 0, %v4430
      %v4547 = vsel %vm520, 0, %v4437
      %v4548 = vsel %vm520, 0, %v4444
      %v4549 = vsel %vm520, 0, %v4451
      %v4550 = vsel %vm520, 0, %v4458
      %v4551 = vsel %vm520, 0, %v4465
      %v4552 = vsel %vm520, 0, %v4472
      %v4553 = vsel %vm520, 0, %v4479
      %v4554 = vsel %vm520, 0, %v4486
      %v4555 = vsel %vm520, 0, %v4493
      %v4556 = vsel %vm520, 0, %v4500
      %v4557 = vsel %vm520, 0, %v4507
      %v4558 = vsel %vm520, 0, %v4514
      %v4559 = vsel %vm520, 0, %v4521
      %v4560 = vsel %vm520, 0, %v4528
      %v4561 = vrot.slane %v4421, 1
      %v4562 = vor.u32 %v4418, %v4561
      %v4563 = vrot.slane %v4428, 1
      %v4564 = vor.u32 %v4425, %v4563
      %v4565 = vrot.slane %v4435, 1
      %v4566 = vor.u32 %v4432, %v4565
      %v4567 = vrot.slane %v4442, 1
      %v4568 = vor.u32 %v4439, %v4567
      %v4569 = vrot.slane %v4449, 1
      %v4570 = vor.u32 %v4446, %v4569
      %v4571 = vrot.slane %v4456, 1
      %v4572 = vor.u32 %v4453, %v4571
      %v4573 = vrot.slane %v4463, 1
      %v4574 = vor.u32 %v4460, %v4573
      %v4575 = vrot.slane %v4470, 1
      %v4576 = vor.u32 %v4467, %v4575
      %v4577 = vrot.slane %v4477, 1
      %v4578 = vor.u32 %v4474, %v4577
      %v4579 = vrot.slane %v4484, 1
      %v4580 = vor.u32 %v4481, %v4579
      %v4581 = vrot.slane %v4491, 1
      %v4582 = vor.u32 %v4488, %v4581
      %v4583 = vrot.slane %v4498, 1
      %v4584 = vor.u32 %v4495, %v4583
      %v4585 = vrot.slane %v4505, 1
      %v4586 = vor.u32 %v4502, %v4585
      %v4587 = vrot.slane %v4512, 1
      %v4588 = vor.u32 %v4509, %v4587
      %v4589 = vrot.slane %v4519, 1
      %v4590 = vor.u32 %v4516, %v4589
      %v4591 = vrot.slane %v4526, 1
      %v4592 = vor.u32 %v4523, %v4591
      %v4609 = vsel %vm587, %v4562, 0
      %v4610 = vsel %vm587, %v4564, 0
      %v4611 = vsel %vm587, %v4566, 0
      %v4612 = vsel %vm587, %v4568, 0
      %v4613 = vsel %vm587, %v4570, 0
      %v4614 = vsel %vm587, %v4572, 0
      %v4615 = vsel %vm587, %v4574, 0
      %v4616 = vsel %vm587, %v4576, 0
      %v4617 = vsel %vm587, %v4578, 0
      %v4618 = vsel %vm587, %v4580, 0
      %v4619 = vsel %vm587, %v4582, 0
      %v4620 = vsel %vm587, %v4584, 0
      %v4621 = vsel %vm587, %v4586, 0
      %v4622 = vsel %vm587, %v4588, 0
      %v4623 = vsel %vm587, %v4590, 0
      %v4624 = vsel %vm587, %v4592, 0
      %s4625 = scalar_lea.vmem %s3, 384
      %v4626 = vld [vmem:[%s4625] sm:$0xf]
      %v4627 = vld [vmem:[%s4625 + $0x4] sm:$0xf]
      %v4628 = vld [vmem:[%s4625 + $0x8] sm:$0xf]
      %v4629 = vld [vmem:[%s4625 + $0xc] sm:$0xf]
      %v4630 = vld [vmem:[%s4625 + $0x10] sm:$0xf]
      %v4631 = vld [vmem:[%s4625 + $0x14] sm:$0xf]
      %v4632 = vld [vmem:[%s4625 + $0x18] sm:$0xf]
      %v4633 = vld [vmem:[%s4625 + $0x1c] sm:$0xf]
      %v4634 = vld [vmem:[%s4625 + $0x20] sm:$0xf]
      %v4635 = vld [vmem:[%s4625 + $0x24] sm:$0xf]
      %v4636 = vld [vmem:[%s4625 + $0x28] sm:$0xf]
      %v4637 = vld [vmem:[%s4625 + $0x2c] sm:$0xf]
      %v4638 = vld [vmem:[%s4625 + $0x30] sm:$0xf]
      %v4639 = vld [vmem:[%s4625 + $0x34] sm:$0xf]
      %v4640 = vld [vmem:[%s4625 + $0x38] sm:$0xf]
      %v4641 = vld [vmem:[%s4625 + $0x3c] sm:$0xf]
      %v4642 = vld [vmem:[%s4625 + $0x40] sm:$0xf]
      %v4643 = vld [vmem:[%s4625 + $0x44] sm:$0xf]
      %v4644 = vld [vmem:[%s4625 + $0x48] sm:$0xf]
      %v4645 = vld [vmem:[%s4625 + $0x4c] sm:$0xf]
      %v4646 = vld [vmem:[%s4625 + $0x50] sm:$0xf]
      %v4647 = vld [vmem:[%s4625 + $0x54] sm:$0xf]
      %v4648 = vld [vmem:[%s4625 + $0x58] sm:$0xf]
      %v4649 = vld [vmem:[%s4625 + $0x5c] sm:$0xf]
      %v4650 = vld [vmem:[%s4625 + $0x60] sm:$0xf]
      %v4651 = vld [vmem:[%s4625 + $0x64] sm:$0xf]
      %v4652 = vld [vmem:[%s4625 + $0x68] sm:$0xf]
      %v4653 = vld [vmem:[%s4625 + $0x6c] sm:$0xf]
      %v4654 = vld [vmem:[%s4625 + $0x70] sm:$0xf]
      %v4655 = vld [vmem:[%s4625 + $0x74] sm:$0xf]
      %v4656 = vld [vmem:[%s4625 + $0x78] sm:$0xf]
      %v4657 = vld [vmem:[%s4625 + $0x7c] sm:$0xf]
      %v4658 = vld [vmem:[%s4625 + $0x80] sm:$0xf]
      %v4659 = vld [vmem:[%s4625 + $0x84] sm:$0xf]
      %v4660 = vld [vmem:[%s4625 + $0x88] sm:$0xf]
      %v4661 = vld [vmem:[%s4625 + $0x8c] sm:$0xf]
      %v4662 = vld [vmem:[%s4625 + $0x90] sm:$0xf]
      %v4663 = vld [vmem:[%s4625 + $0x94] sm:$0xf]
      %v4664 = vld [vmem:[%s4625 + $0x98] sm:$0xf]
      %v4665 = vld [vmem:[%s4625 + $0x9c] sm:$0xf]
      %v4666 = vld [vmem:[%s4625 + $0xa0] sm:$0xf]
      %v4667 = vld [vmem:[%s4625 + $0xa4] sm:$0xf]
      %v4668 = vld [vmem:[%s4625 + $0xa8] sm:$0xf]
      %v4669 = vld [vmem:[%s4625 + $0xac] sm:$0xf]
      %v4670 = vld [vmem:[%s4625 + $0xb0] sm:$0xf]
      %v4671 = vld [vmem:[%s4625 + $0xb4] sm:$0xf]
      %v4672 = vld [vmem:[%s4625 + $0xb8] sm:$0xf]
      %v4673 = vld [vmem:[%s4625 + $0xbc] sm:$0xf]
      %v4722 = vunpack.c.l.b16 %v4626
      %v4723 = vunpack.c.l.b16 %v4627
      %v4724 = vunpack.c.l.b16 %v4628
      %v4725 = vunpack.c.l.b16 %v4629
      %v4726 = vunpack.c.l.b16 %v4630
      %v4727 = vunpack.c.l.b16 %v4631
      %v4728 = vunpack.c.l.b16 %v4632
      %v4729 = vunpack.c.l.b16 %v4633
      %v4730 = vunpack.c.l.b16 %v4634
      %v4731 = vunpack.c.l.b16 %v4635
      %v4732 = vunpack.c.l.b16 %v4636
      %v4733 = vunpack.c.l.b16 %v4637
      %v4734 = vunpack.c.l.b16 %v4638
      %v4735 = vunpack.c.l.b16 %v4639
      %v4736 = vunpack.c.l.b16 %v4640
      %v4737 = vunpack.c.l.b16 %v4641
      %v4738 = vunpack.c.l.b16 %v4642
      %v4739 = vunpack.c.l.b16 %v4643
      %v4740 = vunpack.c.l.b16 %v4644
      %v4741 = vunpack.c.l.b16 %v4645
      %v4742 = vunpack.c.l.b16 %v4646
      %v4743 = vunpack.c.l.b16 %v4647
      %v4744 = vunpack.c.l.b16 %v4648
      %v4745 = vunpack.c.l.b16 %v4649
      %v4746 = vunpack.c.l.b16 %v4650
      %v4747 = vunpack.c.l.b16 %v4651
      %v4748 = vunpack.c.l.b16 %v4652
      %v4749 = vunpack.c.l.b16 %v4653
      %v4750 = vunpack.c.l.b16 %v4654
      %v4751 = vunpack.c.l.b16 %v4655
      %v4752 = vunpack.c.l.b16 %v4656
      %v4753 = vunpack.c.l.b16 %v4657
      %v4754 = vunpack.c.l.b16 %v4658
      %v4755 = vunpack.c.l.b16 %v4659
      %v4756 = vunpack.c.l.b16 %v4660
      %v4757 = vunpack.c.l.b16 %v4661
      %v4758 = vunpack.c.l.b16 %v4662
      %v4759 = vunpack.c.l.b16 %v4663
      %v4760 = vunpack.c.l.b16 %v4664
      %v4761 = vunpack.c.l.b16 %v4665
      %v4762 = vunpack.c.l.b16 %v4666
      %v4763 = vunpack.c.l.b16 %v4667
      %v4764 = vunpack.c.l.b16 %v4668
      %v4765 = vunpack.c.l.b16 %v4669
      %v4766 = vunpack.c.l.b16 %v4670
      %v4767 = vunpack.c.l.b16 %v4671
      %v4768 = vunpack.c.l.b16 %v4672
      %v4769 = vunpack.c.l.b16 %v4673
      %v4770 = vpack.c.b16 %v4723, %v4722
      %v4771 = vpack.c.b16 %v4725, %v4724
      %v4772 = vpack.c.b16 %v4727, %v4726
      %v4773 = vpack.c.b16 %v4729, %v4728
      %v4774 = vpack.c.b16 %v4731, %v4730
      %v4775 = vpack.c.b16 %v4733, %v4732
      %v4776 = vpack.c.b16 %v4735, %v4734
      %v4777 = vpack.c.b16 %v4737, %v4736
      %v4778 = vpack.c.b16 %v4739, %v4738
      %v4779 = vpack.c.b16 %v4741, %v4740
      %v4780 = vpack.c.b16 %v4743, %v4742
      %v4781 = vpack.c.b16 %v4745, %v4744
      %v4782 = vpack.c.b16 %v4747, %v4746
      %v4783 = vpack.c.b16 %v4749, %v4748
      %v4784 = vpack.c.b16 %v4751, %v4750
      %v4785 = vpack.c.b16 %v4753, %v4752
      %v4786 = vpack.c.b16 %v4755, %v4754
      %v4787 = vpack.c.b16 %v4757, %v4756
      %v4788 = vpack.c.b16 %v4759, %v4758
      %v4789 = vpack.c.b16 %v4761, %v4760
      %v4790 = vpack.c.b16 %v4763, %v4762
      %v4791 = vpack.c.b16 %v4765, %v4764
      %v4792 = vpack.c.b16 %v4767, %v4766
      %v4793 = vpack.c.b16 %v4769, %v4768
      %4818 = vmatprep.subr.bf16.mxu0 0
      %4819 = vmatpush1.bf16.msra.mxu0 %v4770
      %4820 = vmatprep.subr.bf16.mxu0 0
      %4821 = vmatpush1.bf16.msra.mxu0 %v4771
      %4822 = vmatprep.subr.bf16.mxu0 0
      %4823 = vmatpush1.bf16.msra.mxu0 %v4772
      %4824 = vmatprep.subr.bf16.mxu0 0
      %4825 = vmatpush1.bf16.msra.mxu0 %v4773
      %4826 = vmatprep.subr.bf16.mxu0 0
      %4827 = vmatpush1.bf16.msra.mxu0 %v4774
      %4828 = vmatprep.subr.bf16.mxu0 0
      %4829 = vmatpush1.bf16.msra.mxu0 %v4775
      %4830 = vmatprep.subr.bf16.mxu0 0
      %4831 = vmatpush1.bf16.msra.mxu0 %v4776
      %4832 = vmatprep.subr.bf16.mxu0 0
      %4833 = vmatpush1.bf16.msra.mxu0 %v4777
      %4834 = vmatprep.subr.bf16.mxu0 0
      %4835 = vmatpush1.bf16.msra.mxu0 %v4778
      %4836 = vmatprep.subr.bf16.mxu0 0
      %4837 = vmatpush1.bf16.msra.mxu0 %v4779
      %4838 = vmatprep.subr.bf16.mxu0 0
      %4839 = vmatpush1.bf16.msra.mxu0 %v4780
      %4840 = vmatprep.subr.bf16.mxu0 0
      %4841 = vmatpush1.bf16.msra.mxu0 %v4781
      %4842 = vmatprep.subr.bf16.mxu0 0
      %4843 = vmatpush1.bf16.msra.mxu0 %v4782
      %4844 = vmatprep.subr.bf16.mxu0 0
      %4845 = vmatpush1.bf16.msra.mxu0 %v4783
      %4846 = vmatprep.subr.bf16.mxu0 0
      %4847 = vmatpush1.bf16.msra.mxu0 %v4784
      %4848 = vmatprep.subr.bf16.mxu0 0
      %4849 = vmatpush1.bf16.msra.mxu0 %v4785
      %4850 = vmatprep.mubr.bf16.mxu0 %v4401
      %4851 = vmatmul.mubr.bf16.gmra.mrb[0].mxu0 %v4545
      %v4852 = vpop.f32.mrb[0].mxu0
      %v4853 = vadd.f32 0.0, %v4852
      %v4854 = vpop.f32.mrb[0].mxu0
      %v4855 = vpop.f32.mrb[0].mxu0
      %v4856 = vadd.f32 0.0, %v4855
      %v4857 = vpop.f32.mrb[0].mxu0
      %4858 = vmatprep.mubr.bf16.mxu0 %v4402
      %4859 = vmatmul.mubr.bf16.gmra.mrb[0].mxu0 %v4546
      %v4860 = vpop.f32.mrb[0].mxu0
      %v4861 = vadd.f32 0.0, %v4860
      %v4862 = vpop.f32.mrb[0].mxu0
      %v4863 = vpop.f32.mrb[0].mxu0
      %v4864 = vadd.f32 0.0, %v4863
      %v4865 = vpop.f32.mrb[0].mxu0
      %4866 = vmatprep.mubr.bf16.mxu0 %v4403
      %4867 = vmatmul.mubr.bf16.gmra.mrb[0].mxu0 %v4547
      %v4868 = vpop.f32.mrb[0].mxu0
      %v4869 = vadd.f32 0.0, %v4868
      %v4870 = vpop.f32.mrb[0].mxu0
      %v4871 = vpop.f32.mrb[0].mxu0
      %v4872 = vadd.f32 0.0, %v4871
      %v4873 = vpop.f32.mrb[0].mxu0
      %4874 = vmatprep.mubr.bf16.mxu0 %v4404
      %4875 = vmatmul.mubr.bf16.gmra.mrb[0].mxu0 %v4548
      %v4876 = vpop.f32.mrb[0].mxu0
      %v4877 = vadd.f32 0.0, %v4876
      %v4878 = vpop.f32.mrb[0].mxu0
      %v4879 = vpop.f32.mrb[0].mxu0
      %v4880 = vadd.f32 0.0, %v4879
      %v4881 = vpop.f32.mrb[0].mxu0
      %4882 = vmatprep.mubr.bf16.mxu0 %v4405
      %4883 = vmatmul.mubr.bf16.gmra.mrb[0].mxu0 %v4549
      %v4884 = vpop.f32.mrb[0].mxu0
      %v4885 = vadd.f32 0.0, %v4884
      %v4886 = vpop.f32.mrb[0].mxu0
      %v4887 = vpop.f32.mrb[0].mxu0
      %v4888 = vadd.f32 0.0, %v4887
      %v4889 = vpop.f32.mrb[0].mxu0
      %4890 = vmatprep.mubr.bf16.mxu0 %v4406
      %4891 = vmatmul.mubr.bf16.gmra.mrb[0].mxu0 %v4550
      %v4892 = vpop.f32.mrb[0].mxu0
      %v4893 = vadd.f32 0.0, %v4892
      %v4894 = vpop.f32.mrb[0].mxu0
      %v4895 = vpop.f32.mrb[0].mxu0
      %v4896 = vadd.f32 0.0, %v4895
      %v4897 = vpop.f32.mrb[0].mxu0
      %4898 = vmatprep.mubr.bf16.mxu0 %v4407
      %4899 = vmatmul.mubr.bf16.gmra.mrb[0].mxu0 %v4551
      %v4900 = vpop.f32.mrb[0].mxu0
      %v4901 = vadd.f32 0.0, %v4900
      %v4902 = vpop.f32.mrb[0].mxu0
      %v4903 = vpop.f32.mrb[0].mxu0
      %v4904 = vadd.f32 0.0, %v4903
      %v4905 = vpop.f32.mrb[0].mxu0
      %4906 = vmatprep.mubr.bf16.mxu0 %v4408
      %4907 = vmatmul.mubr.bf16.gmra.mrb[0].mxu0 %v4552
      %v4908 = vpop.f32.mrb[0].mxu0
      %v4909 = vadd.f32 0.0, %v4908
      %v4910 = vpop.f32.mrb[0].mxu0
      %v4911 = vpop.f32.mrb[0].mxu0
      %v4912 = vadd.f32 0.0, %v4911
      %v4913 = vpop.f32.mrb[0].mxu0
      %4914 = vmatprep.mubr.bf16.mxu0 %v4409
      %4915 = vmatmul.mubr.bf16.gmra.mrb[0].mxu0 %v4553
      %v4916 = vpop.f32.mrb[0].mxu0
      %v4917 = vadd.f32 0.0, %v4916
      %v4918 = vpop.f32.mrb[0].mxu0
      %v4919 = vpop.f32.mrb[0].mxu0
      %v4920 = vadd.f32 0.0, %v4919
      %v4921 = vpop.f32.mrb[0].mxu0
      %4922 = vmatprep.mubr.bf16.mxu0 %v4410
      %4923 = vmatmul.mubr.bf16.gmra.mrb[0].mxu0 %v4554
      %v4924 = vpop.f32.mrb[0].mxu0
      %v4925 = vadd.f32 0.0, %v4924
      %v4926 = vpop.f32.mrb[0].mxu0
      %v4927 = vpop.f32.mrb[0].mxu0
      %v4928 = vadd.f32 0.0, %v4927
      %v4929 = vpop.f32.mrb[0].mxu0
      %4930 = vmatprep.mubr.bf16.mxu0 %v4411
      %4931 = vmatmul.mubr.bf16.gmra.mrb[0].mxu0 %v4555
      %v4932 = vpop.f32.mrb[0].mxu0
      %v4933 = vadd.f32 0.0, %v4932
      %v4934 = vpop.f32.mrb[0].mxu0
      %v4935 = vpop.f32.mrb[0].mxu0
      %v4936 = vadd.f32 0.0, %v4935
      %v4937 = vpop.f32.mrb[0].mxu0
      %4938 = vmatprep.mubr.bf16.mxu0 %v4412
      %4939 = vmatmul.mubr.bf16.gmra.mrb[0].mxu0 %v4556
      %v4940 = vpop.f32.mrb[0].mxu0
      %v4941 = vadd.f32 0.0, %v4940
      %v4942 = vpop.f32.mrb[0].mxu0
      %v4943 = vpop.f32.mrb[0].mxu0
      %v4944 = vadd.f32 0.0, %v4943
      %v4945 = vpop.f32.mrb[0].mxu0
      %4946 = vmatprep.mubr.bf16.mxu0 %v4413
      %4947 = vmatmul.mubr.bf16.gmra.mrb[0].mxu0 %v4557
      %v4948 = vpop.f32.mrb[0].mxu0
      %v4949 = vadd.f32 0.0, %v4948
      %v4950 = vpop.f32.mrb[0].mxu0
      %v4951 = vpop.f32.mrb[0].mxu0
      %v4952 = vadd.f32 0.0, %v4951
      %v4953 = vpop.f32.mrb[0].mxu0
      %4954 = vmatprep.mubr.bf16.mxu0 %v4414
      %4955 = vmatmul.mubr.bf16.gmra.mrb[0].mxu0 %v4558
      %v4956 = vpop.f32.mrb[0].mxu0
      %v4957 = vadd.f32 0.0, %v4956
      %v4958 = vpop.f32.mrb[0].mxu0
      %v4959 = vpop.f32.mrb[0].mxu0
      %v4960 = vadd.f32 0.0, %v4959
      %v4961 = vpop.f32.mrb[0].mxu0
      %4962 = vmatprep.mubr.bf16.mxu0 %v4415
      %4963 = vmatmul.mubr.bf16.gmra.mrb[0].mxu0 %v4559
      %v4964 = vpop.f32.mrb[0].mxu0
      %v4965 = vadd.f32 0.0, %v4964
      %v4966 = vpop.f32.mrb[0].mxu0
      %v4967 = vpop.f32.mrb[0].mxu0
      %v4968 = vadd.f32 0.0, %v4967
      %v4969 = vpop.f32.mrb[0].mxu0
      %4970 = vmatprep.mubr.bf16.mxu0 %v4416
      %4971 = vmatmul.mubr.bf16.gmra.mrb[0].mxu0 %v4560
      %v4972 = vpop.f32.mrb[0].mxu0
      %v4973 = vadd.f32 0.0, %v4972
      %v4974 = vpop.f32.mrb[0].mxu0
      %v4975 = vpop.f32.mrb[0].mxu0
      %v4976 = vadd.f32 0.0, %v4975
      %v4977 = vpop.f32.mrb[0].mxu0
      %4978 = vdwg.mxu0
      %4979 = vmatprep.subr.bf16.mxu0 0
      %4980 = vmatpush1.bf16.msra.mxu0 %v4786
      %4981 = vmatprep.subr.bf16.mxu0 0
      %4982 = vmatpush1.bf16.msra.mxu0 %v4787
      %4983 = vmatprep.subr.bf16.mxu0 0
      %4984 = vmatpush1.bf16.msra.mxu0 %v4788
      %4985 = vmatprep.subr.bf16.mxu0 0
      %4986 = vmatpush1.bf16.msra.mxu0 %v4789
      %4987 = vmatprep.subr.bf16.mxu0 0
      %4988 = vmatpush1.bf16.msra.mxu0 %v4790
      %4989 = vmatprep.subr.bf16.mxu0 0
      %4990 = vmatpush1.bf16.msra.mxu0 %v4791
      %4991 = vmatprep.subr.bf16.mxu0 0
      %4992 = vmatpush1.bf16.msra.mxu0 %v4792
      %4993 = vmatprep.subr.bf16.mxu0 0
      %4994 = vmatpush1.bf16.msra.mxu0 %v4793
      %4995 = vmatprep.subr.bf16.mxu0 0
      %4996 = vmatpush1.bf16.msra.mxu0 0
      %4997 = vmatprep.subr.bf16.mxu0 0
      %4998 = vmatpush1.bf16.msra.mxu0 0
      %4999 = vmatprep.subr.bf16.mxu0 0
      %5000 = vmatpush1.bf16.msra.mxu0 0
      %5001 = vmatprep.subr.bf16.mxu0 0
      %5002 = vmatpush1.bf16.msra.mxu0 0
      %5003 = vmatprep.subr.bf16.mxu0 0
      %5004 = vmatpush1.bf16.msra.mxu0 0
      %5005 = vmatprep.subr.bf16.mxu0 0
      %5006 = vmatpush1.bf16.msra.mxu0 0
      %5007 = vmatprep.subr.bf16.mxu0 0
      %5008 = vmatpush1.bf16.msra.mxu0 0
      %5009 = vmatprep.subr.bf16.mxu0 0
      %5010 = vmatpush1.bf16.msra.mxu0 0
      %5011 = vmatprep.mubr.bf16.mxu0 0
      %5012 = vmatmul.mubr.bf16.gmra.mrb[0].mxu0 %v4609
      %v5013 = vpop.f32.mrb[0].mxu0
      %v5014 = vadd.f32 %v4853, %v5013
      %v5015 = vpop.f32.mrb[0].mxu0
      %v5016 = vpop.f32.mrb[0].mxu0
      %v5017 = vadd.f32 %v4856, %v5016
      %v5018 = vpop.f32.mrb[0].mxu0
      %5019 = vmatprep.mubr.bf16.mxu0 0
      %5020 = vmatmul.mubr.bf16.gmra.mrb[0].mxu0 %v4610
      %v5021 = vpop.f32.mrb[0].mxu0
      %v5022 = vadd.f32 %v4861, %v5021
      %v5023 = vpop.f32.mrb[0].mxu0
      %v5024 = vpop.f32.mrb[0].mxu0
      %v5025 = vadd.f32 %v4864, %v5024
      %v5026 = vpop.f32.mrb[0].mxu0
      %5027 = vmatprep.mubr.bf16.mxu0 0
      %5028 = vmatmul.mubr.bf16.gmra.mrb[0].mxu0 %v4611
      %v5029 = vpop.f32.mrb[0].mxu0
      %v5030 = vadd.f32 %v4869, %v5029
      %v5031 = vpop.f32.mrb[0].mxu0
      %v5032 = vpop.f32.mrb[0].mxu0
      %v5033 = vadd.f32 %v4872, %v5032
      %v5034 = vpop.f32.mrb[0].mxu0
      %5035 = vmatprep.mubr.bf16.mxu0 0
      %5036 = vmatmul.mubr.bf16.gmra.mrb[0].mxu0 %v4612
      %v5037 = vpop.f32.mrb[0].mxu0
      %v5038 = vadd.f32 %v4877, %v5037
      %v5039 = vpop.f32.mrb[0].mxu0
      %v5040 = vpop.f32.mrb[0].mxu0
      %v5041 = vadd.f32 %v4880, %v5040
      %v5042 = vpop.f32.mrb[0].mxu0
      %5043 = vmatprep.mubr.bf16.mxu0 0
      %5044 = vmatmul.mubr.bf16.gmra.mrb[0].mxu0 %v4613
      %v5045 = vpop.f32.mrb[0].mxu0
      %v5046 = vadd.f32 %v4885, %v5045
      %v5047 = vpop.f32.mrb[0].mxu0
      %v5048 = vpop.f32.mrb[0].mxu0
      %v5049 = vadd.f32 %v4888, %v5048
      %v5050 = vpop.f32.mrb[0].mxu0
      %5051 = vmatprep.mubr.bf16.mxu0 0
      %5052 = vmatmul.mubr.bf16.gmra.mrb[0].mxu0 %v4614
      %v5053 = vpop.f32.mrb[0].mxu0
      %v5054 = vadd.f32 %v4893, %v5053
      %v5055 = vpop.f32.mrb[0].mxu0
      %v5056 = vpop.f32.mrb[0].mxu0
      %v5057 = vadd.f32 %v4896, %v5056
      %v5058 = vpop.f32.mrb[0].mxu0
      %5059 = vmatprep.mubr.bf16.mxu0 0
      %5060 = vmatmul.mubr.bf16.gmra.mrb[0].mxu0 %v4615
      %v5061 = vpop.f32.mrb[0].mxu0
      %v5062 = vadd.f32 %v4901, %v5061
      %v5063 = vpop.f32.mrb[0].mxu0
      %v5064 = vpop.f32.mrb[0].mxu0
      %v5065 = vadd.f32 %v4904, %v5064
      %v5066 = vpop.f32.mrb[0].mxu0
      %5067 = vmatprep.mubr.bf16.mxu0 0
      %5068 = vmatmul.mubr.bf16.gmra.mrb[0].mxu0 %v4616
      %v5069 = vpop.f32.mrb[0].mxu0
      %v5070 = vadd.f32 %v4909, %v5069
      %v5071 = vpop.f32.mrb[0].mxu0
      %v5072 = vpop.f32.mrb[0].mxu0
      %v5073 = vadd.f32 %v4912, %v5072
      %v5074 = vpop.f32.mrb[0].mxu0
      %5075 = vmatprep.mubr.bf16.mxu0 0
      %5076 = vmatmul.mubr.bf16.gmra.mrb[0].mxu0 %v4617
      %v5077 = vpop.f32.mrb[0].mxu0
      %v5078 = vadd.f32 %v4917, %v5077
      %v5079 = vpop.f32.mrb[0].mxu0
      %v5080 = vpop.f32.mrb[0].mxu0
      %v5081 = vadd.f32 %v4920, %v5080
      %v5082 = vpop.f32.mrb[0].mxu0
      %5083 = vmatprep.mubr.bf16.mxu0 0
      %5084 = vmatmul.mubr.bf16.gmra.mrb[0].mxu0 %v4618
      %v5085 = vpop.f32.mrb[0].mxu0
      %v5086 = vadd.f32 %v4925, %v5085
      %v5087 = vpop.f32.mrb[0].mxu0
      %v5088 = vpop.f32.mrb[0].mxu0
      %v5089 = vadd.f32 %v4928, %v5088
      %v5090 = vpop.f32.mrb[0].mxu0
      %5091 = vmatprep.mubr.bf16.mxu0 0
      %5092 = vmatmul.mubr.bf16.gmra.mrb[0].mxu0 %v4619
      %v5093 = vpop.f32.mrb[0].mxu0
      %v5094 = vadd.f32 %v4933, %v5093
      %v5095 = vpop.f32.mrb[0].mxu0
      %v5096 = vpop.f32.mrb[0].mxu0
      %v5097 = vadd.f32 %v4936, %v5096
      %v5098 = vpop.f32.mrb[0].mxu0
      %5099 = vmatprep.mubr.bf16.mxu0 0
      %5100 = vmatmul.mubr.bf16.gmra.mrb[0].mxu0 %v4620
      %v5101 = vpop.f32.mrb[0].mxu0
      %v5102 = vadd.f32 %v4941, %v5101
      %v5103 = vpop.f32.mrb[0].mxu0
      %v5104 = vpop.f32.mrb[0].mxu0
      %v5105 = vadd.f32 %v4944, %v5104
      %v5106 = vpop.f32.mrb[0].mxu0
      %5107 = vmatprep.mubr.bf16.mxu0 0
      %5108 = vmatmul.mubr.bf16.gmra.mrb[0].mxu0 %v4621
      %v5109 = vpop.f32.mrb[0].mxu0
      %v5110 = vadd.f32 %v4949, %v5109
      %v5111 = vpop.f32.mrb[0].mxu0
      %v5112 = vpop.f32.mrb[0].mxu0
      %v5113 = vadd.f32 %v4952, %v5112
      %v5114 = vpop.f32.mrb[0].mxu0
      %5115 = vmatprep.mubr.bf16.mxu0 0
      %5116 = vmatmul.mubr.bf16.gmra.mrb[0].mxu0 %v4622
      %v5117 = vpop.f32.mrb[0].mxu0
      %v5118 = vadd.f32 %v4957, %v5117
      %v5119 = vpop.f32.mrb[0].mxu0
      %v5120 = vpop.f32.mrb[0].mxu0
      %v5121 = vadd.f32 %v4960, %v5120
      %v5122 = vpop.f32.mrb[0].mxu0
      %5123 = vmatprep.mubr.bf16.mxu0 0
      %5124 = vmatmul.mubr.bf16.gmra.mrb[0].mxu0 %v4623
      %v5125 = vpop.f32.mrb[0].mxu0
      %v5126 = vadd.f32 %v4965, %v5125
      %v5127 = vpop.f32.mrb[0].mxu0
      %v5128 = vpop.f32.mrb[0].mxu0
      %v5129 = vadd.f32 %v4968, %v5128
      %v5130 = vpop.f32.mrb[0].mxu0
      %5131 = vmatprep.mubr.bf16.mxu0 0
      %5132 = vmatmul.mubr.bf16.gmra.mrb[0].mxu0 %v4624
      %v5133 = vpop.f32.mrb[0].mxu0
      %v5134 = vadd.f32 %v4973, %v5133
      %v5135 = vpop.f32.mrb[0].mxu0
      %v5136 = vpop.f32.mrb[0].mxu0
      %v5137 = vadd.f32 %v4976, %v5136
      %v5138 = vpop.f32.mrb[0].mxu0
      %5139 = vdwg.mxu0
      %v5140 = vadd.f32 %v4275, %v5014
      %v5141 = vadd.f32 %v4278, %v5017
      %v5142 = vadd.f32 %v4283, %v5022
      %v5143 = vadd.f32 %v4286, %v5025
      %v5144 = vadd.f32 %v4291, %v5030
      %v5145 = vadd.f32 %v4294, %v5033
      %v5146 = vadd.f32 %v4299, %v5038
      %v5147 = vadd.f32 %v4302, %v5041
      %v5148 = vadd.f32 %v4307, %v5046
      %v5149 = vadd.f32 %v4310, %v5049
      %v5150 = vadd.f32 %v4315, %v5054
      %v5151 = vadd.f32 %v4318, %v5057
      %v5152 = vadd.f32 %v4323, %v5062
      %v5153 = vadd.f32 %v4326, %v5065
      %v5154 = vadd.f32 %v4331, %v5070
      %v5155 = vadd.f32 %v4334, %v5073
      %v5156 = vadd.f32 %v4339, %v5078
      %v5157 = vadd.f32 %v4342, %v5081
      %v5158 = vadd.f32 %v4347, %v5086
      %v5159 = vadd.f32 %v4350, %v5089
      %v5160 = vadd.f32 %v4355, %v5094
      %v5161 = vadd.f32 %v4358, %v5097
      %v5162 = vadd.f32 %v4363, %v5102
      %v5163 = vadd.f32 %v4366, %v5105
      %v5164 = vadd.f32 %v4371, %v5110
      %v5165 = vadd.f32 %v4374, %v5113
      %v5166 = vadd.f32 %v4379, %v5118
      %v5167 = vadd.f32 %v4382, %v5121
      %v5168 = vadd.f32 %v4387, %v5126
      %v5169 = vadd.f32 %v4390, %v5129
      %v5170 = vadd.f32 %v4395, %v5134
      %v5171 = vadd.f32 %v4398, %v5137
      %v5172 = vld [vmem:[%s4] sm:$0x1]
      %v5174 = vlaneseq
      %v5175 = vshrl.u32 %v5174, 7
      %v5176 = vsub.s32 0, %v5175
      %v5177 = vrot.slane %v5172, %v5176
      %v5179 = vadd.f32 %v5140, %v5177
      %v5180 = vadd.f32 %v5141, %v5177
      %v5181 = vadd.f32 %v5142, %v5177
      %v5182 = vadd.f32 %v5143, %v5177
      %v5183 = vadd.f32 %v5144, %v5177
      %v5184 = vadd.f32 %v5145, %v5177
      %v5185 = vadd.f32 %v5146, %v5177
      %v5186 = vadd.f32 %v5147, %v5177
      %v5187 = vadd.f32 %v5148, %v5177
      %v5188 = vadd.f32 %v5149, %v5177
      %v5189 = vadd.f32 %v5150, %v5177
      %v5190 = vadd.f32 %v5151, %v5177
      %v5191 = vadd.f32 %v5152, %v5177
      %v5192 = vadd.f32 %v5153, %v5177
      %v5193 = vadd.f32 %v5154, %v5177
      %v5194 = vadd.f32 %v5155, %v5177
      %v5195 = vadd.f32 %v5156, %v5177
      %v5196 = vadd.f32 %v5157, %v5177
      %v5197 = vadd.f32 %v5158, %v5177
      %v5198 = vadd.f32 %v5159, %v5177
      %v5199 = vadd.f32 %v5160, %v5177
      %v5200 = vadd.f32 %v5161, %v5177
      %v5201 = vadd.f32 %v5162, %v5177
      %v5202 = vadd.f32 %v5163, %v5177
      %v5203 = vadd.f32 %v5164, %v5177
      %v5204 = vadd.f32 %v5165, %v5177
      %v5205 = vadd.f32 %v5166, %v5177
      %v5206 = vadd.f32 %v5167, %v5177
      %v5207 = vadd.f32 %v5168, %v5177
      %v5208 = vadd.f32 %v5169, %v5177
      %v5209 = vadd.f32 %v5170, %v5177
      %v5210 = vadd.f32 %v5171, %v5177
      %v5211 = vsub.f32 0.0, %v5179
      %v5212 = vsub.f32 0.0, %v5180
      %v5213 = vsub.f32 0.0, %v5181
      %v5214 = vsub.f32 0.0, %v5182
      %v5215 = vsub.f32 0.0, %v5183
      %v5216 = vsub.f32 0.0, %v5184
      %v5217 = vsub.f32 0.0, %v5185
      %v5218 = vsub.f32 0.0, %v5186
      %v5219 = vsub.f32 0.0, %v5187
      %v5220 = vsub.f32 0.0, %v5188
      %v5221 = vsub.f32 0.0, %v5189
      %v5222 = vsub.f32 0.0, %v5190
      %v5223 = vsub.f32 0.0, %v5191
      %v5224 = vsub.f32 0.0, %v5192
      %v5225 = vsub.f32 0.0, %v5193
      %v5226 = vsub.f32 0.0, %v5194
      %v5227 = vsub.f32 0.0, %v5195
      %v5228 = vsub.f32 0.0, %v5196
      %v5229 = vsub.f32 0.0, %v5197
      %v5230 = vsub.f32 0.0, %v5198
      %v5231 = vsub.f32 0.0, %v5199
      %v5232 = vsub.f32 0.0, %v5200
      %v5233 = vsub.f32 0.0, %v5201
      %v5234 = vsub.f32 0.0, %v5202
      %v5235 = vsub.f32 0.0, %v5203
      %v5236 = vsub.f32 0.0, %v5204
      %v5237 = vsub.f32 0.0, %v5205
      %v5238 = vsub.f32 0.0, %v5206
      %v5239 = vsub.f32 0.0, %v5207
      %v5240 = vsub.f32 0.0, %v5208
      %v5241 = vsub.f32 0.0, %v5209
      %v5242 = vsub.f32 0.0, %v5210
      %v5243 = vmul.f32 %v5211, 1.442695
      %v5244 = vpow.pop %v5243
      %v5245 = vmul.f32 %v5212, 1.442695
      %v5246 = vpow.pop %v5245
      %v5247 = vmul.f32 %v5213, 1.442695
      %v5248 = vpow.pop %v5247
      %v5249 = vmul.f32 %v5214, 1.442695
      %v5250 = vpow.pop %v5249
      %v5251 = vmul.f32 %v5215, 1.442695
      %v5252 = vpow.pop %v5251
      %v5253 = vmul.f32 %v5216, 1.442695
      %v5254 = vpow.pop %v5253
      %v5255 = vmul.f32 %v5217, 1.442695
      %v5256 = vpow.pop %v5255
      %v5257 = vmul.f32 %v5218, 1.442695
      %v5258 = vpow.pop %v5257
      %v5259 = vmul.f32 %v5219, 1.442695
      %v5260 = vpow.pop %v5259
      %v5261 = vmul.f32 %v5220, 1.442695
      %v5262 = vpow.pop %v5261
      %v5263 = vmul.f32 %v5221, 1.442695
      %v5264 = vpow.pop %v5263
      %v5265 = vmul.f32 %v5222, 1.442695
      %v5266 = vpow.pop %v5265
      %v5267 = vmul.f32 %v5223, 1.442695
      %v5268 = vpow.pop %v5267
      %v5269 = vmul.f32 %v5224, 1.442695
      %v5270 = vpow.pop %v5269
      %v5271 = vmul.f32 %v5225, 1.442695
      %v5272 = vpow.pop %v5271
      %v5273 = vmul.f32 %v5226, 1.442695
      %v5274 = vpow.pop %v5273
      %v5275 = vmul.f32 %v5227, 1.442695
      %v5276 = vpow.pop %v5275
      %v5277 = vmul.f32 %v5228, 1.442695
      %v5278 = vpow.pop %v5277
      %v5279 = vmul.f32 %v5229, 1.442695
      %v5280 = vpow.pop %v5279
      %v5281 = vmul.f32 %v5230, 1.442695
      %v5282 = vpow.pop %v5281
      %v5283 = vmul.f32 %v5231, 1.442695
      %v5284 = vpow.pop %v5283
      %v5285 = vmul.f32 %v5232, 1.442695
      %v5286 = vpow.pop %v5285
      %v5287 = vmul.f32 %v5233, 1.442695
      %v5288 = vpow.pop %v5287
      %v5289 = vmul.f32 %v5234, 1.442695
      %v5290 = vpow.pop %v5289
      %v5291 = vmul.f32 %v5235, 1.442695
      %v5292 = vpow.pop %v5291
      %v5293 = vmul.f32 %v5236, 1.442695
      %v5294 = vpow.pop %v5293
      %v5295 = vmul.f32 %v5237, 1.442695
      %v5296 = vpow.pop %v5295
      %v5297 = vmul.f32 %v5238, 1.442695
      %v5298 = vpow.pop %v5297
      %v5299 = vmul.f32 %v5239, 1.442695
      %v5300 = vpow.pop %v5299
      %v5301 = vmul.f32 %v5240, 1.442695
      %v5302 = vpow.pop %v5301
      %v5303 = vmul.f32 %v5241, 1.442695
      %v5304 = vpow.pop %v5303
      %v5305 = vmul.f32 %v5242, 1.442695
      %v5306 = vpow.pop %v5305
      %v5307 = vadd.f32 %v5244, 1.0
      %v5308 = vadd.f32 %v5246, 1.0
      %v5309 = vadd.f32 %v5248, 1.0
      %v5310 = vadd.f32 %v5250, 1.0
      %v5311 = vadd.f32 %v5252, 1.0
      %v5312 = vadd.f32 %v5254, 1.0
      %v5313 = vadd.f32 %v5256, 1.0
      %v5314 = vadd.f32 %v5258, 1.0
      %v5315 = vadd.f32 %v5260, 1.0
      %v5316 = vadd.f32 %v5262, 1.0
      %v5317 = vadd.f32 %v5264, 1.0
      %v5318 = vadd.f32 %v5266, 1.0
      %v5319 = vadd.f32 %v5268, 1.0
      %v5320 = vadd.f32 %v5270, 1.0
      %v5321 = vadd.f32 %v5272, 1.0
      %v5322 = vadd.f32 %v5274, 1.0
      %v5323 = vadd.f32 %v5276, 1.0
      %v5324 = vadd.f32 %v5278, 1.0
      %v5325 = vadd.f32 %v5280, 1.0
      %v5326 = vadd.f32 %v5282, 1.0
      %v5327 = vadd.f32 %v5284, 1.0
      %v5328 = vadd.f32 %v5286, 1.0
      %v5329 = vadd.f32 %v5288, 1.0
      %v5330 = vadd.f32 %v5290, 1.0
      %v5331 = vadd.f32 %v5292, 1.0
      %v5332 = vadd.f32 %v5294, 1.0
      %v5333 = vadd.f32 %v5296, 1.0
      %v5334 = vadd.f32 %v5298, 1.0
      %v5335 = vadd.f32 %v5300, 1.0
      %v5336 = vadd.f32 %v5302, 1.0
      %v5337 = vadd.f32 %v5304, 1.0
      %v5338 = vadd.f32 %v5306, 1.0
      %v5339 = vrcp.pop %v5307
      %v5340 = vmul.f32 1.0, %v5339
      %v5341 = vrcp.pop %v5308
      %v5342 = vmul.f32 1.0, %v5341
      %v5343 = vrcp.pop %v5309
      %v5344 = vmul.f32 1.0, %v5343
      %v5345 = vrcp.pop %v5310
      %v5346 = vmul.f32 1.0, %v5345
      %v5347 = vrcp.pop %v5311
      %v5348 = vmul.f32 1.0, %v5347
      %v5349 = vrcp.pop %v5312
      %v5350 = vmul.f32 1.0, %v5349
      %v5351 = vrcp.pop %v5313
      %v5352 = vmul.f32 1.0, %v5351
      %v5353 = vrcp.pop %v5314
      %v5354 = vmul.f32 1.0, %v5353
      %v5355 = vrcp.pop %v5315
      %v5356 = vmul.f32 1.0, %v5355
      %v5357 = vrcp.pop %v5316
      %v5358 = vmul.f32 1.0, %v5357
      %v5359 = vrcp.pop %v5317
      %v5360 = vmul.f32 1.0, %v5359
      %v5361 = vrcp.pop %v5318
      %v5362 = vmul.f32 1.0, %v5361
      %v5363 = vrcp.pop %v5319
      %v5364 = vmul.f32 1.0, %v5363
      %v5365 = vrcp.pop %v5320
      %v5366 = vmul.f32 1.0, %v5365
      %v5367 = vrcp.pop %v5321
      %v5368 = vmul.f32 1.0, %v5367
      %v5369 = vrcp.pop %v5322
      %v5370 = vmul.f32 1.0, %v5369
      %v5371 = vrcp.pop %v5323
      %v5372 = vmul.f32 1.0, %v5371
      %v5373 = vrcp.pop %v5324
      %v5374 = vmul.f32 1.0, %v5373
      %v5375 = vrcp.pop %v5325
      %v5376 = vmul.f32 1.0, %v5375
      %v5377 = vrcp.pop %v5326
      %v5378 = vmul.f32 1.0, %v5377
      %v5379 = vrcp.pop %v5327
      %v5380 = vmul.f32 1.0, %v5379
      %v5381 = vrcp.pop %v5328
      %v5382 = vmul.f32 1.0, %v5381
      %v5383 = vrcp.pop %v5329
      %v5384 = vmul.f32 1.0, %v5383
      %v5385 = vrcp.pop %v5330
      %v5386 = vmul.f32 1.0, %v5385
      %v5387 = vrcp.pop %v5331
      %v5388 = vmul.f32 1.0, %v5387
      %v5389 = vrcp.pop %v5332
      %v5390 = vmul.f32 1.0, %v5389
      %v5391 = vrcp.pop %v5333
      %v5392 = vmul.f32 1.0, %v5391
      %v5393 = vrcp.pop %v5334
      %v5394 = vmul.f32 1.0, %v5393
      %v5395 = vrcp.pop %v5335
      %v5396 = vmul.f32 1.0, %v5395
      %v5397 = vrcp.pop %v5336
      %v5398 = vmul.f32 1.0, %v5397
      %v5399 = vrcp.pop %v5337
      %v5400 = vmul.f32 1.0, %v5399
      %v5401 = vrcp.pop %v5338
      %v5402 = vmul.f32 1.0, %v5401
      %v5403 = vmul.f32 %v5179, %v5340
      %v5404 = vmul.f32 %v5180, %v5342
      %v5405 = vmul.f32 %v5181, %v5344
      %v5406 = vmul.f32 %v5182, %v5346
      %v5407 = vmul.f32 %v5183, %v5348
      %v5408 = vmul.f32 %v5184, %v5350
      %v5409 = vmul.f32 %v5185, %v5352
      %v5410 = vmul.f32 %v5186, %v5354
      %v5411 = vmul.f32 %v5187, %v5356
      %v5412 = vmul.f32 %v5188, %v5358
      %v5413 = vmul.f32 %v5189, %v5360
      %v5414 = vmul.f32 %v5190, %v5362
      %v5415 = vmul.f32 %v5191, %v5364
      %v5416 = vmul.f32 %v5192, %v5366
      %v5417 = vmul.f32 %v5193, %v5368
      %v5418 = vmul.f32 %v5194, %v5370
      %v5419 = vmul.f32 %v5195, %v5372
      %v5420 = vmul.f32 %v5196, %v5374
      %v5421 = vmul.f32 %v5197, %v5376
      %v5422 = vmul.f32 %v5198, %v5378
      %v5423 = vmul.f32 %v5199, %v5380
      %v5424 = vmul.f32 %v5200, %v5382
      %v5425 = vmul.f32 %v5201, %v5384
      %v5426 = vmul.f32 %v5202, %v5386
      %v5427 = vmul.f32 %v5203, %v5388
      %v5428 = vmul.f32 %v5204, %v5390
      %v5429 = vmul.f32 %v5205, %v5392
      %v5430 = vmul.f32 %v5206, %v5394
      %v5431 = vmul.f32 %v5207, %v5396
      %v5432 = vmul.f32 %v5208, %v5398
      %v5433 = vmul.f32 %v5209, %v5400
      %v5434 = vmul.f32 %v5210, %v5402
      %v5435 = vpack.c.bf16 %v5404, %v5403
      %v5436 = vpack.c.bf16 %v5406, %v5405
      %v5437 = vpack.c.bf16 %v5408, %v5407
      %v5438 = vpack.c.bf16 %v5410, %v5409
      %v5439 = vpack.c.bf16 %v5412, %v5411
      %v5440 = vpack.c.bf16 %v5414, %v5413
      %v5441 = vpack.c.bf16 %v5416, %v5415
      %v5442 = vpack.c.bf16 %v5418, %v5417
      %v5443 = vpack.c.bf16 %v5420, %v5419
      %v5444 = vpack.c.bf16 %v5422, %v5421
      %v5445 = vpack.c.bf16 %v5424, %v5423
      %v5446 = vpack.c.bf16 %v5426, %v5425
      %v5447 = vpack.c.bf16 %v5428, %v5427
      %v5448 = vpack.c.bf16 %v5430, %v5429
      %v5449 = vpack.c.bf16 %v5432, %v5431
      %v5450 = vpack.c.bf16 %v5434, %v5433
      %v5467 = vunpack.c.l.b16 %v5435
      %v5468 = vunpack.c.h.b16 %v5435
      %v5469 = vunpack.c.l.b16 %v5436
      %v5470 = vunpack.c.h.b16 %v5436
      %v5471 = vunpack.c.l.b16 %v5437
      %v5472 = vunpack.c.h.b16 %v5437
      %v5473 = vunpack.c.l.b16 %v5438
      %v5474 = vunpack.c.h.b16 %v5438
      %v5475 = vunpack.c.l.b16 %v5439
      %v5476 = vunpack.c.h.b16 %v5439
      %v5477 = vunpack.c.l.b16 %v5440
      %v5478 = vunpack.c.h.b16 %v5440
      %v5479 = vunpack.c.l.b16 %v5441
      %v5480 = vunpack.c.h.b16 %v5441
      %v5481 = vunpack.c.l.b16 %v5442
      %v5482 = vunpack.c.h.b16 %v5442
      %v5483 = vunpack.c.l.b16 %v5443
      %v5484 = vunpack.c.h.b16 %v5443
      %v5485 = vunpack.c.l.b16 %v5444
      %v5486 = vunpack.c.h.b16 %v5444
      %v5487 = vunpack.c.l.b16 %v5445
      %v5488 = vunpack.c.h.b16 %v5445
      %v5489 = vunpack.c.l.b16 %v5446
      %v5490 = vunpack.c.h.b16 %v5446
      %v5491 = vunpack.c.l.b16 %v5447
      %v5492 = vunpack.c.h.b16 %v5447
      %v5493 = vunpack.c.l.b16 %v5448
      %v5494 = vunpack.c.h.b16 %v5448
      %v5495 = vunpack.c.l.b16 %v5449
      %v5496 = vunpack.c.h.b16 %v5449
      %v5497 = vunpack.c.l.b16 %v5450
      %v5498 = vunpack.c.h.b16 %v5450
      %v5499 = vpack.c.b16 %v5467, %v5467
      %v5500 = vpack.c.b16 %v5468, %v5468
      %v5501 = vpack.c.b16 %v5469, %v5469
      %v5502 = vpack.c.b16 %v5470, %v5470
      %v5503 = vpack.c.b16 %v5471, %v5471
      %v5504 = vpack.c.b16 %v5472, %v5472
      %v5505 = vpack.c.b16 %v5473, %v5473
      %v5506 = vpack.c.b16 %v5474, %v5474
      %v5507 = vpack.c.b16 %v5475, %v5475
      %v5508 = vpack.c.b16 %v5476, %v5476
      %v5509 = vpack.c.b16 %v5477, %v5477
      %v5510 = vpack.c.b16 %v5478, %v5478
      %v5511 = vpack.c.b16 %v5479, %v5479
      %v5512 = vpack.c.b16 %v5480, %v5480
      %v5513 = vpack.c.b16 %v5481, %v5481
      %v5514 = vpack.c.b16 %v5482, %v5482
      %v5515 = vpack.c.b16 %v5483, %v5483
      %v5516 = vpack.c.b16 %v5484, %v5484
      %v5517 = vpack.c.b16 %v5485, %v5485
      %v5518 = vpack.c.b16 %v5486, %v5486
      %v5519 = vpack.c.b16 %v5487, %v5487
      %v5520 = vpack.c.b16 %v5488, %v5488
      %v5521 = vpack.c.b16 %v5489, %v5489
      %v5522 = vpack.c.b16 %v5490, %v5490
      %v5523 = vpack.c.b16 %v5491, %v5491
      %v5524 = vpack.c.b16 %v5492, %v5492
      %v5525 = vpack.c.b16 %v5493, %v5493
      %v5526 = vpack.c.b16 %v5494, %v5494
      %v5527 = vpack.c.b16 %v5495, %v5495
      %v5528 = vpack.c.b16 %v5496, %v5496
      %v5529 = vpack.c.b16 %v5497, %v5497
      %v5530 = vpack.c.b16 %v5498, %v5498
      %5563 = vst [vmem:[%s224] sm:$0xf] %v5499
      %5564 = vst [vmem:[%s224 + $0x4] sm:$0xf] %v5500
      %5565 = vst [vmem:[%s224 + $0x8] sm:$0xf] %v5501
      %5566 = vst [vmem:[%s224 + $0xc] sm:$0xf] %v5502
      %5567 = vst [vmem:[%s224 + $0x10] sm:$0xf] %v5503
      %5568 = vst [vmem:[%s224 + $0x14] sm:$0xf] %v5504
      %5569 = vst [vmem:[%s224 + $0x18] sm:$0xf] %v5505
      %5570 = vst [vmem:[%s224 + $0x1c] sm:$0xf] %v5506
      %5571 = vst [vmem:[%s224 + $0x20] sm:$0xf] %v5507
      %5572 = vst [vmem:[%s224 + $0x24] sm:$0xf] %v5508
      %5573 = vst [vmem:[%s224 + $0x28] sm:$0xf] %v5509
      %5574 = vst [vmem:[%s224 + $0x2c] sm:$0xf] %v5510
      %5575 = vst [vmem:[%s224 + $0x30] sm:$0xf] %v5511
      %5576 = vst [vmem:[%s224 + $0x34] sm:$0xf] %v5512
      %5577 = vst [vmem:[%s224 + $0x38] sm:$0xf] %v5513
      %5578 = vst [vmem:[%s224 + $0x3c] sm:$0xf] %v5514
      %5579 = vst [vmem:[%s224 + $0x40] sm:$0xf] %v5515
      %5580 = vst [vmem:[%s224 + $0x44] sm:$0xf] %v5516
      %5581 = vst [vmem:[%s224 + $0x48] sm:$0xf] %v5517
      %5582 = vst [vmem:[%s224 + $0x4c] sm:$0xf] %v5518
      %5583 = vst [vmem:[%s224 + $0x50] sm:$0xf] %v5519
      %5584 = vst [vmem:[%s224 + $0x54] sm:$0xf] %v5520
      %5585 = vst [vmem:[%s224 + $0x58] sm:$0xf] %v5521
      %5586 = vst [vmem:[%s224 + $0x5c] sm:$0xf] %v5522
      %5587 = vst [vmem:[%s224 + $0x60] sm:$0xf] %v5523
      %5588 = vst [vmem:[%s224 + $0x64] sm:$0xf] %v5524
      %5589 = vst [vmem:[%s224 + $0x68] sm:$0xf] %v5525
      %5590 = vst [vmem:[%s224 + $0x6c] sm:$0xf] %v5526
      %5591 = vst [vmem:[%s224 + $0x70] sm:$0xf] %v5527
      %5592 = vst [vmem:[%s224 + $0x74] sm:$0xf] %v5528
      %5593 = vst [vmem:[%s224 + $0x78] sm:$0xf] %v5529
      %5594 = vst [vmem:[%s224 + $0x7c] sm:$0xf] %v5530
      %p5595 = scmp.lt.s32.totalorder %s16, 1
      %s5596 = scalar_select %p5595, %s16, 1
      %s5597 = smul.addr %s5596, 32
      %s5598 = smul.addr %s5597, 4
      %s5599 = scalar_lea.vmem %s5, %s5598
      // Predicated region
      $region41: #{c2f_lmsa_forward.4} parent=39 // pred_check
        %p5600 = pneg %p144
      $region42: #{c2f_lmsa_forward.4} parent=39 // pred_check_branch
        %5602 = sbr.rel (%p5600) target = $region44
      $region43: #{c2f_lmsa_forward.4} parent=39 // pred_region
        _
      $region44: #{c2f_lmsa_forward.4} parent=39 // pred_fallthru
        _
    $region40: #{c2f_lmsa_forward.4} parent=5 // pred_fallthru
      _
    %p5603 = scmp.le.s32.totalorder 2, %s11
    // Predicated region
    $region45: #{c2f_lmsa_forward.4} parent=5 // pred_check
      %p5604 = pneg %p5603
    $region46: #{c2f_lmsa_forward.4} parent=5 // pred_check_branch
      %5606 = sbr.rel (%p5604) target = $region48
    $region47: #{c2f_lmsa_forward.4} parent=5 // pred_region
      %s5607 = ssub.s32 %s11, 2
      // Predicated region
      $region49: #{c2f_lmsa_forward.4} parent=47 // pred_check
        %p5608 = pneg %p150
      $region50: #{c2f_lmsa_forward.4} parent=47 // pred_check_branch
        %5610 = sbr.rel (%p5608) target = $region52
      $region51: #{c2f_lmsa_forward.4} parent=47 // pred_region
        %p5611 = scmp.lt.s32.totalorder %s17, 1
        %s5612 = scalar_select %p5611, %s17, 1
        %s5613 = smul.addr %s5612, 32
        %s5614 = smul.addr %s5613, 4
        %s5615 = scalar_lea.vmem %s5, %s5614
      $region52: #{c2f_lmsa_forward.4} parent=47 // pred_fallthru
        _
    $region48: #{c2f_lmsa_forward.4} parent=5 // pred_fallthru
      _
  $region6: #{c2f_lmsa_forward.4} parent=0 // loop_footer
    %s15 = sadd.s32 1, %s11
  $region7: #{c2f_lmsa_forward.4} parent=0 // loop_footer_branch
    %10 = sbr.rel target = $region3
  $region8: #{c2f_lmsa_forward.4} parent=0 // loop_exit
    _

</llo_original>
